<compile_context>
chip_gen: v6e
topology: v6e:2x2x1
jax: 0.10.0
libtpu: 0.0.40
codegen_flags: <defaults>
</compile_context>

<pallas_src>
import math

import jax
import jax.numpy as jnp
from jax import lax
from jax.experimental import pallas as pl
from jax.experimental.pallas import tpu as pltpu

NHEAD = 4
LN_EPS = 1e-5

# Row indices inside the packed (17, d) small-vector array.
(VD_E_OUT_B, VD_E_LN1_W, VD_E_LN1_B, VD_E_L2_B, VD_E_LN2_W, VD_E_LN2_B,
 VD_TP_B, VD_DSA_BV, VD_DSA_BO, VD_D_LN1_W, VD_D_LN1_B, VD_DCA_OUT_B,
 VD_D_LN2_W, VD_D_LN2_B, VD_D_L2_B, VD_D_LN3_W, VD_D_LN3_B) = range(17)

PARAM_ORDER = [
    # encoder layer (self-attn, ln1, ffn, ln2)
    "e_in_w", "e_in_b", "e_out_w", "e_out_b", "e_ln1_w", "e_ln1_b",
    "e_l1_w", "e_l1_b", "e_l2_w", "e_l2_b", "e_ln2_w", "e_ln2_b",
    # text projection
    "tp_w", "tp_b",
    # decoder layer (self-attn, ln1, cross-attn, ln2, ffn, ln3)
    "dsa_in_w", "dsa_in_b", "dsa_out_w", "dsa_out_b", "d_ln1_w", "d_ln1_b",
    "dca_in_w", "dca_in_b", "dca_out_w", "dca_out_b", "d_ln2_w", "d_ln2_b",
    "d_l1_w", "d_l1_b", "d_l2_w", "d_l2_b", "d_ln3_w", "d_ln3_b",
]

PACKED_ORDER = ["attn_wqkv", "attn_wo", "attn_bqkv", "ffn_w1", "ffn_w2",
                "tp_wT", "dsa_w", "vec_d", "vec_ff"]


# ----------------------------------------------------------------------------
# Pallas kernel
# ----------------------------------------------------------------------------
def _fwd_kernel(obj_ref, txt_ref, wqkv_ref, wo_ref, bqkv_ref, w1_ref, w2_ref,
                tpw_ref, dsaw_ref, vecd_ref, vecff_ref, out_ref, attn_ref):
    obj = obj_ref[...]                        # (N, d)
    txt = txt_ref[...]                        # (1, d_txt)
    bqkv = bqkv_ref[...]                      # (24, hd)   per-head q/k/v biases
    vd = vecd_ref[...]                        # (17, d)    packed small vectors
    vff = vecff_ref[...]                      # (2, d_ff)  FFN first-layer biases

    def vrow(i):                              # (1, d) slice of the packed vectors
        return vd[i:i + 1, :]

    def layer_norm(x, wi, bi):
        mu = jnp.mean(x, axis=-1, keepdims=True)
        var = jnp.mean(jnp.square(x - mu), axis=-1, keepdims=True)
        return (x - mu) * lax.rsqrt(var + LN_EPS) * vrow(wi) + vrow(bi)

    def attention(q_in, kv_in, layer, out_b_row, need_attn):
        """Multi-head attention; head axis is a leading (ref) axis, no lane slices."""
        d = q_in.shape[-1]
        hd = d // NHEAD
        scale = 1.0 / math.sqrt(hd)
        out = jnp.zeros((q_in.shape[0], d), jnp.float32) + vrow(out_b_row)
        attn_sum = (jnp.zeros((q_in.shape[0], kv_in.shape[0]), jnp.float32)
                    if need_attn else None)
        base = layer * 3 * NHEAD
        for h in range(NHEAD):
            rq, rk, rv = base + h, base + NHEAD + h, base + 2 * NHEAD + h
            q = jnp.dot(q_in, wqkv_ref[rq],
                        preferred_element_type=jnp.float32) + bqkv[rq:rq + 1]
            k = jnp.dot(kv_in, wqkv_ref[rk],
                        preferred_element_type=jnp.float32) + bqkv[rk:rk + 1]
            v = jnp.dot(kv_in, wqkv_ref[rv],
                        preferred_element_type=jnp.float32) + bqkv[rv:rv + 1]
            # scores: contract the head dim of q and k (no explicit transpose)
            s = lax.dot_general(q, k, (((1,), (1,)), ((), ())),
                                preferred_element_type=jnp.float32) * scale
            s = s - jnp.max(s, axis=-1, keepdims=True)
            e = jnp.exp(s)
            a = e * pl.reciprocal(jnp.sum(e, axis=-1, keepdims=True), approx=True)
            if need_attn:
                attn_sum = attn_sum + a
            o = jnp.dot(a, v, preferred_element_type=jnp.float32)        # (Lq, hd)
            out = out + jnp.dot(o, wo_ref[layer * NHEAD + h],
                                preferred_element_type=jnp.float32)      # (Lq, d)
        if need_attn:
            return out, attn_sum * (1.0 / NHEAD)
        return out, None

    def ffn(x, layer, b2_row):
        h = jnp.dot(x, w1_ref[layer],
                    preferred_element_type=jnp.float32) + vff[layer:layer + 1, :]
        h = jnp.maximum(h, 0.0)
        return jnp.dot(h, w2_ref[layer],
                       preferred_element_type=jnp.float32) + vrow(b2_row)

    # ---- obj_encoder: 1x TransformerEncoderLayer (post-norm, ReLU) ----
    x = obj
    sa, _ = attention(x, x, layer=0, out_b_row=VD_E_OUT_B, need_attn=False)
    x = layer_norm(x + sa, VD_E_LN1_W, VD_E_LN1_B)
    x = layer_norm(x + ffn(x, 0, VD_E_L2_B), VD_E_LN2_W, VD_E_LN2_B)
    mem = x                                                   # (N, d)

    # ---- text_proj ----
    q = jnp.dot(txt, tpw_ref[...],
                preferred_element_type=jnp.float32) + vrow(VD_TP_B)       # (1, d)

    # ---- decoder self-attention: Lq = Lk = 1 -> softmax == 1 (exact) ----
    v = jnp.dot(q, dsaw_ref[0], preferred_element_type=jnp.float32) + vrow(VD_DSA_BV)
    sa = jnp.dot(v, dsaw_ref[1], preferred_element_type=jnp.float32) + vrow(VD_DSA_BO)
    q = layer_norm(q + sa, VD_D_LN1_W, VD_D_LN1_B)

    # ---- cross attention (weights returned) ----
    ca, attn = attention(q, mem, layer=1, out_b_row=VD_DCA_OUT_B, need_attn=True)
    q = layer_norm(q + ca, VD_D_LN2_W, VD_D_LN2_B)

    # ---- decoder FFN ----
    q = layer_norm(q + ffn(q, 1, VD_D_L2_B), VD_D_LN3_W, VD_D_LN3_B)

    out_ref[...] = q
    attn_ref[...] = attn


# ----------------------------------------------------------------------------
# Host-side parameter repacking (done once, outside the per-call hot path)
# ----------------------------------------------------------------------------
def pack_params(p):
    d = p["e_out_w"].shape[0]
    hd = d // NHEAD

    def qkv_heads(in_w):          # (3d, d) -> (3*NHEAD, d, hd), head on lead axis
        return in_w.reshape(3, NHEAD, hd, d).transpose(0, 1, 3, 2).reshape(
            3 * NHEAD, d, hd)

    def out_heads(out_w):         # (d, d) -> (NHEAD, hd, d)
        return out_w.T.reshape(NHEAD, hd, d)

    attn_wqkv = jnp.concatenate([qkv_heads(p["e_in_w"]),
                                 qkv_heads(p["dca_in_w"])], axis=0)   # (24, d, hd)
    attn_wo = jnp.concatenate([out_heads(p["e_out_w"]),
                               out_heads(p["dca_out_w"])], axis=0)    # (8, hd, d)
    attn_bqkv = jnp.concatenate([p["e_in_b"].reshape(3 * NHEAD, hd),
                                 p["dca_in_b"].reshape(3 * NHEAD, hd)], axis=0)
    ffn_w1 = jnp.stack([p["e_l1_w"].T, p["d_l1_w"].T])                # (2, d, d_ff)
    ffn_w2 = jnp.stack([p["e_l2_w"].T, p["d_l2_w"].T])                # (2, d_ff, d)
    vec_ff = jnp.stack([p["e_l1_b"], p["d_l1_b"]])                    # (2, d_ff)
    tp_wT = p["tp_w"].T                                               # (d_txt, d)
    # Decoder self-attention only needs V and output projections (softmax == 1).
    dsa_w = jnp.stack([p["dsa_in_w"][2 * d:].T, p["dsa_out_w"].T])    # (2, d, d)
    dsa_bv = p["dsa_in_b"][2 * d:]

    vec_d = jnp.stack([
        p["e_out_b"], p["e_ln1_w"], p["e_ln1_b"], p["e_l2_b"],
        p["e_ln2_w"], p["e_ln2_b"], p["tp_b"], dsa_bv, p["dsa_out_b"],
        p["d_ln1_w"], p["d_ln1_b"], p["dca_out_b"], p["d_ln2_w"], p["d_ln2_b"],
        p["d_l2_b"], p["d_ln3_w"], p["d_ln3_b"],
    ])                                                                # (17, d)

    packed = dict(attn_wqkv=attn_wqkv, attn_wo=attn_wo, attn_bqkv=attn_bqkv,
                  ffn_w1=ffn_w1, ffn_w2=ffn_w2, tp_wT=tp_wT, dsa_w=dsa_w,
                  vec_d=vec_d, vec_ff=vec_ff)
    return {k: v.astype(jnp.float32) for k, v in packed.items()}


def unified_spatial_cross_encoder_v2(object_feats, text_feat, packed):
    """object_feats: (N, d_obj) f32; text_feat: (d_txt,) f32; packed: pack_params(...).

    Returns (out (1, d_obj), attn_weights (1, N)) — same as the PyTorch module
    (out.squeeze(1), cross-attn weights averaged over heads, .squeeze(0)).
    """
    n, d_obj = object_feats.shape
    txt = text_feat.reshape(1, -1).astype(jnp.float32)
    inputs = [object_feats.astype(jnp.float32), txt] + [packed[k] for k in PACKED_ORDER]

    vmem = pl.BlockSpec(memory_space=pltpu.MemorySpace.VMEM)
    out, attn = pl.pallas_call(
        _fwd_kernel,
        out_shape=(jax.ShapeDtypeStruct((1, d_obj), jnp.float32),
                   jax.ShapeDtypeStruct((1, n), jnp.float32)),
        in_specs=[vmem] * len(inputs),
        out_specs=(vmem, vmem),
        compiler_params=pltpu.CompilerParams(vmem_limit_bytes=16 << 20),
    )(*inputs)
    return out, attn


# ----------------------------------------------------------------------------
# Pure-JAX reference (PyTorch-layout params, full decoder self-attn) + init
# ----------------------------------------------------------------------------
def _reference_forward(obj, txt, p):
    def layer_norm(x, w, b):
        mu = jnp.mean(x, axis=-1, keepdims=True)
        var = jnp.mean(jnp.square(x - mu), axis=-1, keepdims=True)
        return (x - mu) * lax.rsqrt(var + LN_EPS) * w + b

    def mha(q_in, k_in, v_in, in_w, in_b, out_w, out_b):
        d = q_in.shape[-1]
        hd = d // NHEAD
        scale = 1.0 / math.sqrt(hd)
        q = q_in @ in_w[:d].T + in_b[:d]
        k = k_in @ in_w[d:2 * d].T + in_b[d:2 * d]
        v = v_in @ in_w[2 * d:].T + in_b[2 * d:]
        out = jnp.zeros((q_in.shape[0], d), jnp.float32)
        attn_sum = jnp.zeros((q_in.shape[0], k_in.shape[0]), jnp.float32)
        for h in range(NHEAD):
            sl = slice(h * hd, (h + 1) * hd)
            s = (q[:, sl] @ k[:, sl].T) * scale
            s = s - jnp.max(s, axis=-1, keepdims=True)
            a = jnp.exp(s)
            a = a / jnp.sum(a, axis=-1, keepdims=True)
            attn_sum = attn_sum + a
            out = out + (a @ v[:, sl]) @ out_w[:, sl].T
        return out + out_b, attn_sum / NHEAD

    def ffn(x, w1, b1, w2, b2):
        return jnp.maximum(x @ w1.T + b1, 0.0) @ w2.T + b2

    x = obj
    sa, _ = mha(x, x, x, p["e_in_w"], p["e_in_b"], p["e_out_w"], p["e_out_b"])
    x = layer_norm(x + sa, p["e_ln1_w"], p["e_ln1_b"])
    x = layer_norm(x + ffn(x, p["e_l1_w"], p["e_l1_b"], p["e_l2_w"], p["e_l2_b"]),
                   p["e_ln2_w"], p["e_ln2_b"])
    mem = x

    q = txt @ p["tp_w"].T + p["tp_b"]

    sa, _ = mha(q, q, q, p["dsa_in_w"], p["dsa_in_b"], p["dsa_out_w"], p["dsa_out_b"])
    q = layer_norm(q + sa, p["d_ln1_w"], p["d_ln1_b"])
    ca, attn = mha(q, mem, mem, p["dca_in_w"], p["dca_in_b"],
                   p["dca_out_w"], p["dca_out_b"])
    q = layer_norm(q + ca, p["d_ln2_w"], p["d_ln2_b"])
    q = layer_norm(q + ffn(q, p["d_l1_w"], p["d_l1_b"], p["d_l2_w"], p["d_l2_b"]),
                   p["d_ln3_w"], p["d_ln3_b"])
    return q, attn


def init_params(key, d_obj, d_txt, d_ff):
    d = d_obj
    shapes = {
        "e_in_w": (3 * d, d), "e_in_b": (3 * d,),
        "e_out_w": (d, d), "e_out_b": (d,),
        "e_ln1_w": (d,), "e_ln1_b": (d,),
        "e_l1_w": (d_ff, d), "e_l1_b": (d_ff,),
        "e_l2_w": (d, d_ff), "e_l2_b": (d,),
        "e_ln2_w": (d,), "e_ln2_b": (d,),
        "tp_w": (d, d_txt), "tp_b": (d,),
        "dsa_in_w": (3 * d, d), "dsa_in_b": (3 * d,),
        "dsa_out_w": (d, d), "dsa_out_b": (d,),
        "d_ln1_w": (d,), "d_ln1_b": (d,),
        "dca_in_w": (3 * d, d), "dca_in_b": (3 * d,),
        "dca_out_w": (d, d), "dca_out_b": (d,),
        "d_ln2_w": (d,), "d_ln2_b": (d,),
        "d_l1_w": (d_ff, d), "d_l1_b": (d_ff,),
        "d_l2_w": (d, d_ff), "d_l2_b": (d,),
        "d_ln3_w": (d,), "d_ln3_b": (d,),
    }
    keys = jax.random.split(key, len(PARAM_ORDER))
    params = {}
    for name, k in zip(PARAM_ORDER, keys):
        shp = shapes[name]
        if "_ln" in name:
            # Randomized LN affine (instead of the trivial 1/0 init) so the
            # correctness check actually exercises the packed-vector indexing.
            base = 1.0 if name.endswith("_w") else 0.0
            params[name] = base + 0.1 * jax.random.normal(k, shp, jnp.float32)
        else:
            params[name] = 0.02 * jax.random.normal(k, shp, jnp.float32)
    return params


if __name__ == "__main__":
    D_OBJ, D_TXT, N, D_FF = 64, 32, 16, 2048  # D_FF = nn.TransformerEncoderLayer default

    key = jax.random.PRNGKey(0)
    k_obj, k_txt, k_par = jax.random.split(key, 3)
    object_feats = jax.random.normal(k_obj, (N, D_OBJ), jnp.float32)
    text_feat = jax.random.normal(k_txt, (D_TXT,), jnp.float32)
    params = init_params(k_par, D_OBJ, D_TXT, D_FF)

    packed = pack_params(params)           # one-time host-side weight re-layout
    out, attn = unified_spatial_cross_encoder_v2(object_feats, text_feat, packed)
    out, attn = jax.block_until_ready((out, attn))

    # Pure-JAX reference implementing the original PyTorch math / layout.
    ref_out, ref_attn = _reference_forward(object_feats, text_feat.reshape(1, -1), params)
    ref_out, ref_attn = jax.block_until_ready((ref_out, ref_attn))

    assert out.shape == (1, D_OBJ) and attn.shape == (1, N)
    assert bool(jnp.all(jnp.isfinite(out))) and bool(jnp.all(jnp.isfinite(attn)))
    assert abs(float(jnp.sum(attn)) - 1.0) < 1e-3            # softmax rows sum to 1
    assert jnp.allclose(out, ref_out, atol=5e-3, rtol=5e-3)
    assert jnp.allclose(attn, ref_attn, atol=1e-3, rtol=5e-3)

    print("KERNEL_OK")
</pallas_src>

<mosaic_0001>
module attributes {stable_mosaic.version = 11 : i64} {
  func.func @_fwd_kernel(%arg0: memref<16x64xf32, #tpu.memory_space<vmem>>, %arg1: memref<1x32xf32, #tpu.memory_space<vmem>>, %arg2: memref<24x64x16xf32, #tpu.memory_space<vmem>>, %arg3: memref<8x16x64xf32, #tpu.memory_space<vmem>>, %arg4: memref<24x16xf32, #tpu.memory_space<vmem>>, %arg5: memref<2x64x2048xf32, #tpu.memory_space<vmem>>, %arg6: memref<2x2048x64xf32, #tpu.memory_space<vmem>>, %arg7: memref<32x64xf32, #tpu.memory_space<vmem>>, %arg8: memref<2x64x64xf32, #tpu.memory_space<vmem>>, %arg9: memref<17x64xf32, #tpu.memory_space<vmem>>, %arg10: memref<2x2048xf32, #tpu.memory_space<vmem>>, %arg11: memref<1x64xf32, #tpu.memory_space<vmem>>, %arg12: memref<1x16xf32, #tpu.memory_space<vmem>>) attributes {dimension_semantics = [], scalar_prefetch = 0 : i64, scratch_operands = 0 : i64, tpu.core_type = #tpu.core_type<tc>} {
    %c0 = arith.constant 0 : index
    %c0_0 = arith.constant 0 : index
    %0 = vector.load %arg0[%c0, %c0_0] : memref<16x64xf32, #tpu.memory_space<vmem>>, vector<16x64xf32>
    %c0_1 = arith.constant 0 : index
    %c0_2 = arith.constant 0 : index
    %1 = vector.load %arg1[%c0_1, %c0_2] : memref<1x32xf32, #tpu.memory_space<vmem>>, vector<1x32xf32>
    %c0_3 = arith.constant 0 : index
    %c0_4 = arith.constant 0 : index
    %2 = vector.load %arg4[%c0_3, %c0_4] : memref<24x16xf32, #tpu.memory_space<vmem>>, vector<24x16xf32>
    %c0_5 = arith.constant 0 : index
    %c0_6 = arith.constant 0 : index
    %3 = vector.load %arg9[%c0_5, %c0_6] : memref<17x64xf32, #tpu.memory_space<vmem>>, vector<17x64xf32>
    %c0_7 = arith.constant 0 : index
    %c0_8 = arith.constant 0 : index
    %4 = vector.load %arg10[%c0_7, %c0_8] : memref<2x2048xf32, #tpu.memory_space<vmem>>, vector<2x2048xf32>
    %cst = arith.constant 0.000000e+00 : f32
    %5 = vector.broadcast %cst : f32 to vector<16x64xf32>
    %6 = vector.extract_strided_slice %3 {offsets = [0, 0], sizes = [1, 64], strides = [1, 1]} : vector<17x64xf32> to vector<1x64xf32>
    %7 = vector.broadcast %6 : vector<1x64xf32> to vector<16x64xf32>
    %8 = arith.addf %5, %7 : vector<16x64xf32>
    %c0_9 = arith.constant 0 : index
    %c0_10 = arith.constant 0 : index
    %c0_11 = arith.constant 0 : index
    %9 = vector.load %arg2[%c0_9, %c0_10, %c0_11] : memref<24x64x16xf32, #tpu.memory_space<vmem>>, vector<1x64x16xf32>
    %10 = vector.shape_cast %9 : vector<1x64x16xf32> to vector<64x16xf32>
    %cst_12 = arith.constant dense<0.000000e+00> : vector<16x16xf32>
    %11 = tpu.matmul %0, %10, %cst_12 {dimension_numbers = #tpu.dot_dimension_numbers<[1], [0], [0], [1], [0, 0, 1, 1], [], []>} : vector<16x64xf32>, vector<64x16xf32>, vector<16x16xf32> -> vector<16x16xf32>
    %12 = vector.extract_strided_slice %2 {offsets = [0, 0], sizes = [1, 16], strides = [1, 1]} : vector<24x16xf32> to vector<1x16xf32>
    %13 = vector.broadcast %12 : vector<1x16xf32> to vector<16x16xf32>
    %14 = arith.addf %11, %13 : vector<16x16xf32>
    %c4 = arith.constant 4 : index
    %c0_13 = arith.constant 0 : index
    %c0_14 = arith.constant 0 : index
    %15 = vector.load %arg2[%c4, %c0_13, %c0_14] : memref<24x64x16xf32, #tpu.memory_space<vmem>>, vector<1x64x16xf32>
    %16 = vector.shape_cast %15 : vector<1x64x16xf32> to vector<64x16xf32>
    %cst_15 = arith.constant dense<0.000000e+00> : vector<16x16xf32>
    %17 = tpu.matmul %0, %16, %cst_15 {dimension_numbers = #tpu.dot_dimension_numbers<[1], [0], [0], [1], [0, 0, 1, 1], [], []>} : vector<16x64xf32>, vector<64x16xf32>, vector<16x16xf32> -> vector<16x16xf32>
    %18 = vector.extract_strided_slice %2 {offsets = [4, 0], sizes = [1, 16], strides = [1, 1]} : vector<24x16xf32> to vector<1x16xf32>
    %19 = vector.broadcast %18 : vector<1x16xf32> to vector<16x16xf32>
    %20 = arith.addf %17, %19 : vector<16x16xf32>
    %c8 = arith.constant 8 : index
    %c0_16 = arith.constant 0 : index
    %c0_17 = arith.constant 0 : index
    %21 = vector.load %arg2[%c8, %c0_16, %c0_17] : memref<24x64x16xf32, #tpu.memory_space<vmem>>, vector<1x64x16xf32>
    %22 = vector.shape_cast %21 : vector<1x64x16xf32> to vector<64x16xf32>
    %cst_18 = arith.constant dense<0.000000e+00> : vector<16x16xf32>
    %23 = tpu.matmul %0, %22, %cst_18 {dimension_numbers = #tpu.dot_dimension_numbers<[1], [0], [0], [1], [0, 0, 1, 1], [], []>} : vector<16x64xf32>, vector<64x16xf32>, vector<16x16xf32> -> vector<16x16xf32>
    %24 = vector.extract_strided_slice %2 {offsets = [8, 0], sizes = [1, 16], strides = [1, 1]} : vector<24x16xf32> to vector<1x16xf32>
    %25 = vector.broadcast %24 : vector<1x16xf32> to vector<16x16xf32>
    %26 = arith.addf %23, %25 : vector<16x16xf32>
    %cst_19 = arith.constant dense<0.000000e+00> : vector<16x16xf32>
    %27 = tpu.matmul %14, %20, %cst_19 {dimension_numbers = #tpu.dot_dimension_numbers<[1], [1], [0], [0], [0, 0, 1, 0], [], []>} : vector<16x16xf32>, vector<16x16xf32>, vector<16x16xf32> -> vector<16x16xf32>
    %cst_20 = arith.constant 2.500000e-01 : f32
    %28 = vector.broadcast %cst_20 : f32 to vector<16x16xf32>
    %29 = arith.mulf %27, %28 : vector<16x16xf32>
    %cst_21 = arith.constant dense<0xFF800000> : vector<16xf32>
    %30 = vector.multi_reduction <maximumf>, %29, %cst_21 [1] : vector<16x16xf32> to vector<16xf32>
    %31 = vector.shape_cast %30 : vector<16xf32> to vector<16x1xf32>
    %32 = vector.broadcast %31 : vector<16x1xf32> to vector<16x16xf32>
    %33 = arith.subf %29, %32 : vector<16x16xf32>
    %34 = math.exp %33 : vector<16x16xf32>
    %cst_22 = arith.constant dense<0.000000e+00> : vector<16xf32>
    %35 = vector.multi_reduction <add>, %34, %cst_22 [1] : vector<16x16xf32> to vector<16xf32>
    %36 = vector.shape_cast %35 : vector<16xf32> to vector<16x1xf32>
    %37 = tpu.reciprocal %36 {approx = true} : vector<16x1xf32> -> vector<16x1xf32>
    %38 = vector.broadcast %37 : vector<16x1xf32> to vector<16x16xf32>
    %39 = arith.mulf %34, %38 : vector<16x16xf32>
    %cst_23 = arith.constant dense<0.000000e+00> : vector<16x16xf32>
    %40 = tpu.matmul %39, %26, %cst_23 {dimension_numbers = #tpu.dot_dimension_numbers<[1], [0], [0], [1], [0, 0, 1, 1], [], []>} : vector<16x16xf32>, vector<16x16xf32>, vector<16x16xf32> -> vector<16x16xf32>
    %c0_24 = arith.constant 0 : index
    %c0_25 = arith.constant 0 : index
    %c0_26 = arith.constant 0 : index
    %41 = vector.load %arg3[%c0_24, %c0_25, %c0_26] : memref<8x16x64xf32, #tpu.memory_space<vmem>>, vector<1x16x64xf32>
    %42 = vector.shape_cast %41 : vector<1x16x64xf32> to vector<16x64xf32>
    %cst_27 = arith.constant dense<0.000000e+00> : vector<16x64xf32>
    %43 = tpu.matmul %40, %42, %cst_27 {dimension_numbers = #tpu.dot_dimension_numbers<[1], [0], [0], [1], [0, 0, 1, 1], [], []>} : vector<16x16xf32>, vector<16x64xf32>, vector<16x64xf32> -> vector<16x64xf32>
    %44 = arith.addf %8, %43 : vector<16x64xf32>
    %c1 = arith.constant 1 : index
    %c0_28 = arith.constant 0 : index
    %c0_29 = arith.constant 0 : index
    %45 = vector.load %arg2[%c1, %c0_28, %c0_29] : memref<24x64x16xf32, #tpu.memory_space<vmem>>, vector<1x64x16xf32>
    %46 = vector.shape_cast %45 : vector<1x64x16xf32> to vector<64x16xf32>
    %cst_30 = arith.constant dense<0.000000e+00> : vector<16x16xf32>
    %47 = tpu.matmul %0, %46, %cst_30 {dimension_numbers = #tpu.dot_dimension_numbers<[1], [0], [0], [1], [0, 0, 1, 1], [], []>} : vector<16x64xf32>, vector<64x16xf32>, vector<16x16xf32> -> vector<16x16xf32>
    %48 = vector.extract_strided_slice %2 {offsets = [1, 0], sizes = [1, 16], strides = [1, 1]} : vector<24x16xf32> to vector<1x16xf32>
    %49 = vector.broadcast %48 : vector<1x16xf32> to vector<16x16xf32>
    %50 = arith.addf %47, %49 : vector<16x16xf32>
    %c5 = arith.constant 5 : index
    %c0_31 = arith.constant 0 : index
    %c0_32 = arith.constant 0 : index
    %51 = vector.load %arg2[%c5, %c0_31, %c0_32] : memref<24x64x16xf32, #tpu.memory_space<vmem>>, vector<1x64x16xf32>
    %52 = vector.shape_cast %51 : vector<1x64x16xf32> to vector<64x16xf32>
    %cst_33 = arith.constant dense<0.000000e+00> : vector<16x16xf32>
    %53 = tpu.matmul %0, %52, %cst_33 {dimension_numbers = #tpu.dot_dimension_numbers<[1], [0], [0], [1], [0, 0, 1, 1], [], []>} : vector<16x64xf32>, vector<64x16xf32>, vector<16x16xf32> -> vector<16x16xf32>
    %54 = vector.extract_strided_slice %2 {offsets = [5, 0], sizes = [1, 16], strides = [1, 1]} : vector<24x16xf32> to vector<1x16xf32>
    %55 = vector.broadcast %54 : vector<1x16xf32> to vector<16x16xf32>
    %56 = arith.addf %53, %55 : vector<16x16xf32>
    %c9 = arith.constant 9 : index
    %c0_34 = arith.constant 0 : index
    %c0_35 = arith.constant 0 : index
    %57 = vector.load %arg2[%c9, %c0_34, %c0_35] : memref<24x64x16xf32, #tpu.memory_space<vmem>>, vector<1x64x16xf32>
    %58 = vector.shape_cast %57 : vector<1x64x16xf32> to vector<64x16xf32>
    %cst_36 = arith.constant dense<0.000000e+00> : vector<16x16xf32>
    %59 = tpu.matmul %0, %58, %cst_36 {dimension_numbers = #tpu.dot_dimension_numbers<[1], [0], [0], [1], [0, 0, 1, 1], [], []>} : vector<16x64xf32>, vector<64x16xf32>, vector<16x16xf32> -> vector<16x16xf32>
    %60 = vector.extract_strided_slice %2 {offsets = [9, 0], sizes = [1, 16], strides = [1, 1]} : vector<24x16xf32> to vector<1x16xf32>
    %61 = vector.broadcast %60 : vector<1x16xf32> to vector<16x16xf32>
    %62 = arith.addf %59, %61 : vector<16x16xf32>
    %cst_37 = arith.constant dense<0.000000e+00> : vector<16x16xf32>
    %63 = tpu.matmul %50, %56, %cst_37 {dimension_numbers = #tpu.dot_dimension_numbers<[1], [1], [0], [0], [0, 0, 1, 0], [], []>} : vector<16x16xf32>, vector<16x16xf32>, vector<16x16xf32> -> vector<16x16xf32>
    %cst_38 = arith.constant 2.500000e-01 : f32
    %64 = vector.broadcast %cst_38 : f32 to vector<16x16xf32>
    %65 = arith.mulf %63, %64 : vector<16x16xf32>
    %cst_39 = arith.constant dense<0xFF800000> : vector<16xf32>
    %66 = vector.multi_reduction <maximumf>, %65, %cst_39 [1] : vector<16x16xf32> to vector<16xf32>
    %67 = vector.shape_cast %66 : vector<16xf32> to vector<16x1xf32>
    %68 = vector.broadcast %67 : vector<16x1xf32> to vector<16x16xf32>
    %69 = arith.subf %65, %68 : vector<16x16xf32>
    %70 = math.exp %69 : vector<16x16xf32>
    %cst_40 = arith.constant dense<0.000000e+00> : vector<16xf32>
    %71 = vector.multi_reduction <add>, %70, %cst_40 [1] : vector<16x16xf32> to vector<16xf32>
    %72 = vector.shape_cast %71 : vector<16xf32> to vector<16x1xf32>
    %73 = tpu.reciprocal %72 {approx = true} : vector<16x1xf32> -> vector<16x1xf32>
    %74 = vector.broadcast %73 : vector<16x1xf32> to vector<16x16xf32>
    %75 = arith.mulf %70, %74 : vector<16x16xf32>
    %cst_41 = arith.constant dense<0.000000e+00> : vector<16x16xf32>
    %76 = tpu.matmul %75, %62, %cst_41 {dimension_numbers = #tpu.dot_dimension_numbers<[1], [0], [0], [1], [0, 0, 1, 1], [], []>} : vector<16x16xf32>, vector<16x16xf32>, vector<16x16xf32> -> vector<16x16xf32>
    %c1_42 = arith.constant 1 : index
    %c0_43 = arith.constant 0 : index
    %c0_44 = arith.constant 0 : index
    %77 = vector.load %arg3[%c1_42, %c0_43, %c0_44] : memref<8x16x64xf32, #tpu.memory_space<vmem>>, vector<1x16x64xf32>
    %78 = vector.shape_cast %77 : vector<1x16x64xf32> to vector<16x64xf32>
    %cst_45 = arith.constant dense<0.000000e+00> : vector<16x64xf32>
    %79 = tpu.matmul %76, %78, %cst_45 {dimension_numbers = #tpu.dot_dimension_numbers<[1], [0], [0], [1], [0, 0, 1, 1], [], []>} : vector<16x16xf32>, vector<16x64xf32>, vector<16x64xf32> -> vector<16x64xf32>
    %80 = arith.addf %44, %79 : vector<16x64xf32>
    %c2 = arith.constant 2 : index
    %c0_46 = arith.constant 0 : index
    %c0_47 = arith.constant 0 : index
    %81 = vector.load %arg2[%c2, %c0_46, %c0_47] : memref<24x64x16xf32, #tpu.memory_space<vmem>>, vector<1x64x16xf32>
    %82 = vector.shape_cast %81 : vector<1x64x16xf32> to vector<64x16xf32>
    %cst_48 = arith.constant dense<0.000000e+00> : vector<16x16xf32>
    %83 = tpu.matmul %0, %82, %cst_48 {dimension_numbers = #tpu.dot_dimension_numbers<[1], [0], [0], [1], [0, 0, 1, 1], [], []>} : vector<16x64xf32>, vector<64x16xf32>, vector<16x16xf32> -> vector<16x16xf32>
    %84 = vector.extract_strided_slice %2 {offsets = [2, 0], sizes = [1, 16], strides = [1, 1]} : vector<24x16xf32> to vector<1x16xf32>
    %85 = vector.broadcast %84 : vector<1x16xf32> to vector<16x16xf32>
    %86 = arith.addf %83, %85 : vector<16x16xf32>
    %c6 = arith.constant 6 : index
    %c0_49 = arith.constant 0 : index
    %c0_50 = arith.constant 0 : index
    %87 = vector.load %arg2[%c6, %c0_49, %c0_50] : memref<24x64x16xf32, #tpu.memory_space<vmem>>, vector<1x64x16xf32>
    %88 = vector.shape_cast %87 : vector<1x64x16xf32> to vector<64x16xf32>
    %cst_51 = arith.constant dense<0.000000e+00> : vector<16x16xf32>
    %89 = tpu.matmul %0, %88, %cst_51 {dimension_numbers = #tpu.dot_dimension_numbers<[1], [0], [0], [1], [0, 0, 1, 1], [], []>} : vector<16x64xf32>, vector<64x16xf32>, vector<16x16xf32> -> vector<16x16xf32>
    %90 = vector.extract_strided_slice %2 {offsets = [6, 0], sizes = [1, 16], strides = [1, 1]} : vector<24x16xf32> to vector<1x16xf32>
    %91 = vector.broadcast %90 : vector<1x16xf32> to vector<16x16xf32>
    %92 = arith.addf %89, %91 : vector<16x16xf32>
    %c10 = arith.constant 10 : index
    %c0_52 = arith.constant 0 : index
    %c0_53 = arith.constant 0 : index
    %93 = vector.load %arg2[%c10, %c0_52, %c0_53] : memref<24x64x16xf32, #tpu.memory_space<vmem>>, vector<1x64x16xf32>
    %94 = vector.shape_cast %93 : vector<1x64x16xf32> to vector<64x16xf32>
    %cst_54 = arith.constant dense<0.000000e+00> : vector<16x16xf32>
    %95 = tpu.matmul %0, %94, %cst_54 {dimension_numbers = #tpu.dot_dimension_numbers<[1], [0], [0], [1], [0, 0, 1, 1], [], []>} : vector<16x64xf32>, vector<64x16xf32>, vector<16x16xf32> -> vector<16x16xf32>
    %96 = vector.extract_strided_slice %2 {offsets = [10, 0], sizes = [1, 16], strides = [1, 1]} : vector<24x16xf32> to vector<1x16xf32>
    %97 = vector.broadcast %96 : vector<1x16xf32> to vector<16x16xf32>
    %98 = arith.addf %95, %97 : vector<16x16xf32>
    %cst_55 = arith.constant dense<0.000000e+00> : vector<16x16xf32>
    %99 = tpu.matmul %86, %92, %cst_55 {dimension_numbers = #tpu.dot_dimension_numbers<[1], [1], [0], [0], [0, 0, 1, 0], [], []>} : vector<16x16xf32>, vector<16x16xf32>, vector<16x16xf32> -> vector<16x16xf32>
    %cst_56 = arith.constant 2.500000e-01 : f32
    %100 = vector.broadcast %cst_56 : f32 to vector<16x16xf32>
    %101 = arith.mulf %99, %100 : vector<16x16xf32>
    %cst_57 = arith.constant dense<0xFF800000> : vector<16xf32>
    %102 = vector.multi_reduction <maximumf>, %101, %cst_57 [1] : vector<16x16xf32> to vector<16xf32>
    %103 = vector.shape_cast %102 : vector<16xf32> to vector<16x1xf32>
    %104 = vector.broadcast %103 : vector<16x1xf32> to vector<16x16xf32>
    %105 = arith.subf %101, %104 : vector<16x16xf32>
    %106 = math.exp %105 : vector<16x16xf32>
    %cst_58 = arith.constant dense<0.000000e+00> : vector<16xf32>
    %107 = vector.multi_reduction <add>, %106, %cst_58 [1] : vector<16x16xf32> to vector<16xf32>
    %108 = vector.shape_cast %107 : vector<16xf32> to vector<16x1xf32>
    %109 = tpu.reciprocal %108 {approx = true} : vector<16x1xf32> -> vector<16x1xf32>
    %110 = vector.broadcast %109 : vector<16x1xf32> to vector<16x16xf32>
    %111 = arith.mulf %106, %110 : vector<16x16xf32>
    %cst_59 = arith.constant dense<0.000000e+00> : vector<16x16xf32>
    %112 = tpu.matmul %111, %98, %cst_59 {dimension_numbers = #tpu.dot_dimension_numbers<[1], [0], [0], [1], [0, 0, 1, 1], [], []>} : vector<16x16xf32>, vector<16x16xf32>, vector<16x16xf32> -> vector<16x16xf32>
    %c2_60 = arith.constant 2 : index
    %c0_61 = arith.constant 0 : index
    %c0_62 = arith.constant 0 : index
    %113 = vector.load %arg3[%c2_60, %c0_61, %c0_62] : memref<8x16x64xf32, #tpu.memory_space<vmem>>, vector<1x16x64xf32>
    %114 = vector.shape_cast %113 : vector<1x16x64xf32> to vector<16x64xf32>
    %cst_63 = arith.constant dense<0.000000e+00> : vector<16x64xf32>
    %115 = tpu.matmul %112, %114, %cst_63 {dimension_numbers = #tpu.dot_dimension_numbers<[1], [0], [0], [1], [0, 0, 1, 1], [], []>} : vector<16x16xf32>, vector<16x64xf32>, vector<16x64xf32> -> vector<16x64xf32>
    %116 = arith.addf %80, %115 : vector<16x64xf32>
    %c3 = arith.constant 3 : index
    %c0_64 = arith.constant 0 : index
    %c0_65 = arith.constant 0 : index
    %117 = vector.load %arg2[%c3, %c0_64, %c0_65] : memref<24x64x16xf32, #tpu.memory_space<vmem>>, vector<1x64x16xf32>
    %118 = vector.shape_cast %117 : vector<1x64x16xf32> to vector<64x16xf32>
    %cst_66 = arith.constant dense<0.000000e+00> : vector<16x16xf32>
    %119 = tpu.matmul %0, %118, %cst_66 {dimension_numbers = #tpu.dot_dimension_numbers<[1], [0], [0], [1], [0, 0, 1, 1], [], []>} : vector<16x64xf32>, vector<64x16xf32>, vector<16x16xf32> -> vector<16x16xf32>
    %120 = vector.extract_strided_slice %2 {offsets = [3, 0], sizes = [1, 16], strides = [1, 1]} : vector<24x16xf32> to vector<1x16xf32>
    %121 = vector.broadcast %120 : vector<1x16xf32> to vector<16x16xf32>
    %122 = arith.addf %119, %121 : vector<16x16xf32>
    %c7 = arith.constant 7 : index
    %c0_67 = arith.constant 0 : index
    %c0_68 = arith.constant 0 : index
    %123 = vector.load %arg2[%c7, %c0_67, %c0_68] : memref<24x64x16xf32, #tpu.memory_space<vmem>>, vector<1x64x16xf32>
    %124 = vector.shape_cast %123 : vector<1x64x16xf32> to vector<64x16xf32>
    %cst_69 = arith.constant dense<0.000000e+00> : vector<16x16xf32>
    %125 = tpu.matmul %0, %124, %cst_69 {dimension_numbers = #tpu.dot_dimension_numbers<[1], [0], [0], [1], [0, 0, 1, 1], [], []>} : vector<16x64xf32>, vector<64x16xf32>, vector<16x16xf32> -> vector<16x16xf32>
    %126 = vector.extract_strided_slice %2 {offsets = [7, 0], sizes = [1, 16], strides = [1, 1]} : vector<24x16xf32> to vector<1x16xf32>
    %127 = vector.broadcast %126 : vector<1x16xf32> to vector<16x16xf32>
    %128 = arith.addf %125, %127 : vector<16x16xf32>
    %c11 = arith.constant 11 : index
    %c0_70 = arith.constant 0 : index
    %c0_71 = arith.constant 0 : index
    %129 = vector.load %arg2[%c11, %c0_70, %c0_71] : memref<24x64x16xf32, #tpu.memory_space<vmem>>, vector<1x64x16xf32>
    %130 = vector.shape_cast %129 : vector<1x64x16xf32> to vector<64x16xf32>
    %cst_72 = arith.constant dense<0.000000e+00> : vector<16x16xf32>
    %131 = tpu.matmul %0, %130, %cst_72 {dimension_numbers = #tpu.dot_dimension_numbers<[1], [0], [0], [1], [0, 0, 1, 1], [], []>} : vector<16x64xf32>, vector<64x16xf32>, vector<16x16xf32> -> vector<16x16xf32>
    %132 = vector.extract_strided_slice %2 {offsets = [11, 0], sizes = [1, 16], strides = [1, 1]} : vector<24x16xf32> to vector<1x16xf32>
    %133 = vector.broadcast %132 : vector<1x16xf32> to vector<16x16xf32>
    %134 = arith.addf %131, %133 : vector<16x16xf32>
    %cst_73 = arith.constant dense<0.000000e+00> : vector<16x16xf32>
    %135 = tpu.matmul %122, %128, %cst_73 {dimension_numbers = #tpu.dot_dimension_numbers<[1], [1], [0], [0], [0, 0, 1, 0], [], []>} : vector<16x16xf32>, vector<16x16xf32>, vector<16x16xf32> -> vector<16x16xf32>
    %cst_74 = arith.constant 2.500000e-01 : f32
    %136 = vector.broadcast %cst_74 : f32 to vector<16x16xf32>
    %137 = arith.mulf %135, %136 : vector<16x16xf32>
    %cst_75 = arith.constant dense<0xFF800000> : vector<16xf32>
    %138 = vector.multi_reduction <maximumf>, %137, %cst_75 [1] : vector<16x16xf32> to vector<16xf32>
    %139 = vector.shape_cast %138 : vector<16xf32> to vector<16x1xf32>
    %140 = vector.broadcast %139 : vector<16x1xf32> to vector<16x16xf32>
    %141 = arith.subf %137, %140 : vector<16x16xf32>
    %142 = math.exp %141 : vector<16x16xf32>
    %cst_76 = arith.constant dense<0.000000e+00> : vector<16xf32>
    %143 = vector.multi_reduction <add>, %142, %cst_76 [1] : vector<16x16xf32> to vector<16xf32>
    %144 = vector.shape_cast %143 : vector<16xf32> to vector<16x1xf32>
    %145 = tpu.reciprocal %144 {approx = true} : vector<16x1xf32> -> vector<16x1xf32>
    %146 = vector.broadcast %145 : vector<16x1xf32> to vector<16x16xf32>
    %147 = arith.mulf %142, %146 : vector<16x16xf32>
    %cst_77 = arith.constant dense<0.000000e+00> : vector<16x16xf32>
    %148 = tpu.matmul %147, %134, %cst_77 {dimension_numbers = #tpu.dot_dimension_numbers<[1], [0], [0], [1], [0, 0, 1, 1], [], []>} : vector<16x16xf32>, vector<16x16xf32>, vector<16x16xf32> -> vector<16x16xf32>
    %c3_78 = arith.constant 3 : index
    %c0_79 = arith.constant 0 : index
    %c0_80 = arith.constant 0 : index
    %149 = vector.load %arg3[%c3_78, %c0_79, %c0_80] : memref<8x16x64xf32, #tpu.memory_space<vmem>>, vector<1x16x64xf32>
    %150 = vector.shape_cast %149 : vector<1x16x64xf32> to vector<16x64xf32>
    %cst_81 = arith.constant dense<0.000000e+00> : vector<16x64xf32>
    %151 = tpu.matmul %148, %150, %cst_81 {dimension_numbers = #tpu.dot_dimension_numbers<[1], [0], [0], [1], [0, 0, 1, 1], [], []>} : vector<16x16xf32>, vector<16x64xf32>, vector<16x64xf32> -> vector<16x64xf32>
    %152 = arith.addf %116, %151 : vector<16x64xf32>
    %153 = arith.addf %0, %152 : vector<16x64xf32>
    %cst_82 = arith.constant dense<0.000000e+00> : vector<16xf32>
    %154 = vector.multi_reduction <add>, %153, %cst_82 [1] : vector<16x64xf32> to vector<16xf32>
    %155 = vector.shape_cast %154 : vector<16xf32> to vector<16x1xf32>
    %cst_83 = arith.constant 6.400000e+01 : f32
    %156 = vector.broadcast %cst_83 : f32 to vector<16x1xf32>
    %157 = arith.divf %155, %156 : vector<16x1xf32>
    %158 = vector.broadcast %157 : vector<16x1xf32> to vector<16x64xf32>
    %159 = arith.subf %153, %158 : vector<16x64xf32>
    %160 = arith.mulf %159, %159 : vector<16x64xf32>
    %cst_84 = arith.constant dense<0.000000e+00> : vector<16xf32>
    %161 = vector.multi_reduction <add>, %160, %cst_84 [1] : vector<16x64xf32> to vector<16xf32>
    %162 = vector.shape_cast %161 : vector<16xf32> to vector<16x1xf32>
    %cst_85 = arith.constant 6.400000e+01 : f32
    %163 = vector.broadcast %cst_85 : f32 to vector<16x1xf32>
    %164 = arith.divf %162, %163 : vector<16x1xf32>
    %165 = vector.broadcast %157 : vector<16x1xf32> to vector<16x64xf32>
    %166 = arith.subf %153, %165 : vector<16x64xf32>
    %cst_86 = arith.constant 9.99999974E-6 : f32
    %167 = vector.broadcast %cst_86 : f32 to vector<16x1xf32>
    %168 = arith.addf %164, %167 : vector<16x1xf32>
    %169 = math.rsqrt %168 : vector<16x1xf32>
    %170 = vector.broadcast %169 : vector<16x1xf32> to vector<16x64xf32>
    %171 = arith.mulf %166, %170 : vector<16x64xf32>
    %172 = vector.extract_strided_slice %3 {offsets = [1, 0], sizes = [1, 64], strides = [1, 1]} : vector<17x64xf32> to vector<1x64xf32>
    %173 = vector.broadcast %172 : vector<1x64xf32> to vector<16x64xf32>
    %174 = arith.mulf %171, %173 : vector<16x64xf32>
    %175 = vector.extract_strided_slice %3 {offsets = [2, 0], sizes = [1, 64], strides = [1, 1]} : vector<17x64xf32> to vector<1x64xf32>
    %176 = vector.broadcast %175 : vector<1x64xf32> to vector<16x64xf32>
    %177 = arith.addf %174, %176 : vector<16x64xf32>
    %c0_87 = arith.constant 0 : index
    %c0_88 = arith.constant 0 : index
    %c0_89 = arith.constant 0 : index
    %178 = vector.load %arg5[%c0_87, %c0_88, %c0_89] : memref<2x64x2048xf32, #tpu.memory_space<vmem>>, vector<1x64x2048xf32>
    %179 = vector.shape_cast %178 : vector<1x64x2048xf32> to vector<64x2048xf32>
    %cst_90 = arith.constant dense<0.000000e+00> : vector<16x2048xf32>
    %180 = tpu.matmul %177, %179, %cst_90 {dimension_numbers = #tpu.dot_dimension_numbers<[1], [0], [0], [1], [0, 0, 1, 1], [], []>} : vector<16x64xf32>, vector<64x2048xf32>, vector<16x2048xf32> -> vector<16x2048xf32>
    %181 = vector.extract_strided_slice %4 {offsets = [0, 0], sizes = [1, 2048], strides = [1, 1]} : vector<2x2048xf32> to vector<1x2048xf32>
    %182 = vector.broadcast %181 : vector<1x2048xf32> to vector<16x2048xf32>
    %183 = arith.addf %180, %182 : vector<16x2048xf32>
    %cst_91 = arith.constant 0.000000e+00 : f32
    %184 = vector.broadcast %cst_91 : f32 to vector<16x2048xf32>
    %185 = arith.maximumf %183, %184 : vector<16x2048xf32>
    %c0_92 = arith.constant 0 : index
    %c0_93 = arith.constant 0 : index
    %c0_94 = arith.constant 0 : index
    %186 = vector.load %arg6[%c0_92, %c0_93, %c0_94] : memref<2x2048x64xf32, #tpu.memory_space<vmem>>, vector<1x2048x64xf32>
    %187 = vector.shape_cast %186 : vector<1x2048x64xf32> to vector<2048x64xf32>
    %cst_95 = arith.constant dense<0.000000e+00> : vector<16x64xf32>
    %188 = tpu.matmul %185, %187, %cst_95 {dimension_numbers = #tpu.dot_dimension_numbers<[1], [0], [0], [1], [0, 0, 1, 1], [], []>} : vector<16x2048xf32>, vector<2048x64xf32>, vector<16x64xf32> -> vector<16x64xf32>
    %189 = vector.extract_strided_slice %3 {offsets = [3, 0], sizes = [1, 64], strides = [1, 1]} : vector<17x64xf32> to vector<1x64xf32>
    %190 = vector.broadcast %189 : vector<1x64xf32> to vector<16x64xf32>
    %191 = arith.addf %188, %190 : vector<16x64xf32>
    %192 = arith.addf %177, %191 : vector<16x64xf32>
    %cst_96 = arith.constant dense<0.000000e+00> : vector<16xf32>
    %193 = vector.multi_reduction <add>, %192, %cst_96 [1] : vector<16x64xf32> to vector<16xf32>
    %194 = vector.shape_cast %193 : vector<16xf32> to vector<16x1xf32>
    %cst_97 = arith.constant 6.400000e+01 : f32
    %195 = vector.broadcast %cst_97 : f32 to vector<16x1xf32>
    %196 = arith.divf %194, %195 : vector<16x1xf32>
    %197 = vector.broadcast %196 : vector<16x1xf32> to vector<16x64xf32>
    %198 = arith.subf %192, %197 : vector<16x64xf32>
    %199 = arith.mulf %198, %198 : vector<16x64xf32>
    %cst_98 = arith.constant dense<0.000000e+00> : vector<16xf32>
    %200 = vector.multi_reduction <add>, %199, %cst_98 [1] : vector<16x64xf32> to vector<16xf32>
    %201 = vector.shape_cast %200 : vector<16xf32> to vector<16x1xf32>
    %cst_99 = arith.constant 6.400000e+01 : f32
    %202 = vector.broadcast %cst_99 : f32 to vector<16x1xf32>
    %203 = arith.divf %201, %202 : vector<16x1xf32>
    %204 = vector.broadcast %196 : vector<16x1xf32> to vector<16x64xf32>
    %205 = arith.subf %192, %204 : vector<16x64xf32>
    %cst_100 = arith.constant 9.99999974E-6 : f32
    %206 = vector.broadcast %cst_100 : f32 to vector<16x1xf32>
    %207 = arith.addf %203, %206 : vector<16x1xf32>
    %208 = math.rsqrt %207 : vector<16x1xf32>
    %209 = vector.broadcast %208 : vector<16x1xf32> to vector<16x64xf32>
    %210 = arith.mulf %205, %209 : vector<16x64xf32>
    %211 = vector.extract_strided_slice %3 {offsets = [4, 0], sizes = [1, 64], strides = [1, 1]} : vector<17x64xf32> to vector<1x64xf32>
    %212 = vector.broadcast %211 : vector<1x64xf32> to vector<16x64xf32>
    %213 = arith.mulf %210, %212 : vector<16x64xf32>
    %214 = vector.extract_strided_slice %3 {offsets = [5, 0], sizes = [1, 64], strides = [1, 1]} : vector<17x64xf32> to vector<1x64xf32>
    %215 = vector.broadcast %214 : vector<1x64xf32> to vector<16x64xf32>
    %216 = arith.addf %213, %215 : vector<16x64xf32>
    %c0_101 = arith.constant 0 : index
    %c0_102 = arith.constant 0 : index
    %217 = vector.load %arg7[%c0_101, %c0_102] : memref<32x64xf32, #tpu.memory_space<vmem>>, vector<32x64xf32>
    %cst_103 = arith.constant dense<0.000000e+00> : vector<1x64xf32>
    %218 = tpu.matmul %1, %217, %cst_103 {dimension_numbers = #tpu.dot_dimension_numbers<[1], [0], [0], [1], [0, 0, 1, 1], [], []>} : vector<1x32xf32>, vector<32x64xf32>, vector<1x64xf32> -> vector<1x64xf32>
    %219 = vector.extract_strided_slice %3 {offsets = [6, 0], sizes = [1, 64], strides = [1, 1]} : vector<17x64xf32> to vector<1x64xf32>
    %220 = arith.addf %218, %219 : vector<1x64xf32>
    %c0_104 = arith.constant 0 : index
    %c0_105 = arith.constant 0 : index
    %c0_106 = arith.constant 0 : index
    %221 = vector.load %arg8[%c0_104, %c0_105, %c0_106] : memref<2x64x64xf32, #tpu.memory_space<vmem>>, vector<1x64x64xf32>
    %222 = vector.shape_cast %221 : vector<1x64x64xf32> to vector<64x64xf32>
    %cst_107 = arith.constant dense<0.000000e+00> : vector<1x64xf32>
    %223 = tpu.matmul %220, %222, %cst_107 {dimension_numbers = #tpu.dot_dimension_numbers<[1], [0], [0], [1], [0, 0, 1, 1], [], []>} : vector<1x64xf32>, vector<64x64xf32>, vector<1x64xf32> -> vector<1x64xf32>
    %224 = vector.extract_strided_slice %3 {offsets = [7, 0], sizes = [1, 64], strides = [1, 1]} : vector<17x64xf32> to vector<1x64xf32>
    %225 = arith.addf %223, %224 : vector<1x64xf32>
    %c1_108 = arith.constant 1 : index
    %c0_109 = arith.constant 0 : index
    %c0_110 = arith.constant 0 : index
    %226 = vector.load %arg8[%c1_108, %c0_109, %c0_110] : memref<2x64x64xf32, #tpu.memory_space<vmem>>, vector<1x64x64xf32>
    %227 = vector.shape_cast %226 : vector<1x64x64xf32> to vector<64x64xf32>
    %cst_111 = arith.constant dense<0.000000e+00> : vector<1x64xf32>
    %228 = tpu.matmul %225, %227, %cst_111 {dimension_numbers = #tpu.dot_dimension_numbers<[1], [0], [0], [1], [0, 0, 1, 1], [], []>} : vector<1x64xf32>, vector<64x64xf32>, vector<1x64xf32> -> vector<1x64xf32>
    %229 = vector.extract_strided_slice %3 {offsets = [8, 0], sizes = [1, 64], strides = [1, 1]} : vector<17x64xf32> to vector<1x64xf32>
    %230 = arith.addf %228, %229 : vector<1x64xf32>
    %231 = arith.addf %220, %230 : vector<1x64xf32>
    %cst_112 = arith.constant dense<0.000000e+00> : vector<1xf32>
    %232 = vector.multi_reduction <add>, %231, %cst_112 [1] : vector<1x64xf32> to vector<1xf32>
    %233 = vector.shape_cast %232 : vector<1xf32> to vector<1x1xf32>
    %cst_113 = arith.constant 6.400000e+01 : f32
    %234 = vector.broadcast %cst_113 : f32 to vector<1x1xf32>
    %235 = arith.divf %233, %234 : vector<1x1xf32>
    %236 = vector.broadcast %235 : vector<1x1xf32> to vector<1x64xf32>
    %237 = arith.subf %231, %236 : vector<1x64xf32>
    %238 = arith.mulf %237, %237 : vector<1x64xf32>
    %cst_114 = arith.constant dense<0.000000e+00> : vector<1xf32>
    %239 = vector.multi_reduction <add>, %238, %cst_114 [1] : vector<1x64xf32> to vector<1xf32>
    %240 = vector.shape_cast %239 : vector<1xf32> to vector<1x1xf32>
    %cst_115 = arith.constant 6.400000e+01 : f32
    %241 = vector.broadcast %cst_115 : f32 to vector<1x1xf32>
    %242 = arith.divf %240, %241 : vector<1x1xf32>
    %243 = vector.broadcast %235 : vector<1x1xf32> to vector<1x64xf32>
    %244 = arith.subf %231, %243 : vector<1x64xf32>
    %cst_116 = arith.constant 9.99999974E-6 : f32
    %245 = vector.broadcast %cst_116 : f32 to vector<1x1xf32>
    %246 = arith.addf %242, %245 : vector<1x1xf32>
    %247 = math.rsqrt %246 : vector<1x1xf32>
    %248 = vector.broadcast %247 : vector<1x1xf32> to vector<1x64xf32>
    %249 = arith.mulf %244, %248 : vector<1x64xf32>
    %250 = vector.extract_strided_slice %3 {offsets = [9, 0], sizes = [1, 64], strides = [1, 1]} : vector<17x64xf32> to vector<1x64xf32>
    %251 = arith.mulf %249, %250 : vector<1x64xf32>
    %252 = vector.extract_strided_slice %3 {offsets = [10, 0], sizes = [1, 64], strides = [1, 1]} : vector<17x64xf32> to vector<1x64xf32>
    %253 = arith.addf %251, %252 : vector<1x64xf32>
    %cst_117 = arith.constant 0.000000e+00 : f32
    %254 = vector.broadcast %cst_117 : f32 to vector<1x64xf32>
    %255 = vector.extract_strided_slice %3 {offsets = [11, 0], sizes = [1, 64], strides = [1, 1]} : vector<17x64xf32> to vector<1x64xf32>
    %256 = arith.addf %254, %255 : vector<1x64xf32>
    %cst_118 = arith.constant 0.000000e+00 : f32
    %257 = vector.broadcast %cst_118 : f32 to vector<1x16xf32>
    %c12 = arith.constant 12 : index
    %c0_119 = arith.constant 0 : index
    %c0_120 = arith.constant 0 : index
    %258 = vector.load %arg2[%c12, %c0_119, %c0_120] : memref<24x64x16xf32, #tpu.memory_space<vmem>>, vector<1x64x16xf32>
    %259 = vector.shape_cast %258 : vector<1x64x16xf32> to vector<64x16xf32>
    %cst_121 = arith.constant dense<0.000000e+00> : vector<1x16xf32>
    %260 = tpu.matmul %253, %259, %cst_121 {dimension_numbers = #tpu.dot_dimension_numbers<[1], [0], [0], [1], [0, 0, 1, 1], [], []>} : vector<1x64xf32>, vector<64x16xf32>, vector<1x16xf32> -> vector<1x16xf32>
    %261 = vector.extract_strided_slice %2 {offsets = [12, 0], sizes = [1, 16], strides = [1, 1]} : vector<24x16xf32> to vector<1x16xf32>
    %262 = arith.addf %260, %261 : vector<1x16xf32>
    %c16 = arith.constant 16 : index
    %c0_122 = arith.constant 0 : index
    %c0_123 = arith.constant 0 : index
    %263 = vector.load %arg2[%c16, %c0_122, %c0_123] : memref<24x64x16xf32, #tpu.memory_space<vmem>>, vector<1x64x16xf32>
    %264 = vector.shape_cast %263 : vector<1x64x16xf32> to vector<64x16xf32>
    %cst_124 = arith.constant dense<0.000000e+00> : vector<16x16xf32>
    %265 = tpu.matmul %216, %264, %cst_124 {dimension_numbers = #tpu.dot_dimension_numbers<[1], [0], [0], [1], [0, 0, 1, 1], [], []>} : vector<16x64xf32>, vector<64x16xf32>, vector<16x16xf32> -> vector<16x16xf32>
    %266 = vector.extract_strided_slice %2 {offsets = [16, 0], sizes = [1, 16], strides = [1, 1]} : vector<24x16xf32> to vector<1x16xf32>
    %267 = vector.broadcast %266 : vector<1x16xf32> to vector<16x16xf32>
    %268 = arith.addf %265, %267 : vector<16x16xf32>
    %c20 = arith.constant 20 : index
    %c0_125 = arith.constant 0 : index
    %c0_126 = arith.constant 0 : index
    %269 = vector.load %arg2[%c20, %c0_125, %c0_126] : memref<24x64x16xf32, #tpu.memory_space<vmem>>, vector<1x64x16xf32>
    %270 = vector.shape_cast %269 : vector<1x64x16xf32> to vector<64x16xf32>
    %cst_127 = arith.constant dense<0.000000e+00> : vector<16x16xf32>
    %271 = tpu.matmul %216, %270, %cst_127 {dimension_numbers = #tpu.dot_dimension_numbers<[1], [0], [0], [1], [0, 0, 1, 1], [], []>} : vector<16x64xf32>, vector<64x16xf32>, vector<16x16xf32> -> vector<16x16xf32>
    %272 = vector.extract_strided_slice %2 {offsets = [20, 0], sizes = [1, 16], strides = [1, 1]} : vector<24x16xf32> to vector<1x16xf32>
    %273 = vector.broadcast %272 : vector<1x16xf32> to vector<16x16xf32>
    %274 = arith.addf %271, %273 : vector<16x16xf32>
    %cst_128 = arith.constant dense<0.000000e+00> : vector<1x16xf32>
    %275 = tpu.matmul %262, %268, %cst_128 {dimension_numbers = #tpu.dot_dimension_numbers<[1], [1], [0], [0], [0, 0, 1, 0], [], []>} : vector<1x16xf32>, vector<16x16xf32>, vector<1x16xf32> -> vector<1x16xf32>
    %cst_129 = arith.constant 2.500000e-01 : f32
    %276 = vector.broadcast %cst_129 : f32 to vector<1x16xf32>
    %277 = arith.mulf %275, %276 : vector<1x16xf32>
    %cst_130 = arith.constant dense<0xFF800000> : vector<1xf32>
    %278 = vector.multi_reduction <maximumf>, %277, %cst_130 [1] : vector<1x16xf32> to vector<1xf32>
    %279 = vector.shape_cast %278 : vector<1xf32> to vector<1x1xf32>
    %280 = vector.broadcast %279 : vector<1x1xf32> to vector<1x16xf32>
    %281 = arith.subf %277, %280 : vector<1x16xf32>
    %282 = math.exp %281 : vector<1x16xf32>
    %cst_131 = arith.constant dense<0.000000e+00> : vector<1xf32>
    %283 = vector.multi_reduction <add>, %282, %cst_131 [1] : vector<1x16xf32> to vector<1xf32>
    %284 = vector.shape_cast %283 : vector<1xf32> to vector<1x1xf32>
    %285 = tpu.reciprocal %284 {approx = true} : vector<1x1xf32> -> vector<1x1xf32>
    %286 = vector.broadcast %285 : vector<1x1xf32> to vector<1x16xf32>
    %287 = arith.mulf %282, %286 : vector<1x16xf32>
    %288 = arith.addf %257, %287 : vector<1x16xf32>
    %cst_132 = arith.constant dense<0.000000e+00> : vector<1x16xf32>
    %289 = tpu.matmul %287, %274, %cst_132 {dimension_numbers = #tpu.dot_dimension_numbers<[1], [0], [0], [1], [0, 0, 1, 1], [], []>} : vector<1x16xf32>, vector<16x16xf32>, vector<1x16xf32> -> vector<1x16xf32>
    %c4_133 = arith.constant 4 : index
    %c0_134 = arith.constant 0 : index
    %c0_135 = arith.constant 0 : index
    %290 = vector.load %arg3[%c4_133, %c0_134, %c0_135] : memref<8x16x64xf32, #tpu.memory_space<vmem>>, vector<1x16x64xf32>
    %291 = vector.shape_cast %290 : vector<1x16x64xf32> to vector<16x64xf32>
    %cst_136 = arith.constant dense<0.000000e+00> : vector<1x64xf32>
    %292 = tpu.matmul %289, %291, %cst_136 {dimension_numbers = #tpu.dot_dimension_numbers<[1], [0], [0], [1], [0, 0, 1, 1], [], []>} : vector<1x16xf32>, vector<16x64xf32>, vector<1x64xf32> -> vector<1x64xf32>
    %293 = arith.addf %256, %292 : vector<1x64xf32>
    %c13 = arith.constant 13 : index
    %c0_137 = arith.constant 0 : index
    %c0_138 = arith.constant 0 : index
    %294 = vector.load %arg2[%c13, %c0_137, %c0_138] : memref<24x64x16xf32, #tpu.memory_space<vmem>>, vector<1x64x16xf32>
    %295 = vector.shape_cast %294 : vector<1x64x16xf32> to vector<64x16xf32>
    %cst_139 = arith.constant dense<0.000000e+00> : vector<1x16xf32>
    %296 = tpu.matmul %253, %295, %cst_139 {dimension_numbers = #tpu.dot_dimension_numbers<[1], [0], [0], [1], [0, 0, 1, 1], [], []>} : vector<1x64xf32>, vector<64x16xf32>, vector<1x16xf32> -> vector<1x16xf32>
    %297 = vector.extract_strided_slice %2 {offsets = [13, 0], sizes = [1, 16], strides = [1, 1]} : vector<24x16xf32> to vector<1x16xf32>
    %298 = arith.addf %296, %297 : vector<1x16xf32>
    %c17 = arith.constant 17 : index
    %c0_140 = arith.constant 0 : index
    %c0_141 = arith.constant 0 : index
    %299 = vector.load %arg2[%c17, %c0_140, %c0_141] : memref<24x64x16xf32, #tpu.memory_space<vmem>>, vector<1x64x16xf32>
    %300 = vector.shape_cast %299 : vector<1x64x16xf32> to vector<64x16xf32>
    %cst_142 = arith.constant dense<0.000000e+00> : vector<16x16xf32>
    %301 = tpu.matmul %216, %300, %cst_142 {dimension_numbers = #tpu.dot_dimension_numbers<[1], [0], [0], [1], [0, 0, 1, 1], [], []>} : vector<16x64xf32>, vector<64x16xf32>, vector<16x16xf32> -> vector<16x16xf32>
    %302 = vector.extract_strided_slice %2 {offsets = [17, 0], sizes = [1, 16], strides = [1, 1]} : vector<24x16xf32> to vector<1x16xf32>
    %303 = vector.broadcast %302 : vector<1x16xf32> to vector<16x16xf32>
    %304 = arith.addf %301, %303 : vector<16x16xf32>
    %c21 = arith.constant 21 : index
    %c0_143 = arith.constant 0 : index
    %c0_144 = arith.constant 0 : index
    %305 = vector.load %arg2[%c21, %c0_143, %c0_144] : memref<24x64x16xf32, #tpu.memory_space<vmem>>, vector<1x64x16xf32>
    %306 = vector.shape_cast %305 : vector<1x64x16xf32> to vector<64x16xf32>
    %cst_145 = arith.constant dense<0.000000e+00> : vector<16x16xf32>
    %307 = tpu.matmul %216, %306, %cst_145 {dimension_numbers = #tpu.dot_dimension_numbers<[1], [0], [0], [1], [0, 0, 1, 1], [], []>} : vector<16x64xf32>, vector<64x16xf32>, vector<16x16xf32> -> vector<16x16xf32>
    %308 = vector.extract_strided_slice %2 {offsets = [21, 0], sizes = [1, 16], strides = [1, 1]} : vector<24x16xf32> to vector<1x16xf32>
    %309 = vector.broadcast %308 : vector<1x16xf32> to vector<16x16xf32>
    %310 = arith.addf %307, %309 : vector<16x16xf32>
    %cst_146 = arith.constant dense<0.000000e+00> : vector<1x16xf32>
    %311 = tpu.matmul %298, %304, %cst_146 {dimension_numbers = #tpu.dot_dimension_numbers<[1], [1], [0], [0], [0, 0, 1, 0], [], []>} : vector<1x16xf32>, vector<16x16xf32>, vector<1x16xf32> -> vector<1x16xf32>
    %cst_147 = arith.constant 2.500000e-01 : f32
    %312 = vector.broadcast %cst_147 : f32 to vector<1x16xf32>
    %313 = arith.mulf %311, %312 : vector<1x16xf32>
    %cst_148 = arith.constant dense<0xFF800000> : vector<1xf32>
    %314 = vector.multi_reduction <maximumf>, %313, %cst_148 [1] : vector<1x16xf32> to vector<1xf32>
    %315 = vector.shape_cast %314 : vector<1xf32> to vector<1x1xf32>
    %316 = vector.broadcast %315 : vector<1x1xf32> to vector<1x16xf32>
    %317 = arith.subf %313, %316 : vector<1x16xf32>
    %318 = math.exp %317 : vector<1x16xf32>
    %cst_149 = arith.constant dense<0.000000e+00> : vector<1xf32>
    %319 = vector.multi_reduction <add>, %318, %cst_149 [1] : vector<1x16xf32> to vector<1xf32>
    %320 = vector.shape_cast %319 : vector<1xf32> to vector<1x1xf32>
    %321 = tpu.reciprocal %320 {approx = true} : vector<1x1xf32> -> vector<1x1xf32>
    %322 = vector.broadcast %321 : vector<1x1xf32> to vector<1x16xf32>
    %323 = arith.mulf %318, %322 : vector<1x16xf32>
    %324 = arith.addf %288, %323 : vector<1x16xf32>
    %cst_150 = arith.constant dense<0.000000e+00> : vector<1x16xf32>
    %325 = tpu.matmul %323, %310, %cst_150 {dimension_numbers = #tpu.dot_dimension_numbers<[1], [0], [0], [1], [0, 0, 1, 1], [], []>} : vector<1x16xf32>, vector<16x16xf32>, vector<1x16xf32> -> vector<1x16xf32>
    %c5_151 = arith.constant 5 : index
    %c0_152 = arith.constant 0 : index
    %c0_153 = arith.constant 0 : index
    %326 = vector.load %arg3[%c5_151, %c0_152, %c0_153] : memref<8x16x64xf32, #tpu.memory_space<vmem>>, vector<1x16x64xf32>
    %327 = vector.shape_cast %326 : vector<1x16x64xf32> to vector<16x64xf32>
    %cst_154 = arith.constant dense<0.000000e+00> : vector<1x64xf32>
    %328 = tpu.matmul %325, %327, %cst_154 {dimension_numbers = #tpu.dot_dimension_numbers<[1], [0], [0], [1], [0, 0, 1, 1], [], []>} : vector<1x16xf32>, vector<16x64xf32>, vector<1x64xf32> -> vector<1x64xf32>
    %329 = arith.addf %293, %328 : vector<1x64xf32>
    %c14 = arith.constant 14 : index
    %c0_155 = arith.constant 0 : index
    %c0_156 = arith.constant 0 : index
    %330 = vector.load %arg2[%c14, %c0_155, %c0_156] : memref<24x64x16xf32, #tpu.memory_space<vmem>>, vector<1x64x16xf32>
    %331 = vector.shape_cast %330 : vector<1x64x16xf32> to vector<64x16xf32>
    %cst_157 = arith.constant dense<0.000000e+00> : vector<1x16xf32>
    %332 = tpu.matmul %253, %331, %cst_157 {dimension_numbers = #tpu.dot_dimension_numbers<[1], [0], [0], [1], [0, 0, 1, 1], [], []>} : vector<1x64xf32>, vector<64x16xf32>, vector<1x16xf32> -> vector<1x16xf32>
    %333 = vector.extract_strided_slice %2 {offsets = [14, 0], sizes = [1, 16], strides = [1, 1]} : vector<24x16xf32> to vector<1x16xf32>
    %334 = arith.addf %332, %333 : vector<1x16xf32>
    %c18 = arith.constant 18 : index
    %c0_158 = arith.constant 0 : index
    %c0_159 = arith.constant 0 : index
    %335 = vector.load %arg2[%c18, %c0_158, %c0_159] : memref<24x64x16xf32, #tpu.memory_space<vmem>>, vector<1x64x16xf32>
    %336 = vector.shape_cast %335 : vector<1x64x16xf32> to vector<64x16xf32>
    %cst_160 = arith.constant dense<0.000000e+00> : vector<16x16xf32>
    %337 = tpu.matmul %216, %336, %cst_160 {dimension_numbers = #tpu.dot_dimension_numbers<[1], [0], [0], [1], [0, 0, 1, 1], [], []>} : vector<16x64xf32>, vector<64x16xf32>, vector<16x16xf32> -> vector<16x16xf32>
    %338 = vector.extract_strided_slice %2 {offsets = [18, 0], sizes = [1, 16], strides = [1, 1]} : vector<24x16xf32> to vector<1x16xf32>
    %339 = vector.broadcast %338 : vector<1x16xf32> to vector<16x16xf32>
    %340 = arith.addf %337, %339 : vector<16x16xf32>
    %c22 = arith.constant 22 : index
    %c0_161 = arith.constant 0 : index
    %c0_162 = arith.constant 0 : index
    %341 = vector.load %arg2[%c22, %c0_161, %c0_162] : memref<24x64x16xf32, #tpu.memory_space<vmem>>, vector<1x64x16xf32>
    %342 = vector.shape_cast %341 : vector<1x64x16xf32> to vector<64x16xf32>
    %cst_163 = arith.constant dense<0.000000e+00> : vector<16x16xf32>
    %343 = tpu.matmul %216, %342, %cst_163 {dimension_numbers = #tpu.dot_dimension_numbers<[1], [0], [0], [1], [0, 0, 1, 1], [], []>} : vector<16x64xf32>, vector<64x16xf32>, vector<16x16xf32> -> vector<16x16xf32>
    %344 = vector.extract_strided_slice %2 {offsets = [22, 0], sizes = [1, 16], strides = [1, 1]} : vector<24x16xf32> to vector<1x16xf32>
    %345 = vector.broadcast %344 : vector<1x16xf32> to vector<16x16xf32>
    %346 = arith.addf %343, %345 : vector<16x16xf32>
    %cst_164 = arith.constant dense<0.000000e+00> : vector<1x16xf32>
    %347 = tpu.matmul %334, %340, %cst_164 {dimension_numbers = #tpu.dot_dimension_numbers<[1], [1], [0], [0], [0, 0, 1, 0], [], []>} : vector<1x16xf32>, vector<16x16xf32>, vector<1x16xf32> -> vector<1x16xf32>
    %cst_165 = arith.constant 2.500000e-01 : f32
    %348 = vector.broadcast %cst_165 : f32 to vector<1x16xf32>
    %349 = arith.mulf %347, %348 : vector<1x16xf32>
    %cst_166 = arith.constant dense<0xFF800000> : vector<1xf32>
    %350 = vector.multi_reduction <maximumf>, %349, %cst_166 [1] : vector<1x16xf32> to vector<1xf32>
    %351 = vector.shape_cast %350 : vector<1xf32> to vector<1x1xf32>
    %352 = vector.broadcast %351 : vector<1x1xf32> to vector<1x16xf32>
    %353 = arith.subf %349, %352 : vector<1x16xf32>
    %354 = math.exp %353 : vector<1x16xf32>
    %cst_167 = arith.constant dense<0.000000e+00> : vector<1xf32>
    %355 = vector.multi_reduction <add>, %354, %cst_167 [1] : vector<1x16xf32> to vector<1xf32>
    %356 = vector.shape_cast %355 : vector<1xf32> to vector<1x1xf32>
    %357 = tpu.reciprocal %356 {approx = true} : vector<1x1xf32> -> vector<1x1xf32>
    %358 = vector.broadcast %357 : vector<1x1xf32> to vector<1x16xf32>
    %359 = arith.mulf %354, %358 : vector<1x16xf32>
    %360 = arith.addf %324, %359 : vector<1x16xf32>
    %cst_168 = arith.constant dense<0.000000e+00> : vector<1x16xf32>
    %361 = tpu.matmul %359, %346, %cst_168 {dimension_numbers = #tpu.dot_dimension_numbers<[1], [0], [0], [1], [0, 0, 1, 1], [], []>} : vector<1x16xf32>, vector<16x16xf32>, vector<1x16xf32> -> vector<1x16xf32>
    %c6_169 = arith.constant 6 : index
    %c0_170 = arith.constant 0 : index
    %c0_171 = arith.constant 0 : index
    %362 = vector.load %arg3[%c6_169, %c0_170, %c0_171] : memref<8x16x64xf32, #tpu.memory_space<vmem>>, vector<1x16x64xf32>
    %363 = vector.shape_cast %362 : vector<1x16x64xf32> to vector<16x64xf32>
    %cst_172 = arith.constant dense<0.000000e+00> : vector<1x64xf32>
    %364 = tpu.matmul %361, %363, %cst_172 {dimension_numbers = #tpu.dot_dimension_numbers<[1], [0], [0], [1], [0, 0, 1, 1], [], []>} : vector<1x16xf32>, vector<16x64xf32>, vector<1x64xf32> -> vector<1x64xf32>
    %365 = arith.addf %329, %364 : vector<1x64xf32>
    %c15 = arith.constant 15 : index
    %c0_173 = arith.constant 0 : index
    %c0_174 = arith.constant 0 : index
    %366 = vector.load %arg2[%c15, %c0_173, %c0_174] : memref<24x64x16xf32, #tpu.memory_space<vmem>>, vector<1x64x16xf32>
    %367 = vector.shape_cast %366 : vector<1x64x16xf32> to vector<64x16xf32>
    %cst_175 = arith.constant dense<0.000000e+00> : vector<1x16xf32>
    %368 = tpu.matmul %253, %367, %cst_175 {dimension_numbers = #tpu.dot_dimension_numbers<[1], [0], [0], [1], [0, 0, 1, 1], [], []>} : vector<1x64xf32>, vector<64x16xf32>, vector<1x16xf32> -> vector<1x16xf32>
    %369 = vector.extract_strided_slice %2 {offsets = [15, 0], sizes = [1, 16], strides = [1, 1]} : vector<24x16xf32> to vector<1x16xf32>
    %370 = arith.addf %368, %369 : vector<1x16xf32>
    %c19 = arith.constant 19 : index
    %c0_176 = arith.constant 0 : index
    %c0_177 = arith.constant 0 : index
    %371 = vector.load %arg2[%c19, %c0_176, %c0_177] : memref<24x64x16xf32, #tpu.memory_space<vmem>>, vector<1x64x16xf32>
    %372 = vector.shape_cast %371 : vector<1x64x16xf32> to vector<64x16xf32>
    %cst_178 = arith.constant dense<0.000000e+00> : vector<16x16xf32>
    %373 = tpu.matmul %216, %372, %cst_178 {dimension_numbers = #tpu.dot_dimension_numbers<[1], [0], [0], [1], [0, 0, 1, 1], [], []>} : vector<16x64xf32>, vector<64x16xf32>, vector<16x16xf32> -> vector<16x16xf32>
    %374 = vector.extract_strided_slice %2 {offsets = [19, 0], sizes = [1, 16], strides = [1, 1]} : vector<24x16xf32> to vector<1x16xf32>
    %375 = vector.broadcast %374 : vector<1x16xf32> to vector<16x16xf32>
    %376 = arith.addf %373, %375 : vector<16x16xf32>
    %c23 = arith.constant 23 : index
    %c0_179 = arith.constant 0 : index
    %c0_180 = arith.constant 0 : index
    %377 = vector.load %arg2[%c23, %c0_179, %c0_180] : memref<24x64x16xf32, #tpu.memory_space<vmem>>, vector<1x64x16xf32>
    %378 = vector.shape_cast %377 : vector<1x64x16xf32> to vector<64x16xf32>
    %cst_181 = arith.constant dense<0.000000e+00> : vector<16x16xf32>
    %379 = tpu.matmul %216, %378, %cst_181 {dimension_numbers = #tpu.dot_dimension_numbers<[1], [0], [0], [1], [0, 0, 1, 1], [], []>} : vector<16x64xf32>, vector<64x16xf32>, vector<16x16xf32> -> vector<16x16xf32>
    %380 = vector.extract_strided_slice %2 {offsets = [23, 0], sizes = [1, 16], strides = [1, 1]} : vector<24x16xf32> to vector<1x16xf32>
    %381 = vector.broadcast %380 : vector<1x16xf32> to vector<16x16xf32>
    %382 = arith.addf %379, %381 : vector<16x16xf32>
    %cst_182 = arith.constant dense<0.000000e+00> : vector<1x16xf32>
    %383 = tpu.matmul %370, %376, %cst_182 {dimension_numbers = #tpu.dot_dimension_numbers<[1], [1], [0], [0], [0, 0, 1, 0], [], []>} : vector<1x16xf32>, vector<16x16xf32>, vector<1x16xf32> -> vector<1x16xf32>
    %cst_183 = arith.constant 2.500000e-01 : f32
    %384 = vector.broadcast %cst_183 : f32 to vector<1x16xf32>
    %385 = arith.mulf %383, %384 : vector<1x16xf32>
    %cst_184 = arith.constant dense<0xFF800000> : vector<1xf32>
    %386 = vector.multi_reduction <maximumf>, %385, %cst_184 [1] : vector<1x16xf32> to vector<1xf32>
    %387 = vector.shape_cast %386 : vector<1xf32> to vector<1x1xf32>
    %388 = vector.broadcast %387 : vector<1x1xf32> to vector<1x16xf32>
    %389 = arith.subf %385, %388 : vector<1x16xf32>
    %390 = math.exp %389 : vector<1x16xf32>
    %cst_185 = arith.constant dense<0.000000e+00> : vector<1xf32>
    %391 = vector.multi_reduction <add>, %390, %cst_185 [1] : vector<1x16xf32> to vector<1xf32>
    %392 = vector.shape_cast %391 : vector<1xf32> to vector<1x1xf32>
    %393 = tpu.reciprocal %392 {approx = true} : vector<1x1xf32> -> vector<1x1xf32>
    %394 = vector.broadcast %393 : vector<1x1xf32> to vector<1x16xf32>
    %395 = arith.mulf %390, %394 : vector<1x16xf32>
    %396 = arith.addf %360, %395 : vector<1x16xf32>
    %cst_186 = arith.constant dense<0.000000e+00> : vector<1x16xf32>
    %397 = tpu.matmul %395, %382, %cst_186 {dimension_numbers = #tpu.dot_dimension_numbers<[1], [0], [0], [1], [0, 0, 1, 1], [], []>} : vector<1x16xf32>, vector<16x16xf32>, vector<1x16xf32> -> vector<1x16xf32>
    %c7_187 = arith.constant 7 : index
    %c0_188 = arith.constant 0 : index
    %c0_189 = arith.constant 0 : index
    %398 = vector.load %arg3[%c7_187, %c0_188, %c0_189] : memref<8x16x64xf32, #tpu.memory_space<vmem>>, vector<1x16x64xf32>
    %399 = vector.shape_cast %398 : vector<1x16x64xf32> to vector<16x64xf32>
    %cst_190 = arith.constant dense<0.000000e+00> : vector<1x64xf32>
    %400 = tpu.matmul %397, %399, %cst_190 {dimension_numbers = #tpu.dot_dimension_numbers<[1], [0], [0], [1], [0, 0, 1, 1], [], []>} : vector<1x16xf32>, vector<16x64xf32>, vector<1x64xf32> -> vector<1x64xf32>
    %401 = arith.addf %365, %400 : vector<1x64xf32>
    %cst_191 = arith.constant 2.500000e-01 : f32
    %402 = vector.broadcast %cst_191 : f32 to vector<1x16xf32>
    %403 = arith.mulf %396, %402 : vector<1x16xf32>
    %404 = arith.addf %253, %401 : vector<1x64xf32>
    %cst_192 = arith.constant dense<0.000000e+00> : vector<1xf32>
    %405 = vector.multi_reduction <add>, %404, %cst_192 [1] : vector<1x64xf32> to vector<1xf32>
    %406 = vector.shape_cast %405 : vector<1xf32> to vector<1x1xf32>
    %cst_193 = arith.constant 6.400000e+01 : f32
    %407 = vector.broadcast %cst_193 : f32 to vector<1x1xf32>
    %408 = arith.divf %406, %407 : vector<1x1xf32>
    %409 = vector.broadcast %408 : vector<1x1xf32> to vector<1x64xf32>
    %410 = arith.subf %404, %409 : vector<1x64xf32>
    %411 = arith.mulf %410, %410 : vector<1x64xf32>
    %cst_194 = arith.constant dense<0.000000e+00> : vector<1xf32>
    %412 = vector.multi_reduction <add>, %411, %cst_194 [1] : vector<1x64xf32> to vector<1xf32>
    %413 = vector.shape_cast %412 : vector<1xf32> to vector<1x1xf32>
    %cst_195 = arith.constant 6.400000e+01 : f32
    %414 = vector.broadcast %cst_195 : f32 to vector<1x1xf32>
    %415 = arith.divf %413, %414 : vector<1x1xf32>
    %416 = vector.broadcast %408 : vector<1x1xf32> to vector<1x64xf32>
    %417 = arith.subf %404, %416 : vector<1x64xf32>
    %cst_196 = arith.constant 9.99999974E-6 : f32
    %418 = vector.broadcast %cst_196 : f32 to vector<1x1xf32>
    %419 = arith.addf %415, %418 : vector<1x1xf32>
    %420 = math.rsqrt %419 : vector<1x1xf32>
    %421 = vector.broadcast %420 : vector<1x1xf32> to vector<1x64xf32>
    %422 = arith.mulf %417, %421 : vector<1x64xf32>
    %423 = vector.extract_strided_slice %3 {offsets = [12, 0], sizes = [1, 64], strides = [1, 1]} : vector<17x64xf32> to vector<1x64xf32>
    %424 = arith.mulf %422, %423 : vector<1x64xf32>
    %425 = vector.extract_strided_slice %3 {offsets = [13, 0], sizes = [1, 64], strides = [1, 1]} : vector<17x64xf32> to vector<1x64xf32>
    %426 = arith.addf %424, %425 : vector<1x64xf32>
    %c1_197 = arith.constant 1 : index
    %c0_198 = arith.constant 0 : index
    %c0_199 = arith.constant 0 : index
    %427 = vector.load %arg5[%c1_197, %c0_198, %c0_199] : memref<2x64x2048xf32, #tpu.memory_space<vmem>>, vector<1x64x2048xf32>
    %428 = vector.shape_cast %427 : vector<1x64x2048xf32> to vector<64x2048xf32>
    %cst_200 = arith.constant dense<0.000000e+00> : vector<1x2048xf32>
    %429 = tpu.matmul %426, %428, %cst_200 {dimension_numbers = #tpu.dot_dimension_numbers<[1], [0], [0], [1], [0, 0, 1, 1], [], []>} : vector<1x64xf32>, vector<64x2048xf32>, vector<1x2048xf32> -> vector<1x2048xf32>
    %430 = vector.extract_strided_slice %4 {offsets = [1, 0], sizes = [1, 2048], strides = [1, 1]} : vector<2x2048xf32> to vector<1x2048xf32>
    %431 = arith.addf %429, %430 : vector<1x2048xf32>
    %cst_201 = arith.constant 0.000000e+00 : f32
    %432 = vector.broadcast %cst_201 : f32 to vector<1x2048xf32>
    %433 = arith.maximumf %431, %432 : vector<1x2048xf32>
    %c1_202 = arith.constant 1 : index
    %c0_203 = arith.constant 0 : index
    %c0_204 = arith.constant 0 : index
    %434 = vector.load %arg6[%c1_202, %c0_203, %c0_204] : memref<2x2048x64xf32, #tpu.memory_space<vmem>>, vector<1x2048x64xf32>
    %435 = vector.shape_cast %434 : vector<1x2048x64xf32> to vector<2048x64xf32>
    %cst_205 = arith.constant dense<0.000000e+00> : vector<1x64xf32>
    %436 = tpu.matmul %433, %435, %cst_205 {dimension_numbers = #tpu.dot_dimension_numbers<[1], [0], [0], [1], [0, 0, 1, 1], [], []>} : vector<1x2048xf32>, vector<2048x64xf32>, vector<1x64xf32> -> vector<1x64xf32>
    %437 = vector.extract_strided_slice %3 {offsets = [14, 0], sizes = [1, 64], strides = [1, 1]} : vector<17x64xf32> to vector<1x64xf32>
    %438 = arith.addf %436, %437 : vector<1x64xf32>
    %439 = arith.addf %426, %438 : vector<1x64xf32>
    %cst_206 = arith.constant dense<0.000000e+00> : vector<1xf32>
    %440 = vector.multi_reduction <add>, %439, %cst_206 [1] : vector<1x64xf32> to vector<1xf32>
    %441 = vector.shape_cast %440 : vector<1xf32> to vector<1x1xf32>
    %cst_207 = arith.constant 6.400000e+01 : f32
    %442 = vector.broadcast %cst_207 : f32 to vector<1x1xf32>
    %443 = arith.divf %441, %442 : vector<1x1xf32>
    %444 = vector.broadcast %443 : vector<1x1xf32> to vector<1x64xf32>
    %445 = arith.subf %439, %444 : vector<1x64xf32>
    %446 = arith.mulf %445, %445 : vector<1x64xf32>
    %cst_208 = arith.constant dense<0.000000e+00> : vector<1xf32>
    %447 = vector.multi_reduction <add>, %446, %cst_208 [1] : vector<1x64xf32> to vector<1xf32>
    %448 = vector.shape_cast %447 : vector<1xf32> to vector<1x1xf32>
    %cst_209 = arith.constant 6.400000e+01 : f32
    %449 = vector.broadcast %cst_209 : f32 to vector<1x1xf32>
    %450 = arith.divf %448, %449 : vector<1x1xf32>
    %451 = vector.broadcast %443 : vector<1x1xf32> to vector<1x64xf32>
    %452 = arith.subf %439, %451 : vector<1x64xf32>
    %cst_210 = arith.constant 9.99999974E-6 : f32
    %453 = vector.broadcast %cst_210 : f32 to vector<1x1xf32>
    %454 = arith.addf %450, %453 : vector<1x1xf32>
    %455 = math.rsqrt %454 : vector<1x1xf32>
    %456 = vector.broadcast %455 : vector<1x1xf32> to vector<1x64xf32>
    %457 = arith.mulf %452, %456 : vector<1x64xf32>
    %458 = vector.extract_strided_slice %3 {offsets = [15, 0], sizes = [1, 64], strides = [1, 1]} : vector<17x64xf32> to vector<1x64xf32>
    %459 = arith.mulf %457, %458 : vector<1x64xf32>
    %460 = vector.extract_strided_slice %3 {offsets = [16, 0], sizes = [1, 64], strides = [1, 1]} : vector<17x64xf32> to vector<1x64xf32>
    %461 = arith.addf %459, %460 : vector<1x64xf32>
    %c0_211 = arith.constant 0 : index
    %c0_212 = arith.constant 0 : index
    %462 = vector.load %arg11[%c0_211, %c0_212] : memref<1x64xf32, #tpu.memory_space<vmem>>, vector<1x64xf32>
    tpu.vector_store %arg11[%c0_211, %c0_212], %461 {strides = array<i32>} : memref<1x64xf32, #tpu.memory_space<vmem>>, vector<1x64xf32>,
    %c0_213 = arith.constant 0 : index
    %c0_214 = arith.constant 0 : index
    %463 = vector.load %arg12[%c0_213, %c0_214] : memref<1x16xf32, #tpu.memory_space<vmem>>, vector<1x16xf32>
    tpu.vector_store %arg12[%c0_213, %c0_214], %403 {strides = array<i32>} : memref<1x16xf32, #tpu.memory_space<vmem>>, vector<1x16xf32>,
    return
  }
}

</mosaic_0001>

<llo_original>
// kernel: tpu_custom_call.1
$region0: #{tpu_custom_call.1}
  #allocation0 [shape = 'u32[]', space=smem, size = 0x4, offset = 0x4, fixed_abs, tag = 'smem constant byte address 0x4 - core index']
  #allocation1 [shape = 'u32[144,128]{1,0:T(1,128)}', space=vmem, size = 0x12000, scoped, tag = 'internal scratch']
  %s0 = inlined_call_operand.vmem [shape: f32[16,64], index: 0, kind: input, shape index: {}]
  %s1 = inlined_call_operand.vmem [shape: f32[1,32], index: 1, kind: input, shape index: {}]
  %s2 = inlined_call_operand.vmem [shape: f32[24,64,16], index: 2, kind: input, shape index: {}]
  %s3 = inlined_call_operand.vmem [shape: f32[8,16,64], index: 3, kind: input, shape index: {}]
  %s4 = inlined_call_operand.vmem [shape: f32[24,16], index: 4, kind: input, shape index: {}]
  %s5 = inlined_call_operand.vmem [shape: f32[2,64,2048], index: 5, kind: input, shape index: {}]
  %s6 = inlined_call_operand.vmem [shape: f32[2,2048,64], index: 6, kind: input, shape index: {}]
  %s7 = inlined_call_operand.vmem [shape: f32[32,64], index: 7, kind: input, shape index: {}]
  %s8 = inlined_call_operand.vmem [shape: f32[2,64,64], index: 8, kind: input, shape index: {}]
  %s9 = inlined_call_operand.vmem [shape: f32[17,64], index: 9, kind: input, shape index: {}]
  %s10 = inlined_call_operand.vmem [shape: f32[2,2048], index: 10, kind: input, shape index: {}]
  %s11 = inlined_call_operand.hbm [shape: f32[1,64], index: 11, kind: output, shape index: {0}]
  %s12 = inlined_call_operand.hbm [shape: f32[1,16], index: 12, kind: output, shape index: {1}]
  %13 = xla_tuple %s11, %s12
  %s14 = sld [smem:[#allocation0]]
  $region62: #{tpu_custom_call.1} parent=0
    _
  %s16 = ssub.s32 1, %s14
  %s17 = scalar_select 0, %s16, %s14
  $region1: #{tpu_custom_call.1} parent=0
    #allocation2 [shape = 'u8[512]{0}', space=vmem, size = 0x400, scoped, tag = 'output window, operand 0, single buffered']
    #allocation3 [shape = 's32[1]{0}', space=sflag, size = 0x4, scoped, tag = 'scoped memory for tpu_custom_call.1']
    #allocation4 [shape = 'u8[512]{0}', space=vmem, size = 0x400, scoped, tag = 'output window, operand 1, single buffered']
    #allocation5 [shape = 's32[1]{0}', space=sflag, size = 0x4, scoped, tag = 'scoped memory for tpu_custom_call.1']
    %18 = vsyncpa [#allocation3], 0
    %19 = vsyncpa [#allocation5], 0
    // Predicated region
    $region2: #{tpu_custom_call.1} parent=1 // pred_check
      _
    $region3: #{tpu_custom_call.1} parent=1 // pred_check_branch
      %21 = sbr.rel (0) target = $region5
    $region4: #{tpu_custom_call.1} parent=1 // pred_region
      _
    $region5: #{tpu_custom_call.1} parent=1 // pred_fallthru
      _
    // Predicated region
    $region6: #{tpu_custom_call.1} parent=1 // pred_check
      _
    $region7: #{tpu_custom_call.1} parent=1 // pred_check_branch
      %23 = sbr.rel (0) target = $region9
    $region8: #{tpu_custom_call.1} parent=1 // pred_region
      _
    $region9: #{tpu_custom_call.1} parent=1 // pred_fallthru
      _
    // Predicated region
    $region10: #{tpu_custom_call.1} parent=1 // pred_check
      _
    $region11: #{tpu_custom_call.1} parent=1 // pred_check_branch
      %25 = sbr.rel (0) target = $region13
    $region12: #{tpu_custom_call.1} parent=1 // pred_region
      _
    $region13: #{tpu_custom_call.1} parent=1 // pred_fallthru
      _
    // Predicated region
    $region14: #{tpu_custom_call.1} parent=1 // pred_check
      _
    $region15: #{tpu_custom_call.1} parent=1 // pred_check_branch
      %27 = sbr.rel (0) target = $region17
    $region16: #{tpu_custom_call.1} parent=1 // pred_region
      _
    $region17: #{tpu_custom_call.1} parent=1 // pred_fallthru
      _
    // Predicated region
    $region18: #{tpu_custom_call.1} parent=1 // pred_check
      _
    $region19: #{tpu_custom_call.1} parent=1 // pred_check_branch
      %29 = sbr.rel (0) target = $region21
    $region20: #{tpu_custom_call.1} parent=1 // pred_region
      _
    $region21: #{tpu_custom_call.1} parent=1 // pred_fallthru
      _
    // Predicated region
    $region22: #{tpu_custom_call.1} parent=1 // pred_check
      _
    $region23: #{tpu_custom_call.1} parent=1 // pred_check_branch
      %31 = sbr.rel (0) target = $region25
    $region24: #{tpu_custom_call.1} parent=1 // pred_region
      _
    $region25: #{tpu_custom_call.1} parent=1 // pred_fallthru
      _
    // Predicated region
    $region26: #{tpu_custom_call.1} parent=1 // pred_check
      _
    $region27: #{tpu_custom_call.1} parent=1 // pred_check_branch
      %33 = sbr.rel (0) target = $region29
    $region28: #{tpu_custom_call.1} parent=1 // pred_region
      _
    $region29: #{tpu_custom_call.1} parent=1 // pred_fallthru
      _
    // Predicated region
    $region30: #{tpu_custom_call.1} parent=1 // pred_check
      _
    $region31: #{tpu_custom_call.1} parent=1 // pred_check_branch
      %35 = sbr.rel (0) target = $region33
    $region32: #{tpu_custom_call.1} parent=1 // pred_region
      _
    $region33: #{tpu_custom_call.1} parent=1 // pred_fallthru
      _
    // Predicated region
    $region34: #{tpu_custom_call.1} parent=1 // pred_check
      _
    $region35: #{tpu_custom_call.1} parent=1 // pred_check_branch
      %37 = sbr.rel (0) target = $region37
    $region36: #{tpu_custom_call.1} parent=1 // pred_region
      _
    $region37: #{tpu_custom_call.1} parent=1 // pred_fallthru
      _
    // Predicated region
    $region38: #{tpu_custom_call.1} parent=1 // pred_check
      _
    $region39: #{tpu_custom_call.1} parent=1 // pred_check_branch
      %39 = sbr.rel (0) target = $region41
    $region40: #{tpu_custom_call.1} parent=1 // pred_region
      _
    $region41: #{tpu_custom_call.1} parent=1 // pred_fallthru
      _
    // Predicated region
    $region42: #{tpu_custom_call.1} parent=1 // pred_check
      _
    $region43: #{tpu_custom_call.1} parent=1 // pred_check_branch
      %41 = sbr.rel (0) target = $region45
    $region44: #{tpu_custom_call.1} parent=1 // pred_region
      _
    $region45: #{tpu_custom_call.1} parent=1 // pred_fallthru
      _
    %v42 = vld [vmem:[%s0] sm:$0xff]
    %v43 = vld [vmem:[%s0 + $0x8] sm:$0xff]
    %v44 = vld [vmem:[%s1] sm:$0x1]
    %v45 = vld [vmem:[%s4] sm:$0xff]
    %v46 = vld [vmem:[%s4 + $0x8] sm:$0xff]
    %v47 = vld [vmem:[%s4 + $0x10] sm:$0xff]
    %v48 = vld [vmem:[%s9] sm:$0xff]
    %v49 = vld [vmem:[%s9 + $0x8] sm:$0xff]
    %v50 = vld [vmem:[%s9 + $0x10] sm:$0x1]
    %v51 = vld [vmem:[%s10] sm:$0xff]
    %v52 = vld [vmem:[%s10 + $0x8] sm:$0xff]
    %v53 = vld [vmem:[%s10 + $0x10] sm:$0xff]
    %v54 = vld [vmem:[%s10 + $0x18] sm:$0xff]
    %v55 = vlaneseq
    %v56 = vshrl.u32 %v55, 7
    %v57 = vsub.s32 0, %v56
    %v58 = vrot.slane %v48, %v57
    %v59 = vadd.f32 %v58, 0.0
    %v60 = vld [vmem:[%s2] sm:$0xff]
    %v61 = vld [vmem:[%s2 + $0x8] sm:$0xff]
    %v62 = vld [vmem:[%s2 + $0x10] sm:$0xff]
    %v63 = vld [vmem:[%s2 + $0x18] sm:$0xff]
    %v64 = vld [vmem:[%s2 + $0x20] sm:$0xff]
    %v65 = vld [vmem:[%s2 + $0x28] sm:$0xff]
    %v66 = vld [vmem:[%s2 + $0x30] sm:$0xff]
    %v67 = vld [vmem:[%s2 + $0x38] sm:$0xff]
    %v68 = vlaneseq
    %v69 = vshrl.u32 %v68, 7
    %v70 = vsub.s32 0, %v69
    %v71 = vrot.slane %v45, %v70
    %vm72 = vcmask 523264
    %v74 = vsel %vm72, %v42, 0
    %v77 = vsel %vm72, %v43, 0
    %79 = vmatprep.subr.mxu0 0.0
    %80 = vmatpush1.msra.mxu0 0.0
    %81 = vmatprep.subr.mxu0 0.0
    %82 = vmatpush1.msra.mxu0 0.0
    %83 = vmatprep.subr.mxu0 0.0
    %84 = vmatpush1.msra.mxu0 0.0
    %85 = vmatprep.subr.mxu0 0.0
    %86 = vmatpush1.msra.mxu0 0.0
    %87 = vmatprep.subr.mxu0 0.0
    %88 = vmatpush1.msra.mxu0 0.0
    %89 = vmatprep.subr.mxu0 0.0
    %90 = vmatpush1.msra.mxu0 0.0
    %91 = vmatprep.subr.mxu0 0.0
    %92 = vmatpush1.msra.mxu0 0.0
    %93 = vmatprep.subr.mxu0 0.0
    %94 = vmatpush1.msra.mxu0 0.0
    %95 = vmatprep.subr.mxu0 0.0
    %96 = vmatpush1.msra.mxu0 %v67
    %97 = vmatprep.subr.mxu0 0.0
    %98 = vmatpush1.msra.mxu0 %v66
    %99 = vmatprep.subr.mxu0 0.0
    %100 = vmatpush1.msra.mxu0 %v65
    %101 = vmatprep.subr.mxu0 0.0
    %102 = vmatpush1.msra.mxu0 %v64
    %103 = vmatprep.subr.mxu0 0.0
    %104 = vmatpush1.msra.mxu0 %v63
    %105 = vmatprep.subr.mxu0 0.0
    %106 = vmatpush1.msra.mxu0 %v62
    %107 = vmatprep.subr.mxu0 0.0
    %108 = vmatpush1.msra.mxu0 %v61
    %109 = vmatprep.subr.mxu0 0.0
    %110 = vmatpush1.msra.mxu0 %v60
    %111 = vmatprep.subr.mxu0 0.0
    %112 = vmatpush2.msra.mxu0 0.0
    %113 = vmatprep.subr.mxu0 0.0
    %114 = vmatpush2.msra.mxu0 0.0
    %115 = vmatprep.subr.mxu0 0.0
    %116 = vmatpush2.msra.mxu0 0.0
    %117 = vmatprep.subr.mxu0 0.0
    %118 = vmatpush2.msra.mxu0 0.0
    %119 = vmatprep.subr.mxu0 0.0
    %120 = vmatpush2.msra.mxu0 0.0
    %121 = vmatprep.subr.mxu0 0.0
    %122 = vmatpush2.msra.mxu0 0.0
    %123 = vmatprep.subr.mxu0 0.0
    %124 = vmatpush2.msra.mxu0 0.0
    %125 = vmatprep.subr.mxu0 0.0
    %126 = vmatpush2.msra.mxu0 0.0
    %127 = vmatprep.subr.mxu0 0.0
    %128 = vmatpush2.msra.mxu0 0.0
    %129 = vmatprep.subr.mxu0 0.0
    %130 = vmatpush2.msra.mxu0 0.0
    %131 = vmatprep.subr.mxu0 0.0
    %132 = vmatpush2.msra.mxu0 0.0
    %133 = vmatprep.subr.mxu0 0.0
    %134 = vmatpush2.msra.mxu0 0.0
    %135 = vmatprep.subr.mxu0 0.0
    %136 = vmatpush2.msra.mxu0 0.0
    %137 = vmatprep.subr.mxu0 0.0
    %138 = vmatpush2.msra.mxu0 0.0
    %139 = vmatprep.subr.mxu0 0.0
    %140 = vmatpush2.msra.mxu0 0.0
    %141 = vmatprep.subr.mxu0 0.0
    %142 = vmatpush2.msra.mxu0 0.0
    %143 = vmatprep.mubr.f32.mxu0 0.0
    %144 = vmatmul.mubr.f32.gmra.mxu0 %v74
    %v145 = vpop.f32.mrf.mxu0
    %v146 = vadd.f32 %v71, %v145
    %v147 = vpop.f32.mrf.mxu0
    %148 = vmatprep.mubr.f32.mxu0 0.0
    %149 = vmatmul.mubr.f32.gmra.mxu0 %v77
    %v150 = vpop.f32.mrf.mxu0
    %v151 = vadd.f32 %v71, %v150
    %v152 = vpop.f32.mrf.mxu0
    %153 = vdwg.mxu0
    %s154 = scalar_lea.vmem %s2, 256
    %v155 = vld [vmem:[%s154] sm:$0xff]
    %v156 = vld [vmem:[%s154 + $0x8] sm:$0xff]
    %v157 = vld [vmem:[%s154 + $0x10] sm:$0xff]
    %v158 = vld [vmem:[%s154 + $0x18] sm:$0xff]
    %v159 = vld [vmem:[%s154 + $0x20] sm:$0xff]
    %v160 = vld [vmem:[%s154 + $0x28] sm:$0xff]
    %v161 = vld [vmem:[%s154 + $0x30] sm:$0xff]
    %v162 = vld [vmem:[%s154 + $0x38] sm:$0xff]
    %v163 = vlaneseq
    %v164 = vshrl.u32 %v163, 7
    %v165 = vsub.s32 4, %v164
    %v166 = vrot.slane %v45, %v165
    %167 = vmatprep.subr.mxu0 0.0
    %168 = vmatpush1.msra.mxu0 0.0
    %169 = vmatprep.subr.mxu0 0.0
    %170 = vmatpush1.msra.mxu0 0.0
    %171 = vmatprep.subr.mxu0 0.0
    %172 = vmatpush1.msra.mxu0 0.0
    %173 = vmatprep.subr.mxu0 0.0
    %174 = vmatpush1.msra.mxu0 0.0
    %175 = vmatprep.subr.mxu0 0.0
    %176 = vmatpush1.msra.mxu0 0.0
    %177 = vmatprep.subr.mxu0 0.0
    %178 = vmatpush1.msra.mxu0 0.0
    %179 = vmatprep.subr.mxu0 0.0
    %180 = vmatpush1.msra.mxu0 0.0
    %181 = vmatprep.subr.mxu0 0.0
    %182 = vmatpush1.msra.mxu0 0.0
    %183 = vmatprep.subr.mxu0 0.0
    %184 = vmatpush1.msra.mxu0 %v162
    %185 = vmatprep.subr.mxu0 0.0
    %186 = vmatpush1.msra.mxu0 %v161
    %187 = vmatprep.subr.mxu0 0.0
    %188 = vmatpush1.msra.mxu0 %v160
    %189 = vmatprep.subr.mxu0 0.0
    %190 = vmatpush1.msra.mxu0 %v159
    %191 = vmatprep.subr.mxu0 0.0
    %192 = vmatpush1.msra.mxu0 %v158
    %193 = vmatprep.subr.mxu0 0.0
    %194 = vmatpush1.msra.mxu0 %v157
    %195 = vmatprep.subr.mxu0 0.0
    %196 = vmatpush1.msra.mxu0 %v156
    %197 = vmatprep.subr.mxu0 0.0
    %198 = vmatpush1.msra.mxu0 %v155
    %199 = vmatprep.subr.mxu0 0.0
    %200 = vmatpush2.msra.mxu0 0.0
    %201 = vmatprep.subr.mxu0 0.0
    %202 = vmatpush2.msra.mxu0 0.0
    %203 = vmatprep.subr.mxu0 0.0
    %204 = vmatpush2.msra.mxu0 0.0
    %205 = vmatprep.subr.mxu0 0.0
    %206 = vmatpush2.msra.mxu0 0.0
    %207 = vmatprep.subr.mxu0 0.0
    %208 = vmatpush2.msra.mxu0 0.0
    %209 = vmatprep.subr.mxu0 0.0
    %210 = vmatpush2.msra.mxu0 0.0
    %211 = vmatprep.subr.mxu0 0.0
    %212 = vmatpush2.msra.mxu0 0.0
    %213 = vmatprep.subr.mxu0 0.0
    %214 = vmatpush2.msra.mxu0 0.0
    %215 = vmatprep.subr.mxu0 0.0
    %216 = vmatpush2.msra.mxu0 0.0
    %217 = vmatprep.subr.mxu0 0.0
    %218 = vmatpush2.msra.mxu0 0.0
    %219 = vmatprep.subr.mxu0 0.0
    %220 = vmatpush2.msra.mxu0 0.0
    %221 = vmatprep.subr.mxu0 0.0
    %222 = vmatpush2.msra.mxu0 0.0
    %223 = vmatprep.subr.mxu0 0.0
    %224 = vmatpush2.msra.mxu0 0.0
    %225 = vmatprep.subr.mxu0 0.0
    %226 = vmatpush2.msra.mxu0 0.0
    %227 = vmatprep.subr.mxu0 0.0
    %228 = vmatpush2.msra.mxu0 0.0
    %229 = vmatprep.subr.mxu0 0.0
    %230 = vmatpush2.msra.mxu0 0.0
    %231 = vmatprep.mubr.f32.mxu0 0.0
    %232 = vmatmul.mubr.f32.gmra.mxu0 %v74
    %v233 = vpop.f32.mrf.mxu0
    %v234 = vadd.f32 %v166, %v233
    %v235 = vpop.f32.mrf.mxu0
    %236 = vmatprep.mubr.f32.mxu0 0.0
    %237 = vmatmul.mubr.f32.gmra.mxu0 %v77
    %v238 = vpop.f32.mrf.mxu0
    %v239 = vadd.f32 %v166, %v238
    %v240 = vpop.f32.mrf.mxu0
    %241 = vdwg.mxu0
    %s242 = scalar_lea.vmem %s2, 512
    %v243 = vld [vmem:[%s242] sm:$0xff]
    %v244 = vld [vmem:[%s242 + $0x8] sm:$0xff]
    %v245 = vld [vmem:[%s242 + $0x10] sm:$0xff]
    %v246 = vld [vmem:[%s242 + $0x18] sm:$0xff]
    %v247 = vld [vmem:[%s242 + $0x20] sm:$0xff]
    %v248 = vld [vmem:[%s242 + $0x28] sm:$0xff]
    %v249 = vld [vmem:[%s242 + $0x30] sm:$0xff]
    %v250 = vld [vmem:[%s242 + $0x38] sm:$0xff]
    %v251 = vlaneseq
    %v252 = vshrl.u32 %v251, 7
    %v253 = vsub.s32 0, %v252
    %v254 = vrot.slane %v46, %v253
    %255 = vmatprep.subr.mxu0 0.0
    %256 = vmatpush1.msra.mxu0 0.0
    %257 = vmatprep.subr.mxu0 0.0
    %258 = vmatpush1.msra.mxu0 0.0
    %259 = vmatprep.subr.mxu0 0.0
    %260 = vmatpush1.msra.mxu0 0.0
    %261 = vmatprep.subr.mxu0 0.0
    %262 = vmatpush1.msra.mxu0 0.0
    %263 = vmatprep.subr.mxu0 0.0
    %264 = vmatpush1.msra.mxu0 0.0
    %265 = vmatprep.subr.mxu0 0.0
    %266 = vmatpush1.msra.mxu0 0.0
    %267 = vmatprep.subr.mxu0 0.0
    %268 = vmatpush1.msra.mxu0 0.0
    %269 = vmatprep.subr.mxu0 0.0
    %270 = vmatpush1.msra.mxu0 0.0
    %271 = vmatprep.subr.mxu0 0.0
    %272 = vmatpush1.msra.mxu0 %v250
    %273 = vmatprep.subr.mxu0 0.0
    %274 = vmatpush1.msra.mxu0 %v249
    %275 = vmatprep.subr.mxu0 0.0
    %276 = vmatpush1.msra.mxu0 %v248
    %277 = vmatprep.subr.mxu0 0.0
    %278 = vmatpush1.msra.mxu0 %v247
    %279 = vmatprep.subr.mxu0 0.0
    %280 = vmatpush1.msra.mxu0 %v246
    %281 = vmatprep.subr.mxu0 0.0
    %282 = vmatpush1.msra.mxu0 %v245
    %283 = vmatprep.subr.mxu0 0.0
    %284 = vmatpush1.msra.mxu0 %v244
    %285 = vmatprep.subr.mxu0 0.0
    %286 = vmatpush1.msra.mxu0 %v243
    %287 = vmatprep.subr.mxu0 0.0
    %288 = vmatpush2.msra.mxu0 0.0
    %289 = vmatprep.subr.mxu0 0.0
    %290 = vmatpush2.msra.mxu0 0.0
    %291 = vmatprep.subr.mxu0 0.0
    %292 = vmatpush2.msra.mxu0 0.0
    %293 = vmatprep.subr.mxu0 0.0
    %294 = vmatpush2.msra.mxu0 0.0
    %295 = vmatprep.subr.mxu0 0.0
    %296 = vmatpush2.msra.mxu0 0.0
    %297 = vmatprep.subr.mxu0 0.0
    %298 = vmatpush2.msra.mxu0 0.0
    %299 = vmatprep.subr.mxu0 0.0
    %300 = vmatpush2.msra.mxu0 0.0
    %301 = vmatprep.subr.mxu0 0.0
    %302 = vmatpush2.msra.mxu0 0.0
    %303 = vmatprep.subr.mxu0 0.0
    %304 = vmatpush2.msra.mxu0 0.0
    %305 = vmatprep.subr.mxu0 0.0
    %306 = vmatpush2.msra.mxu0 0.0
    %307 = vmatprep.subr.mxu0 0.0
    %308 = vmatpush2.msra.mxu0 0.0
    %309 = vmatprep.subr.mxu0 0.0
    %310 = vmatpush2.msra.mxu0 0.0
    %311 = vmatprep.subr.mxu0 0.0
    %312 = vmatpush2.msra.mxu0 0.0
    %313 = vmatprep.subr.mxu0 0.0
    %314 = vmatpush2.msra.mxu0 0.0
    %315 = vmatprep.subr.mxu0 0.0
    %316 = vmatpush2.msra.mxu0 0.0
    %317 = vmatprep.subr.mxu0 0.0
    %318 = vmatpush2.msra.mxu0 0.0
    %319 = vmatprep.mubr.f32.mxu0 0.0
    %320 = vmatmul.mubr.f32.gmra.mxu0 %v74
    %v321 = vpop.f32.mrf.mxu0
    %v322 = vadd.f32 %v254, %v321
    %v323 = vpop.f32.mrf.mxu0
    %324 = vmatprep.mubr.f32.mxu0 0.0
    %325 = vmatmul.mubr.f32.gmra.mxu0 %v77
    %v326 = vpop.f32.mrf.mxu0
    %v327 = vadd.f32 %v254, %v326
    %v328 = vpop.f32.mrf.mxu0
    %329 = vdwg.mxu0
    %vm330 = vcmask 130048
    %v332 = vsel %vm330, %v146, 0
    %v335 = vsel %vm330, %v151, 0
    %v338 = vsel %vm330, %v234, 0
    %v341 = vsel %vm330, %v239, 0
    %343 = vmatprep.subr.mxu0 0.0
    %344 = vmatpush1.xpose.msra.mxu0 0.0
    %345 = vmatprep.subr.mxu0 0.0
    %346 = vmatpush1.xpose.msra.mxu0 0.0
    %347 = vmatprep.subr.mxu0 0.0
    %348 = vmatpush1.xpose.msra.mxu0 0.0
    %349 = vmatprep.subr.mxu0 0.0
    %350 = vmatpush1.xpose.msra.mxu0 0.0
    %351 = vmatprep.subr.mxu0 0.0
    %352 = vmatpush1.xpose.msra.mxu0 0.0
    %353 = vmatprep.subr.mxu0 0.0
    %354 = vmatpush1.xpose.msra.mxu0 0.0
    %355 = vmatprep.subr.mxu0 0.0
    %356 = vmatpush1.xpose.msra.mxu0 0.0
    %357 = vmatprep.subr.mxu0 0.0
    %358 = vmatpush1.xpose.msra.mxu0 0.0
    %359 = vmatprep.subr.mxu0 0.0
    %360 = vmatpush1.xpose.msra.mxu0 0.0
    %361 = vmatprep.subr.mxu0 0.0
    %362 = vmatpush1.xpose.msra.mxu0 0.0
    %363 = vmatprep.subr.mxu0 0.0
    %364 = vmatpush1.xpose.msra.mxu0 0.0
    %365 = vmatprep.subr.mxu0 0.0
    %366 = vmatpush1.xpose.msra.mxu0 0.0
    %367 = vmatprep.subr.mxu0 0.0
    %368 = vmatpush1.xpose.msra.mxu0 0.0
    %369 = vmatprep.subr.mxu0 0.0
    %370 = vmatpush1.xpose.msra.mxu0 0.0
    %371 = vmatprep.subr.mxu0 0.0
    %372 = vmatpush1.xpose.msra.mxu0 %v341
    %373 = vmatprep.subr.mxu0 0.0
    %374 = vmatpush1.xpose.msra.mxu0 %v338
    %375 = vmatprep.subr.mxu0 0.0
    %376 = vmatpush2.xpose.msra.mxu0 0.0
    %377 = vmatprep.subr.mxu0 0.0
    %378 = vmatpush2.xpose.msra.mxu0 0.0
    %379 = vmatprep.subr.mxu0 0.0
    %380 = vmatpush2.xpose.msra.mxu0 0.0
    %381 = vmatprep.subr.mxu0 0.0
    %382 = vmatpush2.xpose.msra.mxu0 0.0
    %383 = vmatprep.subr.mxu0 0.0
    %384 = vmatpush2.xpose.msra.mxu0 0.0
    %385 = vmatprep.subr.mxu0 0.0
    %386 = vmatpush2.xpose.msra.mxu0 0.0
    %387 = vmatprep.subr.mxu0 0.0
    %388 = vmatpush2.xpose.msra.mxu0 0.0
    %389 = vmatprep.subr.mxu0 0.0
    %390 = vmatpush2.xpose.msra.mxu0 0.0
    %391 = vmatprep.subr.mxu0 0.0
    %392 = vmatpush2.xpose.msra.mxu0 0.0
    %393 = vmatprep.subr.mxu0 0.0
    %394 = vmatpush2.xpose.msra.mxu0 0.0
    %395 = vmatprep.subr.mxu0 0.0
    %396 = vmatpush2.xpose.msra.mxu0 0.0
    %397 = vmatprep.subr.mxu0 0.0
    %398 = vmatpush2.xpose.msra.mxu0 0.0
    %399 = vmatprep.subr.mxu0 0.0
    %400 = vmatpush2.xpose.msra.mxu0 0.0
    %401 = vmatprep.subr.mxu0 0.0
    %402 = vmatpush2.xpose.msra.mxu0 0.0
    %403 = vmatprep.subr.mxu0 0.0
    %404 = vmatpush2.xpose.msra.mxu0 0.0
    %405 = vmatprep.subr.mxu0 0.0
    %406 = vmatpush2.xpose.msra.mxu0 0.0
    %407 = vmatprep.mubr.f32.mxu0 0.0
    %408 = vmatmul.mubr.f32.gmra.mxu0 %v332
    %v409 = vpop.f32.mrf.mxu0
    %v410 = vadd.f32 0.0, %v409
    %v411 = vpop.f32.mrf.mxu0
    %412 = vmatprep.mubr.f32.mxu0 0.0
    %413 = vmatmul.mubr.f32.gmra.mxu0 %v335
    %v414 = vpop.f32.mrf.mxu0
    %v415 = vadd.f32 0.0, %v414
    %v416 = vpop.f32.mrf.mxu0
    %417 = vdwg.mxu0
    %v418 = vmul.f32 %v410, 0.25
    %v419 = vmul.f32 %v415, 0.25
    %v420 = vsel %vm330, %v418, -inf
    %421 = vmax.xlane.f32.xlu0 %v420
    %v422 = vpop.xlane.xlu0 %421
    %v423 = vsel %vm330, %v419, -inf
    %424 = vmax.xlane.f32.xlu0 %v423
    %v425 = vpop.xlane.xlu0 %424
    %v426 = vsub.f32 %v418, %v422
    %v427 = vsub.f32 %v419, %v425
    %v428 = vmul.f32 %v426, 1.442695
    %v429 = vpow.pop %v428
    %v430 = vmul.f32 %v427, 1.442695
    %v431 = vpow.pop %v430
    %v432 = vsel %vm330, %v429, 0.0
    %433 = vadd.xlane.f32.xlu0 %v432
    %v434 = vpop.xlane.xlu0 %433
    %v435 = vsel %vm330, %v431, 0.0
    %436 = vadd.xlane.f32.xlu0 %v435
    %v437 = vpop.xlane.xlu0 %436
    %v438 = vrcp.pop %v434
    %v439 = vrcp.pop %v437
    %v440 = vmul.f32 %v429, %v438
    %v441 = vmul.f32 %v431, %v439
    %v443 = vsel %vm330, %v440, 0
    %v446 = vsel %vm330, %v441, 0
    %448 = vmatprep.subr.mxu0 0.0
    %449 = vmatpush1.msra.mxu0 0.0
    %450 = vmatprep.subr.mxu0 0.0
    %451 = vmatpush1.msra.mxu0 0.0
    %452 = vmatprep.subr.mxu0 0.0
    %453 = vmatpush1.msra.mxu0 0.0
    %454 = vmatprep.subr.mxu0 0.0
    %455 = vmatpush1.msra.mxu0 0.0
    %456 = vmatprep.subr.mxu0 0.0
    %457 = vmatpush1.msra.mxu0 0.0
    %458 = vmatprep.subr.mxu0 0.0
    %459 = vmatpush1.msra.mxu0 0.0
    %460 = vmatprep.subr.mxu0 0.0
    %461 = vmatpush1.msra.mxu0 0.0
    %462 = vmatprep.subr.mxu0 0.0
    %463 = vmatpush1.msra.mxu0 0.0
    %464 = vmatprep.subr.mxu0 0.0
    %465 = vmatpush1.msra.mxu0 0.0
    %466 = vmatprep.subr.mxu0 0.0
    %467 = vmatpush1.msra.mxu0 0.0
    %468 = vmatprep.subr.mxu0 0.0
    %469 = vmatpush1.msra.mxu0 0.0
    %470 = vmatprep.subr.mxu0 0.0
    %471 = vmatpush1.msra.mxu0 0.0
    %472 = vmatprep.subr.mxu0 0.0
    %473 = vmatpush1.msra.mxu0 0.0
    %474 = vmatprep.subr.mxu0 0.0
    %475 = vmatpush1.msra.mxu0 0.0
    %476 = vmatprep.subr.mxu0 0.0
    %477 = vmatpush1.msra.mxu0 %v327
    %478 = vmatprep.subr.mxu0 0.0
    %479 = vmatpush1.msra.mxu0 %v322
    %480 = vmatprep.subr.mxu0 0.0
    %481 = vmatpush2.msra.mxu0 0.0
    %482 = vmatprep.subr.mxu0 0.0
    %483 = vmatpush2.msra.mxu0 0.0
    %484 = vmatprep.subr.mxu0 0.0
    %485 = vmatpush2.msra.mxu0 0.0
    %486 = vmatprep.subr.mxu0 0.0
    %487 = vmatpush2.msra.mxu0 0.0
    %488 = vmatprep.subr.mxu0 0.0
    %489 = vmatpush2.msra.mxu0 0.0
    %490 = vmatprep.subr.mxu0 0.0
    %491 = vmatpush2.msra.mxu0 0.0
    %492 = vmatprep.subr.mxu0 0.0
    %493 = vmatpush2.msra.mxu0 0.0
    %494 = vmatprep.subr.mxu0 0.0
    %495 = vmatpush2.msra.mxu0 0.0
    %496 = vmatprep.subr.mxu0 0.0
    %497 = vmatpush2.msra.mxu0 0.0
    %498 = vmatprep.subr.mxu0 0.0
    %499 = vmatpush2.msra.mxu0 0.0
    %500 = vmatprep.subr.mxu0 0.0
    %501 = vmatpush2.msra.mxu0 0.0
    %502 = vmatprep.subr.mxu0 0.0
    %503 = vmatpush2.msra.mxu0 0.0
    %504 = vmatprep.subr.mxu0 0.0
    %505 = vmatpush2.msra.mxu0 0.0
    %506 = vmatprep.subr.mxu0 0.0
    %507 = vmatpush2.msra.mxu0 0.0
    %508 = vmatprep.subr.mxu0 0.0
    %509 = vmatpush2.msra.mxu0 0.0
    %510 = vmatprep.subr.mxu0 0.0
    %511 = vmatpush2.msra.mxu0 0.0
    %512 = vmatprep.mubr.f32.mxu0 0.0
    %513 = vmatmul.mubr.f32.gmra.mxu0 %v443
    %v514 = vpop.f32.mrf.mxu0
    %v515 = vadd.f32 0.0, %v514
    %v516 = vpop.f32.mrf.mxu0
    %517 = vmatprep.mubr.f32.mxu0 0.0
    %518 = vmatmul.mubr.f32.gmra.mxu0 %v446
    %v519 = vpop.f32.mrf.mxu0
    %v520 = vadd.f32 0.0, %v519
    %v521 = vpop.f32.mrf.mxu0
    %522 = vdwg.mxu0
    %v523 = vld [vmem:[%s3] sm:$0xff]
    %v524 = vld [vmem:[%s3 + $0x8] sm:$0xff]
    %v526 = vsel %vm330, %v515, 0
    %v529 = vsel %vm330, %v520, 0
    %531 = vmatprep.subr.mxu0 0.0
    %532 = vmatpush1.msra.mxu0 0.0
    %533 = vmatprep.subr.mxu0 0.0
    %534 = vmatpush1.msra.mxu0 0.0
    %535 = vmatprep.subr.mxu0 0.0
    %536 = vmatpush1.msra.mxu0 0.0
    %537 = vmatprep.subr.mxu0 0.0
    %538 = vmatpush1.msra.mxu0 0.0
    %539 = vmatprep.subr.mxu0 0.0
    %540 = vmatpush1.msra.mxu0 0.0
    %541 = vmatprep.subr.mxu0 0.0
    %542 = vmatpush1.msra.mxu0 0.0
    %543 = vmatprep.subr.mxu0 0.0
    %544 = vmatpush1.msra.mxu0 0.0
    %545 = vmatprep.subr.mxu0 0.0
    %546 = vmatpush1.msra.mxu0 0.0
    %547 = vmatprep.subr.mxu0 0.0
    %548 = vmatpush1.msra.mxu0 0.0
    %549 = vmatprep.subr.mxu0 0.0
    %550 = vmatpush1.msra.mxu0 0.0
    %551 = vmatprep.subr.mxu0 0.0
    %552 = vmatpush1.msra.mxu0 0.0
    %553 = vmatprep.subr.mxu0 0.0
    %554 = vmatpush1.msra.mxu0 0.0
    %555 = vmatprep.subr.mxu0 0.0
    %556 = vmatpush1.msra.mxu0 0.0
    %557 = vmatprep.subr.mxu0 0.0
    %558 = vmatpush1.msra.mxu0 0.0
    %559 = vmatprep.subr.mxu0 0.0
    %560 = vmatpush1.msra.mxu0 %v524
    %561 = vmatprep.subr.mxu0 0.0
    %562 = vmatpush1.msra.mxu0 %v523
    %563 = vmatprep.subr.mxu0 0.0
    %564 = vmatpush2.msra.mxu0 0.0
    %565 = vmatprep.subr.mxu0 0.0
    %566 = vmatpush2.msra.mxu0 0.0
    %567 = vmatprep.subr.mxu0 0.0
    %568 = vmatpush2.msra.mxu0 0.0
    %569 = vmatprep.subr.mxu0 0.0
    %570 = vmatpush2.msra.mxu0 0.0
    %571 = vmatprep.subr.mxu0 0.0
    %572 = vmatpush2.msra.mxu0 0.0
    %573 = vmatprep.subr.mxu0 0.0
    %574 = vmatpush2.msra.mxu0 0.0
    %575 = vmatprep.subr.mxu0 0.0
    %576 = vmatpush2.msra.mxu0 0.0
    %577 = vmatprep.subr.mxu0 0.0
    %578 = vmatpush2.msra.mxu0 0.0
    %579 = vmatprep.subr.mxu0 0.0
    %580 = vmatpush2.msra.mxu0 0.0
    %581 = vmatprep.subr.mxu0 0.0
    %582 = vmatpush2.msra.mxu0 0.0
    %583 = vmatprep.subr.mxu0 0.0
    %584 = vmatpush2.msra.mxu0 0.0
    %585 = vmatprep.subr.mxu0 0.0
    %586 = vmatpush2.msra.mxu0 0.0
    %587 = vmatprep.subr.mxu0 0.0
    %588 = vmatpush2.msra.mxu0 0.0
    %589 = vmatprep.subr.mxu0 0.0
    %590 = vmatpush2.msra.mxu0 0.0
    %591 = vmatprep.subr.mxu0 0.0
    %592 = vmatpush2.msra.mxu0 0.0
    %593 = vmatprep.subr.mxu0 0.0
    %594 = vmatpush2.msra.mxu0 0.0
    %595 = vmatprep.mubr.f32.mxu0 0.0
    %596 = vmatmul.mubr.f32.gmra.mxu0 %v526
    %v597 = vpop.f32.mrf.mxu0
    %v598 = vadd.f32 0.0, %v597
    %v599 = vpop.f32.mrf.mxu0
    %600 = vmatprep.mubr.f32.mxu0 0.0
    %601 = vmatmul.mubr.f32.gmra.mxu0 %v529
    %v602 = vpop.f32.mrf.mxu0
    %v603 = vadd.f32 0.0, %v602
    %v604 = vpop.f32.mrf.mxu0
    %605 = vdwg.mxu0
    %v606 = vadd.f32 %v59, %v598
    %v607 = vadd.f32 %v59, %v603
    %s608 = scalar_lea.vmem %s2, 64
    %v609 = vld [vmem:[%s608] sm:$0xff]
    %v610 = vld [vmem:[%s608 + $0x8] sm:$0xff]
    %v611 = vld [vmem:[%s608 + $0x10] sm:$0xff]
    %v612 = vld [vmem:[%s608 + $0x18] sm:$0xff]
    %v613 = vld [vmem:[%s608 + $0x20] sm:$0xff]
    %v614 = vld [vmem:[%s608 + $0x28] sm:$0xff]
    %v615 = vld [vmem:[%s608 + $0x30] sm:$0xff]
    %v616 = vld [vmem:[%s608 + $0x38] sm:$0xff]
    %v617 = vlaneseq
    %v618 = vshrl.u32 %v617, 7
    %v619 = vsub.s32 1, %v618
    %v620 = vrot.slane %v45, %v619
    %621 = vmatprep.subr.mxu0 0.0
    %622 = vmatpush1.msra.mxu0 0.0
    %623 = vmatprep.subr.mxu0 0.0
    %624 = vmatpush1.msra.mxu0 0.0
    %625 = vmatprep.subr.mxu0 0.0
    %626 = vmatpush1.msra.mxu0 0.0
    %627 = vmatprep.subr.mxu0 0.0
    %628 = vmatpush1.msra.mxu0 0.0
    %629 = vmatprep.subr.mxu0 0.0
    %630 = vmatpush1.msra.mxu0 0.0
    %631 = vmatprep.subr.mxu0 0.0
    %632 = vmatpush1.msra.mxu0 0.0
    %633 = vmatprep.subr.mxu0 0.0
    %634 = vmatpush1.msra.mxu0 0.0
    %635 = vmatprep.subr.mxu0 0.0
    %636 = vmatpush1.msra.mxu0 0.0
    %637 = vmatprep.subr.mxu0 0.0
    %638 = vmatpush1.msra.mxu0 %v616
    %639 = vmatprep.subr.mxu0 0.0
    %640 = vmatpush1.msra.mxu0 %v615
    %641 = vmatprep.subr.mxu0 0.0
    %642 = vmatpush1.msra.mxu0 %v614
    %643 = vmatprep.subr.mxu0 0.0
    %644 = vmatpush1.msra.mxu0 %v613
    %645 = vmatprep.subr.mxu0 0.0
    %646 = vmatpush1.msra.mxu0 %v612
    %647 = vmatprep.subr.mxu0 0.0
    %648 = vmatpush1.msra.mxu0 %v611
    %649 = vmatprep.subr.mxu0 0.0
    %650 = vmatpush1.msra.mxu0 %v610
    %651 = vmatprep.subr.mxu0 0.0
    %652 = vmatpush1.msra.mxu0 %v609
    %653 = vmatprep.subr.mxu0 0.0
    %654 = vmatpush2.msra.mxu0 0.0
    %655 = vmatprep.subr.mxu0 0.0
    %656 = vmatpush2.msra.mxu0 0.0
    %657 = vmatprep.subr.mxu0 0.0
    %658 = vmatpush2.msra.mxu0 0.0
    %659 = vmatprep.subr.mxu0 0.0
    %660 = vmatpush2.msra.mxu0 0.0
    %661 = vmatprep.subr.mxu0 0.0
    %662 = vmatpush2.msra.mxu0 0.0
    %663 = vmatprep.subr.mxu0 0.0
    %664 = vmatpush2.msra.mxu0 0.0
    %665 = vmatprep.subr.mxu0 0.0
    %666 = vmatpush2.msra.mxu0 0.0
    %667 = vmatprep.subr.mxu0 0.0
    %668 = vmatpush2.msra.mxu0 0.0
    %669 = vmatprep.subr.mxu0 0.0
    %670 = vmatpush2.msra.mxu0 0.0
    %671 = vmatprep.subr.mxu0 0.0
    %672 = vmatpush2.msra.mxu0 0.0
    %673 = vmatprep.subr.mxu0 0.0
    %674 = vmatpush2.msra.mxu0 0.0
    %675 = vmatprep.subr.mxu0 0.0
    %676 = vmatpush2.msra.mxu0 0.0
    %677 = vmatprep.subr.mxu0 0.0
    %678 = vmatpush2.msra.mxu0 0.0
    %679 = vmatprep.subr.mxu0 0.0
    %680 = vmatpush2.msra.mxu0 0.0
    %681 = vmatprep.subr.mxu0 0.0
    %682 = vmatpush2.msra.mxu0 0.0
    %683 = vmatprep.subr.mxu0 0.0
    %684 = vmatpush2.msra.mxu0 0.0
    %685 = vmatprep.mubr.f32.mxu0 0.0
    %686 = vmatmul.mubr.f32.gmra.mxu0 %v74
    %v687 = vpop.f32.mrf.mxu0
    %v688 = vadd.f32 %v620, %v687
    %v689 = vpop.f32.mrf.mxu0
    %690 = vmatprep.mubr.f32.mxu0 0.0
    %691 = vmatmul.mubr.f32.gmra.mxu0 %v77
    %v692 = vpop.f32.mrf.mxu0
    %v693 = vadd.f32 %v620, %v692
    %v694 = vpop.f32.mrf.mxu0
    %695 = vdwg.mxu0
    %s696 = scalar_lea.vmem %s2, 320
    %v697 = vld [vmem:[%s696] sm:$0xff]
    %v698 = vld [vmem:[%s696 + $0x8] sm:$0xff]
    %v699 = vld [vmem:[%s696 + $0x10] sm:$0xff]
    %v700 = vld [vmem:[%s696 + $0x18] sm:$0xff]
    %v701 = vld [vmem:[%s696 + $0x20] sm:$0xff]
    %v702 = vld [vmem:[%s696 + $0x28] sm:$0xff]
    %v703 = vld [vmem:[%s696 + $0x30] sm:$0xff]
    %v704 = vld [vmem:[%s696 + $0x38] sm:$0xff]
    %v705 = vlaneseq
    %v706 = vshrl.u32 %v705, 7
    %v707 = vsub.s32 5, %v706
    %v708 = vrot.slane %v45, %v707
    %709 = vmatprep.subr.mxu0 0.0
    %710 = vmatpush1.msra.mxu0 0.0
    %711 = vmatprep.subr.mxu0 0.0
    %712 = vmatpush1.msra.mxu0 0.0
    %713 = vmatprep.subr.mxu0 0.0
    %714 = vmatpush1.msra.mxu0 0.0
    %715 = vmatprep.subr.mxu0 0.0
    %716 = vmatpush1.msra.mxu0 0.0
    %717 = vmatprep.subr.mxu0 0.0
    %718 = vmatpush1.msra.mxu0 0.0
    %719 = vmatprep.subr.mxu0 0.0
    %720 = vmatpush1.msra.mxu0 0.0
    %721 = vmatprep.subr.mxu0 0.0
    %722 = vmatpush1.msra.mxu0 0.0
    %723 = vmatprep.subr.mxu0 0.0
    %724 = vmatpush1.msra.mxu0 0.0
    %725 = vmatprep.subr.mxu0 0.0
    %726 = vmatpush1.msra.mxu0 %v704
    %727 = vmatprep.subr.mxu0 0.0
    %728 = vmatpush1.msra.mxu0 %v703
    %729 = vmatprep.subr.mxu0 0.0
    %730 = vmatpush1.msra.mxu0 %v702
    %731 = vmatprep.subr.mxu0 0.0
    %732 = vmatpush1.msra.mxu0 %v701
    %733 = vmatprep.subr.mxu0 0.0
    %734 = vmatpush1.msra.mxu0 %v700
    %735 = vmatprep.subr.mxu0 0.0
    %736 = vmatpush1.msra.mxu0 %v699
    %737 = vmatprep.subr.mxu0 0.0
    %738 = vmatpush1.msra.mxu0 %v698
    %739 = vmatprep.subr.mxu0 0.0
    %740 = vmatpush1.msra.mxu0 %v697
    %741 = vmatprep.subr.mxu0 0.0
    %742 = vmatpush2.msra.mxu0 0.0
    %743 = vmatprep.subr.mxu0 0.0
    %744 = vmatpush2.msra.mxu0 0.0
    %745 = vmatprep.subr.mxu0 0.0
    %746 = vmatpush2.msra.mxu0 0.0
    %747 = vmatprep.subr.mxu0 0.0
    %748 = vmatpush2.msra.mxu0 0.0
    %749 = vmatprep.subr.mxu0 0.0
    %750 = vmatpush2.msra.mxu0 0.0
    %751 = vmatprep.subr.mxu0 0.0
    %752 = vmatpush2.msra.mxu0 0.0
    %753 = vmatprep.subr.mxu0 0.0
    %754 = vmatpush2.msra.mxu0 0.0
    %755 = vmatprep.subr.mxu0 0.0
    %756 = vmatpush2.msra.mxu0 0.0
    %757 = vmatprep.subr.mxu0 0.0
    %758 = vmatpush2.msra.mxu0 0.0
    %759 = vmatprep.subr.mxu0 0.0
    %760 = vmatpush2.msra.mxu0 0.0
    %761 = vmatprep.subr.mxu0 0.0
    %762 = vmatpush2.msra.mxu0 0.0
    %763 = vmatprep.subr.mxu0 0.0
    %764 = vmatpush2.msra.mxu0 0.0
    %765 = vmatprep.subr.mxu0 0.0
    %766 = vmatpush2.msra.mxu0 0.0
    %767 = vmatprep.subr.mxu0 0.0
    %768 = vmatpush2.msra.mxu0 0.0
    %769 = vmatprep.subr.mxu0 0.0
    %770 = vmatpush2.msra.mxu0 0.0
    %771 = vmatprep.subr.mxu0 0.0
    %772 = vmatpush2.msra.mxu0 0.0
    %773 = vmatprep.mubr.f32.mxu0 0.0
    %774 = vmatmul.mubr.f32.gmra.mxu0 %v74
    %v775 = vpop.f32.mrf.mxu0
    %v776 = vadd.f32 %v708, %v775
    %v777 = vpop.f32.mrf.mxu0
    %778 = vmatprep.mubr.f32.mxu0 0.0
    %779 = vmatmul.mubr.f32.gmra.mxu0 %v77
    %v780 = vpop.f32.mrf.mxu0
    %v781 = vadd.f32 %v708, %v780
    %v782 = vpop.f32.mrf.mxu0
    %783 = vdwg.mxu0
    %s784 = scalar_lea.vmem %s2, 576
    %v785 = vld [vmem:[%s784] sm:$0xff]
    %v786 = vld [vmem:[%s784 + $0x8] sm:$0xff]
    %v787 = vld [vmem:[%s784 + $0x10] sm:$0xff]
    %v788 = vld [vmem:[%s784 + $0x18] sm:$0xff]
    %v789 = vld [vmem:[%s784 + $0x20] sm:$0xff]
    %v790 = vld [vmem:[%s784 + $0x28] sm:$0xff]
    %v791 = vld [vmem:[%s784 + $0x30] sm:$0xff]
    %v792 = vld [vmem:[%s784 + $0x38] sm:$0xff]
    %v793 = vlaneseq
    %v794 = vshrl.u32 %v793, 7
    %v795 = vsub.s32 1, %v794
    %v796 = vrot.slane %v46, %v795
    %797 = vmatprep.subr.mxu0 0.0
    %798 = vmatpush1.msra.mxu0 0.0
    %799 = vmatprep.subr.mxu0 0.0
    %800 = vmatpush1.msra.mxu0 0.0
    %801 = vmatprep.subr.mxu0 0.0
    %802 = vmatpush1.msra.mxu0 0.0
    %803 = vmatprep.subr.mxu0 0.0
    %804 = vmatpush1.msra.mxu0 0.0
    %805 = vmatprep.subr.mxu0 0.0
    %806 = vmatpush1.msra.mxu0 0.0
    %807 = vmatprep.subr.mxu0 0.0
    %808 = vmatpush1.msra.mxu0 0.0
    %809 = vmatprep.subr.mxu0 0.0
    %810 = vmatpush1.msra.mxu0 0.0
    %811 = vmatprep.subr.mxu0 0.0
    %812 = vmatpush1.msra.mxu0 0.0
    %813 = vmatprep.subr.mxu0 0.0
    %814 = vmatpush1.msra.mxu0 %v792
    %815 = vmatprep.subr.mxu0 0.0
    %816 = vmatpush1.msra.mxu0 %v791
    %817 = vmatprep.subr.mxu0 0.0
    %818 = vmatpush1.msra.mxu0 %v790
    %819 = vmatprep.subr.mxu0 0.0
    %820 = vmatpush1.msra.mxu0 %v789
    %821 = vmatprep.subr.mxu0 0.0
    %822 = vmatpush1.msra.mxu0 %v788
    %823 = vmatprep.subr.mxu0 0.0
    %824 = vmatpush1.msra.mxu0 %v787
    %825 = vmatprep.subr.mxu0 0.0
    %826 = vmatpush1.msra.mxu0 %v786
    %827 = vmatprep.subr.mxu0 0.0
    %828 = vmatpush1.msra.mxu0 %v785
    %829 = vmatprep.subr.mxu0 0.0
    %830 = vmatpush2.msra.mxu0 0.0
    %831 = vmatprep.subr.mxu0 0.0
    %832 = vmatpush2.msra.mxu0 0.0
    %833 = vmatprep.subr.mxu0 0.0
    %834 = vmatpush2.msra.mxu0 0.0
    %835 = vmatprep.subr.mxu0 0.0
    %836 = vmatpush2.msra.mxu0 0.0
    %837 = vmatprep.subr.mxu0 0.0
    %838 = vmatpush2.msra.mxu0 0.0
    %839 = vmatprep.subr.mxu0 0.0
    %840 = vmatpush2.msra.mxu0 0.0
    %841 = vmatprep.subr.mxu0 0.0
    %842 = vmatpush2.msra.mxu0 0.0
    %843 = vmatprep.subr.mxu0 0.0
    %844 = vmatpush2.msra.mxu0 0.0
    %845 = vmatprep.subr.mxu0 0.0
    %846 = vmatpush2.msra.mxu0 0.0
    %847 = vmatprep.subr.mxu0 0.0
    %848 = vmatpush2.msra.mxu0 0.0
    %849 = vmatprep.subr.mxu0 0.0
    %850 = vmatpush2.msra.mxu0 0.0
    %851 = vmatprep.subr.mxu0 0.0
    %852 = vmatpush2.msra.mxu0 0.0
    %853 = vmatprep.subr.mxu0 0.0
    %854 = vmatpush2.msra.mxu0 0.0
    %855 = vmatprep.subr.mxu0 0.0
    %856 = vmatpush2.msra.mxu0 0.0
    %857 = vmatprep.subr.mxu0 0.0
    %858 = vmatpush2.msra.mxu0 0.0
    %859 = vmatprep.subr.mxu0 0.0
    %860 = vmatpush2.msra.mxu0 0.0
    %861 = vmatprep.mubr.f32.mxu0 0.0
    %862 = vmatmul.mubr.f32.gmra.mxu0 %v74
    %v863 = vpop.f32.mrf.mxu0
    %v864 = vadd.f32 %v796, %v863
    %v865 = vpop.f32.mrf.mxu0
    %866 = vmatprep.mubr.f32.mxu0 0.0
    %867 = vmatmul.mubr.f32.gmra.mxu0 %v77
    %v868 = vpop.f32.mrf.mxu0
    %v869 = vadd.f32 %v796, %v868
    %v870 = vpop.f32.mrf.mxu0
    %871 = vdwg.mxu0
    %v873 = vsel %vm330, %v688, 0
    %v876 = vsel %vm330, %v693, 0
    %v879 = vsel %vm330, %v776, 0
    %v882 = vsel %vm330, %v781, 0
    %884 = vmatprep.subr.mxu0 0.0
    %885 = vmatpush1.xpose.msra.mxu0 0.0
    %886 = vmatprep.subr.mxu0 0.0
    %887 = vmatpush1.xpose.msra.mxu0 0.0
    %888 = vmatprep.subr.mxu0 0.0
    %889 = vmatpush1.xpose.msra.mxu0 0.0
    %890 = vmatprep.subr.mxu0 0.0
    %891 = vmatpush1.xpose.msra.mxu0 0.0
    %892 = vmatprep.subr.mxu0 0.0
    %893 = vmatpush1.xpose.msra.mxu0 0.0
    %894 = vmatprep.subr.mxu0 0.0
    %895 = vmatpush1.xpose.msra.mxu0 0.0
    %896 = vmatprep.subr.mxu0 0.0
    %897 = vmatpush1.xpose.msra.mxu0 0.0
    %898 = vmatprep.subr.mxu0 0.0
    %899 = vmatpush1.xpose.msra.mxu0 0.0
    %900 = vmatprep.subr.mxu0 0.0
    %901 = vmatpush1.xpose.msra.mxu0 0.0
    %902 = vmatprep.subr.mxu0 0.0
    %903 = vmatpush1.xpose.msra.mxu0 0.0
    %904 = vmatprep.subr.mxu0 0.0
    %905 = vmatpush1.xpose.msra.mxu0 0.0
    %906 = vmatprep.subr.mxu0 0.0
    %907 = vmatpush1.xpose.msra.mxu0 0.0
    %908 = vmatprep.subr.mxu0 0.0
    %909 = vmatpush1.xpose.msra.mxu0 0.0
    %910 = vmatprep.subr.mxu0 0.0
    %911 = vmatpush1.xpose.msra.mxu0 0.0
    %912 = vmatprep.subr.mxu0 0.0
    %913 = vmatpush1.xpose.msra.mxu0 %v882
    %914 = vmatprep.subr.mxu0 0.0
    %915 = vmatpush1.xpose.msra.mxu0 %v879
    %916 = vmatprep.subr.mxu0 0.0
    %917 = vmatpush2.xpose.msra.mxu0 0.0
    %918 = vmatprep.subr.mxu0 0.0
    %919 = vmatpush2.xpose.msra.mxu0 0.0
    %920 = vmatprep.subr.mxu0 0.0
    %921 = vmatpush2.xpose.msra.mxu0 0.0
    %922 = vmatprep.subr.mxu0 0.0
    %923 = vmatpush2.xpose.msra.mxu0 0.0
    %924 = vmatprep.subr.mxu0 0.0
    %925 = vmatpush2.xpose.msra.mxu0 0.0
    %926 = vmatprep.subr.mxu0 0.0
    %927 = vmatpush2.xpose.msra.mxu0 0.0
    %928 = vmatprep.subr.mxu0 0.0
    %929 = vmatpush2.xpose.msra.mxu0 0.0
    %930 = vmatprep.subr.mxu0 0.0
    %931 = vmatpush2.xpose.msra.mxu0 0.0
    %932 = vmatprep.subr.mxu0 0.0
    %933 = vmatpush2.xpose.msra.mxu0 0.0
    %934 = vmatprep.subr.mxu0 0.0
    %935 = vmatpush2.xpose.msra.mxu0 0.0
    %936 = vmatprep.subr.mxu0 0.0
    %937 = vmatpush2.xpose.msra.mxu0 0.0
    %938 = vmatprep.subr.mxu0 0.0
    %939 = vmatpush2.xpose.msra.mxu0 0.0
    %940 = vmatprep.subr.mxu0 0.0
    %941 = vmatpush2.xpose.msra.mxu0 0.0
    %942 = vmatprep.subr.mxu0 0.0
    %943 = vmatpush2.xpose.msra.mxu0 0.0
    %944 = vmatprep.subr.mxu0 0.0
    %945 = vmatpush2.xpose.msra.mxu0 0.0
    %946 = vmatprep.subr.mxu0 0.0
    %947 = vmatpush2.xpose.msra.mxu0 0.0
    %948 = vmatprep.mubr.f32.mxu0 0.0
    %949 = vmatmul.mubr.f32.gmra.mxu0 %v873
    %v950 = vpop.f32.mrf.mxu0
    %v951 = vadd.f32 0.0, %v950
    %v952 = vpop.f32.mrf.mxu0
    %953 = vmatprep.mubr.f32.mxu0 0.0
    %954 = vmatmul.mubr.f32.gmra.mxu0 %v876
    %v955 = vpop.f32.mrf.mxu0
    %v956 = vadd.f32 0.0, %v955
    %v957 = vpop.f32.mrf.mxu0
    %958 = vdwg.mxu0
    %v959 = vmul.f32 %v951, 0.25
    %v960 = vmul.f32 %v956, 0.25
    %v961 = vsel %vm330, %v959, -inf
    %962 = vmax.xlane.f32.xlu0 %v961
    %v963 = vpop.xlane.xlu0 %962
    %v964 = vsel %vm330, %v960, -inf
    %965 = vmax.xlane.f32.xlu0 %v964
    %v966 = vpop.xlane.xlu0 %965
    %v967 = vsub.f32 %v959, %v963
    %v968 = vsub.f32 %v960, %v966
    %v969 = vmul.f32 %v967, 1.442695
    %v970 = vpow.pop %v969
    %v971 = vmul.f32 %v968, 1.442695
    %v972 = vpow.pop %v971
    %v973 = vsel %vm330, %v970, 0.0
    %974 = vadd.xlane.f32.xlu0 %v973
    %v975 = vpop.xlane.xlu0 %974
    %v976 = vsel %vm330, %v972, 0.0
    %977 = vadd.xlane.f32.xlu0 %v976
    %v978 = vpop.xlane.xlu0 %977
    %v979 = vrcp.pop %v975
    %v980 = vrcp.pop %v978
    %v981 = vmul.f32 %v970, %v979
    %v982 = vmul.f32 %v972, %v980
    %v984 = vsel %vm330, %v981, 0
    %v987 = vsel %vm330, %v982, 0
    %989 = vmatprep.subr.mxu0 0.0
    %990 = vmatpush1.msra.mxu0 0.0
    %991 = vmatprep.subr.mxu0 0.0
    %992 = vmatpush1.msra.mxu0 0.0
    %993 = vmatprep.subr.mxu0 0.0
    %994 = vmatpush1.msra.mxu0 0.0
    %995 = vmatprep.subr.mxu0 0.0
    %996 = vmatpush1.msra.mxu0 0.0
    %997 = vmatprep.subr.mxu0 0.0
    %998 = vmatpush1.msra.mxu0 0.0
    %999 = vmatprep.subr.mxu0 0.0
    %1000 = vmatpush1.msra.mxu0 0.0
    %1001 = vmatprep.subr.mxu0 0.0
    %1002 = vmatpush1.msra.mxu0 0.0
    %1003 = vmatprep.subr.mxu0 0.0
    %1004 = vmatpush1.msra.mxu0 0.0
    %1005 = vmatprep.subr.mxu0 0.0
    %1006 = vmatpush1.msra.mxu0 0.0
    %1007 = vmatprep.subr.mxu0 0.0
    %1008 = vmatpush1.msra.mxu0 0.0
    %1009 = vmatprep.subr.mxu0 0.0
    %1010 = vmatpush1.msra.mxu0 0.0
    %1011 = vmatprep.subr.mxu0 0.0
    %1012 = vmatpush1.msra.mxu0 0.0
    %1013 = vmatprep.subr.mxu0 0.0
    %1014 = vmatpush1.msra.mxu0 0.0
    %1015 = vmatprep.subr.mxu0 0.0
    %1016 = vmatpush1.msra.mxu0 0.0
    %1017 = vmatprep.subr.mxu0 0.0
    %1018 = vmatpush1.msra.mxu0 %v869
    %1019 = vmatprep.subr.mxu0 0.0
    %1020 = vmatpush1.msra.mxu0 %v864
    %1021 = vmatprep.subr.mxu0 0.0
    %1022 = vmatpush2.msra.mxu0 0.0
    %1023 = vmatprep.subr.mxu0 0.0
    %1024 = vmatpush2.msra.mxu0 0.0
    %1025 = vmatprep.subr.mxu0 0.0
    %1026 = vmatpush2.msra.mxu0 0.0
    %1027 = vmatprep.subr.mxu0 0.0
    %1028 = vmatpush2.msra.mxu0 0.0
    %1029 = vmatprep.subr.mxu0 0.0
    %1030 = vmatpush2.msra.mxu0 0.0
    %1031 = vmatprep.subr.mxu0 0.0
    %1032 = vmatpush2.msra.mxu0 0.0
    %1033 = vmatprep.subr.mxu0 0.0
    %1034 = vmatpush2.msra.mxu0 0.0
    %1035 = vmatprep.subr.mxu0 0.0
    %1036 = vmatpush2.msra.mxu0 0.0
    %1037 = vmatprep.subr.mxu0 0.0
    %1038 = vmatpush2.msra.mxu0 0.0
    %1039 = vmatprep.subr.mxu0 0.0
    %1040 = vmatpush2.msra.mxu0 0.0
    %1041 = vmatprep.subr.mxu0 0.0
    %1042 = vmatpush2.msra.mxu0 0.0
    %1043 = vmatprep.subr.mxu0 0.0
    %1044 = vmatpush2.msra.mxu0 0.0
    %1045 = vmatprep.subr.mxu0 0.0
    %1046 = vmatpush2.msra.mxu0 0.0
    %1047 = vmatprep.subr.mxu0 0.0
    %1048 = vmatpush2.msra.mxu0 0.0
    %1049 = vmatprep.subr.mxu0 0.0
    %1050 = vmatpush2.msra.mxu0 0.0
    %1051 = vmatprep.subr.mxu0 0.0
    %1052 = vmatpush2.msra.mxu0 0.0
    %1053 = vmatprep.mubr.f32.mxu0 0.0
    %1054 = vmatmul.mubr.f32.gmra.mxu0 %v984
    %v1055 = vpop.f32.mrf.mxu0
    %v1056 = vadd.f32 0.0, %v1055
    %v1057 = vpop.f32.mrf.mxu0
    %1058 = vmatprep.mubr.f32.mxu0 0.0
    %1059 = vmatmul.mubr.f32.gmra.mxu0 %v987
    %v1060 = vpop.f32.mrf.mxu0
    %v1061 = vadd.f32 0.0, %v1060
    %v1062 = vpop.f32.mrf.mxu0
    %1063 = vdwg.mxu0
    %s1064 = scalar_lea.vmem %s3, 16
    %v1065 = vld [vmem:[%s1064] sm:$0xff]
    %v1066 = vld [vmem:[%s1064 + $0x8] sm:$0xff]
    %v1068 = vsel %vm330, %v1056, 0
    %v1071 = vsel %vm330, %v1061, 0
    %1073 = vmatprep.subr.mxu0 0.0
    %1074 = vmatpush1.msra.mxu0 0.0
    %1075 = vmatprep.subr.mxu0 0.0
    %1076 = vmatpush1.msra.mxu0 0.0
    %1077 = vmatprep.subr.mxu0 0.0
    %1078 = vmatpush1.msra.mxu0 0.0
    %1079 = vmatprep.subr.mxu0 0.0
    %1080 = vmatpush1.msra.mxu0 0.0
    %1081 = vmatprep.subr.mxu0 0.0
    %1082 = vmatpush1.msra.mxu0 0.0
    %1083 = vmatprep.subr.mxu0 0.0
    %1084 = vmatpush1.msra.mxu0 0.0
    %1085 = vmatprep.subr.mxu0 0.0
    %1086 = vmatpush1.msra.mxu0 0.0
    %1087 = vmatprep.subr.mxu0 0.0
    %1088 = vmatpush1.msra.mxu0 0.0
    %1089 = vmatprep.subr.mxu0 0.0
    %1090 = vmatpush1.msra.mxu0 0.0
    %1091 = vmatprep.subr.mxu0 0.0
    %1092 = vmatpush1.msra.mxu0 0.0
    %1093 = vmatprep.subr.mxu0 0.0
    %1094 = vmatpush1.msra.mxu0 0.0
    %1095 = vmatprep.subr.mxu0 0.0
    %1096 = vmatpush1.msra.mxu0 0.0
    %1097 = vmatprep.subr.mxu0 0.0
    %1098 = vmatpush1.msra.mxu0 0.0
    %1099 = vmatprep.subr.mxu0 0.0
    %1100 = vmatpush1.msra.mxu0 0.0
    %1101 = vmatprep.subr.mxu0 0.0
    %1102 = vmatpush1.msra.mxu0 %v1066
    %1103 = vmatprep.subr.mxu0 0.0
    %1104 = vmatpush1.msra.mxu0 %v1065
    %1105 = vmatprep.subr.mxu0 0.0
    %1106 = vmatpush2.msra.mxu0 0.0
    %1107 = vmatprep.subr.mxu0 0.0
    %1108 = vmatpush2.msra.mxu0 0.0
    %1109 = vmatprep.subr.mxu0 0.0
    %1110 = vmatpush2.msra.mxu0 0.0
    %1111 = vmatprep.subr.mxu0 0.0
    %1112 = vmatpush2.msra.mxu0 0.0
    %1113 = vmatprep.subr.mxu0 0.0
    %1114 = vmatpush2.msra.mxu0 0.0
    %1115 = vmatprep.subr.mxu0 0.0
    %1116 = vmatpush2.msra.mxu0 0.0
    %1117 = vmatprep.subr.mxu0 0.0
    %1118 = vmatpush2.msra.mxu0 0.0
    %1119 = vmatprep.subr.mxu0 0.0
    %1120 = vmatpush2.msra.mxu0 0.0
    %1121 = vmatprep.subr.mxu0 0.0
    %1122 = vmatpush2.msra.mxu0 0.0
    %1123 = vmatprep.subr.mxu0 0.0
    %1124 = vmatpush2.msra.mxu0 0.0
    %1125 = vmatprep.subr.mxu0 0.0
    %1126 = vmatpush2.msra.mxu0 0.0
    %1127 = vmatprep.subr.mxu0 0.0
    %1128 = vmatpush2.msra.mxu0 0.0
    %1129 = vmatprep.subr.mxu0 0.0
    %1130 = vmatpush2.msra.mxu0 0.0
    %1131 = vmatprep.subr.mxu0 0.0
    %1132 = vmatpush2.msra.mxu0 0.0
    %1133 = vmatprep.subr.mxu0 0.0
    %1134 = vmatpush2.msra.mxu0 0.0
    %1135 = vmatprep.subr.mxu0 0.0
    %1136 = vmatpush2.msra.mxu0 0.0
    %1137 = vmatprep.mubr.f32.mxu0 0.0
    %1138 = vmatmul.mubr.f32.gmra.mxu0 %v1068
    %v1139 = vpop.f32.mrf.mxu0
    %v1140 = vadd.f32 0.0, %v1139
    %v1141 = vpop.f32.mrf.mxu0
    %1142 = vmatprep.mubr.f32.mxu0 0.0
    %1143 = vmatmul.mubr.f32.gmra.mxu0 %v1071
    %v1144 = vpop.f32.mrf.mxu0
    %v1145 = vadd.f32 0.0, %v1144
    %v1146 = vpop.f32.mrf.mxu0
    %1147 = vdwg.mxu0
    %v1148 = vadd.f32 %v606, %v1140
    %v1149 = vadd.f32 %v607, %v1145
    %s1150 = scalar_lea.vmem %s2, 128
    %v1151 = vld [vmem:[%s1150] sm:$0xff]
    %v1152 = vld [vmem:[%s1150 + $0x8] sm:$0xff]
    %v1153 = vld [vmem:[%s1150 + $0x10] sm:$0xff]
    %v1154 = vld [vmem:[%s1150 + $0x18] sm:$0xff]
    %v1155 = vld [vmem:[%s1150 + $0x20] sm:$0xff]
    %v1156 = vld [vmem:[%s1150 + $0x28] sm:$0xff]
    %v1157 = vld [vmem:[%s1150 + $0x30] sm:$0xff]
    %v1158 = vld [vmem:[%s1150 + $0x38] sm:$0xff]
    %v1159 = vlaneseq
    %v1160 = vshrl.u32 %v1159, 7
    %v1161 = vsub.s32 2, %v1160
    %v1162 = vrot.slane %v45, %v1161
    %1163 = vmatprep.subr.mxu0 0.0
    %1164 = vmatpush1.msra.mxu0 0.0
    %1165 = vmatprep.subr.mxu0 0.0
    %1166 = vmatpush1.msra.mxu0 0.0
    %1167 = vmatprep.subr.mxu0 0.0
    %1168 = vmatpush1.msra.mxu0 0.0
    %1169 = vmatprep.subr.mxu0 0.0
    %1170 = vmatpush1.msra.mxu0 0.0
    %1171 = vmatprep.subr.mxu0 0.0
    %1172 = vmatpush1.msra.mxu0 0.0
    %1173 = vmatprep.subr.mxu0 0.0
    %1174 = vmatpush1.msra.mxu0 0.0
    %1175 = vmatprep.subr.mxu0 0.0
    %1176 = vmatpush1.msra.mxu0 0.0
    %1177 = vmatprep.subr.mxu0 0.0
    %1178 = vmatpush1.msra.mxu0 0.0
    %1179 = vmatprep.subr.mxu0 0.0
    %1180 = vmatpush1.msra.mxu0 %v1158
    %1181 = vmatprep.subr.mxu0 0.0
    %1182 = vmatpush1.msra.mxu0 %v1157
    %1183 = vmatprep.subr.mxu0 0.0
    %1184 = vmatpush1.msra.mxu0 %v1156
    %1185 = vmatprep.subr.mxu0 0.0
    %1186 = vmatpush1.msra.mxu0 %v1155
    %1187 = vmatprep.subr.mxu0 0.0
    %1188 = vmatpush1.msra.mxu0 %v1154
    %1189 = vmatprep.subr.mxu0 0.0
    %1190 = vmatpush1.msra.mxu0 %v1153
    %1191 = vmatprep.subr.mxu0 0.0
    %1192 = vmatpush1.msra.mxu0 %v1152
    %1193 = vmatprep.subr.mxu0 0.0
    %1194 = vmatpush1.msra.mxu0 %v1151
    %1195 = vmatprep.subr.mxu0 0.0
    %1196 = vmatpush2.msra.mxu0 0.0
    %1197 = vmatprep.subr.mxu0 0.0
    %1198 = vmatpush2.msra.mxu0 0.0
    %1199 = vmatprep.subr.mxu0 0.0
    %1200 = vmatpush2.msra.mxu0 0.0
    %1201 = vmatprep.subr.mxu0 0.0
    %1202 = vmatpush2.msra.mxu0 0.0
    %1203 = vmatprep.subr.mxu0 0.0
    %1204 = vmatpush2.msra.mxu0 0.0
    %1205 = vmatprep.subr.mxu0 0.0
    %1206 = vmatpush2.msra.mxu0 0.0
    %1207 = vmatprep.subr.mxu0 0.0
    %1208 = vmatpush2.msra.mxu0 0.0
    %1209 = vmatprep.subr.mxu0 0.0
    %1210 = vmatpush2.msra.mxu0 0.0
    %1211 = vmatprep.subr.mxu0 0.0
    %1212 = vmatpush2.msra.mxu0 0.0
    %1213 = vmatprep.subr.mxu0 0.0
    %1214 = vmatpush2.msra.mxu0 0.0
    %1215 = vmatprep.subr.mxu0 0.0
    %1216 = vmatpush2.msra.mxu0 0.0
    %1217 = vmatprep.subr.mxu0 0.0
    %1218 = vmatpush2.msra.mxu0 0.0
    %1219 = vmatprep.subr.mxu0 0.0
    %1220 = vmatpush2.msra.mxu0 0.0
    %1221 = vmatprep.subr.mxu0 0.0
    %1222 = vmatpush2.msra.mxu0 0.0
    %1223 = vmatprep.subr.mxu0 0.0
    %1224 = vmatpush2.msra.mxu0 0.0
    %1225 = vmatprep.subr.mxu0 0.0
    %1226 = vmatpush2.msra.mxu0 0.0
    %1227 = vmatprep.mubr.f32.mxu0 0.0
    %1228 = vmatmul.mubr.f32.gmra.mxu0 %v74
    %v1229 = vpop.f32.mrf.mxu0
    %v1230 = vadd.f32 %v1162, %v1229
    %v1231 = vpop.f32.mrf.mxu0
    %1232 = vmatprep.mubr.f32.mxu0 0.0
    %1233 = vmatmul.mubr.f32.gmra.mxu0 %v77
    %v1234 = vpop.f32.mrf.mxu0
    %v1235 = vadd.f32 %v1162, %v1234
    %v1236 = vpop.f32.mrf.mxu0
    %1237 = vdwg.mxu0
    %s1238 = scalar_lea.vmem %s2, 384
    %v1239 = vld [vmem:[%s1238] sm:$0xff]
    %v1240 = vld [vmem:[%s1238 + $0x8] sm:$0xff]
    %v1241 = vld [vmem:[%s1238 + $0x10] sm:$0xff]
    %v1242 = vld [vmem:[%s1238 + $0x18] sm:$0xff]
    %v1243 = vld [vmem:[%s1238 + $0x20] sm:$0xff]
    %v1244 = vld [vmem:[%s1238 + $0x28] sm:$0xff]
    %v1245 = vld [vmem:[%s1238 + $0x30] sm:$0xff]
    %v1246 = vld [vmem:[%s1238 + $0x38] sm:$0xff]
    %v1247 = vlaneseq
    %v1248 = vshrl.u32 %v1247, 7
    %v1249 = vsub.s32 6, %v1248
    %v1250 = vrot.slane %v45, %v1249
    %1251 = vmatprep.subr.mxu0 0.0
    %1252 = vmatpush1.msra.mxu0 0.0
    %1253 = vmatprep.subr.mxu0 0.0
    %1254 = vmatpush1.msra.mxu0 0.0
    %1255 = vmatprep.subr.mxu0 0.0
    %1256 = vmatpush1.msra.mxu0 0.0
    %1257 = vmatprep.subr.mxu0 0.0
    %1258 = vmatpush1.msra.mxu0 0.0
    %1259 = vmatprep.subr.mxu0 0.0
    %1260 = vmatpush1.msra.mxu0 0.0
    %1261 = vmatprep.subr.mxu0 0.0
    %1262 = vmatpush1.msra.mxu0 0.0
    %1263 = vmatprep.subr.mxu0 0.0
    %1264 = vmatpush1.msra.mxu0 0.0
    %1265 = vmatprep.subr.mxu0 0.0
    %1266 = vmatpush1.msra.mxu0 0.0
    %1267 = vmatprep.subr.mxu0 0.0
    %1268 = vmatpush1.msra.mxu0 %v1246
    %1269 = vmatprep.subr.mxu0 0.0
    %1270 = vmatpush1.msra.mxu0 %v1245
    %1271 = vmatprep.subr.mxu0 0.0
    %1272 = vmatpush1.msra.mxu0 %v1244
    %1273 = vmatprep.subr.mxu0 0.0
    %1274 = vmatpush1.msra.mxu0 %v1243
    %1275 = vmatprep.subr.mxu0 0.0
    %1276 = vmatpush1.msra.mxu0 %v1242
    %1277 = vmatprep.subr.mxu0 0.0
    %1278 = vmatpush1.msra.mxu0 %v1241
    %1279 = vmatprep.subr.mxu0 0.0
    %1280 = vmatpush1.msra.mxu0 %v1240
    %1281 = vmatprep.subr.mxu0 0.0
    %1282 = vmatpush1.msra.mxu0 %v1239
    %1283 = vmatprep.subr.mxu0 0.0
    %1284 = vmatpush2.msra.mxu0 0.0
    %1285 = vmatprep.subr.mxu0 0.0
    %1286 = vmatpush2.msra.mxu0 0.0
    %1287 = vmatprep.subr.mxu0 0.0
    %1288 = vmatpush2.msra.mxu0 0.0
    %1289 = vmatprep.subr.mxu0 0.0
    %1290 = vmatpush2.msra.mxu0 0.0
    %1291 = vmatprep.subr.mxu0 0.0
    %1292 = vmatpush2.msra.mxu0 0.0
    %1293 = vmatprep.subr.mxu0 0.0
    %1294 = vmatpush2.msra.mxu0 0.0
    %1295 = vmatprep.subr.mxu0 0.0
    %1296 = vmatpush2.msra.mxu0 0.0
    %1297 = vmatprep.subr.mxu0 0.0
    %1298 = vmatpush2.msra.mxu0 0.0
    %1299 = vmatprep.subr.mxu0 0.0
    %1300 = vmatpush2.msra.mxu0 0.0
    %1301 = vmatprep.subr.mxu0 0.0
    %1302 = vmatpush2.msra.mxu0 0.0
    %1303 = vmatprep.subr.mxu0 0.0
    %1304 = vmatpush2.msra.mxu0 0.0
    %1305 = vmatprep.subr.mxu0 0.0
    %1306 = vmatpush2.msra.mxu0 0.0
    %1307 = vmatprep.subr.mxu0 0.0
    %1308 = vmatpush2.msra.mxu0 0.0
    %1309 = vmatprep.subr.mxu0 0.0
    %1310 = vmatpush2.msra.mxu0 0.0
    %1311 = vmatprep.subr.mxu0 0.0
    %1312 = vmatpush2.msra.mxu0 0.0
    %1313 = vmatprep.subr.mxu0 0.0
    %1314 = vmatpush2.msra.mxu0 0.0
    %1315 = vmatprep.mubr.f32.mxu0 0.0
    %1316 = vmatmul.mubr.f32.gmra.mxu0 %v74
    %v1317 = vpop.f32.mrf.mxu0
    %v1318 = vadd.f32 %v1250, %v1317
    %v1319 = vpop.f32.mrf.mxu0
    %1320 = vmatprep.mubr.f32.mxu0 0.0
    %1321 = vmatmul.mubr.f32.gmra.mxu0 %v77
    %v1322 = vpop.f32.mrf.mxu0
    %v1323 = vadd.f32 %v1250, %v1322
    %v1324 = vpop.f32.mrf.mxu0
    %1325 = vdwg.mxu0
    %s1326 = scalar_lea.vmem %s2, 640
    %v1327 = vld [vmem:[%s1326] sm:$0xff]
    %v1328 = vld [vmem:[%s1326 + $0x8] sm:$0xff]
    %v1329 = vld [vmem:[%s1326 + $0x10] sm:$0xff]
    %v1330 = vld [vmem:[%s1326 + $0x18] sm:$0xff]
    %v1331 = vld [vmem:[%s1326 + $0x20] sm:$0xff]
    %v1332 = vld [vmem:[%s1326 + $0x28] sm:$0xff]
    %v1333 = vld [vmem:[%s1326 + $0x30] sm:$0xff]
    %v1334 = vld [vmem:[%s1326 + $0x38] sm:$0xff]
    %v1335 = vlaneseq
    %v1336 = vshrl.u32 %v1335, 7
    %v1337 = vsub.s32 2, %v1336
    %v1338 = vrot.slane %v46, %v1337
    %1339 = vmatprep.subr.mxu0 0.0
    %1340 = vmatpush1.msra.mxu0 0.0
    %1341 = vmatprep.subr.mxu0 0.0
    %1342 = vmatpush1.msra.mxu0 0.0
    %1343 = vmatprep.subr.mxu0 0.0
    %1344 = vmatpush1.msra.mxu0 0.0
    %1345 = vmatprep.subr.mxu0 0.0
    %1346 = vmatpush1.msra.mxu0 0.0
    %1347 = vmatprep.subr.mxu0 0.0
    %1348 = vmatpush1.msra.mxu0 0.0
    %1349 = vmatprep.subr.mxu0 0.0
    %1350 = vmatpush1.msra.mxu0 0.0
    %1351 = vmatprep.subr.mxu0 0.0
    %1352 = vmatpush1.msra.mxu0 0.0
    %1353 = vmatprep.subr.mxu0 0.0
    %1354 = vmatpush1.msra.mxu0 0.0
    %1355 = vmatprep.subr.mxu0 0.0
    %1356 = vmatpush1.msra.mxu0 %v1334
    %1357 = vmatprep.subr.mxu0 0.0
    %1358 = vmatpush1.msra.mxu0 %v1333
    %1359 = vmatprep.subr.mxu0 0.0
    %1360 = vmatpush1.msra.mxu0 %v1332
    %1361 = vmatprep.subr.mxu0 0.0
    %1362 = vmatpush1.msra.mxu0 %v1331
    %1363 = vmatprep.subr.mxu0 0.0
    %1364 = vmatpush1.msra.mxu0 %v1330
    %1365 = vmatprep.subr.mxu0 0.0
    %1366 = vmatpush1.msra.mxu0 %v1329
    %1367 = vmatprep.subr.mxu0 0.0
    %1368 = vmatpush1.msra.mxu0 %v1328
    %1369 = vmatprep.subr.mxu0 0.0
    %1370 = vmatpush1.msra.mxu0 %v1327
    %1371 = vmatprep.subr.mxu0 0.0
    %1372 = vmatpush2.msra.mxu0 0.0
    %1373 = vmatprep.subr.mxu0 0.0
    %1374 = vmatpush2.msra.mxu0 0.0
    %1375 = vmatprep.subr.mxu0 0.0
    %1376 = vmatpush2.msra.mxu0 0.0
    %1377 = vmatprep.subr.mxu0 0.0
    %1378 = vmatpush2.msra.mxu0 0.0
    %1379 = vmatprep.subr.mxu0 0.0
    %1380 = vmatpush2.msra.mxu0 0.0
    %1381 = vmatprep.subr.mxu0 0.0
    %1382 = vmatpush2.msra.mxu0 0.0
    %1383 = vmatprep.subr.mxu0 0.0
    %1384 = vmatpush2.msra.mxu0 0.0
    %1385 = vmatprep.subr.mxu0 0.0
    %1386 = vmatpush2.msra.mxu0 0.0
    %1387 = vmatprep.subr.mxu0 0.0
    %1388 = vmatpush2.msra.mxu0 0.0
    %1389 = vmatprep.subr.mxu0 0.0
    %1390 = vmatpush2.msra.mxu0 0.0
    %1391 = vmatprep.subr.mxu0 0.0
    %1392 = vmatpush2.msra.mxu0 0.0
    %1393 = vmatprep.subr.mxu0 0.0
    %1394 = vmatpush2.msra.mxu0 0.0
    %1395 = vmatprep.subr.mxu0 0.0
    %1396 = vmatpush2.msra.mxu0 0.0
    %1397 = vmatprep.subr.mxu0 0.0
    %1398 = vmatpush2.msra.mxu0 0.0
    %1399 = vmatprep.subr.mxu0 0.0
    %1400 = vmatpush2.msra.mxu0 0.0
    %1401 = vmatprep.subr.mxu0 0.0
    %1402 = vmatpush2.msra.mxu0 0.0
    %1403 = vmatprep.mubr.f32.mxu0 0.0
    %1404 = vmatmul.mubr.f32.gmra.mxu0 %v74
    %v1405 = vpop.f32.mrf.mxu0
    %v1406 = vadd.f32 %v1338, %v1405
    %v1407 = vpop.f32.mrf.mxu0
    %1408 = vmatprep.mubr.f32.mxu0 0.0
    %1409 = vmatmul.mubr.f32.gmra.mxu0 %v77
    %v1410 = vpop.f32.mrf.mxu0
    %v1411 = vadd.f32 %v1338, %v1410
    %v1412 = vpop.f32.mrf.mxu0
    %1413 = vdwg.mxu0
    %v1415 = vsel %vm330, %v1230, 0
    %v1418 = vsel %vm330, %v1235, 0
    %v1421 = vsel %vm330, %v1318, 0
    %v1424 = vsel %vm330, %v1323, 0
    %1426 = vmatprep.subr.mxu0 0.0
    %1427 = vmatpush1.xpose.msra.mxu0 0.0
    %1428 = vmatprep.subr.mxu0 0.0
    %1429 = vmatpush1.xpose.msra.mxu0 0.0
    %1430 = vmatprep.subr.mxu0 0.0
    %1431 = vmatpush1.xpose.msra.mxu0 0.0
    %1432 = vmatprep.subr.mxu0 0.0
    %1433 = vmatpush1.xpose.msra.mxu0 0.0
    %1434 = vmatprep.subr.mxu0 0.0
    %1435 = vmatpush1.xpose.msra.mxu0 0.0
    %1436 = vmatprep.subr.mxu0 0.0
    %1437 = vmatpush1.xpose.msra.mxu0 0.0
    %1438 = vmatprep.subr.mxu0 0.0
    %1439 = vmatpush1.xpose.msra.mxu0 0.0
    %1440 = vmatprep.subr.mxu0 0.0
    %1441 = vmatpush1.xpose.msra.mxu0 0.0
    %1442 = vmatprep.subr.mxu0 0.0
    %1443 = vmatpush1.xpose.msra.mxu0 0.0
    %1444 = vmatprep.subr.mxu0 0.0
    %1445 = vmatpush1.xpose.msra.mxu0 0.0
    %1446 = vmatprep.subr.mxu0 0.0
    %1447 = vmatpush1.xpose.msra.mxu0 0.0
    %1448 = vmatprep.subr.mxu0 0.0
    %1449 = vmatpush1.xpose.msra.mxu0 0.0
    %1450 = vmatprep.subr.mxu0 0.0
    %1451 = vmatpush1.xpose.msra.mxu0 0.0
    %1452 = vmatprep.subr.mxu0 0.0
    %1453 = vmatpush1.xpose.msra.mxu0 0.0
    %1454 = vmatprep.subr.mxu0 0.0
    %1455 = vmatpush1.xpose.msra.mxu0 %v1424
    %1456 = vmatprep.subr.mxu0 0.0
    %1457 = vmatpush1.xpose.msra.mxu0 %v1421
    %1458 = vmatprep.subr.mxu0 0.0
    %1459 = vmatpush2.xpose.msra.mxu0 0.0
    %1460 = vmatprep.subr.mxu0 0.0
    %1461 = vmatpush2.xpose.msra.mxu0 0.0
    %1462 = vmatprep.subr.mxu0 0.0
    %1463 = vmatpush2.xpose.msra.mxu0 0.0
    %1464 = vmatprep.subr.mxu0 0.0
    %1465 = vmatpush2.xpose.msra.mxu0 0.0
    %1466 = vmatprep.subr.mxu0 0.0
    %1467 = vmatpush2.xpose.msra.mxu0 0.0
    %1468 = vmatprep.subr.mxu0 0.0
    %1469 = vmatpush2.xpose.msra.mxu0 0.0
    %1470 = vmatprep.subr.mxu0 0.0
    %1471 = vmatpush2.xpose.msra.mxu0 0.0
    %1472 = vmatprep.subr.mxu0 0.0
    %1473 = vmatpush2.xpose.msra.mxu0 0.0
    %1474 = vmatprep.subr.mxu0 0.0
    %1475 = vmatpush2.xpose.msra.mxu0 0.0
    %1476 = vmatprep.subr.mxu0 0.0
    %1477 = vmatpush2.xpose.msra.mxu0 0.0
    %1478 = vmatprep.subr.mxu0 0.0
    %1479 = vmatpush2.xpose.msra.mxu0 0.0
    %1480 = vmatprep.subr.mxu0 0.0
    %1481 = vmatpush2.xpose.msra.mxu0 0.0
    %1482 = vmatprep.subr.mxu0 0.0
    %1483 = vmatpush2.xpose.msra.mxu0 0.0
    %1484 = vmatprep.subr.mxu0 0.0
    %1485 = vmatpush2.xpose.msra.mxu0 0.0
    %1486 = vmatprep.subr.mxu0 0.0
    %1487 = vmatpush2.xpose.msra.mxu0 0.0
    %1488 = vmatprep.subr.mxu0 0.0
    %1489 = vmatpush2.xpose.msra.mxu0 0.0
    %1490 = vmatprep.mubr.f32.mxu0 0.0
    %1491 = vmatmul.mubr.f32.gmra.mxu0 %v1415
    %v1492 = vpop.f32.mrf.mxu0
    %v1493 = vadd.f32 0.0, %v1492
    %v1494 = vpop.f32.mrf.mxu0
    %1495 = vmatprep.mubr.f32.mxu0 0.0
    %1496 = vmatmul.mubr.f32.gmra.mxu0 %v1418
    %v1497 = vpop.f32.mrf.mxu0
    %v1498 = vadd.f32 0.0, %v1497
    %v1499 = vpop.f32.mrf.mxu0
    %1500 = vdwg.mxu0
    %v1501 = vmul.f32 %v1493, 0.25
    %v1502 = vmul.f32 %v1498, 0.25
    %v1503 = vsel %vm330, %v1501, -inf
    %1504 = vmax.xlane.f32.xlu0 %v1503
    %v1505 = vpop.xlane.xlu0 %1504
    %v1506 = vsel %vm330, %v1502, -inf
    %1507 = vmax.xlane.f32.xlu0 %v1506
    %v1508 = vpop.xlane.xlu0 %1507
    %v1509 = vsub.f32 %v1501, %v1505
    %v1510 = vsub.f32 %v1502, %v1508
    %v1511 = vmul.f32 %v1509, 1.442695
    %v1512 = vpow.pop %v1511
    %v1513 = vmul.f32 %v1510, 1.442695
    %v1514 = vpow.pop %v1513
    %v1515 = vsel %vm330, %v1512, 0.0
    %1516 = vadd.xlane.f32.xlu0 %v1515
    %v1517 = vpop.xlane.xlu0 %1516
    %v1518 = vsel %vm330, %v1514, 0.0
    %1519 = vadd.xlane.f32.xlu0 %v1518
    %v1520 = vpop.xlane.xlu0 %1519
    %v1521 = vrcp.pop %v1517
    %v1522 = vrcp.pop %v1520
    %v1523 = vmul.f32 %v1512, %v1521
    %v1524 = vmul.f32 %v1514, %v1522
    %v1526 = vsel %vm330, %v1523, 0
    %v1529 = vsel %vm330, %v1524, 0
    %1531 = vmatprep.subr.mxu0 0.0
    %1532 = vmatpush1.msra.mxu0 0.0
    %1533 = vmatprep.subr.mxu0 0.0
    %1534 = vmatpush1.msra.mxu0 0.0
    %1535 = vmatprep.subr.mxu0 0.0
    %1536 = vmatpush1.msra.mxu0 0.0
    %1537 = vmatprep.subr.mxu0 0.0
    %1538 = vmatpush1.msra.mxu0 0.0
    %1539 = vmatprep.subr.mxu0 0.0
    %1540 = vmatpush1.msra.mxu0 0.0
    %1541 = vmatprep.subr.mxu0 0.0
    %1542 = vmatpush1.msra.mxu0 0.0
    %1543 = vmatprep.subr.mxu0 0.0
    %1544 = vmatpush1.msra.mxu0 0.0
    %1545 = vmatprep.subr.mxu0 0.0
    %1546 = vmatpush1.msra.mxu0 0.0
    %1547 = vmatprep.subr.mxu0 0.0
    %1548 = vmatpush1.msra.mxu0 0.0
    %1549 = vmatprep.subr.mxu0 0.0
    %1550 = vmatpush1.msra.mxu0 0.0
    %1551 = vmatprep.subr.mxu0 0.0
    %1552 = vmatpush1.msra.mxu0 0.0
    %1553 = vmatprep.subr.mxu0 0.0
    %1554 = vmatpush1.msra.mxu0 0.0
    %1555 = vmatprep.subr.mxu0 0.0
    %1556 = vmatpush1.msra.mxu0 0.0
    %1557 = vmatprep.subr.mxu0 0.0
    %1558 = vmatpush1.msra.mxu0 0.0
    %1559 = vmatprep.subr.mxu0 0.0
    %1560 = vmatpush1.msra.mxu0 %v1411
    %1561 = vmatprep.subr.mxu0 0.0
    %1562 = vmatpush1.msra.mxu0 %v1406
    %1563 = vmatprep.subr.mxu0 0.0
    %1564 = vmatpush2.msra.mxu0 0.0
    %1565 = vmatprep.subr.mxu0 0.0
    %1566 = vmatpush2.msra.mxu0 0.0
    %1567 = vmatprep.subr.mxu0 0.0
    %1568 = vmatpush2.msra.mxu0 0.0
    %1569 = vmatprep.subr.mxu0 0.0
    %1570 = vmatpush2.msra.mxu0 0.0
    %1571 = vmatprep.subr.mxu0 0.0
    %1572 = vmatpush2.msra.mxu0 0.0
    %1573 = vmatprep.subr.mxu0 0.0
    %1574 = vmatpush2.msra.mxu0 0.0
    %1575 = vmatprep.subr.mxu0 0.0
    %1576 = vmatpush2.msra.mxu0 0.0
    %1577 = vmatprep.subr.mxu0 0.0
    %1578 = vmatpush2.msra.mxu0 0.0
    %1579 = vmatprep.subr.mxu0 0.0
    %1580 = vmatpush2.msra.mxu0 0.0
    %1581 = vmatprep.subr.mxu0 0.0
    %1582 = vmatpush2.msra.mxu0 0.0
    %1583 = vmatprep.subr.mxu0 0.0
    %1584 = vmatpush2.msra.mxu0 0.0
    %1585 = vmatprep.subr.mxu0 0.0
    %1586 = vmatpush2.msra.mxu0 0.0
    %1587 = vmatprep.subr.mxu0 0.0
    %1588 = vmatpush2.msra.mxu0 0.0
    %1589 = vmatprep.subr.mxu0 0.0
    %1590 = vmatpush2.msra.mxu0 0.0
    %1591 = vmatprep.subr.mxu0 0.0
    %1592 = vmatpush2.msra.mxu0 0.0
    %1593 = vmatprep.subr.mxu0 0.0
    %1594 = vmatpush2.msra.mxu0 0.0
    %1595 = vmatprep.mubr.f32.mxu0 0.0
    %1596 = vmatmul.mubr.f32.gmra.mxu0 %v1526
    %v1597 = vpop.f32.mrf.mxu0
    %v1598 = vadd.f32 0.0, %v1597
    %v1599 = vpop.f32.mrf.mxu0
    %1600 = vmatprep.mubr.f32.mxu0 0.0
    %1601 = vmatmul.mubr.f32.gmra.mxu0 %v1529
    %v1602 = vpop.f32.mrf.mxu0
    %v1603 = vadd.f32 0.0, %v1602
    %v1604 = vpop.f32.mrf.mxu0
    %1605 = vdwg.mxu0
    %s1606 = scalar_lea.vmem %s3, 32
    %v1607 = vld [vmem:[%s1606] sm:$0xff]
    %v1608 = vld [vmem:[%s1606 + $0x8] sm:$0xff]
    %v1610 = vsel %vm330, %v1598, 0
    %v1613 = vsel %vm330, %v1603, 0
    %1615 = vmatprep.subr.mxu0 0.0
    %1616 = vmatpush1.msra.mxu0 0.0
    %1617 = vmatprep.subr.mxu0 0.0
    %1618 = vmatpush1.msra.mxu0 0.0
    %1619 = vmatprep.subr.mxu0 0.0
    %1620 = vmatpush1.msra.mxu0 0.0
    %1621 = vmatprep.subr.mxu0 0.0
    %1622 = vmatpush1.msra.mxu0 0.0
    %1623 = vmatprep.subr.mxu0 0.0
    %1624 = vmatpush1.msra.mxu0 0.0
    %1625 = vmatprep.subr.mxu0 0.0
    %1626 = vmatpush1.msra.mxu0 0.0
    %1627 = vmatprep.subr.mxu0 0.0
    %1628 = vmatpush1.msra.mxu0 0.0
    %1629 = vmatprep.subr.mxu0 0.0
    %1630 = vmatpush1.msra.mxu0 0.0
    %1631 = vmatprep.subr.mxu0 0.0
    %1632 = vmatpush1.msra.mxu0 0.0
    %1633 = vmatprep.subr.mxu0 0.0
    %1634 = vmatpush1.msra.mxu0 0.0
    %1635 = vmatprep.subr.mxu0 0.0
    %1636 = vmatpush1.msra.mxu0 0.0
    %1637 = vmatprep.subr.mxu0 0.0
    %1638 = vmatpush1.msra.mxu0 0.0
    %1639 = vmatprep.subr.mxu0 0.0
    %1640 = vmatpush1.msra.mxu0 0.0
    %1641 = vmatprep.subr.mxu0 0.0
    %1642 = vmatpush1.msra.mxu0 0.0
    %1643 = vmatprep.subr.mxu0 0.0
    %1644 = vmatpush1.msra.mxu0 %v1608
    %1645 = vmatprep.subr.mxu0 0.0
    %1646 = vmatpush1.msra.mxu0 %v1607
    %1647 = vmatprep.subr.mxu0 0.0
    %1648 = vmatpush2.msra.mxu0 0.0
    %1649 = vmatprep.subr.mxu0 0.0
    %1650 = vmatpush2.msra.mxu0 0.0
    %1651 = vmatprep.subr.mxu0 0.0
    %1652 = vmatpush2.msra.mxu0 0.0
    %1653 = vmatprep.subr.mxu0 0.0
    %1654 = vmatpush2.msra.mxu0 0.0
    %1655 = vmatprep.subr.mxu0 0.0
    %1656 = vmatpush2.msra.mxu0 0.0
    %1657 = vmatprep.subr.mxu0 0.0
    %1658 = vmatpush2.msra.mxu0 0.0
    %1659 = vmatprep.subr.mxu0 0.0
    %1660 = vmatpush2.msra.mxu0 0.0
    %1661 = vmatprep.subr.mxu0 0.0
    %1662 = vmatpush2.msra.mxu0 0.0
    %1663 = vmatprep.subr.mxu0 0.0
    %1664 = vmatpush2.msra.mxu0 0.0
    %1665 = vmatprep.subr.mxu0 0.0
    %1666 = vmatpush2.msra.mxu0 0.0
    %1667 = vmatprep.subr.mxu0 0.0
    %1668 = vmatpush2.msra.mxu0 0.0
    %1669 = vmatprep.subr.mxu0 0.0
    %1670 = vmatpush2.msra.mxu0 0.0
    %1671 = vmatprep.subr.mxu0 0.0
    %1672 = vmatpush2.msra.mxu0 0.0
    %1673 = vmatprep.subr.mxu0 0.0
    %1674 = vmatpush2.msra.mxu0 0.0
    %1675 = vmatprep.subr.mxu0 0.0
    %1676 = vmatpush2.msra.mxu0 0.0
    %1677 = vmatprep.subr.mxu0 0.0
    %1678 = vmatpush2.msra.mxu0 0.0
    %1679 = vmatprep.mubr.f32.mxu0 0.0
    %1680 = vmatmul.mubr.f32.gmra.mxu0 %v1610
    %v1681 = vpop.f32.mrf.mxu0
    %v1682 = vadd.f32 0.0, %v1681
    %v1683 = vpop.f32.mrf.mxu0
    %1684 = vmatprep.mubr.f32.mxu0 0.0
    %1685 = vmatmul.mubr.f32.gmra.mxu0 %v1613
    %v1686 = vpop.f32.mrf.mxu0
    %v1687 = vadd.f32 0.0, %v1686
    %v1688 = vpop.f32.mrf.mxu0
    %1689 = vdwg.mxu0
    %v1690 = vadd.f32 %v1148, %v1682
    %v1691 = vadd.f32 %v1149, %v1687
    %s1692 = scalar_lea.vmem %s2, 192
    %v1693 = vld [vmem:[%s1692] sm:$0xff]
    %v1694 = vld [vmem:[%s1692 + $0x8] sm:$0xff]
    %v1695 = vld [vmem:[%s1692 + $0x10] sm:$0xff]
    %v1696 = vld [vmem:[%s1692 + $0x18] sm:$0xff]
    %v1697 = vld [vmem:[%s1692 + $0x20] sm:$0xff]
    %v1698 = vld [vmem:[%s1692 + $0x28] sm:$0xff]
    %v1699 = vld [vmem:[%s1692 + $0x30] sm:$0xff]
    %v1700 = vld [vmem:[%s1692 + $0x38] sm:$0xff]
    %v1701 = vlaneseq
    %v1702 = vshrl.u32 %v1701, 7
    %v1703 = vsub.s32 3, %v1702
    %v1704 = vrot.slane %v45, %v1703
    %1705 = vmatprep.subr.mxu0 0.0
    %1706 = vmatpush1.msra.mxu0 0.0
    %1707 = vmatprep.subr.mxu0 0.0
    %1708 = vmatpush1.msra.mxu0 0.0
    %1709 = vmatprep.subr.mxu0 0.0
    %1710 = vmatpush1.msra.mxu0 0.0
    %1711 = vmatprep.subr.mxu0 0.0
    %1712 = vmatpush1.msra.mxu0 0.0
    %1713 = vmatprep.subr.mxu0 0.0
    %1714 = vmatpush1.msra.mxu0 0.0
    %1715 = vmatprep.subr.mxu0 0.0
    %1716 = vmatpush1.msra.mxu0 0.0
    %1717 = vmatprep.subr.mxu0 0.0
    %1718 = vmatpush1.msra.mxu0 0.0
    %1719 = vmatprep.subr.mxu0 0.0
    %1720 = vmatpush1.msra.mxu0 0.0
    %1721 = vmatprep.subr.mxu0 0.0
    %1722 = vmatpush1.msra.mxu0 %v1700
    %1723 = vmatprep.subr.mxu0 0.0
    %1724 = vmatpush1.msra.mxu0 %v1699
    %1725 = vmatprep.subr.mxu0 0.0
    %1726 = vmatpush1.msra.mxu0 %v1698
    %1727 = vmatprep.subr.mxu0 0.0
    %1728 = vmatpush1.msra.mxu0 %v1697
    %1729 = vmatprep.subr.mxu0 0.0
    %1730 = vmatpush1.msra.mxu0 %v1696
    %1731 = vmatprep.subr.mxu0 0.0
    %1732 = vmatpush1.msra.mxu0 %v1695
    %1733 = vmatprep.subr.mxu0 0.0
    %1734 = vmatpush1.msra.mxu0 %v1694
    %1735 = vmatprep.subr.mxu0 0.0
    %1736 = vmatpush1.msra.mxu0 %v1693
    %1737 = vmatprep.subr.mxu0 0.0
    %1738 = vmatpush2.msra.mxu0 0.0
    %1739 = vmatprep.subr.mxu0 0.0
    %1740 = vmatpush2.msra.mxu0 0.0
    %1741 = vmatprep.subr.mxu0 0.0
    %1742 = vmatpush2.msra.mxu0 0.0
    %1743 = vmatprep.subr.mxu0 0.0
    %1744 = vmatpush2.msra.mxu0 0.0
    %1745 = vmatprep.subr.mxu0 0.0
    %1746 = vmatpush2.msra.mxu0 0.0
    %1747 = vmatprep.subr.mxu0 0.0
    %1748 = vmatpush2.msra.mxu0 0.0
    %1749 = vmatprep.subr.mxu0 0.0
    %1750 = vmatpush2.msra.mxu0 0.0
    %1751 = vmatprep.subr.mxu0 0.0
    %1752 = vmatpush2.msra.mxu0 0.0
    %1753 = vmatprep.subr.mxu0 0.0
    %1754 = vmatpush2.msra.mxu0 0.0
    %1755 = vmatprep.subr.mxu0 0.0
    %1756 = vmatpush2.msra.mxu0 0.0
    %1757 = vmatprep.subr.mxu0 0.0
    %1758 = vmatpush2.msra.mxu0 0.0
    %1759 = vmatprep.subr.mxu0 0.0
    %1760 = vmatpush2.msra.mxu0 0.0
    %1761 = vmatprep.subr.mxu0 0.0
    %1762 = vmatpush2.msra.mxu0 0.0
    %1763 = vmatprep.subr.mxu0 0.0
    %1764 = vmatpush2.msra.mxu0 0.0
    %1765 = vmatprep.subr.mxu0 0.0
    %1766 = vmatpush2.msra.mxu0 0.0
    %1767 = vmatprep.subr.mxu0 0.0
    %1768 = vmatpush2.msra.mxu0 0.0
    %1769 = vmatprep.mubr.f32.mxu0 0.0
    %1770 = vmatmul.mubr.f32.gmra.mxu0 %v74
    %v1771 = vpop.f32.mrf.mxu0
    %v1772 = vadd.f32 %v1704, %v1771
    %v1773 = vpop.f32.mrf.mxu0
    %1774 = vmatprep.mubr.f32.mxu0 0.0
    %1775 = vmatmul.mubr.f32.gmra.mxu0 %v77
    %v1776 = vpop.f32.mrf.mxu0
    %v1777 = vadd.f32 %v1704, %v1776
    %v1778 = vpop.f32.mrf.mxu0
    %1779 = vdwg.mxu0
    %s1780 = scalar_lea.vmem %s2, 448
    %v1781 = vld [vmem:[%s1780] sm:$0xff]
    %v1782 = vld [vmem:[%s1780 + $0x8] sm:$0xff]
    %v1783 = vld [vmem:[%s1780 + $0x10] sm:$0xff]
    %v1784 = vld [vmem:[%s1780 + $0x18] sm:$0xff]
    %v1785 = vld [vmem:[%s1780 + $0x20] sm:$0xff]
    %v1786 = vld [vmem:[%s1780 + $0x28] sm:$0xff]
    %v1787 = vld [vmem:[%s1780 + $0x30] sm:$0xff]
    %v1788 = vld [vmem:[%s1780 + $0x38] sm:$0xff]
    %v1789 = vlaneseq
    %v1790 = vshrl.u32 %v1789, 7
    %v1791 = vsub.s32 7, %v1790
    %v1792 = vrot.slane %v45, %v1791
    %1793 = vmatprep.subr.mxu0 0.0
    %1794 = vmatpush1.msra.mxu0 0.0
    %1795 = vmatprep.subr.mxu0 0.0
    %1796 = vmatpush1.msra.mxu0 0.0
    %1797 = vmatprep.subr.mxu0 0.0
    %1798 = vmatpush1.msra.mxu0 0.0
    %1799 = vmatprep.subr.mxu0 0.0
    %1800 = vmatpush1.msra.mxu0 0.0
    %1801 = vmatprep.subr.mxu0 0.0
    %1802 = vmatpush1.msra.mxu0 0.0
    %1803 = vmatprep.subr.mxu0 0.0
    %1804 = vmatpush1.msra.mxu0 0.0
    %1805 = vmatprep.subr.mxu0 0.0
    %1806 = vmatpush1.msra.mxu0 0.0
    %1807 = vmatprep.subr.mxu0 0.0
    %1808 = vmatpush1.msra.mxu0 0.0
    %1809 = vmatprep.subr.mxu0 0.0
    %1810 = vmatpush1.msra.mxu0 %v1788
    %1811 = vmatprep.subr.mxu0 0.0
    %1812 = vmatpush1.msra.mxu0 %v1787
    %1813 = vmatprep.subr.mxu0 0.0
    %1814 = vmatpush1.msra.mxu0 %v1786
    %1815 = vmatprep.subr.mxu0 0.0
    %1816 = vmatpush1.msra.mxu0 %v1785
    %1817 = vmatprep.subr.mxu0 0.0
    %1818 = vmatpush1.msra.mxu0 %v1784
    %1819 = vmatprep.subr.mxu0 0.0
    %1820 = vmatpush1.msra.mxu0 %v1783
    %1821 = vmatprep.subr.mxu0 0.0
    %1822 = vmatpush1.msra.mxu0 %v1782
    %1823 = vmatprep.subr.mxu0 0.0
    %1824 = vmatpush1.msra.mxu0 %v1781
    %1825 = vmatprep.subr.mxu0 0.0
    %1826 = vmatpush2.msra.mxu0 0.0
    %1827 = vmatprep.subr.mxu0 0.0
    %1828 = vmatpush2.msra.mxu0 0.0
    %1829 = vmatprep.subr.mxu0 0.0
    %1830 = vmatpush2.msra.mxu0 0.0
    %1831 = vmatprep.subr.mxu0 0.0
    %1832 = vmatpush2.msra.mxu0 0.0
    %1833 = vmatprep.subr.mxu0 0.0
    %1834 = vmatpush2.msra.mxu0 0.0
    %1835 = vmatprep.subr.mxu0 0.0
    %1836 = vmatpush2.msra.mxu0 0.0
    %1837 = vmatprep.subr.mxu0 0.0
    %1838 = vmatpush2.msra.mxu0 0.0
    %1839 = vmatprep.subr.mxu0 0.0
    %1840 = vmatpush2.msra.mxu0 0.0
    %1841 = vmatprep.subr.mxu0 0.0
    %1842 = vmatpush2.msra.mxu0 0.0
    %1843 = vmatprep.subr.mxu0 0.0
    %1844 = vmatpush2.msra.mxu0 0.0
    %1845 = vmatprep.subr.mxu0 0.0
    %1846 = vmatpush2.msra.mxu0 0.0
    %1847 = vmatprep.subr.mxu0 0.0
    %1848 = vmatpush2.msra.mxu0 0.0
    %1849 = vmatprep.subr.mxu0 0.0
    %1850 = vmatpush2.msra.mxu0 0.0
    %1851 = vmatprep.subr.mxu0 0.0
    %1852 = vmatpush2.msra.mxu0 0.0
    %1853 = vmatprep.subr.mxu0 0.0
    %1854 = vmatpush2.msra.mxu0 0.0
    %1855 = vmatprep.subr.mxu0 0.0
    %1856 = vmatpush2.msra.mxu0 0.0
    %1857 = vmatprep.mubr.f32.mxu0 0.0
    %1858 = vmatmul.mubr.f32.gmra.mxu0 %v74
    %v1859 = vpop.f32.mrf.mxu0
    %v1860 = vadd.f32 %v1792, %v1859
    %v1861 = vpop.f32.mrf.mxu0
    %1862 = vmatprep.mubr.f32.mxu0 0.0
    %1863 = vmatmul.mubr.f32.gmra.mxu0 %v77
    %v1864 = vpop.f32.mrf.mxu0
    %v1865 = vadd.f32 %v1792, %v1864
    %v1866 = vpop.f32.mrf.mxu0
    %1867 = vdwg.mxu0
    %s1868 = scalar_lea.vmem %s2, 704
    %v1869 = vld [vmem:[%s1868] sm:$0xff]
    %v1870 = vld [vmem:[%s1868 + $0x8] sm:$0xff]
    %v1871 = vld [vmem:[%s1868 + $0x10] sm:$0xff]
    %v1872 = vld [vmem:[%s1868 + $0x18] sm:$0xff]
    %v1873 = vld [vmem:[%s1868 + $0x20] sm:$0xff]
    %v1874 = vld [vmem:[%s1868 + $0x28] sm:$0xff]
    %v1875 = vld [vmem:[%s1868 + $0x30] sm:$0xff]
    %v1876 = vld [vmem:[%s1868 + $0x38] sm:$0xff]
    %v1877 = vlaneseq
    %v1878 = vshrl.u32 %v1877, 7
    %v1879 = vsub.s32 3, %v1878
    %v1880 = vrot.slane %v46, %v1879
    %1881 = vmatprep.subr.mxu0 0.0
    %1882 = vmatpush1.msra.mxu0 0.0
    %1883 = vmatprep.subr.mxu0 0.0
    %1884 = vmatpush1.msra.mxu0 0.0
    %1885 = vmatprep.subr.mxu0 0.0
    %1886 = vmatpush1.msra.mxu0 0.0
    %1887 = vmatprep.subr.mxu0 0.0
    %1888 = vmatpush1.msra.mxu0 0.0
    %1889 = vmatprep.subr.mxu0 0.0
    %1890 = vmatpush1.msra.mxu0 0.0
    %1891 = vmatprep.subr.mxu0 0.0
    %1892 = vmatpush1.msra.mxu0 0.0
    %1893 = vmatprep.subr.mxu0 0.0
    %1894 = vmatpush1.msra.mxu0 0.0
    %1895 = vmatprep.subr.mxu0 0.0
    %1896 = vmatpush1.msra.mxu0 0.0
    %1897 = vmatprep.subr.mxu0 0.0
    %1898 = vmatpush1.msra.mxu0 %v1876
    %1899 = vmatprep.subr.mxu0 0.0
    %1900 = vmatpush1.msra.mxu0 %v1875
    %1901 = vmatprep.subr.mxu0 0.0
    %1902 = vmatpush1.msra.mxu0 %v1874
    %1903 = vmatprep.subr.mxu0 0.0
    %1904 = vmatpush1.msra.mxu0 %v1873
    %1905 = vmatprep.subr.mxu0 0.0
    %1906 = vmatpush1.msra.mxu0 %v1872
    %1907 = vmatprep.subr.mxu0 0.0
    %1908 = vmatpush1.msra.mxu0 %v1871
    %1909 = vmatprep.subr.mxu0 0.0
    %1910 = vmatpush1.msra.mxu0 %v1870
    %1911 = vmatprep.subr.mxu0 0.0
    %1912 = vmatpush1.msra.mxu0 %v1869
    %1913 = vmatprep.subr.mxu0 0.0
    %1914 = vmatpush2.msra.mxu0 0.0
    %1915 = vmatprep.subr.mxu0 0.0
    %1916 = vmatpush2.msra.mxu0 0.0
    %1917 = vmatprep.subr.mxu0 0.0
    %1918 = vmatpush2.msra.mxu0 0.0
    %1919 = vmatprep.subr.mxu0 0.0
    %1920 = vmatpush2.msra.mxu0 0.0
    %1921 = vmatprep.subr.mxu0 0.0
    %1922 = vmatpush2.msra.mxu0 0.0
    %1923 = vmatprep.subr.mxu0 0.0
    %1924 = vmatpush2.msra.mxu0 0.0
    %1925 = vmatprep.subr.mxu0 0.0
    %1926 = vmatpush2.msra.mxu0 0.0
    %1927 = vmatprep.subr.mxu0 0.0
    %1928 = vmatpush2.msra.mxu0 0.0
    %1929 = vmatprep.subr.mxu0 0.0
    %1930 = vmatpush2.msra.mxu0 0.0
    %1931 = vmatprep.subr.mxu0 0.0
    %1932 = vmatpush2.msra.mxu0 0.0
    %1933 = vmatprep.subr.mxu0 0.0
    %1934 = vmatpush2.msra.mxu0 0.0
    %1935 = vmatprep.subr.mxu0 0.0
    %1936 = vmatpush2.msra.mxu0 0.0
    %1937 = vmatprep.subr.mxu0 0.0
    %1938 = vmatpush2.msra.mxu0 0.0
    %1939 = vmatprep.subr.mxu0 0.0
    %1940 = vmatpush2.msra.mxu0 0.0
    %1941 = vmatprep.subr.mxu0 0.0
    %1942 = vmatpush2.msra.mxu0 0.0
    %1943 = vmatprep.subr.mxu0 0.0
    %1944 = vmatpush2.msra.mxu0 0.0
    %1945 = vmatprep.mubr.f32.mxu0 0.0
    %1946 = vmatmul.mubr.f32.gmra.mxu0 %v74
    %v1947 = vpop.f32.mrf.mxu0
    %v1948 = vadd.f32 %v1880, %v1947
    %v1949 = vpop.f32.mrf.mxu0
    %1950 = vmatprep.mubr.f32.mxu0 0.0
    %1951 = vmatmul.mubr.f32.gmra.mxu0 %v77
    %v1952 = vpop.f32.mrf.mxu0
    %v1953 = vadd.f32 %v1880, %v1952
    %v1954 = vpop.f32.mrf.mxu0
    %1955 = vdwg.mxu0
    %v1957 = vsel %vm330, %v1772, 0
    %v1960 = vsel %vm330, %v1777, 0
    %v1963 = vsel %vm330, %v1860, 0
    %v1966 = vsel %vm330, %v1865, 0
    %1968 = vmatprep.subr.mxu0 0.0
    %1969 = vmatpush1.xpose.msra.mxu0 0.0
    %1970 = vmatprep.subr.mxu0 0.0
    %1971 = vmatpush1.xpose.msra.mxu0 0.0
    %1972 = vmatprep.subr.mxu0 0.0
    %1973 = vmatpush1.xpose.msra.mxu0 0.0
    %1974 = vmatprep.subr.mxu0 0.0
    %1975 = vmatpush1.xpose.msra.mxu0 0.0
    %1976 = vmatprep.subr.mxu0 0.0
    %1977 = vmatpush1.xpose.msra.mxu0 0.0
    %1978 = vmatprep.subr.mxu0 0.0
    %1979 = vmatpush1.xpose.msra.mxu0 0.0
    %1980 = vmatprep.subr.mxu0 0.0
    %1981 = vmatpush1.xpose.msra.mxu0 0.0
    %1982 = vmatprep.subr.mxu0 0.0
    %1983 = vmatpush1.xpose.msra.mxu0 0.0
    %1984 = vmatprep.subr.mxu0 0.0
    %1985 = vmatpush1.xpose.msra.mxu0 0.0
    %1986 = vmatprep.subr.mxu0 0.0
    %1987 = vmatpush1.xpose.msra.mxu0 0.0
    %1988 = vmatprep.subr.mxu0 0.0
    %1989 = vmatpush1.xpose.msra.mxu0 0.0
    %1990 = vmatprep.subr.mxu0 0.0
    %1991 = vmatpush1.xpose.msra.mxu0 0.0
    %1992 = vmatprep.subr.mxu0 0.0
    %1993 = vmatpush1.xpose.msra.mxu0 0.0
    %1994 = vmatprep.subr.mxu0 0.0
    %1995 = vmatpush1.xpose.msra.mxu0 0.0
    %1996 = vmatprep.subr.mxu0 0.0
    %1997 = vmatpush1.xpose.msra.mxu0 %v1966
    %1998 = vmatprep.subr.mxu0 0.0
    %1999 = vmatpush1.xpose.msra.mxu0 %v1963
    %2000 = vmatprep.subr.mxu0 0.0
    %2001 = vmatpush2.xpose.msra.mxu0 0.0
    %2002 = vmatprep.subr.mxu0 0.0
    %2003 = vmatpush2.xpose.msra.mxu0 0.0
    %2004 = vmatprep.subr.mxu0 0.0
    %2005 = vmatpush2.xpose.msra.mxu0 0.0
    %2006 = vmatprep.subr.mxu0 0.0
    %2007 = vmatpush2.xpose.msra.mxu0 0.0
    %2008 = vmatprep.subr.mxu0 0.0
    %2009 = vmatpush2.xpose.msra.mxu0 0.0
    %2010 = vmatprep.subr.mxu0 0.0
    %2011 = vmatpush2.xpose.msra.mxu0 0.0
    %2012 = vmatprep.subr.mxu0 0.0
    %2013 = vmatpush2.xpose.msra.mxu0 0.0
    %2014 = vmatprep.subr.mxu0 0.0
    %2015 = vmatpush2.xpose.msra.mxu0 0.0
    %2016 = vmatprep.subr.mxu0 0.0
    %2017 = vmatpush2.xpose.msra.mxu0 0.0
    %2018 = vmatprep.subr.mxu0 0.0
    %2019 = vmatpush2.xpose.msra.mxu0 0.0
    %2020 = vmatprep.subr.mxu0 0.0
    %2021 = vmatpush2.xpose.msra.mxu0 0.0
    %2022 = vmatprep.subr.mxu0 0.0
    %2023 = vmatpush2.xpose.msra.mxu0 0.0
    %2024 = vmatprep.subr.mxu0 0.0
    %2025 = vmatpush2.xpose.msra.mxu0 0.0
    %2026 = vmatprep.subr.mxu0 0.0
    %2027 = vmatpush2.xpose.msra.mxu0 0.0
    %2028 = vmatprep.subr.mxu0 0.0
    %2029 = vmatpush2.xpose.msra.mxu0 0.0
    %2030 = vmatprep.subr.mxu0 0.0
    %2031 = vmatpush2.xpose.msra.mxu0 0.0
    %2032 = vmatprep.mubr.f32.mxu0 0.0
    %2033 = vmatmul.mubr.f32.gmra.mxu0 %v1957
    %v2034 = vpop.f32.mrf.mxu0
    %v2035 = vadd.f32 0.0, %v2034
    %v2036 = vpop.f32.mrf.mxu0
    %2037 = vmatprep.mubr.f32.mxu0 0.0
    %2038 = vmatmul.mubr.f32.gmra.mxu0 %v1960
    %v2039 = vpop.f32.mrf.mxu0
    %v2040 = vadd.f32 0.0, %v2039
    %v2041 = vpop.f32.mrf.mxu0
    %2042 = vdwg.mxu0
    %v2043 = vmul.f32 %v2035, 0.25
    %v2044 = vmul.f32 %v2040, 0.25
    %v2045 = vsel %vm330, %v2043, -inf
    %2046 = vmax.xlane.f32.xlu0 %v2045
    %v2047 = vpop.xlane.xlu0 %2046
    %v2048 = vsel %vm330, %v2044, -inf
    %2049 = vmax.xlane.f32.xlu0 %v2048
    %v2050 = vpop.xlane.xlu0 %2049
    %v2051 = vsub.f32 %v2043, %v2047
    %v2052 = vsub.f32 %v2044, %v2050
    %v2053 = vmul.f32 %v2051, 1.442695
    %v2054 = vpow.pop %v2053
    %v2055 = vmul.f32 %v2052, 1.442695
    %v2056 = vpow.pop %v2055
    %v2057 = vsel %vm330, %v2054, 0.0
    %2058 = vadd.xlane.f32.xlu0 %v2057
    %v2059 = vpop.xlane.xlu0 %2058
    %v2060 = vsel %vm330, %v2056, 0.0
    %2061 = vadd.xlane.f32.xlu0 %v2060
    %v2062 = vpop.xlane.xlu0 %2061
    %v2063 = vrcp.pop %v2059
    %v2064 = vrcp.pop %v2062
    %v2065 = vmul.f32 %v2054, %v2063
    %v2066 = vmul.f32 %v2056, %v2064
    %v2068 = vsel %vm330, %v2065, 0
    %v2071 = vsel %vm330, %v2066, 0
    %2073 = vmatprep.subr.mxu0 0.0
    %2074 = vmatpush1.msra.mxu0 0.0
    %2075 = vmatprep.subr.mxu0 0.0
    %2076 = vmatpush1.msra.mxu0 0.0
    %2077 = vmatprep.subr.mxu0 0.0
    %2078 = vmatpush1.msra.mxu0 0.0
    %2079 = vmatprep.subr.mxu0 0.0
    %2080 = vmatpush1.msra.mxu0 0.0
    %2081 = vmatprep.subr.mxu0 0.0
    %2082 = vmatpush1.msra.mxu0 0.0
    %2083 = vmatprep.subr.mxu0 0.0
    %2084 = vmatpush1.msra.mxu0 0.0
    %2085 = vmatprep.subr.mxu0 0.0
    %2086 = vmatpush1.msra.mxu0 0.0
    %2087 = vmatprep.subr.mxu0 0.0
    %2088 = vmatpush1.msra.mxu0 0.0
    %2089 = vmatprep.subr.mxu0 0.0
    %2090 = vmatpush1.msra.mxu0 0.0
    %2091 = vmatprep.subr.mxu0 0.0
    %2092 = vmatpush1.msra.mxu0 0.0
    %2093 = vmatprep.subr.mxu0 0.0
    %2094 = vmatpush1.msra.mxu0 0.0
    %2095 = vmatprep.subr.mxu0 0.0
    %2096 = vmatpush1.msra.mxu0 0.0
    %2097 = vmatprep.subr.mxu0 0.0
    %2098 = vmatpush1.msra.mxu0 0.0
    %2099 = vmatprep.subr.mxu0 0.0
    %2100 = vmatpush1.msra.mxu0 0.0
    %2101 = vmatprep.subr.mxu0 0.0
    %2102 = vmatpush1.msra.mxu0 %v1953
    %2103 = vmatprep.subr.mxu0 0.0
    %2104 = vmatpush1.msra.mxu0 %v1948
    %2105 = vmatprep.subr.mxu0 0.0
    %2106 = vmatpush2.msra.mxu0 0.0
    %2107 = vmatprep.subr.mxu0 0.0
    %2108 = vmatpush2.msra.mxu0 0.0
    %2109 = vmatprep.subr.mxu0 0.0
    %2110 = vmatpush2.msra.mxu0 0.0
    %2111 = vmatprep.subr.mxu0 0.0
    %2112 = vmatpush2.msra.mxu0 0.0
    %2113 = vmatprep.subr.mxu0 0.0
    %2114 = vmatpush2.msra.mxu0 0.0
    %2115 = vmatprep.subr.mxu0 0.0
    %2116 = vmatpush2.msra.mxu0 0.0
    %2117 = vmatprep.subr.mxu0 0.0
    %2118 = vmatpush2.msra.mxu0 0.0
    %2119 = vmatprep.subr.mxu0 0.0
    %2120 = vmatpush2.msra.mxu0 0.0
    %2121 = vmatprep.subr.mxu0 0.0
    %2122 = vmatpush2.msra.mxu0 0.0
    %2123 = vmatprep.subr.mxu0 0.0
    %2124 = vmatpush2.msra.mxu0 0.0
    %2125 = vmatprep.subr.mxu0 0.0
    %2126 = vmatpush2.msra.mxu0 0.0
    %2127 = vmatprep.subr.mxu0 0.0
    %2128 = vmatpush2.msra.mxu0 0.0
    %2129 = vmatprep.subr.mxu0 0.0
    %2130 = vmatpush2.msra.mxu0 0.0
    %2131 = vmatprep.subr.mxu0 0.0
    %2132 = vmatpush2.msra.mxu0 0.0
    %2133 = vmatprep.subr.mxu0 0.0
    %2134 = vmatpush2.msra.mxu0 0.0
    %2135 = vmatprep.subr.mxu0 0.0
    %2136 = vmatpush2.msra.mxu0 0.0
    %2137 = vmatprep.mubr.f32.mxu0 0.0
    %2138 = vmatmul.mubr.f32.gmra.mxu0 %v2068
    %v2139 = vpop.f32.mrf.mxu0
    %v2140 = vadd.f32 0.0, %v2139
    %v2141 = vpop.f32.mrf.mxu0
    %2142 = vmatprep.mubr.f32.mxu0 0.0
    %2143 = vmatmul.mubr.f32.gmra.mxu0 %v2071
    %v2144 = vpop.f32.mrf.mxu0
    %v2145 = vadd.f32 0.0, %v2144
    %v2146 = vpop.f32.mrf.mxu0
    %2147 = vdwg.mxu0
    %s2148 = scalar_lea.vmem %s3, 48
    %v2149 = vld [vmem:[%s2148] sm:$0xff]
    %v2150 = vld [vmem:[%s2148 + $0x8] sm:$0xff]
    %v2152 = vsel %vm330, %v2140, 0
    %v2155 = vsel %vm330, %v2145, 0
    %2157 = vmatprep.subr.mxu0 0.0
    %2158 = vmatpush1.msra.mxu0 0.0
    %2159 = vmatprep.subr.mxu0 0.0
    %2160 = vmatpush1.msra.mxu0 0.0
    %2161 = vmatprep.subr.mxu0 0.0
    %2162 = vmatpush1.msra.mxu0 0.0
    %2163 = vmatprep.subr.mxu0 0.0
    %2164 = vmatpush1.msra.mxu0 0.0
    %2165 = vmatprep.subr.mxu0 0.0
    %2166 = vmatpush1.msra.mxu0 0.0
    %2167 = vmatprep.subr.mxu0 0.0
    %2168 = vmatpush1.msra.mxu0 0.0
    %2169 = vmatprep.subr.mxu0 0.0
    %2170 = vmatpush1.msra.mxu0 0.0
    %2171 = vmatprep.subr.mxu0 0.0
    %2172 = vmatpush1.msra.mxu0 0.0
    %2173 = vmatprep.subr.mxu0 0.0
    %2174 = vmatpush1.msra.mxu0 0.0
    %2175 = vmatprep.subr.mxu0 0.0
    %2176 = vmatpush1.msra.mxu0 0.0
    %2177 = vmatprep.subr.mxu0 0.0
    %2178 = vmatpush1.msra.mxu0 0.0
    %2179 = vmatprep.subr.mxu0 0.0
    %2180 = vmatpush1.msra.mxu0 0.0
    %2181 = vmatprep.subr.mxu0 0.0
    %2182 = vmatpush1.msra.mxu0 0.0
    %2183 = vmatprep.subr.mxu0 0.0
    %2184 = vmatpush1.msra.mxu0 0.0
    %2185 = vmatprep.subr.mxu0 0.0
    %2186 = vmatpush1.msra.mxu0 %v2150
    %2187 = vmatprep.subr.mxu0 0.0
    %2188 = vmatpush1.msra.mxu0 %v2149
    %2189 = vmatprep.subr.mxu0 0.0
    %2190 = vmatpush2.msra.mxu0 0.0
    %2191 = vmatprep.subr.mxu0 0.0
    %2192 = vmatpush2.msra.mxu0 0.0
    %2193 = vmatprep.subr.mxu0 0.0
    %2194 = vmatpush2.msra.mxu0 0.0
    %2195 = vmatprep.subr.mxu0 0.0
    %2196 = vmatpush2.msra.mxu0 0.0
    %2197 = vmatprep.subr.mxu0 0.0
    %2198 = vmatpush2.msra.mxu0 0.0
    %2199 = vmatprep.subr.mxu0 0.0
    %2200 = vmatpush2.msra.mxu0 0.0
    %2201 = vmatprep.subr.mxu0 0.0
    %2202 = vmatpush2.msra.mxu0 0.0
    %2203 = vmatprep.subr.mxu0 0.0
    %2204 = vmatpush2.msra.mxu0 0.0
    %2205 = vmatprep.subr.mxu0 0.0
    %2206 = vmatpush2.msra.mxu0 0.0
    %2207 = vmatprep.subr.mxu0 0.0
    %2208 = vmatpush2.msra.mxu0 0.0
    %2209 = vmatprep.subr.mxu0 0.0
    %2210 = vmatpush2.msra.mxu0 0.0
    %2211 = vmatprep.subr.mxu0 0.0
    %2212 = vmatpush2.msra.mxu0 0.0
    %2213 = vmatprep.subr.mxu0 0.0
    %2214 = vmatpush2.msra.mxu0 0.0
    %2215 = vmatprep.subr.mxu0 0.0
    %2216 = vmatpush2.msra.mxu0 0.0
    %2217 = vmatprep.subr.mxu0 0.0
    %2218 = vmatpush2.msra.mxu0 0.0
    %2219 = vmatprep.subr.mxu0 0.0
    %2220 = vmatpush2.msra.mxu0 0.0
    %2221 = vmatprep.mubr.f32.mxu0 0.0
    %2222 = vmatmul.mubr.f32.gmra.mxu0 %v2152
    %v2223 = vpop.f32.mrf.mxu0
    %v2224 = vadd.f32 0.0, %v2223
    %v2225 = vpop.f32.mrf.mxu0
    %2226 = vmatprep.mubr.f32.mxu0 0.0
    %2227 = vmatmul.mubr.f32.gmra.mxu0 %v2155
    %v2228 = vpop.f32.mrf.mxu0
    %v2229 = vadd.f32 0.0, %v2228
    %v2230 = vpop.f32.mrf.mxu0
    %2231 = vdwg.mxu0
    %v2232 = vadd.f32 %v1690, %v2224
    %v2233 = vadd.f32 %v1691, %v2229
    %v2234 = vadd.f32 %v42, %v2232
    %v2235 = vadd.f32 %v43, %v2233
    %v2236 = vsel %vm72, %v2234, 0.0
    %2237 = vadd.xlane.f32.xlu0 %v2236
    %v2238 = vpop.xlane.xlu0 %2237
    %v2239 = vsel %vm72, %v2235, 0.0
    %2240 = vadd.xlane.f32.xlu0 %v2239
    %v2241 = vpop.xlane.xlu0 %2240
    %v2242 = vrcp.pop 64.0
    %v2243 = vmul.f32 %v2238, %v2242
    %v2244 = vmul.f32 %v2241, %v2242
    %v2245 = vsub.f32 %v2234, %v2243
    %v2246 = vsub.f32 %v2235, %v2244
    %v2247 = vmul.f32 %v2245, %v2245
    %v2248 = vmul.f32 %v2246, %v2246
    %v2249 = vsel %vm72, %v2247, 0.0
    %2250 = vadd.xlane.f32.xlu0 %v2249
    %v2251 = vpop.xlane.xlu0 %2250
    %v2252 = vsel %vm72, %v2248, 0.0
    %2253 = vadd.xlane.f32.xlu0 %v2252
    %v2254 = vpop.xlane.xlu0 %2253
    %v2255 = vmul.f32 %v2251, %v2242
    %v2256 = vmul.f32 %v2254, %v2242
    %v2257 = vadd.f32 %v2255, 1e-05
    %v2258 = vadd.f32 %v2256, 1e-05
    %v2259 = vrsqrt.pop %v2257
    %v2260 = vrsqrt.pop %v2258
    %v2261 = vmul.f32 %v2245, %v2259
    %v2262 = vmul.f32 %v2246, %v2260
    %v2263 = vlaneseq
    %v2264 = vshrl.u32 %v2263, 7
    %v2265 = vsub.s32 1, %v2264
    %v2266 = vrot.slane %v48, %v2265
    %v2267 = vmul.f32 %v2261, %v2266
    %v2268 = vmul.f32 %v2262, %v2266
    %v2269 = vlaneseq
    %v2270 = vshrl.u32 %v2269, 7
    %v2271 = vsub.s32 2, %v2270
    %v2272 = vrot.slane %v48, %v2271
    %v2273 = vadd.f32 %v2267, %v2272
    %v2274 = vadd.f32 %v2268, %v2272
    %v2275 = vld [vmem:[%s5] sm:$0xff]
    %v2276 = vld [vmem:[%s5 + $0x8] sm:$0xff]
    %v2277 = vld [vmem:[%s5 + $0x10] sm:$0xff]
    %v2278 = vld [vmem:[%s5 + $0x18] sm:$0xff]
    %v2279 = vld [vmem:[%s5 + $0x20] sm:$0xff]
    %v2280 = vld [vmem:[%s5 + $0x28] sm:$0xff]
    %v2281 = vld [vmem:[%s5 + $0x30] sm:$0xff]
    %v2282 = vld [vmem:[%s5 + $0x38] sm:$0xff]
    %v2283 = vld [vmem:[%s5 + $0x40] sm:$0xff]
    %v2284 = vld [vmem:[%s5 + $0x48] sm:$0xff]
    %v2285 = vld [vmem:[%s5 + $0x50] sm:$0xff]
    %v2286 = vld [vmem:[%s5 + $0x58] sm:$0xff]
    %v2287 = vld [vmem:[%s5 + $0x60] sm:$0xff]
    %v2288 = vld [vmem:[%s5 + $0x68] sm:$0xff]
    %v2289 = vld [vmem:[%s5 + $0x70] sm:$0xff]
    %v2290 = vld [vmem:[%s5 + $0x78] sm:$0xff]
    %v2291 = vld [vmem:[%s5 + $0x80] sm:$0xff]
    %v2292 = vld [vmem:[%s5 + $0x88] sm:$0xff]
    %v2293 = vld [vmem:[%s5 + $0x90] sm:$0xff]
    %v2294 = vld [vmem:[%s5 + $0x98] sm:$0xff]
    %v2295 = vld [vmem:[%s5 + $0xa0] sm:$0xff]
    %v2296 = vld [vmem:[%s5 + $0xa8] sm:$0xff]
    %v2297 = vld [vmem:[%s5 + $0xb0] sm:$0xff]
    %v2298 = vld [vmem:[%s5 + $0xb8] sm:$0xff]
    %v2299 = vld [vmem:[%s5 + $0xc0] sm:$0xff]
    %v2300 = vld [vmem:[%s5 + $0xc8] sm:$0xff]
    %v2301 = vld [vmem:[%s5 + $0xd0] sm:$0xff]
    %v2302 = vld [vmem:[%s5 + $0xd8] sm:$0xff]
    %v2303 = vld [vmem:[%s5 + $0xe0] sm:$0xff]
    %v2304 = vld [vmem:[%s5 + $0xe8] sm:$0xff]
    %v2305 = vld [vmem:[%s5 + $0xf0] sm:$0xff]
    %v2306 = vld [vmem:[%s5 + $0xf8] sm:$0xff]
    %v2307 = vld [vmem:[%s5 + $0x100] sm:$0xff]
    %v2308 = vld [vmem:[%s5 + $0x108] sm:$0xff]
    %v2309 = vld [vmem:[%s5 + $0x110] sm:$0xff]
    %v2310 = vld [vmem:[%s5 + $0x118] sm:$0xff]
    %v2311 = vld [vmem:[%s5 + $0x120] sm:$0xff]
    %v2312 = vld [vmem:[%s5 + $0x128] sm:$0xff]
    %v2313 = vld [vmem:[%s5 + $0x130] sm:$0xff]
    %v2314 = vld [vmem:[%s5 + $0x138] sm:$0xff]
    %v2315 = vld [vmem:[%s5 + $0x140] sm:$0xff]
    %v2316 = vld [vmem:[%s5 + $0x148] sm:$0xff]
    %v2317 = vld [vmem:[%s5 + $0x150] sm:$0xff]
    %v2318 = vld [vmem:[%s5 + $0x158] sm:$0xff]
    %v2319 = vld [vmem:[%s5 + $0x160] sm:$0xff]
    %v2320 = vld [vmem:[%s5 + $0x168] sm:$0xff]
    %v2321 = vld [vmem:[%s5 + $0x170] sm:$0xff]
    %v2322 = vld [vmem:[%s5 + $0x178] sm:$0xff]
    %v2323 = vld [vmem:[%s5 + $0x180] sm:$0xff]
    %v2324 = vld [vmem:[%s5 + $0x188] sm:$0xff]
    %v2325 = vld [vmem:[%s5 + $0x190] sm:$0xff]
    %v2326 = vld [vmem:[%s5 + $0x198] sm:$0xff]
    %v2327 = vld [vmem:[%s5 + $0x1a0] sm:$0xff]
    %v2328 = vld [vmem:[%s5 + $0x1a8] sm:$0xff]
    %v2329 = vld [vmem:[%s5 + $0x1b0] sm:$0xff]
    %v2330 = vld [vmem:[%s5 + $0x1b8] sm:$0xff]
    %v2331 = vld [vmem:[%s5 + $0x1c0] sm:$0xff]
    %v2332 = vld [vmem:[%s5 + $0x1c8] sm:$0xff]
    %v2333 = vld [vmem:[%s5 + $0x1d0] sm:$0xff]
    %v2334 = vld [vmem:[%s5 + $0x1d8] sm:$0xff]
    %v2335 = vld [vmem:[%s5 + $0x1e0] sm:$0xff]
    %v2336 = vld [vmem:[%s5 + $0x1e8] sm:$0xff]
    %v2337 = vld [vmem:[%s5 + $0x1f0] sm:$0xff]
    %v2338 = vld [vmem:[%s5 + $0x1f8] sm:$0xff]
    %v2339 = vld [vmem:[%s5 + $0x200] sm:$0xff]
    %v2340 = vld [vmem:[%s5 + $0x208] sm:$0xff]
    %v2341 = vld [vmem:[%s5 + $0x210] sm:$0xff]
    %v2342 = vld [vmem:[%s5 + $0x218] sm:$0xff]
    %v2343 = vld [vmem:[%s5 + $0x220] sm:$0xff]
    %v2344 = vld [vmem:[%s5 + $0x228] sm:$0xff]
    %v2345 = vld [vmem:[%s5 + $0x230] sm:$0xff]
    %v2346 = vld [vmem:[%s5 + $0x238] sm:$0xff]
    %v2347 = vld [vmem:[%s5 + $0x240] sm:$0xff]
    %v2348 = vld [vmem:[%s5 + $0x248] sm:$0xff]
    %v2349 = vld [vmem:[%s5 + $0x250] sm:$0xff]
    %v2350 = vld [vmem:[%s5 + $0x258] sm:$0xff]
    %v2351 = vld [vmem:[%s5 + $0x260] sm:$0xff]
    %v2352 = vld [vmem:[%s5 + $0x268] sm:$0xff]
    %v2353 = vld [vmem:[%s5 + $0x270] sm:$0xff]
    %v2354 = vld [vmem:[%s5 + $0x278] sm:$0xff]
    %v2355 = vld [vmem:[%s5 + $0x280] sm:$0xff]
    %v2356 = vld [vmem:[%s5 + $0x288] sm:$0xff]
    %v2357 = vld [vmem:[%s5 + $0x290] sm:$0xff]
    %v2358 = vld [vmem:[%s5 + $0x298] sm:$0xff]
    %v2359 = vld [vmem:[%s5 + $0x2a0] sm:$0xff]
    %v2360 = vld [vmem:[%s5 + $0x2a8] sm:$0xff]
    %v2361 = vld [vmem:[%s5 + $0x2b0] sm:$0xff]
    %v2362 = vld [vmem:[%s5 + $0x2b8] sm:$0xff]
    %v2363 = vld [vmem:[%s5 + $0x2c0] sm:$0xff]
    %v2364 = vld [vmem:[%s5 + $0x2c8] sm:$0xff]
    %v2365 = vld [vmem:[%s5 + $0x2d0] sm:$0xff]
    %v2366 = vld [vmem:[%s5 + $0x2d8] sm:$0xff]
    %v2367 = vld [vmem:[%s5 + $0x2e0] sm:$0xff]
    %v2368 = vld [vmem:[%s5 + $0x2e8] sm:$0xff]
    %v2369 = vld [vmem:[%s5 + $0x2f0] sm:$0xff]
    %v2370 = vld [vmem:[%s5 + $0x2f8] sm:$0xff]
    %v2371 = vld [vmem:[%s5 + $0x300] sm:$0xff]
    %v2372 = vld [vmem:[%s5 + $0x308] sm:$0xff]
    %v2373 = vld [vmem:[%s5 + $0x310] sm:$0xff]
    %v2374 = vld [vmem:[%s5 + $0x318] sm:$0xff]
    %v2375 = vld [vmem:[%s5 + $0x320] sm:$0xff]
    %v2376 = vld [vmem:[%s5 + $0x328] sm:$0xff]
    %v2377 = vld [vmem:[%s5 + $0x330] sm:$0xff]
    %v2378 = vld [vmem:[%s5 + $0x338] sm:$0xff]
    %v2379 = vld [vmem:[%s5 + $0x340] sm:$0xff]
    %v2380 = vld [vmem:[%s5 + $0x348] sm:$0xff]
    %v2381 = vld [vmem:[%s5 + $0x350] sm:$0xff]
    %v2382 = vld [vmem:[%s5 + $0x358] sm:$0xff]
    %v2383 = vld [vmem:[%s5 + $0x360] sm:$0xff]
    %v2384 = vld [vmem:[%s5 + $0x368] sm:$0xff]
    %v2385 = vld [vmem:[%s5 + $0x370] sm:$0xff]
    %v2386 = vld [vmem:[%s5 + $0x378] sm:$0xff]
    %v2387 = vld [vmem:[%s5 + $0x380] sm:$0xff]
    %v2388 = vld [vmem:[%s5 + $0x388] sm:$0xff]
    %v2389 = vld [vmem:[%s5 + $0x390] sm:$0xff]
    %v2390 = vld [vmem:[%s5 + $0x398] sm:$0xff]
    %v2391 = vld [vmem:[%s5 + $0x3a0] sm:$0xff]
    %v2392 = vld [vmem:[%s5 + $0x3a8] sm:$0xff]
    %v2393 = vld [vmem:[%s5 + $0x3b0] sm:$0xff]
    %v2394 = vld [vmem:[%s5 + $0x3b8] sm:$0xff]
    %v2395 = vld [vmem:[%s5 + $0x3c0] sm:$0xff]
    %v2396 = vld [vmem:[%s5 + $0x3c8] sm:$0xff]
    %v2397 = vld [vmem:[%s5 + $0x3d0] sm:$0xff]
    %v2398 = vld [vmem:[%s5 + $0x3d8] sm:$0xff]
    %v2399 = vld [vmem:[%s5 + $0x3e0] sm:$0xff]
    %v2400 = vld [vmem:[%s5 + $0x3e8] sm:$0xff]
    %v2401 = vld [vmem:[%s5 + $0x3f0] sm:$0xff]
    %v2402 = vld [vmem:[%s5 + $0x3f8] sm:$0xff]
    %v2407 = vlaneseq
    %v2408 = vshrl.u32 %v2407, 7
    %v2409 = vsub.s32 0, %v2408
    %v2410 = vrot.slane %v51, %v2409
    %v2411 = vlaneseq
    %v2412 = vshrl.u32 %v2411, 7
    %v2413 = vsub.s32 2, %v2412
    %v2414 = vrot.slane %v51, %v2413
    %v2415 = vlaneseq
    %v2416 = vshrl.u32 %v2415, 7
    %v2417 = vsub.s32 4, %v2416
    %v2418 = vrot.slane %v51, %v2417
    %v2419 = vlaneseq
    %v2420 = vshrl.u32 %v2419, 7
    %v2421 = vsub.s32 6, %v2420
    %v2422 = vrot.slane %v51, %v2421
    %v2423 = vlaneseq
    %v2424 = vshrl.u32 %v2423, 7
    %v2425 = vsub.s32 0, %v2424
    %v2426 = vrot.slane %v52, %v2425
    %v2427 = vlaneseq
    %v2428 = vshrl.u32 %v2427, 7
    %v2429 = vsub.s32 2, %v2428
    %v2430 = vrot.slane %v52, %v2429
    %v2431 = vlaneseq
    %v2432 = vshrl.u32 %v2431, 7
    %v2433 = vsub.s32 4, %v2432
    %v2434 = vrot.slane %v52, %v2433
    %v2435 = vlaneseq
    %v2436 = vshrl.u32 %v2435, 7
    %v2437 = vsub.s32 6, %v2436
    %v2438 = vrot.slane %v52, %v2437
    %v2439 = vlaneseq
    %v2440 = vshrl.u32 %v2439, 7
    %v2441 = vsub.s32 0, %v2440
    %v2442 = vrot.slane %v53, %v2441
    %v2443 = vlaneseq
    %v2444 = vshrl.u32 %v2443, 7
    %v2445 = vsub.s32 2, %v2444
    %v2446 = vrot.slane %v53, %v2445
    %v2447 = vlaneseq
    %v2448 = vshrl.u32 %v2447, 7
    %v2449 = vsub.s32 4, %v2448
    %v2450 = vrot.slane %v53, %v2449
    %v2451 = vlaneseq
    %v2452 = vshrl.u32 %v2451, 7
    %v2453 = vsub.s32 6, %v2452
    %v2454 = vrot.slane %v53, %v2453
    %v2455 = vlaneseq
    %v2456 = vshrl.u32 %v2455, 7
    %v2457 = vsub.s32 0, %v2456
    %v2458 = vrot.slane %v54, %v2457
    %v2459 = vlaneseq
    %v2460 = vshrl.u32 %v2459, 7
    %v2461 = vsub.s32 2, %v2460
    %v2462 = vrot.slane %v54, %v2461
    %v2463 = vlaneseq
    %v2464 = vshrl.u32 %v2463, 7
    %v2465 = vsub.s32 4, %v2464
    %v2466 = vrot.slane %v54, %v2465
    %v2467 = vlaneseq
    %v2468 = vshrl.u32 %v2467, 7
    %v2469 = vsub.s32 6, %v2468
    %v2470 = vrot.slane %v54, %v2469
    %v2487 = vlaneseq
    %v2488 = vshrl.u32 %v2487, 7
    %v2489 = vsub.s32 0, %v2488
    %v2490 = vrot.slane %v2410, %v2489
    %v2491 = vlaneseq
    %v2492 = vshrl.u32 %v2491, 7
    %v2493 = vsub.s32 0, %v2492
    %v2494 = vrot.slane %v2414, %v2493
    %v2495 = vlaneseq
    %v2496 = vshrl.u32 %v2495, 7
    %v2497 = vsub.s32 0, %v2496
    %v2498 = vrot.slane %v2418, %v2497
    %v2499 = vlaneseq
    %v2500 = vshrl.u32 %v2499, 7
    %v2501 = vsub.s32 0, %v2500
    %v2502 = vrot.slane %v2422, %v2501
    %v2503 = vlaneseq
    %v2504 = vshrl.u32 %v2503, 7
    %v2505 = vsub.s32 0, %v2504
    %v2506 = vrot.slane %v2426, %v2505
    %v2507 = vlaneseq
    %v2508 = vshrl.u32 %v2507, 7
    %v2509 = vsub.s32 0, %v2508
    %v2510 = vrot.slane %v2430, %v2509
    %v2511 = vlaneseq
    %v2512 = vshrl.u32 %v2511, 7
    %v2513 = vsub.s32 0, %v2512
    %v2514 = vrot.slane %v2434, %v2513
    %v2515 = vlaneseq
    %v2516 = vshrl.u32 %v2515, 7
    %v2517 = vsub.s32 0, %v2516
    %v2518 = vrot.slane %v2438, %v2517
    %v2519 = vlaneseq
    %v2520 = vshrl.u32 %v2519, 7
    %v2521 = vsub.s32 0, %v2520
    %v2522 = vrot.slane %v2442, %v2521
    %v2523 = vlaneseq
    %v2524 = vshrl.u32 %v2523, 7
    %v2525 = vsub.s32 0, %v2524
    %v2526 = vrot.slane %v2446, %v2525
    %v2527 = vlaneseq
    %v2528 = vshrl.u32 %v2527, 7
    %v2529 = vsub.s32 0, %v2528
    %v2530 = vrot.slane %v2450, %v2529
    %v2531 = vlaneseq
    %v2532 = vshrl.u32 %v2531, 7
    %v2533 = vsub.s32 0, %v2532
    %v2534 = vrot.slane %v2454, %v2533
    %v2535 = vlaneseq
    %v2536 = vshrl.u32 %v2535, 7
    %v2537 = vsub.s32 0, %v2536
    %v2538 = vrot.slane %v2458, %v2537
    %v2539 = vlaneseq
    %v2540 = vshrl.u32 %v2539, 7
    %v2541 = vsub.s32 0, %v2540
    %v2542 = vrot.slane %v2462, %v2541
    %v2543 = vlaneseq
    %v2544 = vshrl.u32 %v2543, 7
    %v2545 = vsub.s32 0, %v2544
    %v2546 = vrot.slane %v2466, %v2545
    %v2547 = vlaneseq
    %v2548 = vshrl.u32 %v2547, 7
    %v2549 = vsub.s32 0, %v2548
    %v2550 = vrot.slane %v2470, %v2549
    %v2552 = vsel %vm72, %v2273, 0
    %v2555 = vsel %vm72, %v2274, 0
    %2557 = vmatprep.subr.mxu0 0.0
    %2558 = vmatpush1.msra.mxu0 0.0
    %2559 = vmatprep.subr.mxu0 0.0
    %2560 = vmatpush1.msra.mxu0 0.0
    %2561 = vmatprep.subr.mxu0 0.0
    %2562 = vmatpush1.msra.mxu0 0.0
    %2563 = vmatprep.subr.mxu0 0.0
    %2564 = vmatpush1.msra.mxu0 0.0
    %2565 = vmatprep.subr.mxu0 0.0
    %2566 = vmatpush1.msra.mxu0 0.0
    %2567 = vmatprep.subr.mxu0 0.0
    %2568 = vmatpush1.msra.mxu0 0.0
    %2569 = vmatprep.subr.mxu0 0.0
    %2570 = vmatpush1.msra.mxu0 0.0
    %2571 = vmatprep.subr.mxu0 0.0
    %2572 = vmatpush1.msra.mxu0 0.0
    %2573 = vmatprep.subr.mxu0 %v2388
    %2574 = vmatpush1.msra.mxu0 %v2387
    %2575 = vmatprep.subr.mxu0 %v2372
    %2576 = vmatpush1.msra.mxu0 %v2371
    %2577 = vmatprep.subr.mxu0 %v2356
    %2578 = vmatpush1.msra.mxu0 %v2355
    %2579 = vmatprep.subr.mxu0 %v2340
    %2580 = vmatpush1.msra.mxu0 %v2339
    %2581 = vmatprep.subr.mxu0 %v2324
    %2582 = vmatpush1.msra.mxu0 %v2323
    %2583 = vmatprep.subr.mxu0 %v2308
    %2584 = vmatpush1.msra.mxu0 %v2307
    %2585 = vmatprep.subr.mxu0 %v2292
    %2586 = vmatpush1.msra.mxu0 %v2291
    %2587 = vmatprep.subr.mxu0 %v2276
    %2588 = vmatpush1.msra.mxu0 %v2275
    %2589 = vmatprep.subr.mxu0 0.0
    %2590 = vmatpush2.msra.mxu0 0.0
    %2591 = vmatprep.subr.mxu0 0.0
    %2592 = vmatpush2.msra.mxu0 0.0
    %2593 = vmatprep.subr.mxu0 0.0
    %2594 = vmatpush2.msra.mxu0 0.0
    %2595 = vmatprep.subr.mxu0 0.0
    %2596 = vmatpush2.msra.mxu0 0.0
    %2597 = vmatprep.subr.mxu0 0.0
    %2598 = vmatpush2.msra.mxu0 0.0
    %2599 = vmatprep.subr.mxu0 0.0
    %2600 = vmatpush2.msra.mxu0 0.0
    %2601 = vmatprep.subr.mxu0 0.0
    %2602 = vmatpush2.msra.mxu0 0.0
    %2603 = vmatprep.subr.mxu0 0.0
    %2604 = vmatpush2.msra.mxu0 0.0
    %2605 = vmatprep.subr.mxu0 0.0
    %2606 = vmatpush2.msra.mxu0 0.0
    %2607 = vmatprep.subr.mxu0 0.0
    %2608 = vmatpush2.msra.mxu0 0.0
    %2609 = vmatprep.subr.mxu0 0.0
    %2610 = vmatpush2.msra.mxu0 0.0
    %2611 = vmatprep.subr.mxu0 0.0
    %2612 = vmatpush2.msra.mxu0 0.0
    %2613 = vmatprep.subr.mxu0 0.0
    %2614 = vmatpush2.msra.mxu0 0.0
    %2615 = vmatprep.subr.mxu0 0.0
    %2616 = vmatpush2.msra.mxu0 0.0
    %2617 = vmatprep.subr.mxu0 0.0
    %2618 = vmatpush2.msra.mxu0 0.0
    %2619 = vmatprep.subr.mxu0 0.0
    %2620 = vmatpush2.msra.mxu0 0.0
    %2621 = vmatprep.mubr.f32.mxu0 0.0
    %2622 = vmatmul.mubr.f32.gmra.mxu0 %v2552
    %v2623 = vpop.f32.mrf.mxu0
    %v2624 = vadd.f32 %v2490, %v2623
    %v2625 = vpop.f32.mrf.mxu0
    %v2626 = vadd.f32 %v2494, %v2625
    %2627 = vmatprep.mubr.f32.mxu0 0.0
    %2628 = vmatmul.mubr.f32.gmra.mxu0 %v2555
    %v2629 = vpop.f32.mrf.mxu0
    %v2630 = vadd.f32 %v2490, %v2629
    %v2631 = vpop.f32.mrf.mxu0
    %v2632 = vadd.f32 %v2494, %v2631
    %2633 = vdwg.mxu0
    %2634 = vmatprep.subr.mxu0 0.0
    %2635 = vmatpush1.msra.mxu0 0.0
    %2636 = vmatprep.subr.mxu0 0.0
    %2637 = vmatpush1.msra.mxu0 0.0
    %2638 = vmatprep.subr.mxu0 0.0
    %2639 = vmatpush1.msra.mxu0 0.0
    %2640 = vmatprep.subr.mxu0 0.0
    %2641 = vmatpush1.msra.mxu0 0.0
    %2642 = vmatprep.subr.mxu0 0.0
    %2643 = vmatpush1.msra.mxu0 0.0
    %2644 = vmatprep.subr.mxu0 0.0
    %2645 = vmatpush1.msra.mxu0 0.0
    %2646 = vmatprep.subr.mxu0 0.0
    %2647 = vmatpush1.msra.mxu0 0.0
    %2648 = vmatprep.subr.mxu0 0.0
    %2649 = vmatpush1.msra.mxu0 0.0
    %2650 = vmatprep.subr.mxu0 %v2390
    %2651 = vmatpush1.msra.mxu0 %v2389
    %2652 = vmatprep.subr.mxu0 %v2374
    %2653 = vmatpush1.msra.mxu0 %v2373
    %2654 = vmatprep.subr.mxu0 %v2358
    %2655 = vmatpush1.msra.mxu0 %v2357
    %2656 = vmatprep.subr.mxu0 %v2342
    %2657 = vmatpush1.msra.mxu0 %v2341
    %2658 = vmatprep.subr.mxu0 %v2326
    %2659 = vmatpush1.msra.mxu0 %v2325
    %2660 = vmatprep.subr.mxu0 %v2310
    %2661 = vmatpush1.msra.mxu0 %v2309
    %2662 = vmatprep.subr.mxu0 %v2294
    %2663 = vmatpush1.msra.mxu0 %v2293
    %2664 = vmatprep.subr.mxu0 %v2278
    %2665 = vmatpush1.msra.mxu0 %v2277
    %2666 = vmatprep.subr.mxu0 0.0
    %2667 = vmatpush2.msra.mxu0 0.0
    %2668 = vmatprep.subr.mxu0 0.0
    %2669 = vmatpush2.msra.mxu0 0.0
    %2670 = vmatprep.subr.mxu0 0.0
    %2671 = vmatpush2.msra.mxu0 0.0
    %2672 = vmatprep.subr.mxu0 0.0
    %2673 = vmatpush2.msra.mxu0 0.0
    %2674 = vmatprep.subr.mxu0 0.0
    %2675 = vmatpush2.msra.mxu0 0.0
    %2676 = vmatprep.subr.mxu0 0.0
    %2677 = vmatpush2.msra.mxu0 0.0
    %2678 = vmatprep.subr.mxu0 0.0
    %2679 = vmatpush2.msra.mxu0 0.0
    %2680 = vmatprep.subr.mxu0 0.0
    %2681 = vmatpush2.msra.mxu0 0.0
    %2682 = vmatprep.subr.mxu0 0.0
    %2683 = vmatpush2.msra.mxu0 0.0
    %2684 = vmatprep.subr.mxu0 0.0
    %2685 = vmatpush2.msra.mxu0 0.0
    %2686 = vmatprep.subr.mxu0 0.0
    %2687 = vmatpush2.msra.mxu0 0.0
    %2688 = vmatprep.subr.mxu0 0.0
    %2689 = vmatpush2.msra.mxu0 0.0
    %2690 = vmatprep.subr.mxu0 0.0
    %2691 = vmatpush2.msra.mxu0 0.0
    %2692 = vmatprep.subr.mxu0 0.0
    %2693 = vmatpush2.msra.mxu0 0.0
    %2694 = vmatprep.subr.mxu0 0.0
    %2695 = vmatpush2.msra.mxu0 0.0
    %2696 = vmatprep.subr.mxu0 0.0
    %2697 = vmatpush2.msra.mxu0 0.0
    %2698 = vmatprep.mubr.f32.mxu0 0.0
    %2699 = vmatmul.mubr.f32.gmra.mxu0 %v2552
    %v2700 = vpop.f32.mrf.mxu0
    %v2701 = vadd.f32 %v2498, %v2700
    %v2702 = vpop.f32.mrf.mxu0
    %v2703 = vadd.f32 %v2502, %v2702
    %2704 = vmatprep.mubr.f32.mxu0 0.0
    %2705 = vmatmul.mubr.f32.gmra.mxu0 %v2555
    %v2706 = vpop.f32.mrf.mxu0
    %v2707 = vadd.f32 %v2498, %v2706
    %v2708 = vpop.f32.mrf.mxu0
    %v2709 = vadd.f32 %v2502, %v2708
    %2710 = vdwg.mxu0
    %2711 = vmatprep.subr.mxu0 0.0
    %2712 = vmatpush1.msra.mxu0 0.0
    %2713 = vmatprep.subr.mxu0 0.0
    %2714 = vmatpush1.msra.mxu0 0.0
    %2715 = vmatprep.subr.mxu0 0.0
    %2716 = vmatpush1.msra.mxu0 0.0
    %2717 = vmatprep.subr.mxu0 0.0
    %2718 = vmatpush1.msra.mxu0 0.0
    %2719 = vmatprep.subr.mxu0 0.0
    %2720 = vmatpush1.msra.mxu0 0.0
    %2721 = vmatprep.subr.mxu0 0.0
    %2722 = vmatpush1.msra.mxu0 0.0
    %2723 = vmatprep.subr.mxu0 0.0
    %2724 = vmatpush1.msra.mxu0 0.0
    %2725 = vmatprep.subr.mxu0 0.0
    %2726 = vmatpush1.msra.mxu0 0.0
    %2727 = vmatprep.subr.mxu0 %v2392
    %2728 = vmatpush1.msra.mxu0 %v2391
    %2729 = vmatprep.subr.mxu0 %v2376
    %2730 = vmatpush1.msra.mxu0 %v2375
    %2731 = vmatprep.subr.mxu0 %v2360
    %2732 = vmatpush1.msra.mxu0 %v2359
    %2733 = vmatprep.subr.mxu0 %v2344
    %2734 = vmatpush1.msra.mxu0 %v2343
    %2735 = vmatprep.subr.mxu0 %v2328
    %2736 = vmatpush1.msra.mxu0 %v2327
    %2737 = vmatprep.subr.mxu0 %v2312
    %2738 = vmatpush1.msra.mxu0 %v2311
    %2739 = vmatprep.subr.mxu0 %v2296
    %2740 = vmatpush1.msra.mxu0 %v2295
    %2741 = vmatprep.subr.mxu0 %v2280
    %2742 = vmatpush1.msra.mxu0 %v2279
    %2743 = vmatprep.subr.mxu0 0.0
    %2744 = vmatpush2.msra.mxu0 0.0
    %2745 = vmatprep.subr.mxu0 0.0
    %2746 = vmatpush2.msra.mxu0 0.0
    %2747 = vmatprep.subr.mxu0 0.0
    %2748 = vmatpush2.msra.mxu0 0.0
    %2749 = vmatprep.subr.mxu0 0.0
    %2750 = vmatpush2.msra.mxu0 0.0
    %2751 = vmatprep.subr.mxu0 0.0
    %2752 = vmatpush2.msra.mxu0 0.0
    %2753 = vmatprep.subr.mxu0 0.0
    %2754 = vmatpush2.msra.mxu0 0.0
    %2755 = vmatprep.subr.mxu0 0.0
    %2756 = vmatpush2.msra.mxu0 0.0
    %2757 = vmatprep.subr.mxu0 0.0
    %2758 = vmatpush2.msra.mxu0 0.0
    %2759 = vmatprep.subr.mxu0 0.0
    %2760 = vmatpush2.msra.mxu0 0.0
    %2761 = vmatprep.subr.mxu0 0.0
    %2762 = vmatpush2.msra.mxu0 0.0
    %2763 = vmatprep.subr.mxu0 0.0
    %2764 = vmatpush2.msra.mxu0 0.0
    %2765 = vmatprep.subr.mxu0 0.0
    %2766 = vmatpush2.msra.mxu0 0.0
    %2767 = vmatprep.subr.mxu0 0.0
    %2768 = vmatpush2.msra.mxu0 0.0
    %2769 = vmatprep.subr.mxu0 0.0
    %2770 = vmatpush2.msra.mxu0 0.0
    %2771 = vmatprep.subr.mxu0 0.0
    %2772 = vmatpush2.msra.mxu0 0.0
    %2773 = vmatprep.subr.mxu0 0.0
    %2774 = vmatpush2.msra.mxu0 0.0
    %2775 = vmatprep.mubr.f32.mxu0 0.0
    %2776 = vmatmul.mubr.f32.gmra.mxu0 %v2552
    %v2777 = vpop.f32.mrf.mxu0
    %v2778 = vadd.f32 %v2506, %v2777
    %v2779 = vpop.f32.mrf.mxu0
    %v2780 = vadd.f32 %v2510, %v2779
    %2781 = vmatprep.mubr.f32.mxu0 0.0
    %2782 = vmatmul.mubr.f32.gmra.mxu0 %v2555
    %v2783 = vpop.f32.mrf.mxu0
    %v2784 = vadd.f32 %v2506, %v2783
    %v2785 = vpop.f32.mrf.mxu0
    %v2786 = vadd.f32 %v2510, %v2785
    %2787 = vdwg.mxu0
    %2788 = vmatprep.subr.mxu0 0.0
    %2789 = vmatpush1.msra.mxu0 0.0
    %2790 = vmatprep.subr.mxu0 0.0
    %2791 = vmatpush1.msra.mxu0 0.0
    %2792 = vmatprep.subr.mxu0 0.0
    %2793 = vmatpush1.msra.mxu0 0.0
    %2794 = vmatprep.subr.mxu0 0.0
    %2795 = vmatpush1.msra.mxu0 0.0
    %2796 = vmatprep.subr.mxu0 0.0
    %2797 = vmatpush1.msra.mxu0 0.0
    %2798 = vmatprep.subr.mxu0 0.0
    %2799 = vmatpush1.msra.mxu0 0.0
    %2800 = vmatprep.subr.mxu0 0.0
    %2801 = vmatpush1.msra.mxu0 0.0
    %2802 = vmatprep.subr.mxu0 0.0
    %2803 = vmatpush1.msra.mxu0 0.0
    %2804 = vmatprep.subr.mxu0 %v2394
    %2805 = vmatpush1.msra.mxu0 %v2393
    %2806 = vmatprep.subr.mxu0 %v2378
    %2807 = vmatpush1.msra.mxu0 %v2377
    %2808 = vmatprep.subr.mxu0 %v2362
    %2809 = vmatpush1.msra.mxu0 %v2361
    %2810 = vmatprep.subr.mxu0 %v2346
    %2811 = vmatpush1.msra.mxu0 %v2345
    %2812 = vmatprep.subr.mxu0 %v2330
    %2813 = vmatpush1.msra.mxu0 %v2329
    %2814 = vmatprep.subr.mxu0 %v2314
    %2815 = vmatpush1.msra.mxu0 %v2313
    %2816 = vmatprep.subr.mxu0 %v2298
    %2817 = vmatpush1.msra.mxu0 %v2297
    %2818 = vmatprep.subr.mxu0 %v2282
    %2819 = vmatpush1.msra.mxu0 %v2281
    %2820 = vmatprep.subr.mxu0 0.0
    %2821 = vmatpush2.msra.mxu0 0.0
    %2822 = vmatprep.subr.mxu0 0.0
    %2823 = vmatpush2.msra.mxu0 0.0
    %2824 = vmatprep.subr.mxu0 0.0
    %2825 = vmatpush2.msra.mxu0 0.0
    %2826 = vmatprep.subr.mxu0 0.0
    %2827 = vmatpush2.msra.mxu0 0.0
    %2828 = vmatprep.subr.mxu0 0.0
    %2829 = vmatpush2.msra.mxu0 0.0
    %2830 = vmatprep.subr.mxu0 0.0
    %2831 = vmatpush2.msra.mxu0 0.0
    %2832 = vmatprep.subr.mxu0 0.0
    %2833 = vmatpush2.msra.mxu0 0.0
    %2834 = vmatprep.subr.mxu0 0.0
    %2835 = vmatpush2.msra.mxu0 0.0
    %2836 = vmatprep.subr.mxu0 0.0
    %2837 = vmatpush2.msra.mxu0 0.0
    %2838 = vmatprep.subr.mxu0 0.0
    %2839 = vmatpush2.msra.mxu0 0.0
    %2840 = vmatprep.subr.mxu0 0.0
    %2841 = vmatpush2.msra.mxu0 0.0
    %2842 = vmatprep.subr.mxu0 0.0
    %2843 = vmatpush2.msra.mxu0 0.0
    %2844 = vmatprep.subr.mxu0 0.0
    %2845 = vmatpush2.msra.mxu0 0.0
    %2846 = vmatprep.subr.mxu0 0.0
    %2847 = vmatpush2.msra.mxu0 0.0
    %2848 = vmatprep.subr.mxu0 0.0
    %2849 = vmatpush2.msra.mxu0 0.0
    %2850 = vmatprep.subr.mxu0 0.0
    %2851 = vmatpush2.msra.mxu0 0.0
    %2852 = vmatprep.mubr.f32.mxu0 0.0
    %2853 = vmatmul.mubr.f32.gmra.mxu0 %v2552
    %v2854 = vpop.f32.mrf.mxu0
    %v2855 = vadd.f32 %v2514, %v2854
    %v2856 = vpop.f32.mrf.mxu0
    %v2857 = vadd.f32 %v2518, %v2856
    %2858 = vmatprep.mubr.f32.mxu0 0.0
    %2859 = vmatmul.mubr.f32.gmra.mxu0 %v2555
    %v2860 = vpop.f32.mrf.mxu0
    %v2861 = vadd.f32 %v2514, %v2860
    %v2862 = vpop.f32.mrf.mxu0
    %v2863 = vadd.f32 %v2518, %v2862
    %2864 = vdwg.mxu0
    %2865 = vmatprep.subr.mxu0 0.0
    %2866 = vmatpush1.msra.mxu0 0.0
    %2867 = vmatprep.subr.mxu0 0.0
    %2868 = vmatpush1.msra.mxu0 0.0
    %2869 = vmatprep.subr.mxu0 0.0
    %2870 = vmatpush1.msra.mxu0 0.0
    %2871 = vmatprep.subr.mxu0 0.0
    %2872 = vmatpush1.msra.mxu0 0.0
    %2873 = vmatprep.subr.mxu0 0.0
    %2874 = vmatpush1.msra.mxu0 0.0
    %2875 = vmatprep.subr.mxu0 0.0
    %2876 = vmatpush1.msra.mxu0 0.0
    %2877 = vmatprep.subr.mxu0 0.0
    %2878 = vmatpush1.msra.mxu0 0.0
    %2879 = vmatprep.subr.mxu0 0.0
    %2880 = vmatpush1.msra.mxu0 0.0
    %2881 = vmatprep.subr.mxu0 %v2396
    %2882 = vmatpush1.msra.mxu0 %v2395
    %2883 = vmatprep.subr.mxu0 %v2380
    %2884 = vmatpush1.msra.mxu0 %v2379
    %2885 = vmatprep.subr.mxu0 %v2364
    %2886 = vmatpush1.msra.mxu0 %v2363
    %2887 = vmatprep.subr.mxu0 %v2348
    %2888 = vmatpush1.msra.mxu0 %v2347
    %2889 = vmatprep.subr.mxu0 %v2332
    %2890 = vmatpush1.msra.mxu0 %v2331
    %2891 = vmatprep.subr.mxu0 %v2316
    %2892 = vmatpush1.msra.mxu0 %v2315
    %2893 = vmatprep.subr.mxu0 %v2300
    %2894 = vmatpush1.msra.mxu0 %v2299
    %2895 = vmatprep.subr.mxu0 %v2284
    %2896 = vmatpush1.msra.mxu0 %v2283
    %2897 = vmatprep.subr.mxu0 0.0
    %2898 = vmatpush2.msra.mxu0 0.0
    %2899 = vmatprep.subr.mxu0 0.0
    %2900 = vmatpush2.msra.mxu0 0.0
    %2901 = vmatprep.subr.mxu0 0.0
    %2902 = vmatpush2.msra.mxu0 0.0
    %2903 = vmatprep.subr.mxu0 0.0
    %2904 = vmatpush2.msra.mxu0 0.0
    %2905 = vmatprep.subr.mxu0 0.0
    %2906 = vmatpush2.msra.mxu0 0.0
    %2907 = vmatprep.subr.mxu0 0.0
    %2908 = vmatpush2.msra.mxu0 0.0
    %2909 = vmatprep.subr.mxu0 0.0
    %2910 = vmatpush2.msra.mxu0 0.0
    %2911 = vmatprep.subr.mxu0 0.0
    %2912 = vmatpush2.msra.mxu0 0.0
    %2913 = vmatprep.subr.mxu0 0.0
    %2914 = vmatpush2.msra.mxu0 0.0
    %2915 = vmatprep.subr.mxu0 0.0
    %2916 = vmatpush2.msra.mxu0 0.0
    %2917 = vmatprep.subr.mxu0 0.0
    %2918 = vmatpush2.msra.mxu0 0.0
    %2919 = vmatprep.subr.mxu0 0.0
    %2920 = vmatpush2.msra.mxu0 0.0
    %2921 = vmatprep.subr.mxu0 0.0
    %2922 = vmatpush2.msra.mxu0 0.0
    %2923 = vmatprep.subr.mxu0 0.0
    %2924 = vmatpush2.msra.mxu0 0.0
    %2925 = vmatprep.subr.mxu0 0.0
    %2926 = vmatpush2.msra.mxu0 0.0
    %2927 = vmatprep.subr.mxu0 0.0
    %2928 = vmatpush2.msra.mxu0 0.0
    %2929 = vmatprep.mubr.f32.mxu0 0.0
    %2930 = vmatmul.mubr.f32.gmra.mxu0 %v2552
    %v2931 = vpop.f32.mrf.mxu0
    %v2932 = vadd.f32 %v2522, %v2931
    %v2933 = vpop.f32.mrf.mxu0
    %v2934 = vadd.f32 %v2526, %v2933
    %2935 = vmatprep.mubr.f32.mxu0 0.0
    %2936 = vmatmul.mubr.f32.gmra.mxu0 %v2555
    %v2937 = vpop.f32.mrf.mxu0
    %v2938 = vadd.f32 %v2522, %v2937
    %v2939 = vpop.f32.mrf.mxu0
    %v2940 = vadd.f32 %v2526, %v2939
    %2941 = vdwg.mxu0
    %2942 = vmatprep.subr.mxu0 0.0
    %2943 = vmatpush1.msra.mxu0 0.0
    %2944 = vmatprep.subr.mxu0 0.0
    %2945 = vmatpush1.msra.mxu0 0.0
    %2946 = vmatprep.subr.mxu0 0.0
    %2947 = vmatpush1.msra.mxu0 0.0
    %2948 = vmatprep.subr.mxu0 0.0
    %2949 = vmatpush1.msra.mxu0 0.0
    %2950 = vmatprep.subr.mxu0 0.0
    %2951 = vmatpush1.msra.mxu0 0.0
    %2952 = vmatprep.subr.mxu0 0.0
    %2953 = vmatpush1.msra.mxu0 0.0
    %2954 = vmatprep.subr.mxu0 0.0
    %2955 = vmatpush1.msra.mxu0 0.0
    %2956 = vmatprep.subr.mxu0 0.0
    %2957 = vmatpush1.msra.mxu0 0.0
    %2958 = vmatprep.subr.mxu0 %v2398
    %2959 = vmatpush1.msra.mxu0 %v2397
    %2960 = vmatprep.subr.mxu0 %v2382
    %2961 = vmatpush1.msra.mxu0 %v2381
    %2962 = vmatprep.subr.mxu0 %v2366
    %2963 = vmatpush1.msra.mxu0 %v2365
    %2964 = vmatprep.subr.mxu0 %v2350
    %2965 = vmatpush1.msra.mxu0 %v2349
    %2966 = vmatprep.subr.mxu0 %v2334
    %2967 = vmatpush1.msra.mxu0 %v2333
    %2968 = vmatprep.subr.mxu0 %v2318
    %2969 = vmatpush1.msra.mxu0 %v2317
    %2970 = vmatprep.subr.mxu0 %v2302
    %2971 = vmatpush1.msra.mxu0 %v2301
    %2972 = vmatprep.subr.mxu0 %v2286
    %2973 = vmatpush1.msra.mxu0 %v2285
    %2974 = vmatprep.subr.mxu0 0.0
    %2975 = vmatpush2.msra.mxu0 0.0
    %2976 = vmatprep.subr.mxu0 0.0
    %2977 = vmatpush2.msra.mxu0 0.0
    %2978 = vmatprep.subr.mxu0 0.0
    %2979 = vmatpush2.msra.mxu0 0.0
    %2980 = vmatprep.subr.mxu0 0.0
    %2981 = vmatpush2.msra.mxu0 0.0
    %2982 = vmatprep.subr.mxu0 0.0
    %2983 = vmatpush2.msra.mxu0 0.0
    %2984 = vmatprep.subr.mxu0 0.0
    %2985 = vmatpush2.msra.mxu0 0.0
    %2986 = vmatprep.subr.mxu0 0.0
    %2987 = vmatpush2.msra.mxu0 0.0
    %2988 = vmatprep.subr.mxu0 0.0
    %2989 = vmatpush2.msra.mxu0 0.0
    %2990 = vmatprep.subr.mxu0 0.0
    %2991 = vmatpush2.msra.mxu0 0.0
    %2992 = vmatprep.subr.mxu0 0.0
    %2993 = vmatpush2.msra.mxu0 0.0
    %2994 = vmatprep.subr.mxu0 0.0
    %2995 = vmatpush2.msra.mxu0 0.0
    %2996 = vmatprep.subr.mxu0 0.0
    %2997 = vmatpush2.msra.mxu0 0.0
    %2998 = vmatprep.subr.mxu0 0.0
    %2999 = vmatpush2.msra.mxu0 0.0
    %3000 = vmatprep.subr.mxu0 0.0
    %3001 = vmatpush2.msra.mxu0 0.0
    %3002 = vmatprep.subr.mxu0 0.0
    %3003 = vmatpush2.msra.mxu0 0.0
    %3004 = vmatprep.subr.mxu0 0.0
    %3005 = vmatpush2.msra.mxu0 0.0
    %3006 = vmatprep.mubr.f32.mxu0 0.0
    %3007 = vmatmul.mubr.f32.gmra.mxu0 %v2552
    %v3008 = vpop.f32.mrf.mxu0
    %v3009 = vadd.f32 %v2530, %v3008
    %v3010 = vpop.f32.mrf.mxu0
    %v3011 = vadd.f32 %v2534, %v3010
    %3012 = vmatprep.mubr.f32.mxu0 0.0
    %3013 = vmatmul.mubr.f32.gmra.mxu0 %v2555
    %v3014 = vpop.f32.mrf.mxu0
    %v3015 = vadd.f32 %v2530, %v3014
    %v3016 = vpop.f32.mrf.mxu0
    %v3017 = vadd.f32 %v2534, %v3016
    %3018 = vdwg.mxu0
    %3019 = vmatprep.subr.mxu0 0.0
    %3020 = vmatpush1.msra.mxu0 0.0
    %3021 = vmatprep.subr.mxu0 0.0
    %3022 = vmatpush1.msra.mxu0 0.0
    %3023 = vmatprep.subr.mxu0 0.0
    %3024 = vmatpush1.msra.mxu0 0.0
    %3025 = vmatprep.subr.mxu0 0.0
    %3026 = vmatpush1.msra.mxu0 0.0
    %3027 = vmatprep.subr.mxu0 0.0
    %3028 = vmatpush1.msra.mxu0 0.0
    %3029 = vmatprep.subr.mxu0 0.0
    %3030 = vmatpush1.msra.mxu0 0.0
    %3031 = vmatprep.subr.mxu0 0.0
    %3032 = vmatpush1.msra.mxu0 0.0
    %3033 = vmatprep.subr.mxu0 0.0
    %3034 = vmatpush1.msra.mxu0 0.0
    %3035 = vmatprep.subr.mxu0 %v2400
    %3036 = vmatpush1.msra.mxu0 %v2399
    %3037 = vmatprep.subr.mxu0 %v2384
    %3038 = vmatpush1.msra.mxu0 %v2383
    %3039 = vmatprep.subr.mxu0 %v2368
    %3040 = vmatpush1.msra.mxu0 %v2367
    %3041 = vmatprep.subr.mxu0 %v2352
    %3042 = vmatpush1.msra.mxu0 %v2351
    %3043 = vmatprep.subr.mxu0 %v2336
    %3044 = vmatpush1.msra.mxu0 %v2335
    %3045 = vmatprep.subr.mxu0 %v2320
    %3046 = vmatpush1.msra.mxu0 %v2319
    %3047 = vmatprep.subr.mxu0 %v2304
    %3048 = vmatpush1.msra.mxu0 %v2303
    %3049 = vmatprep.subr.mxu0 %v2288
    %3050 = vmatpush1.msra.mxu0 %v2287
    %3051 = vmatprep.subr.mxu0 0.0
    %3052 = vmatpush2.msra.mxu0 0.0
    %3053 = vmatprep.subr.mxu0 0.0
    %3054 = vmatpush2.msra.mxu0 0.0
    %3055 = vmatprep.subr.mxu0 0.0
    %3056 = vmatpush2.msra.mxu0 0.0
    %3057 = vmatprep.subr.mxu0 0.0
    %3058 = vmatpush2.msra.mxu0 0.0
    %3059 = vmatprep.subr.mxu0 0.0
    %3060 = vmatpush2.msra.mxu0 0.0
    %3061 = vmatprep.subr.mxu0 0.0
    %3062 = vmatpush2.msra.mxu0 0.0
    %3063 = vmatprep.subr.mxu0 0.0
    %3064 = vmatpush2.msra.mxu0 0.0
    %3065 = vmatprep.subr.mxu0 0.0
    %3066 = vmatpush2.msra.mxu0 0.0
    %3067 = vmatprep.subr.mxu0 0.0
    %3068 = vmatpush2.msra.mxu0 0.0
    %3069 = vmatprep.subr.mxu0 0.0
    %3070 = vmatpush2.msra.mxu0 0.0
    %3071 = vmatprep.subr.mxu0 0.0
    %3072 = vmatpush2.msra.mxu0 0.0
    %3073 = vmatprep.subr.mxu0 0.0
    %3074 = vmatpush2.msra.mxu0 0.0
    %3075 = vmatprep.subr.mxu0 0.0
    %3076 = vmatpush2.msra.mxu0 0.0
    %3077 = vmatprep.subr.mxu0 0.0
    %3078 = vmatpush2.msra.mxu0 0.0
    %3079 = vmatprep.subr.mxu0 0.0
    %3080 = vmatpush2.msra.mxu0 0.0
    %3081 = vmatprep.subr.mxu0 0.0
    %3082 = vmatpush2.msra.mxu0 0.0
    %3083 = vmatprep.mubr.f32.mxu0 0.0
    %3084 = vmatmul.mubr.f32.gmra.mxu0 %v2552
    %v3085 = vpop.f32.mrf.mxu0
    %v3086 = vadd.f32 %v2538, %v3085
    %v3087 = vpop.f32.mrf.mxu0
    %v3088 = vadd.f32 %v2542, %v3087
    %3089 = vmatprep.mubr.f32.mxu0 0.0
    %3090 = vmatmul.mubr.f32.gmra.mxu0 %v2555
    %v3091 = vpop.f32.mrf.mxu0
    %v3092 = vadd.f32 %v2538, %v3091
    %v3093 = vpop.f32.mrf.mxu0
    %v3094 = vadd.f32 %v2542, %v3093
    %3095 = vdwg.mxu0
    %3096 = vmatprep.subr.mxu0 0.0
    %3097 = vmatpush1.msra.mxu0 0.0
    %3098 = vmatprep.subr.mxu0 0.0
    %3099 = vmatpush1.msra.mxu0 0.0
    %3100 = vmatprep.subr.mxu0 0.0
    %3101 = vmatpush1.msra.mxu0 0.0
    %3102 = vmatprep.subr.mxu0 0.0
    %3103 = vmatpush1.msra.mxu0 0.0
    %3104 = vmatprep.subr.mxu0 0.0
    %3105 = vmatpush1.msra.mxu0 0.0
    %3106 = vmatprep.subr.mxu0 0.0
    %3107 = vmatpush1.msra.mxu0 0.0
    %3108 = vmatprep.subr.mxu0 0.0
    %3109 = vmatpush1.msra.mxu0 0.0
    %3110 = vmatprep.subr.mxu0 0.0
    %3111 = vmatpush1.msra.mxu0 0.0
    %3112 = vmatprep.subr.mxu0 %v2402
    %3113 = vmatpush1.msra.mxu0 %v2401
    %3114 = vmatprep.subr.mxu0 %v2386
    %3115 = vmatpush1.msra.mxu0 %v2385
    %3116 = vmatprep.subr.mxu0 %v2370
    %3117 = vmatpush1.msra.mxu0 %v2369
    %3118 = vmatprep.subr.mxu0 %v2354
    %3119 = vmatpush1.msra.mxu0 %v2353
    %3120 = vmatprep.subr.mxu0 %v2338
    %3121 = vmatpush1.msra.mxu0 %v2337
    %3122 = vmatprep.subr.mxu0 %v2322
    %3123 = vmatpush1.msra.mxu0 %v2321
    %3124 = vmatprep.subr.mxu0 %v2306
    %3125 = vmatpush1.msra.mxu0 %v2305
    %3126 = vmatprep.subr.mxu0 %v2290
    %3127 = vmatpush1.msra.mxu0 %v2289
    %3128 = vmatprep.subr.mxu0 0.0
    %3129 = vmatpush2.msra.mxu0 0.0
    %3130 = vmatprep.subr.mxu0 0.0
    %3131 = vmatpush2.msra.mxu0 0.0
    %3132 = vmatprep.subr.mxu0 0.0
    %3133 = vmatpush2.msra.mxu0 0.0
    %3134 = vmatprep.subr.mxu0 0.0
    %3135 = vmatpush2.msra.mxu0 0.0
    %3136 = vmatprep.subr.mxu0 0.0
    %3137 = vmatpush2.msra.mxu0 0.0
    %3138 = vmatprep.subr.mxu0 0.0
    %3139 = vmatpush2.msra.mxu0 0.0
    %3140 = vmatprep.subr.mxu0 0.0
    %3141 = vmatpush2.msra.mxu0 0.0
    %3142 = vmatprep.subr.mxu0 0.0
    %3143 = vmatpush2.msra.mxu0 0.0
    %3144 = vmatprep.subr.mxu0 0.0
    %3145 = vmatpush2.msra.mxu0 0.0
    %3146 = vmatprep.subr.mxu0 0.0
    %3147 = vmatpush2.msra.mxu0 0.0
    %3148 = vmatprep.subr.mxu0 0.0
    %3149 = vmatpush2.msra.mxu0 0.0
    %3150 = vmatprep.subr.mxu0 0.0
    %3151 = vmatpush2.msra.mxu0 0.0
    %3152 = vmatprep.subr.mxu0 0.0
    %3153 = vmatpush2.msra.mxu0 0.0
    %3154 = vmatprep.subr.mxu0 0.0
    %3155 = vmatpush2.msra.mxu0 0.0
    %3156 = vmatprep.subr.mxu0 0.0
    %3157 = vmatpush2.msra.mxu0 0.0
    %3158 = vmatprep.subr.mxu0 0.0
    %3159 = vmatpush2.msra.mxu0 0.0
    %3160 = vmatprep.mubr.f32.mxu0 0.0
    %3161 = vmatmul.mubr.f32.gmra.mxu0 %v2552
    %v3162 = vpop.f32.mrf.mxu0
    %v3163 = vadd.f32 %v2546, %v3162
    %v3164 = vpop.f32.mrf.mxu0
    %v3165 = vadd.f32 %v2550, %v3164
    %3166 = vmatprep.mubr.f32.mxu0 0.0
    %3167 = vmatmul.mubr.f32.gmra.mxu0 %v2555
    %v3168 = vpop.f32.mrf.mxu0
    %v3169 = vadd.f32 %v2546, %v3168
    %v3170 = vpop.f32.mrf.mxu0
    %v3171 = vadd.f32 %v2550, %v3170
    %3172 = vdwg.mxu0
    %v3173 = vmax.f32 %v2624, 0.0
    %v3174 = vmax.f32 %v2626, 0.0
    %v3175 = vmax.f32 %v2701, 0.0
    %v3176 = vmax.f32 %v2703, 0.0
    %v3177 = vmax.f32 %v2778, 0.0
    %v3178 = vmax.f32 %v2780, 0.0
    %v3179 = vmax.f32 %v2855, 0.0
    %v3180 = vmax.f32 %v2857, 0.0
    %v3181 = vmax.f32 %v2932, 0.0
    %v3182 = vmax.f32 %v2934, 0.0
    %v3183 = vmax.f32 %v3009, 0.0
    %v3184 = vmax.f32 %v3011, 0.0
    %v3185 = vmax.f32 %v3086, 0.0
    %v3186 = vmax.f32 %v3088, 0.0
    %v3187 = vmax.f32 %v3163, 0.0
    %v3188 = vmax.f32 %v3165, 0.0
    %v3189 = vmax.f32 %v2630, 0.0
    %v3190 = vmax.f32 %v2632, 0.0
    %v3191 = vmax.f32 %v2707, 0.0
    %v3192 = vmax.f32 %v2709, 0.0
    %v3193 = vmax.f32 %v2784, 0.0
    %v3194 = vmax.f32 %v2786, 0.0
    %v3195 = vmax.f32 %v2861, 0.0
    %v3196 = vmax.f32 %v2863, 0.0
    %v3197 = vmax.f32 %v2938, 0.0
    %v3198 = vmax.f32 %v2940, 0.0
    %v3199 = vmax.f32 %v3015, 0.0
    %v3200 = vmax.f32 %v3017, 0.0
    %v3201 = vmax.f32 %v3092, 0.0
    %v3202 = vmax.f32 %v3094, 0.0
    %v3203 = vmax.f32 %v3169, 0.0
    %v3204 = vmax.f32 %v3171, 0.0
    %v3205 = vld [vmem:[%s6] sm:$0xff]
    %v3206 = vld [vmem:[%s6 + $0x8] sm:$0xff]
    %v3207 = vld [vmem:[%s6 + $0x10] sm:$0xff]
    %v3208 = vld [vmem:[%s6 + $0x18] sm:$0xff]
    %v3209 = vld [vmem:[%s6 + $0x20] sm:$0xff]
    %v3210 = vld [vmem:[%s6 + $0x28] sm:$0xff]
    %v3211 = vld [vmem:[%s6 + $0x30] sm:$0xff]
    %v3212 = vld [vmem:[%s6 + $0x38] sm:$0xff]
    %v3213 = vld [vmem:[%s6 + $0x40] sm:$0xff]
    %v3214 = vld [vmem:[%s6 + $0x48] sm:$0xff]
    %v3215 = vld [vmem:[%s6 + $0x50] sm:$0xff]
    %v3216 = vld [vmem:[%s6 + $0x58] sm:$0xff]
    %v3217 = vld [vmem:[%s6 + $0x60] sm:$0xff]
    %v3218 = vld [vmem:[%s6 + $0x68] sm:$0xff]
    %v3219 = vld [vmem:[%s6 + $0x70] sm:$0xff]
    %v3220 = vld [vmem:[%s6 + $0x78] sm:$0xff]
    %v3221 = vld [vmem:[%s6 + $0x80] sm:$0xff]
    %v3222 = vld [vmem:[%s6 + $0x88] sm:$0xff]
    %v3223 = vld [vmem:[%s6 + $0x90] sm:$0xff]
    %v3224 = vld [vmem:[%s6 + $0x98] sm:$0xff]
    %v3225 = vld [vmem:[%s6 + $0xa0] sm:$0xff]
    %v3226 = vld [vmem:[%s6 + $0xa8] sm:$0xff]
    %v3227 = vld [vmem:[%s6 + $0xb0] sm:$0xff]
    %v3228 = vld [vmem:[%s6 + $0xb8] sm:$0xff]
    %v3229 = vld [vmem:[%s6 + $0xc0] sm:$0xff]
    %v3230 = vld [vmem:[%s6 + $0xc8] sm:$0xff]
    %v3231 = vld [vmem:[%s6 + $0xd0] sm:$0xff]
    %v3232 = vld [vmem:[%s6 + $0xd8] sm:$0xff]
    %v3233 = vld [vmem:[%s6 + $0xe0] sm:$0xff]
    %v3234 = vld [vmem:[%s6 + $0xe8] sm:$0xff]
    %v3235 = vld [vmem:[%s6 + $0xf0] sm:$0xff]
    %v3236 = vld [vmem:[%s6 + $0xf8] sm:$0xff]
    %v3237 = vld [vmem:[%s6 + $0x100] sm:$0xff]
    %v3238 = vld [vmem:[%s6 + $0x108] sm:$0xff]
    %v3239 = vld [vmem:[%s6 + $0x110] sm:$0xff]
    %v3240 = vld [vmem:[%s6 + $0x118] sm:$0xff]
    %v3241 = vld [vmem:[%s6 + $0x120] sm:$0xff]
    %v3242 = vld [vmem:[%s6 + $0x128] sm:$0xff]
    %v3243 = vld [vmem:[%s6 + $0x130] sm:$0xff]
    %v3244 = vld [vmem:[%s6 + $0x138] sm:$0xff]
    %v3245 = vld [vmem:[%s6 + $0x140] sm:$0xff]
    %v3246 = vld [vmem:[%s6 + $0x148] sm:$0xff]
    %v3247 = vld [vmem:[%s6 + $0x150] sm:$0xff]
    %v3248 = vld [vmem:[%s6 + $0x158] sm:$0xff]
    %v3249 = vld [vmem:[%s6 + $0x160] sm:$0xff]
    %v3250 = vld [vmem:[%s6 + $0x168] sm:$0xff]
    %v3251 = vld [vmem:[%s6 + $0x170] sm:$0xff]
    %v3252 = vld [vmem:[%s6 + $0x178] sm:$0xff]
    %v3253 = vld [vmem:[%s6 + $0x180] sm:$0xff]
    %v3254 = vld [vmem:[%s6 + $0x188] sm:$0xff]
    %v3255 = vld [vmem:[%s6 + $0x190] sm:$0xff]
    %v3256 = vld [vmem:[%s6 + $0x198] sm:$0xff]
    %v3257 = vld [vmem:[%s6 + $0x1a0] sm:$0xff]
    %v3258 = vld [vmem:[%s6 + $0x1a8] sm:$0xff]
    %v3259 = vld [vmem:[%s6 + $0x1b0] sm:$0xff]
    %v3260 = vld [vmem:[%s6 + $0x1b8] sm:$0xff]
    %v3261 = vld [vmem:[%s6 + $0x1c0] sm:$0xff]
    %v3262 = vld [vmem:[%s6 + $0x1c8] sm:$0xff]
    %v3263 = vld [vmem:[%s6 + $0x1d0] sm:$0xff]
    %v3264 = vld [vmem:[%s6 + $0x1d8] sm:$0xff]
    %v3265 = vld [vmem:[%s6 + $0x1e0] sm:$0xff]
    %v3266 = vld [vmem:[%s6 + $0x1e8] sm:$0xff]
    %v3267 = vld [vmem:[%s6 + $0x1f0] sm:$0xff]
    %v3268 = vld [vmem:[%s6 + $0x1f8] sm:$0xff]
    %v3269 = vld [vmem:[%s6 + $0x200] sm:$0xff]
    %v3270 = vld [vmem:[%s6 + $0x208] sm:$0xff]
    %v3271 = vld [vmem:[%s6 + $0x210] sm:$0xff]
    %v3272 = vld [vmem:[%s6 + $0x218] sm:$0xff]
    %v3273 = vld [vmem:[%s6 + $0x220] sm:$0xff]
    %v3274 = vld [vmem:[%s6 + $0x228] sm:$0xff]
    %v3275 = vld [vmem:[%s6 + $0x230] sm:$0xff]
    %v3276 = vld [vmem:[%s6 + $0x238] sm:$0xff]
    %v3277 = vld [vmem:[%s6 + $0x240] sm:$0xff]
    %v3278 = vld [vmem:[%s6 + $0x248] sm:$0xff]
    %v3279 = vld [vmem:[%s6 + $0x250] sm:$0xff]
    %v3280 = vld [vmem:[%s6 + $0x258] sm:$0xff]
    %v3281 = vld [vmem:[%s6 + $0x260] sm:$0xff]
    %v3282 = vld [vmem:[%s6 + $0x268] sm:$0xff]
    %v3283 = vld [vmem:[%s6 + $0x270] sm:$0xff]
    %v3284 = vld [vmem:[%s6 + $0x278] sm:$0xff]
    %v3285 = vld [vmem:[%s6 + $0x280] sm:$0xff]
    %v3286 = vld [vmem:[%s6 + $0x288] sm:$0xff]
    %v3287 = vld [vmem:[%s6 + $0x290] sm:$0xff]
    %v3288 = vld [vmem:[%s6 + $0x298] sm:$0xff]
    %v3289 = vld [vmem:[%s6 + $0x2a0] sm:$0xff]
    %v3290 = vld [vmem:[%s6 + $0x2a8] sm:$0xff]
    %v3291 = vld [vmem:[%s6 + $0x2b0] sm:$0xff]
    %v3292 = vld [vmem:[%s6 + $0x2b8] sm:$0xff]
    %v3293 = vld [vmem:[%s6 + $0x2c0] sm:$0xff]
    %v3294 = vld [vmem:[%s6 + $0x2c8] sm:$0xff]
    %v3295 = vld [vmem:[%s6 + $0x2d0] sm:$0xff]
    %v3296 = vld [vmem:[%s6 + $0x2d8] sm:$0xff]
    %v3297 = vld [vmem:[%s6 + $0x2e0] sm:$0xff]
    %v3298 = vld [vmem:[%s6 + $0x2e8] sm:$0xff]
    %v3299 = vld [vmem:[%s6 + $0x2f0] sm:$0xff]
    %v3300 = vld [vmem:[%s6 + $0x2f8] sm:$0xff]
    %v3301 = vld [vmem:[%s6 + $0x300] sm:$0xff]
    %v3302 = vld [vmem:[%s6 + $0x308] sm:$0xff]
    %v3303 = vld [vmem:[%s6 + $0x310] sm:$0xff]
    %v3304 = vld [vmem:[%s6 + $0x318] sm:$0xff]
    %v3305 = vld [vmem:[%s6 + $0x320] sm:$0xff]
    %v3306 = vld [vmem:[%s6 + $0x328] sm:$0xff]
    %v3307 = vld [vmem:[%s6 + $0x330] sm:$0xff]
    %v3308 = vld [vmem:[%s6 + $0x338] sm:$0xff]
    %v3309 = vld [vmem:[%s6 + $0x340] sm:$0xff]
    %v3310 = vld [vmem:[%s6 + $0x348] sm:$0xff]
    %v3311 = vld [vmem:[%s6 + $0x350] sm:$0xff]
    %v3312 = vld [vmem:[%s6 + $0x358] sm:$0xff]
    %v3313 = vld [vmem:[%s6 + $0x360] sm:$0xff]
    %v3314 = vld [vmem:[%s6 + $0x368] sm:$0xff]
    %v3315 = vld [vmem:[%s6 + $0x370] sm:$0xff]
    %v3316 = vld [vmem:[%s6 + $0x378] sm:$0xff]
    %v3317 = vld [vmem:[%s6 + $0x380] sm:$0xff]
    %v3318 = vld [vmem:[%s6 + $0x388] sm:$0xff]
    %v3319 = vld [vmem:[%s6 + $0x390] sm:$0xff]
    %v3320 = vld [vmem:[%s6 + $0x398] sm:$0xff]
    %v3321 = vld [vmem:[%s6 + $0x3a0] sm:$0xff]
    %v3322 = vld [vmem:[%s6 + $0x3a8] sm:$0xff]
    %v3323 = vld [vmem:[%s6 + $0x3b0] sm:$0xff]
    %v3324 = vld [vmem:[%s6 + $0x3b8] sm:$0xff]
    %v3325 = vld [vmem:[%s6 + $0x3c0] sm:$0xff]
    %v3326 = vld [vmem:[%s6 + $0x3c8] sm:$0xff]
    %v3327 = vld [vmem:[%s6 + $0x3d0] sm:$0xff]
    %v3328 = vld [vmem:[%s6 + $0x3d8] sm:$0xff]
    %v3329 = vld [vmem:[%s6 + $0x3e0] sm:$0xff]
    %v3330 = vld [vmem:[%s6 + $0x3e8] sm:$0xff]
    %v3331 = vld [vmem:[%s6 + $0x3f0] sm:$0xff]
    %v3332 = vld [vmem:[%s6 + $0x3f8] sm:$0xff]
    %v3333 = vld [vmem:[%s6 + $0x400] sm:$0xff]
    %v3334 = vld [vmem:[%s6 + $0x408] sm:$0xff]
    %v3335 = vld [vmem:[%s6 + $0x410] sm:$0xff]
    %v3336 = vld [vmem:[%s6 + $0x418] sm:$0xff]
    %v3337 = vld [vmem:[%s6 + $0x420] sm:$0xff]
    %v3338 = vld [vmem:[%s6 + $0x428] sm:$0xff]
    %v3339 = vld [vmem:[%s6 + $0x430] sm:$0xff]
    %v3340 = vld [vmem:[%s6 + $0x438] sm:$0xff]
    %v3341 = vld [vmem:[%s6 + $0x440] sm:$0xff]
    %v3342 = vld [vmem:[%s6 + $0x448] sm:$0xff]
    %v3343 = vld [vmem:[%s6 + $0x450] sm:$0xff]
    %v3344 = vld [vmem:[%s6 + $0x458] sm:$0xff]
    %v3345 = vld [vmem:[%s6 + $0x460] sm:$0xff]
    %v3346 = vld [vmem:[%s6 + $0x468] sm:$0xff]
    %v3347 = vld [vmem:[%s6 + $0x470] sm:$0xff]
    %v3348 = vld [vmem:[%s6 + $0x478] sm:$0xff]
    %v3349 = vld [vmem:[%s6 + $0x480] sm:$0xff]
    %v3350 = vld [vmem:[%s6 + $0x488] sm:$0xff]
    %v3351 = vld [vmem:[%s6 + $0x490] sm:$0xff]
    %v3352 = vld [vmem:[%s6 + $0x498] sm:$0xff]
    %v3353 = vld [vmem:[%s6 + $0x4a0] sm:$0xff]
    %v3354 = vld [vmem:[%s6 + $0x4a8] sm:$0xff]
    %v3355 = vld [vmem:[%s6 + $0x4b0] sm:$0xff]
    %v3356 = vld [vmem:[%s6 + $0x4b8] sm:$0xff]
    %v3357 = vld [vmem:[%s6 + $0x4c0] sm:$0xff]
    %v3358 = vld [vmem:[%s6 + $0x4c8] sm:$0xff]
    %v3359 = vld [vmem:[%s6 + $0x4d0] sm:$0xff]
    %v3360 = vld [vmem:[%s6 + $0x4d8] sm:$0xff]
    %v3361 = vld [vmem:[%s6 + $0x4e0] sm:$0xff]
    %v3362 = vld [vmem:[%s6 + $0x4e8] sm:$0xff]
    %v3363 = vld [vmem:[%s6 + $0x4f0] sm:$0xff]
    %v3364 = vld [vmem:[%s6 + $0x4f8] sm:$0xff]
    %v3365 = vld [vmem:[%s6 + $0x500] sm:$0xff]
    %v3366 = vld [vmem:[%s6 + $0x508] sm:$0xff]
    %v3367 = vld [vmem:[%s6 + $0x510] sm:$0xff]
    %v3368 = vld [vmem:[%s6 + $0x518] sm:$0xff]
    %v3369 = vld [vmem:[%s6 + $0x520] sm:$0xff]
    %v3370 = vld [vmem:[%s6 + $0x528] sm:$0xff]
    %v3371 = vld [vmem:[%s6 + $0x530] sm:$0xff]
    %v3372 = vld [vmem:[%s6 + $0x538] sm:$0xff]
    %v3373 = vld [vmem:[%s6 + $0x540] sm:$0xff]
    %v3374 = vld [vmem:[%s6 + $0x548] sm:$0xff]
    %v3375 = vld [vmem:[%s6 + $0x550] sm:$0xff]
    %v3376 = vld [vmem:[%s6 + $0x558] sm:$0xff]
    %v3377 = vld [vmem:[%s6 + $0x560] sm:$0xff]
    %v3378 = vld [vmem:[%s6 + $0x568] sm:$0xff]
    %v3379 = vld [vmem:[%s6 + $0x570] sm:$0xff]
    %v3380 = vld [vmem:[%s6 + $0x578] sm:$0xff]
    %v3381 = vld [vmem:[%s6 + $0x580] sm:$0xff]
    %v3382 = vld [vmem:[%s6 + $0x588] sm:$0xff]
    %v3383 = vld [vmem:[%s6 + $0x590] sm:$0xff]
    %v3384 = vld [vmem:[%s6 + $0x598] sm:$0xff]
    %v3385 = vld [vmem:[%s6 + $0x5a0] sm:$0xff]
    %v3386 = vld [vmem:[%s6 + $0x5a8] sm:$0xff]
    %v3387 = vld [vmem:[%s6 + $0x5b0] sm:$0xff]
    %v3388 = vld [vmem:[%s6 + $0x5b8] sm:$0xff]
    %v3389 = vld [vmem:[%s6 + $0x5c0] sm:$0xff]
    %v3390 = vld [vmem:[%s6 + $0x5c8] sm:$0xff]
    %v3391 = vld [vmem:[%s6 + $0x5d0] sm:$0xff]
    %v3392 = vld [vmem:[%s6 + $0x5d8] sm:$0xff]
    %v3393 = vld [vmem:[%s6 + $0x5e0] sm:$0xff]
    %v3394 = vld [vmem:[%s6 + $0x5e8] sm:$0xff]
    %v3395 = vld [vmem:[%s6 + $0x5f0] sm:$0xff]
    %v3396 = vld [vmem:[%s6 + $0x5f8] sm:$0xff]
    %v3397 = vld [vmem:[%s6 + $0x600] sm:$0xff]
    %v3398 = vld [vmem:[%s6 + $0x608] sm:$0xff]
    %v3399 = vld [vmem:[%s6 + $0x610] sm:$0xff]
    %v3400 = vld [vmem:[%s6 + $0x618] sm:$0xff]
    %v3401 = vld [vmem:[%s6 + $0x620] sm:$0xff]
    %v3402 = vld [vmem:[%s6 + $0x628] sm:$0xff]
    %v3403 = vld [vmem:[%s6 + $0x630] sm:$0xff]
    %v3404 = vld [vmem:[%s6 + $0x638] sm:$0xff]
    %v3405 = vld [vmem:[%s6 + $0x640] sm:$0xff]
    %v3406 = vld [vmem:[%s6 + $0x648] sm:$0xff]
    %v3407 = vld [vmem:[%s6 + $0x650] sm:$0xff]
    %v3408 = vld [vmem:[%s6 + $0x658] sm:$0xff]
    %v3409 = vld [vmem:[%s6 + $0x660] sm:$0xff]
    %v3410 = vld [vmem:[%s6 + $0x668] sm:$0xff]
    %v3411 = vld [vmem:[%s6 + $0x670] sm:$0xff]
    %v3412 = vld [vmem:[%s6 + $0x678] sm:$0xff]
    %v3413 = vld [vmem:[%s6 + $0x680] sm:$0xff]
    %v3414 = vld [vmem:[%s6 + $0x688] sm:$0xff]
    %v3415 = vld [vmem:[%s6 + $0x690] sm:$0xff]
    %v3416 = vld [vmem:[%s6 + $0x698] sm:$0xff]
    %v3417 = vld [vmem:[%s6 + $0x6a0] sm:$0xff]
    %v3418 = vld [vmem:[%s6 + $0x6a8] sm:$0xff]
    %v3419 = vld [vmem:[%s6 + $0x6b0] sm:$0xff]
    %v3420 = vld [vmem:[%s6 + $0x6b8] sm:$0xff]
    %v3421 = vld [vmem:[%s6 + $0x6c0] sm:$0xff]
    %v3422 = vld [vmem:[%s6 + $0x6c8] sm:$0xff]
    %v3423 = vld [vmem:[%s6 + $0x6d0] sm:$0xff]
    %v3424 = vld [vmem:[%s6 + $0x6d8] sm:$0xff]
    %v3425 = vld [vmem:[%s6 + $0x6e0] sm:$0xff]
    %v3426 = vld [vmem:[%s6 + $0x6e8] sm:$0xff]
    %v3427 = vld [vmem:[%s6 + $0x6f0] sm:$0xff]
    %v3428 = vld [vmem:[%s6 + $0x6f8] sm:$0xff]
    %v3429 = vld [vmem:[%s6 + $0x700] sm:$0xff]
    %v3430 = vld [vmem:[%s6 + $0x708] sm:$0xff]
    %v3431 = vld [vmem:[%s6 + $0x710] sm:$0xff]
    %v3432 = vld [vmem:[%s6 + $0x718] sm:$0xff]
    %v3433 = vld [vmem:[%s6 + $0x720] sm:$0xff]
    %v3434 = vld [vmem:[%s6 + $0x728] sm:$0xff]
    %v3435 = vld [vmem:[%s6 + $0x730] sm:$0xff]
    %v3436 = vld [vmem:[%s6 + $0x738] sm:$0xff]
    %v3437 = vld [vmem:[%s6 + $0x740] sm:$0xff]
    %v3438 = vld [vmem:[%s6 + $0x748] sm:$0xff]
    %v3439 = vld [vmem:[%s6 + $0x750] sm:$0xff]
    %v3440 = vld [vmem:[%s6 + $0x758] sm:$0xff]
    %v3441 = vld [vmem:[%s6 + $0x760] sm:$0xff]
    %v3442 = vld [vmem:[%s6 + $0x768] sm:$0xff]
    %v3443 = vld [vmem:[%s6 + $0x770] sm:$0xff]
    %v3444 = vld [vmem:[%s6 + $0x778] sm:$0xff]
    %v3445 = vld [vmem:[%s6 + $0x780] sm:$0xff]
    %v3446 = vld [vmem:[%s6 + $0x788] sm:$0xff]
    %v3447 = vld [vmem:[%s6 + $0x790] sm:$0xff]
    %v3448 = vld [vmem:[%s6 + $0x798] sm:$0xff]
    %v3449 = vld [vmem:[%s6 + $0x7a0] sm:$0xff]
    %v3450 = vld [vmem:[%s6 + $0x7a8] sm:$0xff]
    %v3451 = vld [vmem:[%s6 + $0x7b0] sm:$0xff]
    %v3452 = vld [vmem:[%s6 + $0x7b8] sm:$0xff]
    %v3453 = vld [vmem:[%s6 + $0x7c0] sm:$0xff]
    %v3454 = vld [vmem:[%s6 + $0x7c8] sm:$0xff]
    %v3455 = vld [vmem:[%s6 + $0x7d0] sm:$0xff]
    %v3456 = vld [vmem:[%s6 + $0x7d8] sm:$0xff]
    %v3457 = vld [vmem:[%s6 + $0x7e0] sm:$0xff]
    %v3458 = vld [vmem:[%s6 + $0x7e8] sm:$0xff]
    %v3459 = vld [vmem:[%s6 + $0x7f0] sm:$0xff]
    %v3460 = vld [vmem:[%s6 + $0x7f8] sm:$0xff]
    %v3461 = vlaneseq
    %v3462 = vshrl.u32 %v3461, 7
    %v3463 = vsub.s32 3, %v3462
    %v3464 = vrot.slane %v48, %v3463
    %3465 = vmatprep.subr.mxu0 0.0
    %3466 = vmatpush1.msra.mxu0 %v3220
    %3467 = vmatprep.subr.mxu0 0.0
    %3468 = vmatpush1.msra.mxu0 %v3219
    %3469 = vmatprep.subr.mxu0 0.0
    %3470 = vmatpush1.msra.mxu0 %v3218
    %3471 = vmatprep.subr.mxu0 0.0
    %3472 = vmatpush1.msra.mxu0 %v3217
    %3473 = vmatprep.subr.mxu0 0.0
    %3474 = vmatpush1.msra.mxu0 %v3216
    %3475 = vmatprep.subr.mxu0 0.0
    %3476 = vmatpush1.msra.mxu0 %v3215
    %3477 = vmatprep.subr.mxu0 0.0
    %3478 = vmatpush1.msra.mxu0 %v3214
    %3479 = vmatprep.subr.mxu0 0.0
    %3480 = vmatpush1.msra.mxu0 %v3213
    %3481 = vmatprep.subr.mxu0 0.0
    %3482 = vmatpush1.msra.mxu0 %v3212
    %3483 = vmatprep.subr.mxu0 0.0
    %3484 = vmatpush1.msra.mxu0 %v3211
    %3485 = vmatprep.subr.mxu0 0.0
    %3486 = vmatpush1.msra.mxu0 %v3210
    %3487 = vmatprep.subr.mxu0 0.0
    %3488 = vmatpush1.msra.mxu0 %v3209
    %3489 = vmatprep.subr.mxu0 0.0
    %3490 = vmatpush1.msra.mxu0 %v3208
    %3491 = vmatprep.subr.mxu0 0.0
    %3492 = vmatpush1.msra.mxu0 %v3207
    %3493 = vmatprep.subr.mxu0 0.0
    %3494 = vmatpush1.msra.mxu0 %v3206
    %3495 = vmatprep.subr.mxu0 0.0
    %3496 = vmatpush1.msra.mxu0 %v3205
    %3497 = vmatprep.subr.mxu0 0.0
    %3498 = vmatpush2.msra.mxu0 %v3236
    %3499 = vmatprep.subr.mxu0 0.0
    %3500 = vmatpush2.msra.mxu0 %v3235
    %3501 = vmatprep.subr.mxu0 0.0
    %3502 = vmatpush2.msra.mxu0 %v3234
    %3503 = vmatprep.subr.mxu0 0.0
    %3504 = vmatpush2.msra.mxu0 %v3233
    %3505 = vmatprep.subr.mxu0 0.0
    %3506 = vmatpush2.msra.mxu0 %v3232
    %3507 = vmatprep.subr.mxu0 0.0
    %3508 = vmatpush2.msra.mxu0 %v3231
    %3509 = vmatprep.subr.mxu0 0.0
    %3510 = vmatpush2.msra.mxu0 %v3230
    %3511 = vmatprep.subr.mxu0 0.0
    %3512 = vmatpush2.msra.mxu0 %v3229
    %3513 = vmatprep.subr.mxu0 0.0
    %3514 = vmatpush2.msra.mxu0 %v3228
    %3515 = vmatprep.subr.mxu0 0.0
    %3516 = vmatpush2.msra.mxu0 %v3227
    %3517 = vmatprep.subr.mxu0 0.0
    %3518 = vmatpush2.msra.mxu0 %v3226
    %3519 = vmatprep.subr.mxu0 0.0
    %3520 = vmatpush2.msra.mxu0 %v3225
    %3521 = vmatprep.subr.mxu0 0.0
    %3522 = vmatpush2.msra.mxu0 %v3224
    %3523 = vmatprep.subr.mxu0 0.0
    %3524 = vmatpush2.msra.mxu0 %v3223
    %3525 = vmatprep.subr.mxu0 0.0
    %3526 = vmatpush2.msra.mxu0 %v3222
    %3527 = vmatprep.subr.mxu0 0.0
    %3528 = vmatpush2.msra.mxu0 %v3221
    %3529 = vmatprep.mubr.f32.mxu0 %v3174
    %3530 = vmatmul.mubr.f32.gmra.mxu0 %v3173
    %v3531 = vpop.f32.mrf.mxu0
    %v3532 = vadd.f32 %v3464, %v3531
    %v3533 = vpop.f32.mrf.mxu0
    %3534 = vmatprep.mubr.f32.mxu0 %v3190
    %3535 = vmatmul.mubr.f32.gmra.mxu0 %v3189
    %v3536 = vpop.f32.mrf.mxu0
    %v3537 = vadd.f32 %v3464, %v3536
    %v3538 = vpop.f32.mrf.mxu0
    %3539 = vdwg.mxu0
    %3540 = vmatprep.subr.mxu0 0.0
    %3541 = vmatpush1.msra.mxu0 %v3252
    %3542 = vmatprep.subr.mxu0 0.0
    %3543 = vmatpush1.msra.mxu0 %v3251
    %3544 = vmatprep.subr.mxu0 0.0
    %3545 = vmatpush1.msra.mxu0 %v3250
    %3546 = vmatprep.subr.mxu0 0.0
    %3547 = vmatpush1.msra.mxu0 %v3249
    %3548 = vmatprep.subr.mxu0 0.0
    %3549 = vmatpush1.msra.mxu0 %v3248
    %3550 = vmatprep.subr.mxu0 0.0
    %3551 = vmatpush1.msra.mxu0 %v3247
    %3552 = vmatprep.subr.mxu0 0.0
    %3553 = vmatpush1.msra.mxu0 %v3246
    %3554 = vmatprep.subr.mxu0 0.0
    %3555 = vmatpush1.msra.mxu0 %v3245
    %3556 = vmatprep.subr.mxu0 0.0
    %3557 = vmatpush1.msra.mxu0 %v3244
    %3558 = vmatprep.subr.mxu0 0.0
    %3559 = vmatpush1.msra.mxu0 %v3243
    %3560 = vmatprep.subr.mxu0 0.0
    %3561 = vmatpush1.msra.mxu0 %v3242
    %3562 = vmatprep.subr.mxu0 0.0
    %3563 = vmatpush1.msra.mxu0 %v3241
    %3564 = vmatprep.subr.mxu0 0.0
    %3565 = vmatpush1.msra.mxu0 %v3240
    %3566 = vmatprep.subr.mxu0 0.0
    %3567 = vmatpush1.msra.mxu0 %v3239
    %3568 = vmatprep.subr.mxu0 0.0
    %3569 = vmatpush1.msra.mxu0 %v3238
    %3570 = vmatprep.subr.mxu0 0.0
    %3571 = vmatpush1.msra.mxu0 %v3237
    %3572 = vmatprep.subr.mxu0 0.0
    %3573 = vmatpush2.msra.mxu0 %v3268
    %3574 = vmatprep.subr.mxu0 0.0
    %3575 = vmatpush2.msra.mxu0 %v3267
    %3576 = vmatprep.subr.mxu0 0.0
    %3577 = vmatpush2.msra.mxu0 %v3266
    %3578 = vmatprep.subr.mxu0 0.0
    %3579 = vmatpush2.msra.mxu0 %v3265
    %3580 = vmatprep.subr.mxu0 0.0
    %3581 = vmatpush2.msra.mxu0 %v3264
    %3582 = vmatprep.subr.mxu0 0.0
    %3583 = vmatpush2.msra.mxu0 %v3263
    %3584 = vmatprep.subr.mxu0 0.0
    %3585 = vmatpush2.msra.mxu0 %v3262
    %3586 = vmatprep.subr.mxu0 0.0
    %3587 = vmatpush2.msra.mxu0 %v3261
    %3588 = vmatprep.subr.mxu0 0.0
    %3589 = vmatpush2.msra.mxu0 %v3260
    %3590 = vmatprep.subr.mxu0 0.0
    %3591 = vmatpush2.msra.mxu0 %v3259
    %3592 = vmatprep.subr.mxu0 0.0
    %3593 = vmatpush2.msra.mxu0 %v3258
    %3594 = vmatprep.subr.mxu0 0.0
    %3595 = vmatpush2.msra.mxu0 %v3257
    %3596 = vmatprep.subr.mxu0 0.0
    %3597 = vmatpush2.msra.mxu0 %v3256
    %3598 = vmatprep.subr.mxu0 0.0
    %3599 = vmatpush2.msra.mxu0 %v3255
    %3600 = vmatprep.subr.mxu0 0.0
    %3601 = vmatpush2.msra.mxu0 %v3254
    %3602 = vmatprep.subr.mxu0 0.0
    %3603 = vmatpush2.msra.mxu0 %v3253
    %3604 = vmatprep.mubr.f32.mxu0 %v3176
    %3605 = vmatmul.mubr.f32.gmra.mxu0 %v3175
    %v3606 = vpop.f32.mrf.mxu0
    %v3607 = vadd.f32 %v3532, %v3606
    %v3608 = vpop.f32.mrf.mxu0
    %3609 = vmatprep.mubr.f32.mxu0 %v3192
    %3610 = vmatmul.mubr.f32.gmra.mxu0 %v3191
    %v3611 = vpop.f32.mrf.mxu0
    %v3612 = vadd.f32 %v3537, %v3611
    %v3613 = vpop.f32.mrf.mxu0
    %3614 = vdwg.mxu0
    %3615 = vmatprep.subr.mxu0 0.0
    %3616 = vmatpush1.msra.mxu0 %v3284
    %3617 = vmatprep.subr.mxu0 0.0
    %3618 = vmatpush1.msra.mxu0 %v3283
    %3619 = vmatprep.subr.mxu0 0.0
    %3620 = vmatpush1.msra.mxu0 %v3282
    %3621 = vmatprep.subr.mxu0 0.0
    %3622 = vmatpush1.msra.mxu0 %v3281
    %3623 = vmatprep.subr.mxu0 0.0
    %3624 = vmatpush1.msra.mxu0 %v3280
    %3625 = vmatprep.subr.mxu0 0.0
    %3626 = vmatpush1.msra.mxu0 %v3279
    %3627 = vmatprep.subr.mxu0 0.0
    %3628 = vmatpush1.msra.mxu0 %v3278
    %3629 = vmatprep.subr.mxu0 0.0
    %3630 = vmatpush1.msra.mxu0 %v3277
    %3631 = vmatprep.subr.mxu0 0.0
    %3632 = vmatpush1.msra.mxu0 %v3276
    %3633 = vmatprep.subr.mxu0 0.0
    %3634 = vmatpush1.msra.mxu0 %v3275
    %3635 = vmatprep.subr.mxu0 0.0
    %3636 = vmatpush1.msra.mxu0 %v3274
    %3637 = vmatprep.subr.mxu0 0.0
    %3638 = vmatpush1.msra.mxu0 %v3273
    %3639 = vmatprep.subr.mxu0 0.0
    %3640 = vmatpush1.msra.mxu0 %v3272
    %3641 = vmatprep.subr.mxu0 0.0
    %3642 = vmatpush1.msra.mxu0 %v3271
    %3643 = vmatprep.subr.mxu0 0.0
    %3644 = vmatpush1.msra.mxu0 %v3270
    %3645 = vmatprep.subr.mxu0 0.0
    %3646 = vmatpush1.msra.mxu0 %v3269
    %3647 = vmatprep.subr.mxu0 0.0
    %3648 = vmatpush2.msra.mxu0 %v3300
    %3649 = vmatprep.subr.mxu0 0.0
    %3650 = vmatpush2.msra.mxu0 %v3299
    %3651 = vmatprep.subr.mxu0 0.0
    %3652 = vmatpush2.msra.mxu0 %v3298
    %3653 = vmatprep.subr.mxu0 0.0
    %3654 = vmatpush2.msra.mxu0 %v3297
    %3655 = vmatprep.subr.mxu0 0.0
    %3656 = vmatpush2.msra.mxu0 %v3296
    %3657 = vmatprep.subr.mxu0 0.0
    %3658 = vmatpush2.msra.mxu0 %v3295
    %3659 = vmatprep.subr.mxu0 0.0
    %3660 = vmatpush2.msra.mxu0 %v3294
    %3661 = vmatprep.subr.mxu0 0.0
    %3662 = vmatpush2.msra.mxu0 %v3293
    %3663 = vmatprep.subr.mxu0 0.0
    %3664 = vmatpush2.msra.mxu0 %v3292
    %3665 = vmatprep.subr.mxu0 0.0
    %3666 = vmatpush2.msra.mxu0 %v3291
    %3667 = vmatprep.subr.mxu0 0.0
    %3668 = vmatpush2.msra.mxu0 %v3290
    %3669 = vmatprep.subr.mxu0 0.0
    %3670 = vmatpush2.msra.mxu0 %v3289
    %3671 = vmatprep.subr.mxu0 0.0
    %3672 = vmatpush2.msra.mxu0 %v3288
    %3673 = vmatprep.subr.mxu0 0.0
    %3674 = vmatpush2.msra.mxu0 %v3287
    %3675 = vmatprep.subr.mxu0 0.0
    %3676 = vmatpush2.msra.mxu0 %v3286
    %3677 = vmatprep.subr.mxu0 0.0
    %3678 = vmatpush2.msra.mxu0 %v3285
    %3679 = vmatprep.mubr.f32.mxu0 %v3178
    %3680 = vmatmul.mubr.f32.gmra.mxu0 %v3177
    %v3681 = vpop.f32.mrf.mxu0
    %v3682 = vadd.f32 %v3607, %v3681
    %v3683 = vpop.f32.mrf.mxu0
    %3684 = vmatprep.mubr.f32.mxu0 %v3194
    %3685 = vmatmul.mubr.f32.gmra.mxu0 %v3193
    %v3686 = vpop.f32.mrf.mxu0
    %v3687 = vadd.f32 %v3612, %v3686
    %v3688 = vpop.f32.mrf.mxu0
    %3689 = vdwg.mxu0
    %3690 = vmatprep.subr.mxu0 0.0
    %3691 = vmatpush1.msra.mxu0 %v3316
    %3692 = vmatprep.subr.mxu0 0.0
    %3693 = vmatpush1.msra.mxu0 %v3315
    %3694 = vmatprep.subr.mxu0 0.0
    %3695 = vmatpush1.msra.mxu0 %v3314
    %3696 = vmatprep.subr.mxu0 0.0
    %3697 = vmatpush1.msra.mxu0 %v3313
    %3698 = vmatprep.subr.mxu0 0.0
    %3699 = vmatpush1.msra.mxu0 %v3312
    %3700 = vmatprep.subr.mxu0 0.0
    %3701 = vmatpush1.msra.mxu0 %v3311
    %3702 = vmatprep.subr.mxu0 0.0
    %3703 = vmatpush1.msra.mxu0 %v3310
    %3704 = vmatprep.subr.mxu0 0.0
    %3705 = vmatpush1.msra.mxu0 %v3309
    %3706 = vmatprep.subr.mxu0 0.0
    %3707 = vmatpush1.msra.mxu0 %v3308
    %3708 = vmatprep.subr.mxu0 0.0
    %3709 = vmatpush1.msra.mxu0 %v3307
    %3710 = vmatprep.subr.mxu0 0.0
    %3711 = vmatpush1.msra.mxu0 %v3306
    %3712 = vmatprep.subr.mxu0 0.0
    %3713 = vmatpush1.msra.mxu0 %v3305
    %3714 = vmatprep.subr.mxu0 0.0
    %3715 = vmatpush1.msra.mxu0 %v3304
    %3716 = vmatprep.subr.mxu0 0.0
    %3717 = vmatpush1.msra.mxu0 %v3303
    %3718 = vmatprep.subr.mxu0 0.0
    %3719 = vmatpush1.msra.mxu0 %v3302
    %3720 = vmatprep.subr.mxu0 0.0
    %3721 = vmatpush1.msra.mxu0 %v3301
    %3722 = vmatprep.subr.mxu0 0.0
    %3723 = vmatpush2.msra.mxu0 %v3332
    %3724 = vmatprep.subr.mxu0 0.0
    %3725 = vmatpush2.msra.mxu0 %v3331
    %3726 = vmatprep.subr.mxu0 0.0
    %3727 = vmatpush2.msra.mxu0 %v3330
    %3728 = vmatprep.subr.mxu0 0.0
    %3729 = vmatpush2.msra.mxu0 %v3329
    %3730 = vmatprep.subr.mxu0 0.0
    %3731 = vmatpush2.msra.mxu0 %v3328
    %3732 = vmatprep.subr.mxu0 0.0
    %3733 = vmatpush2.msra.mxu0 %v3327
    %3734 = vmatprep.subr.mxu0 0.0
    %3735 = vmatpush2.msra.mxu0 %v3326
    %3736 = vmatprep.subr.mxu0 0.0
    %3737 = vmatpush2.msra.mxu0 %v3325
    %3738 = vmatprep.subr.mxu0 0.0
    %3739 = vmatpush2.msra.mxu0 %v3324
    %3740 = vmatprep.subr.mxu0 0.0
    %3741 = vmatpush2.msra.mxu0 %v3323
    %3742 = vmatprep.subr.mxu0 0.0
    %3743 = vmatpush2.msra.mxu0 %v3322
    %3744 = vmatprep.subr.mxu0 0.0
    %3745 = vmatpush2.msra.mxu0 %v3321
    %3746 = vmatprep.subr.mxu0 0.0
    %3747 = vmatpush2.msra.mxu0 %v3320
    %3748 = vmatprep.subr.mxu0 0.0
    %3749 = vmatpush2.msra.mxu0 %v3319
    %3750 = vmatprep.subr.mxu0 0.0
    %3751 = vmatpush2.msra.mxu0 %v3318
    %3752 = vmatprep.subr.mxu0 0.0
    %3753 = vmatpush2.msra.mxu0 %v3317
    %3754 = vmatprep.mubr.f32.mxu0 %v3180
    %3755 = vmatmul.mubr.f32.gmra.mxu0 %v3179
    %v3756 = vpop.f32.mrf.mxu0
    %v3757 = vadd.f32 %v3682, %v3756
    %v3758 = vpop.f32.mrf.mxu0
    %3759 = vmatprep.mubr.f32.mxu0 %v3196
    %3760 = vmatmul.mubr.f32.gmra.mxu0 %v3195
    %v3761 = vpop.f32.mrf.mxu0
    %v3762 = vadd.f32 %v3687, %v3761
    %v3763 = vpop.f32.mrf.mxu0
    %3764 = vdwg.mxu0
    %3765 = vmatprep.subr.mxu0 0.0
    %3766 = vmatpush1.msra.mxu0 %v3348
    %3767 = vmatprep.subr.mxu0 0.0
    %3768 = vmatpush1.msra.mxu0 %v3347
    %3769 = vmatprep.subr.mxu0 0.0
    %3770 = vmatpush1.msra.mxu0 %v3346
    %3771 = vmatprep.subr.mxu0 0.0
    %3772 = vmatpush1.msra.mxu0 %v3345
    %3773 = vmatprep.subr.mxu0 0.0
    %3774 = vmatpush1.msra.mxu0 %v3344
    %3775 = vmatprep.subr.mxu0 0.0
    %3776 = vmatpush1.msra.mxu0 %v3343
    %3777 = vmatprep.subr.mxu0 0.0
    %3778 = vmatpush1.msra.mxu0 %v3342
    %3779 = vmatprep.subr.mxu0 0.0
    %3780 = vmatpush1.msra.mxu0 %v3341
    %3781 = vmatprep.subr.mxu0 0.0
    %3782 = vmatpush1.msra.mxu0 %v3340
    %3783 = vmatprep.subr.mxu0 0.0
    %3784 = vmatpush1.msra.mxu0 %v3339
    %3785 = vmatprep.subr.mxu0 0.0
    %3786 = vmatpush1.msra.mxu0 %v3338
    %3787 = vmatprep.subr.mxu0 0.0
    %3788 = vmatpush1.msra.mxu0 %v3337
    %3789 = vmatprep.subr.mxu0 0.0
    %3790 = vmatpush1.msra.mxu0 %v3336
    %3791 = vmatprep.subr.mxu0 0.0
    %3792 = vmatpush1.msra.mxu0 %v3335
    %3793 = vmatprep.subr.mxu0 0.0
    %3794 = vmatpush1.msra.mxu0 %v3334
    %3795 = vmatprep.subr.mxu0 0.0
    %3796 = vmatpush1.msra.mxu0 %v3333
    %3797 = vmatprep.subr.mxu0 0.0
    %3798 = vmatpush2.msra.mxu0 %v3364
    %3799 = vmatprep.subr.mxu0 0.0
    %3800 = vmatpush2.msra.mxu0 %v3363
    %3801 = vmatprep.subr.mxu0 0.0
    %3802 = vmatpush2.msra.mxu0 %v3362
    %3803 = vmatprep.subr.mxu0 0.0
    %3804 = vmatpush2.msra.mxu0 %v3361
    %3805 = vmatprep.subr.mxu0 0.0
    %3806 = vmatpush2.msra.mxu0 %v3360
    %3807 = vmatprep.subr.mxu0 0.0
    %3808 = vmatpush2.msra.mxu0 %v3359
    %3809 = vmatprep.subr.mxu0 0.0
    %3810 = vmatpush2.msra.mxu0 %v3358
    %3811 = vmatprep.subr.mxu0 0.0
    %3812 = vmatpush2.msra.mxu0 %v3357
    %3813 = vmatprep.subr.mxu0 0.0
    %3814 = vmatpush2.msra.mxu0 %v3356
    %3815 = vmatprep.subr.mxu0 0.0
    %3816 = vmatpush2.msra.mxu0 %v3355
    %3817 = vmatprep.subr.mxu0 0.0
    %3818 = vmatpush2.msra.mxu0 %v3354
    %3819 = vmatprep.subr.mxu0 0.0
    %3820 = vmatpush2.msra.mxu0 %v3353
    %3821 = vmatprep.subr.mxu0 0.0
    %3822 = vmatpush2.msra.mxu0 %v3352
    %3823 = vmatprep.subr.mxu0 0.0
    %3824 = vmatpush2.msra.mxu0 %v3351
    %3825 = vmatprep.subr.mxu0 0.0
    %3826 = vmatpush2.msra.mxu0 %v3350
    %3827 = vmatprep.subr.mxu0 0.0
    %3828 = vmatpush2.msra.mxu0 %v3349
    %3829 = vmatprep.mubr.f32.mxu0 %v3182
    %3830 = vmatmul.mubr.f32.gmra.mxu0 %v3181
    %v3831 = vpop.f32.mrf.mxu0
    %v3832 = vadd.f32 %v3757, %v3831
    %v3833 = vpop.f32.mrf.mxu0
    %3834 = vmatprep.mubr.f32.mxu0 %v3198
    %3835 = vmatmul.mubr.f32.gmra.mxu0 %v3197
    %v3836 = vpop.f32.mrf.mxu0
    %v3837 = vadd.f32 %v3762, %v3836
    %v3838 = vpop.f32.mrf.mxu0
    %3839 = vdwg.mxu0
    %3840 = vmatprep.subr.mxu0 0.0
    %3841 = vmatpush1.msra.mxu0 %v3380
    %3842 = vmatprep.subr.mxu0 0.0
    %3843 = vmatpush1.msra.mxu0 %v3379
    %3844 = vmatprep.subr.mxu0 0.0
    %3845 = vmatpush1.msra.mxu0 %v3378
    %3846 = vmatprep.subr.mxu0 0.0
    %3847 = vmatpush1.msra.mxu0 %v3377
    %3848 = vmatprep.subr.mxu0 0.0
    %3849 = vmatpush1.msra.mxu0 %v3376
    %3850 = vmatprep.subr.mxu0 0.0
    %3851 = vmatpush1.msra.mxu0 %v3375
    %3852 = vmatprep.subr.mxu0 0.0
    %3853 = vmatpush1.msra.mxu0 %v3374
    %3854 = vmatprep.subr.mxu0 0.0
    %3855 = vmatpush1.msra.mxu0 %v3373
    %3856 = vmatprep.subr.mxu0 0.0
    %3857 = vmatpush1.msra.mxu0 %v3372
    %3858 = vmatprep.subr.mxu0 0.0
    %3859 = vmatpush1.msra.mxu0 %v3371
    %3860 = vmatprep.subr.mxu0 0.0
    %3861 = vmatpush1.msra.mxu0 %v3370
    %3862 = vmatprep.subr.mxu0 0.0
    %3863 = vmatpush1.msra.mxu0 %v3369
    %3864 = vmatprep.subr.mxu0 0.0
    %3865 = vmatpush1.msra.mxu0 %v3368
    %3866 = vmatprep.subr.mxu0 0.0
    %3867 = vmatpush1.msra.mxu0 %v3367
    %3868 = vmatprep.subr.mxu0 0.0
    %3869 = vmatpush1.msra.mxu0 %v3366
    %3870 = vmatprep.subr.mxu0 0.0
    %3871 = vmatpush1.msra.mxu0 %v3365
    %3872 = vmatprep.subr.mxu0 0.0
    %3873 = vmatpush2.msra.mxu0 %v3396
    %3874 = vmatprep.subr.mxu0 0.0
    %3875 = vmatpush2.msra.mxu0 %v3395
    %3876 = vmatprep.subr.mxu0 0.0
    %3877 = vmatpush2.msra.mxu0 %v3394
    %3878 = vmatprep.subr.mxu0 0.0
    %3879 = vmatpush2.msra.mxu0 %v3393
    %3880 = vmatprep.subr.mxu0 0.0
    %3881 = vmatpush2.msra.mxu0 %v3392
    %3882 = vmatprep.subr.mxu0 0.0
    %3883 = vmatpush2.msra.mxu0 %v3391
    %3884 = vmatprep.subr.mxu0 0.0
    %3885 = vmatpush2.msra.mxu0 %v3390
    %3886 = vmatprep.subr.mxu0 0.0
    %3887 = vmatpush2.msra.mxu0 %v3389
    %3888 = vmatprep.subr.mxu0 0.0
    %3889 = vmatpush2.msra.mxu0 %v3388
    %3890 = vmatprep.subr.mxu0 0.0
    %3891 = vmatpush2.msra.mxu0 %v3387
    %3892 = vmatprep.subr.mxu0 0.0
    %3893 = vmatpush2.msra.mxu0 %v3386
    %3894 = vmatprep.subr.mxu0 0.0
    %3895 = vmatpush2.msra.mxu0 %v3385
    %3896 = vmatprep.subr.mxu0 0.0
    %3897 = vmatpush2.msra.mxu0 %v3384
    %3898 = vmatprep.subr.mxu0 0.0
    %3899 = vmatpush2.msra.mxu0 %v3383
    %3900 = vmatprep.subr.mxu0 0.0
    %3901 = vmatpush2.msra.mxu0 %v3382
    %3902 = vmatprep.subr.mxu0 0.0
    %3903 = vmatpush2.msra.mxu0 %v3381
    %3904 = vmatprep.mubr.f32.mxu0 %v3184
    %3905 = vmatmul.mubr.f32.gmra.mxu0 %v3183
    %v3906 = vpop.f32.mrf.mxu0
    %v3907 = vadd.f32 %v3832, %v3906
    %v3908 = vpop.f32.mrf.mxu0
    %3909 = vmatprep.mubr.f32.mxu0 %v3200
    %3910 = vmatmul.mubr.f32.gmra.mxu0 %v3199
    %v3911 = vpop.f32.mrf.mxu0
    %v3912 = vadd.f32 %v3837, %v3911
    %v3913 = vpop.f32.mrf.mxu0
    %3914 = vdwg.mxu0
    %3915 = vmatprep.subr.mxu0 0.0
    %3916 = vmatpush1.msra.mxu0 %v3412
    %3917 = vmatprep.subr.mxu0 0.0
    %3918 = vmatpush1.msra.mxu0 %v3411
    %3919 = vmatprep.subr.mxu0 0.0
    %3920 = vmatpush1.msra.mxu0 %v3410
    %3921 = vmatprep.subr.mxu0 0.0
    %3922 = vmatpush1.msra.mxu0 %v3409
    %3923 = vmatprep.subr.mxu0 0.0
    %3924 = vmatpush1.msra.mxu0 %v3408
    %3925 = vmatprep.subr.mxu0 0.0
    %3926 = vmatpush1.msra.mxu0 %v3407
    %3927 = vmatprep.subr.mxu0 0.0
    %3928 = vmatpush1.msra.mxu0 %v3406
    %3929 = vmatprep.subr.mxu0 0.0
    %3930 = vmatpush1.msra.mxu0 %v3405
    %3931 = vmatprep.subr.mxu0 0.0
    %3932 = vmatpush1.msra.mxu0 %v3404
    %3933 = vmatprep.subr.mxu0 0.0
    %3934 = vmatpush1.msra.mxu0 %v3403
    %3935 = vmatprep.subr.mxu0 0.0
    %3936 = vmatpush1.msra.mxu0 %v3402
    %3937 = vmatprep.subr.mxu0 0.0
    %3938 = vmatpush1.msra.mxu0 %v3401
    %3939 = vmatprep.subr.mxu0 0.0
    %3940 = vmatpush1.msra.mxu0 %v3400
    %3941 = vmatprep.subr.mxu0 0.0
    %3942 = vmatpush1.msra.mxu0 %v3399
    %3943 = vmatprep.subr.mxu0 0.0
    %3944 = vmatpush1.msra.mxu0 %v3398
    %3945 = vmatprep.subr.mxu0 0.0
    %3946 = vmatpush1.msra.mxu0 %v3397
    %3947 = vmatprep.subr.mxu0 0.0
    %3948 = vmatpush2.msra.mxu0 %v3428
    %3949 = vmatprep.subr.mxu0 0.0
    %3950 = vmatpush2.msra.mxu0 %v3427
    %3951 = vmatprep.subr.mxu0 0.0
    %3952 = vmatpush2.msra.mxu0 %v3426
    %3953 = vmatprep.subr.mxu0 0.0
    %3954 = vmatpush2.msra.mxu0 %v3425
    %3955 = vmatprep.subr.mxu0 0.0
    %3956 = vmatpush2.msra.mxu0 %v3424
    %3957 = vmatprep.subr.mxu0 0.0
    %3958 = vmatpush2.msra.mxu0 %v3423
    %3959 = vmatprep.subr.mxu0 0.0
    %3960 = vmatpush2.msra.mxu0 %v3422
    %3961 = vmatprep.subr.mxu0 0.0
    %3962 = vmatpush2.msra.mxu0 %v3421
    %3963 = vmatprep.subr.mxu0 0.0
    %3964 = vmatpush2.msra.mxu0 %v3420
    %3965 = vmatprep.subr.mxu0 0.0
    %3966 = vmatpush2.msra.mxu0 %v3419
    %3967 = vmatprep.subr.mxu0 0.0
    %3968 = vmatpush2.msra.mxu0 %v3418
    %3969 = vmatprep.subr.mxu0 0.0
    %3970 = vmatpush2.msra.mxu0 %v3417
    %3971 = vmatprep.subr.mxu0 0.0
    %3972 = vmatpush2.msra.mxu0 %v3416
    %3973 = vmatprep.subr.mxu0 0.0
    %3974 = vmatpush2.msra.mxu0 %v3415
    %3975 = vmatprep.subr.mxu0 0.0
    %3976 = vmatpush2.msra.mxu0 %v3414
    %3977 = vmatprep.subr.mxu0 0.0
    %3978 = vmatpush2.msra.mxu0 %v3413
    %3979 = vmatprep.mubr.f32.mxu0 %v3186
    %3980 = vmatmul.mubr.f32.gmra.mxu0 %v3185
    %v3981 = vpop.f32.mrf.mxu0
    %v3982 = vadd.f32 %v3907, %v3981
    %v3983 = vpop.f32.mrf.mxu0
    %3984 = vmatprep.mubr.f32.mxu0 %v3202
    %3985 = vmatmul.mubr.f32.gmra.mxu0 %v3201
    %v3986 = vpop.f32.mrf.mxu0
    %v3987 = vadd.f32 %v3912, %v3986
    %v3988 = vpop.f32.mrf.mxu0
    %3989 = vdwg.mxu0
    %3990 = vmatprep.subr.mxu0 0.0
    %3991 = vmatpush1.msra.mxu0 %v3444
    %3992 = vmatprep.subr.mxu0 0.0
    %3993 = vmatpush1.msra.mxu0 %v3443
    %3994 = vmatprep.subr.mxu0 0.0
    %3995 = vmatpush1.msra.mxu0 %v3442
    %3996 = vmatprep.subr.mxu0 0.0
    %3997 = vmatpush1.msra.mxu0 %v3441
    %3998 = vmatprep.subr.mxu0 0.0
    %3999 = vmatpush1.msra.mxu0 %v3440
    %4000 = vmatprep.subr.mxu0 0.0
    %4001 = vmatpush1.msra.mxu0 %v3439
    %4002 = vmatprep.subr.mxu0 0.0
    %4003 = vmatpush1.msra.mxu0 %v3438
    %4004 = vmatprep.subr.mxu0 0.0
    %4005 = vmatpush1.msra.mxu0 %v3437
    %4006 = vmatprep.subr.mxu0 0.0
    %4007 = vmatpush1.msra.mxu0 %v3436
    %4008 = vmatprep.subr.mxu0 0.0
    %4009 = vmatpush1.msra.mxu0 %v3435
    %4010 = vmatprep.subr.mxu0 0.0
    %4011 = vmatpush1.msra.mxu0 %v3434
    %4012 = vmatprep.subr.mxu0 0.0
    %4013 = vmatpush1.msra.mxu0 %v3433
    %4014 = vmatprep.subr.mxu0 0.0
    %4015 = vmatpush1.msra.mxu0 %v3432
    %4016 = vmatprep.subr.mxu0 0.0
    %4017 = vmatpush1.msra.mxu0 %v3431
    %4018 = vmatprep.subr.mxu0 0.0
    %4019 = vmatpush1.msra.mxu0 %v3430
    %4020 = vmatprep.subr.mxu0 0.0
    %4021 = vmatpush1.msra.mxu0 %v3429
    %4022 = vmatprep.subr.mxu0 0.0
    %4023 = vmatpush2.msra.mxu0 %v3460
    %4024 = vmatprep.subr.mxu0 0.0
    %4025 = vmatpush2.msra.mxu0 %v3459
    %4026 = vmatprep.subr.mxu0 0.0
    %4027 = vmatpush2.msra.mxu0 %v3458
    %4028 = vmatprep.subr.mxu0 0.0
    %4029 = vmatpush2.msra.mxu0 %v3457
    %4030 = vmatprep.subr.mxu0 0.0
    %4031 = vmatpush2.msra.mxu0 %v3456
    %4032 = vmatprep.subr.mxu0 0.0
    %4033 = vmatpush2.msra.mxu0 %v3455
    %4034 = vmatprep.subr.mxu0 0.0
    %4035 = vmatpush2.msra.mxu0 %v3454
    %4036 = vmatprep.subr.mxu0 0.0
    %4037 = vmatpush2.msra.mxu0 %v3453
    %4038 = vmatprep.subr.mxu0 0.0
    %4039 = vmatpush2.msra.mxu0 %v3452
    %4040 = vmatprep.subr.mxu0 0.0
    %4041 = vmatpush2.msra.mxu0 %v3451
    %4042 = vmatprep.subr.mxu0 0.0
    %4043 = vmatpush2.msra.mxu0 %v3450
    %4044 = vmatprep.subr.mxu0 0.0
    %4045 = vmatpush2.msra.mxu0 %v3449
    %4046 = vmatprep.subr.mxu0 0.0
    %4047 = vmatpush2.msra.mxu0 %v3448
    %4048 = vmatprep.subr.mxu0 0.0
    %4049 = vmatpush2.msra.mxu0 %v3447
    %4050 = vmatprep.subr.mxu0 0.0
    %4051 = vmatpush2.msra.mxu0 %v3446
    %4052 = vmatprep.subr.mxu0 0.0
    %4053 = vmatpush2.msra.mxu0 %v3445
    %4054 = vmatprep.mubr.f32.mxu0 %v3188
    %4055 = vmatmul.mubr.f32.gmra.mxu0 %v3187
    %v4056 = vpop.f32.mrf.mxu0
    %v4057 = vadd.f32 %v3982, %v4056
    %v4058 = vpop.f32.mrf.mxu0
    %4059 = vmatprep.mubr.f32.mxu0 %v3204
    %4060 = vmatmul.mubr.f32.gmra.mxu0 %v3203
    %v4061 = vpop.f32.mrf.mxu0
    %v4062 = vadd.f32 %v3987, %v4061
    %v4063 = vpop.f32.mrf.mxu0
    %4064 = vdwg.mxu0
    %v4065 = vadd.f32 %v2273, %v4057
    %v4066 = vadd.f32 %v2274, %v4062
    %v4067 = vsel %vm72, %v4065, 0.0
    %4068 = vadd.xlane.f32.xlu0 %v4067
    %v4069 = vpop.xlane.xlu0 %4068
    %v4070 = vsel %vm72, %v4066, 0.0
    %4071 = vadd.xlane.f32.xlu0 %v4070
    %v4072 = vpop.xlane.xlu0 %4071
    %v4073 = vmul.f32 %v4069, %v2242
    %v4074 = vmul.f32 %v4072, %v2242
    %v4075 = vsub.f32 %v4065, %v4073
    %v4076 = vsub.f32 %v4066, %v4074
    %v4077 = vmul.f32 %v4075, %v4075
    %v4078 = vmul.f32 %v4076, %v4076
    %v4079 = vsel %vm72, %v4077, 0.0
    %4080 = vadd.xlane.f32.xlu0 %v4079
    %v4081 = vpop.xlane.xlu0 %4080
    %v4082 = vsel %vm72, %v4078, 0.0
    %4083 = vadd.xlane.f32.xlu0 %v4082
    %v4084 = vpop.xlane.xlu0 %4083
    %v4085 = vmul.f32 %v4081, %v2242
    %v4086 = vmul.f32 %v4084, %v2242
    %v4087 = vadd.f32 %v4085, 1e-05
    %v4088 = vadd.f32 %v4086, 1e-05
    %v4089 = vrsqrt.pop %v4087
    %v4090 = vrsqrt.pop %v4088
    %v4091 = vmul.f32 %v4075, %v4089
    %v4092 = vmul.f32 %v4076, %v4090
    %v4093 = vlaneseq
    %v4094 = vshrl.u32 %v4093, 7
    %v4095 = vsub.s32 4, %v4094
    %v4096 = vrot.slane %v48, %v4095
    %v4097 = vmul.f32 %v4091, %v4096
    %v4098 = vmul.f32 %v4092, %v4096
    %v4099 = vlaneseq
    %v4100 = vshrl.u32 %v4099, 7
    %v4101 = vsub.s32 5, %v4100
    %v4102 = vrot.slane %v48, %v4101
    %v4103 = vadd.f32 %v4097, %v4102
    %v4104 = vadd.f32 %v4098, %v4102
    %v4105 = vld [vmem:[%s7] sm:$0xff]
    %v4106 = vld [vmem:[%s7 + $0x8] sm:$0xff]
    %v4107 = vld [vmem:[%s7 + $0x10] sm:$0xff]
    %v4108 = vld [vmem:[%s7 + $0x18] sm:$0xff]
    %v4110 = vrot.slane %v48, 6
    %vm4112 = vcmask 261120
    %v4114 = vsel %vm4112, %v44, 0
    %4116 = vmatprep.subr.mxu0 0.0
    %4117 = vmatpush1.msra.mxu0 0.0
    %4118 = vmatprep.subr.mxu0 0.0
    %4119 = vmatpush1.msra.mxu0 0.0
    %4120 = vmatprep.subr.mxu0 0.0
    %4121 = vmatpush1.msra.mxu0 0.0
    %4122 = vmatprep.subr.mxu0 0.0
    %4123 = vmatpush1.msra.mxu0 0.0
    %4124 = vmatprep.subr.mxu0 0.0
    %4125 = vmatpush1.msra.mxu0 0.0
    %4126 = vmatprep.subr.mxu0 0.0
    %4127 = vmatpush1.msra.mxu0 0.0
    %4128 = vmatprep.subr.mxu0 0.0
    %4129 = vmatpush1.msra.mxu0 0.0
    %4130 = vmatprep.subr.mxu0 0.0
    %4131 = vmatpush1.msra.mxu0 0.0
    %4132 = vmatprep.subr.mxu0 0.0
    %4133 = vmatpush1.msra.mxu0 0.0
    %4134 = vmatprep.subr.mxu0 0.0
    %4135 = vmatpush1.msra.mxu0 0.0
    %4136 = vmatprep.subr.mxu0 0.0
    %4137 = vmatpush1.msra.mxu0 0.0
    %4138 = vmatprep.subr.mxu0 0.0
    %4139 = vmatpush1.msra.mxu0 0.0
    %4140 = vmatprep.subr.mxu0 0.0
    %4141 = vmatpush1.msra.mxu0 %v4108
    %4142 = vmatprep.subr.mxu0 0.0
    %4143 = vmatpush1.msra.mxu0 %v4107
    %4144 = vmatprep.subr.mxu0 0.0
    %4145 = vmatpush1.msra.mxu0 %v4106
    %4146 = vmatprep.subr.mxu0 0.0
    %4147 = vmatpush1.msra.mxu0 %v4105
    %4148 = vmatprep.subr.mxu0 0.0
    %4149 = vmatpush2.msra.mxu0 0.0
    %4150 = vmatprep.subr.mxu0 0.0
    %4151 = vmatpush2.msra.mxu0 0.0
    %4152 = vmatprep.subr.mxu0 0.0
    %4153 = vmatpush2.msra.mxu0 0.0
    %4154 = vmatprep.subr.mxu0 0.0
    %4155 = vmatpush2.msra.mxu0 0.0
    %4156 = vmatprep.subr.mxu0 0.0
    %4157 = vmatpush2.msra.mxu0 0.0
    %4158 = vmatprep.subr.mxu0 0.0
    %4159 = vmatpush2.msra.mxu0 0.0
    %4160 = vmatprep.subr.mxu0 0.0
    %4161 = vmatpush2.msra.mxu0 0.0
    %4162 = vmatprep.subr.mxu0 0.0
    %4163 = vmatpush2.msra.mxu0 0.0
    %4164 = vmatprep.subr.mxu0 0.0
    %4165 = vmatpush2.msra.mxu0 0.0
    %4166 = vmatprep.subr.mxu0 0.0
    %4167 = vmatpush2.msra.mxu0 0.0
    %4168 = vmatprep.subr.mxu0 0.0
    %4169 = vmatpush2.msra.mxu0 0.0
    %4170 = vmatprep.subr.mxu0 0.0
    %4171 = vmatpush2.msra.mxu0 0.0
    %4172 = vmatprep.subr.mxu0 0.0
    %4173 = vmatpush2.msra.mxu0 0.0
    %4174 = vmatprep.subr.mxu0 0.0
    %4175 = vmatpush2.msra.mxu0 0.0
    %4176 = vmatprep.subr.mxu0 0.0
    %4177 = vmatpush2.msra.mxu0 0.0
    %4178 = vmatprep.subr.mxu0 0.0
    %4179 = vmatpush2.msra.mxu0 0.0
    %4180 = vmatprep.mubr.f32.mxu0 0.0
    %4181 = vmatmul.mubr.f32.gmra.mxu0 %v4114
    %v4182 = vpop.f32.mrf.mxu0
    %v4183 = vadd.f32 %v4110, %v4182
    %v4184 = vpop.f32.mrf.mxu0
    %4185 = vdwg.mxu0
    %v4186 = vld [vmem:[%s8] sm:$0xff]
    %v4187 = vld [vmem:[%s8 + $0x8] sm:$0xff]
    %v4188 = vld [vmem:[%s8 + $0x10] sm:$0xff]
    %v4189 = vld [vmem:[%s8 + $0x18] sm:$0xff]
    %v4190 = vld [vmem:[%s8 + $0x20] sm:$0xff]
    %v4191 = vld [vmem:[%s8 + $0x28] sm:$0xff]
    %v4192 = vld [vmem:[%s8 + $0x30] sm:$0xff]
    %v4193 = vld [vmem:[%s8 + $0x38] sm:$0xff]
    %v4194 = vrot.slane %v48, 7
    %v4197 = vsel %vm72, %v4183, 0
    %4199 = vmatprep.subr.mxu0 0.0
    %4200 = vmatpush1.msra.mxu0 0.0
    %4201 = vmatprep.subr.mxu0 0.0
    %4202 = vmatpush1.msra.mxu0 0.0
    %4203 = vmatprep.subr.mxu0 0.0
    %4204 = vmatpush1.msra.mxu0 0.0
    %4205 = vmatprep.subr.mxu0 0.0
    %4206 = vmatpush1.msra.mxu0 0.0
    %4207 = vmatprep.subr.mxu0 0.0
    %4208 = vmatpush1.msra.mxu0 0.0
    %4209 = vmatprep.subr.mxu0 0.0
    %4210 = vmatpush1.msra.mxu0 0.0
    %4211 = vmatprep.subr.mxu0 0.0
    %4212 = vmatpush1.msra.mxu0 0.0
    %4213 = vmatprep.subr.mxu0 0.0
    %4214 = vmatpush1.msra.mxu0 0.0
    %4215 = vmatprep.subr.mxu0 0.0
    %4216 = vmatpush1.msra.mxu0 %v4193
    %4217 = vmatprep.subr.mxu0 0.0
    %4218 = vmatpush1.msra.mxu0 %v4192
    %4219 = vmatprep.subr.mxu0 0.0
    %4220 = vmatpush1.msra.mxu0 %v4191
    %4221 = vmatprep.subr.mxu0 0.0
    %4222 = vmatpush1.msra.mxu0 %v4190
    %4223 = vmatprep.subr.mxu0 0.0
    %4224 = vmatpush1.msra.mxu0 %v4189
    %4225 = vmatprep.subr.mxu0 0.0
    %4226 = vmatpush1.msra.mxu0 %v4188
    %4227 = vmatprep.subr.mxu0 0.0
    %4228 = vmatpush1.msra.mxu0 %v4187
    %4229 = vmatprep.subr.mxu0 0.0
    %4230 = vmatpush1.msra.mxu0 %v4186
    %4231 = vmatprep.subr.mxu0 0.0
    %4232 = vmatpush2.msra.mxu0 0.0
    %4233 = vmatprep.subr.mxu0 0.0
    %4234 = vmatpush2.msra.mxu0 0.0
    %4235 = vmatprep.subr.mxu0 0.0
    %4236 = vmatpush2.msra.mxu0 0.0
    %4237 = vmatprep.subr.mxu0 0.0
    %4238 = vmatpush2.msra.mxu0 0.0
    %4239 = vmatprep.subr.mxu0 0.0
    %4240 = vmatpush2.msra.mxu0 0.0
    %4241 = vmatprep.subr.mxu0 0.0
    %4242 = vmatpush2.msra.mxu0 0.0
    %4243 = vmatprep.subr.mxu0 0.0
    %4244 = vmatpush2.msra.mxu0 0.0
    %4245 = vmatprep.subr.mxu0 0.0
    %4246 = vmatpush2.msra.mxu0 0.0
    %4247 = vmatprep.subr.mxu0 0.0
    %4248 = vmatpush2.msra.mxu0 0.0
    %4249 = vmatprep.subr.mxu0 0.0
    %4250 = vmatpush2.msra.mxu0 0.0
    %4251 = vmatprep.subr.mxu0 0.0
    %4252 = vmatpush2.msra.mxu0 0.0
    %4253 = vmatprep.subr.mxu0 0.0
    %4254 = vmatpush2.msra.mxu0 0.0
    %4255 = vmatprep.subr.mxu0 0.0
    %4256 = vmatpush2.msra.mxu0 0.0
    %4257 = vmatprep.subr.mxu0 0.0
    %4258 = vmatpush2.msra.mxu0 0.0
    %4259 = vmatprep.subr.mxu0 0.0
    %4260 = vmatpush2.msra.mxu0 0.0
    %4261 = vmatprep.subr.mxu0 0.0
    %4262 = vmatpush2.msra.mxu0 0.0
    %4263 = vmatprep.mubr.f32.mxu0 0.0
    %4264 = vmatmul.mubr.f32.gmra.mxu0 %v4197
    %v4265 = vpop.f32.mrf.mxu0
    %v4266 = vadd.f32 %v4194, %v4265
    %v4267 = vpop.f32.mrf.mxu0
    %4268 = vdwg.mxu0
    %s4269 = scalar_lea.vmem %s8, 64
    %v4270 = vld [vmem:[%s4269] sm:$0xff]
    %v4271 = vld [vmem:[%s4269 + $0x8] sm:$0xff]
    %v4272 = vld [vmem:[%s4269 + $0x10] sm:$0xff]
    %v4273 = vld [vmem:[%s4269 + $0x18] sm:$0xff]
    %v4274 = vld [vmem:[%s4269 + $0x20] sm:$0xff]
    %v4275 = vld [vmem:[%s4269 + $0x28] sm:$0xff]
    %v4276 = vld [vmem:[%s4269 + $0x30] sm:$0xff]
    %v4277 = vld [vmem:[%s4269 + $0x38] sm:$0xff]
    %v4279 = vsel %vm72, %v4266, 0
    %4281 = vmatprep.subr.mxu0 0.0
    %4282 = vmatpush1.msra.mxu0 0.0
    %4283 = vmatprep.subr.mxu0 0.0
    %4284 = vmatpush1.msra.mxu0 0.0
    %4285 = vmatprep.subr.mxu0 0.0
    %4286 = vmatpush1.msra.mxu0 0.0
    %4287 = vmatprep.subr.mxu0 0.0
    %4288 = vmatpush1.msra.mxu0 0.0
    %4289 = vmatprep.subr.mxu0 0.0
    %4290 = vmatpush1.msra.mxu0 0.0
    %4291 = vmatprep.subr.mxu0 0.0
    %4292 = vmatpush1.msra.mxu0 0.0
    %4293 = vmatprep.subr.mxu0 0.0
    %4294 = vmatpush1.msra.mxu0 0.0
    %4295 = vmatprep.subr.mxu0 0.0
    %4296 = vmatpush1.msra.mxu0 0.0
    %4297 = vmatprep.subr.mxu0 0.0
    %4298 = vmatpush1.msra.mxu0 %v4277
    %4299 = vmatprep.subr.mxu0 0.0
    %4300 = vmatpush1.msra.mxu0 %v4276
    %4301 = vmatprep.subr.mxu0 0.0
    %4302 = vmatpush1.msra.mxu0 %v4275
    %4303 = vmatprep.subr.mxu0 0.0
    %4304 = vmatpush1.msra.mxu0 %v4274
    %4305 = vmatprep.subr.mxu0 0.0
    %4306 = vmatpush1.msra.mxu0 %v4273
    %4307 = vmatprep.subr.mxu0 0.0
    %4308 = vmatpush1.msra.mxu0 %v4272
    %4309 = vmatprep.subr.mxu0 0.0
    %4310 = vmatpush1.msra.mxu0 %v4271
    %4311 = vmatprep.subr.mxu0 0.0
    %4312 = vmatpush1.msra.mxu0 %v4270
    %4313 = vmatprep.subr.mxu0 0.0
    %4314 = vmatpush2.msra.mxu0 0.0
    %4315 = vmatprep.subr.mxu0 0.0
    %4316 = vmatpush2.msra.mxu0 0.0
    %4317 = vmatprep.subr.mxu0 0.0
    %4318 = vmatpush2.msra.mxu0 0.0
    %4319 = vmatprep.subr.mxu0 0.0
    %4320 = vmatpush2.msra.mxu0 0.0
    %4321 = vmatprep.subr.mxu0 0.0
    %4322 = vmatpush2.msra.mxu0 0.0
    %4323 = vmatprep.subr.mxu0 0.0
    %4324 = vmatpush2.msra.mxu0 0.0
    %4325 = vmatprep.subr.mxu0 0.0
    %4326 = vmatpush2.msra.mxu0 0.0
    %4327 = vmatprep.subr.mxu0 0.0
    %4328 = vmatpush2.msra.mxu0 0.0
    %4329 = vmatprep.subr.mxu0 0.0
    %4330 = vmatpush2.msra.mxu0 0.0
    %4331 = vmatprep.subr.mxu0 0.0
    %4332 = vmatpush2.msra.mxu0 0.0
    %4333 = vmatprep.subr.mxu0 0.0
    %4334 = vmatpush2.msra.mxu0 0.0
    %4335 = vmatprep.subr.mxu0 0.0
    %4336 = vmatpush2.msra.mxu0 0.0
    %4337 = vmatprep.subr.mxu0 0.0
    %4338 = vmatpush2.msra.mxu0 0.0
    %4339 = vmatprep.subr.mxu0 0.0
    %4340 = vmatpush2.msra.mxu0 0.0
    %4341 = vmatprep.subr.mxu0 0.0
    %4342 = vmatpush2.msra.mxu0 0.0
    %4343 = vmatprep.subr.mxu0 0.0
    %4344 = vmatpush2.msra.mxu0 0.0
    %4345 = vmatprep.mubr.f32.mxu0 0.0
    %4346 = vmatmul.mubr.f32.gmra.mxu0 %v4279
    %v4347 = vpop.f32.mrf.mxu0
    %v4348 = vadd.f32 %v49, %v4347
    %v4349 = vpop.f32.mrf.mxu0
    %4350 = vdwg.mxu0
    %v4351 = vadd.f32 %v4183, %v4348
    %vm4352 = vcmask 516096
    %v4353 = vsel %vm4352, %v4351, 0.0
    %4354 = vadd.xlane.f32.xlu0 %v4353
    %v4355 = vpop.xlane.xlu0 %4354
    %v4356 = vmul.f32 %v4355, %v2242
    %v4357 = vsub.f32 %v4351, %v4356
    %v4358 = vmul.f32 %v4357, %v4357
    %v4359 = vsel %vm4352, %v4358, 0.0
    %4360 = vadd.xlane.f32.xlu0 %v4359
    %v4361 = vpop.xlane.xlu0 %4360
    %v4362 = vmul.f32 %v4361, %v2242
    %v4363 = vadd.f32 %v4362, 1e-05
    %v4364 = vrsqrt.pop %v4363
    %v4365 = vmul.f32 %v4357, %v4364
    %v4367 = vrot.slane %v49, 1
    %v4369 = vmul.f32 %v4365, %v4367
    %v4370 = vrot.slane %v49, 2
    %v4372 = vadd.f32 %v4369, %v4370
    %v4373 = vadd.f32 %v49, 0.0
    %s4374 = scalar_lea.vmem %s2, 768
    %v4375 = vld [vmem:[%s4374] sm:$0xff]
    %v4376 = vld [vmem:[%s4374 + $0x8] sm:$0xff]
    %v4377 = vld [vmem:[%s4374 + $0x10] sm:$0xff]
    %v4378 = vld [vmem:[%s4374 + $0x18] sm:$0xff]
    %v4379 = vld [vmem:[%s4374 + $0x20] sm:$0xff]
    %v4380 = vld [vmem:[%s4374 + $0x28] sm:$0xff]
    %v4381 = vld [vmem:[%s4374 + $0x30] sm:$0xff]
    %v4382 = vld [vmem:[%s4374 + $0x38] sm:$0xff]
    %v4384 = vrot.slane %v46, 4
    %v4387 = vsel %vm72, %v4372, 0
    %4389 = vmatprep.subr.mxu0 0.0
    %4390 = vmatpush1.msra.mxu0 0.0
    %4391 = vmatprep.subr.mxu0 0.0
    %4392 = vmatpush1.msra.mxu0 0.0
    %4393 = vmatprep.subr.mxu0 0.0
    %4394 = vmatpush1.msra.mxu0 0.0
    %4395 = vmatprep.subr.mxu0 0.0
    %4396 = vmatpush1.msra.mxu0 0.0
    %4397 = vmatprep.subr.mxu0 0.0
    %4398 = vmatpush1.msra.mxu0 0.0
    %4399 = vmatprep.subr.mxu0 0.0
    %4400 = vmatpush1.msra.mxu0 0.0
    %4401 = vmatprep.subr.mxu0 0.0
    %4402 = vmatpush1.msra.mxu0 0.0
    %4403 = vmatprep.subr.mxu0 0.0
    %4404 = vmatpush1.msra.mxu0 0.0
    %4405 = vmatprep.subr.mxu0 0.0
    %4406 = vmatpush1.msra.mxu0 %v4382
    %4407 = vmatprep.subr.mxu0 0.0
    %4408 = vmatpush1.msra.mxu0 %v4381
    %4409 = vmatprep.subr.mxu0 0.0
    %4410 = vmatpush1.msra.mxu0 %v4380
    %4411 = vmatprep.subr.mxu0 0.0
    %4412 = vmatpush1.msra.mxu0 %v4379
    %4413 = vmatprep.subr.mxu0 0.0
    %4414 = vmatpush1.msra.mxu0 %v4378
    %4415 = vmatprep.subr.mxu0 0.0
    %4416 = vmatpush1.msra.mxu0 %v4377
    %4417 = vmatprep.subr.mxu0 0.0
    %4418 = vmatpush1.msra.mxu0 %v4376
    %4419 = vmatprep.subr.mxu0 0.0
    %4420 = vmatpush1.msra.mxu0 %v4375
    %4421 = vmatprep.subr.mxu0 0.0
    %4422 = vmatpush2.msra.mxu0 0.0
    %4423 = vmatprep.subr.mxu0 0.0
    %4424 = vmatpush2.msra.mxu0 0.0
    %4425 = vmatprep.subr.mxu0 0.0
    %4426 = vmatpush2.msra.mxu0 0.0
    %4427 = vmatprep.subr.mxu0 0.0
    %4428 = vmatpush2.msra.mxu0 0.0
    %4429 = vmatprep.subr.mxu0 0.0
    %4430 = vmatpush2.msra.mxu0 0.0
    %4431 = vmatprep.subr.mxu0 0.0
    %4432 = vmatpush2.msra.mxu0 0.0
    %4433 = vmatprep.subr.mxu0 0.0
    %4434 = vmatpush2.msra.mxu0 0.0
    %4435 = vmatprep.subr.mxu0 0.0
    %4436 = vmatpush2.msra.mxu0 0.0
    %4437 = vmatprep.subr.mxu0 0.0
    %4438 = vmatpush2.msra.mxu0 0.0
    %4439 = vmatprep.subr.mxu0 0.0
    %4440 = vmatpush2.msra.mxu0 0.0
    %4441 = vmatprep.subr.mxu0 0.0
    %4442 = vmatpush2.msra.mxu0 0.0
    %4443 = vmatprep.subr.mxu0 0.0
    %4444 = vmatpush2.msra.mxu0 0.0
    %4445 = vmatprep.subr.mxu0 0.0
    %4446 = vmatpush2.msra.mxu0 0.0
    %4447 = vmatprep.subr.mxu0 0.0
    %4448 = vmatpush2.msra.mxu0 0.0
    %4449 = vmatprep.subr.mxu0 0.0
    %4450 = vmatpush2.msra.mxu0 0.0
    %4451 = vmatprep.subr.mxu0 0.0
    %4452 = vmatpush2.msra.mxu0 0.0
    %4453 = vmatprep.mubr.f32.mxu0 0.0
    %4454 = vmatmul.mubr.f32.gmra.mxu0 %v4387
    %v4455 = vpop.f32.mrf.mxu0
    %v4456 = vadd.f32 %v4384, %v4455
    %v4457 = vpop.f32.mrf.mxu0
    %4458 = vdwg.mxu0
    %s4459 = scalar_lea.vmem %s2, 1024
    %v4460 = vld [vmem:[%s4459] sm:$0xff]
    %v4461 = vld [vmem:[%s4459 + $0x8] sm:$0xff]
    %v4462 = vld [vmem:[%s4459 + $0x10] sm:$0xff]
    %v4463 = vld [vmem:[%s4459 + $0x18] sm:$0xff]
    %v4464 = vld [vmem:[%s4459 + $0x20] sm:$0xff]
    %v4465 = vld [vmem:[%s4459 + $0x28] sm:$0xff]
    %v4466 = vld [vmem:[%s4459 + $0x30] sm:$0xff]
    %v4467 = vld [vmem:[%s4459 + $0x38] sm:$0xff]
    %v4468 = vlaneseq
    %v4469 = vshrl.u32 %v4468, 7
    %v4470 = vsub.s32 0, %v4469
    %v4471 = vrot.slane %v47, %v4470
    %v4473 = vsel %vm72, %v4103, 0
    %v4476 = vsel %vm72, %v4104, 0
    %4478 = vmatprep.subr.mxu0 0.0
    %4479 = vmatpush1.msra.mxu0 0.0
    %4480 = vmatprep.subr.mxu0 0.0
    %4481 = vmatpush1.msra.mxu0 0.0
    %4482 = vmatprep.subr.mxu0 0.0
    %4483 = vmatpush1.msra.mxu0 0.0
    %4484 = vmatprep.subr.mxu0 0.0
    %4485 = vmatpush1.msra.mxu0 0.0
    %4486 = vmatprep.subr.mxu0 0.0
    %4487 = vmatpush1.msra.mxu0 0.0
    %4488 = vmatprep.subr.mxu0 0.0
    %4489 = vmatpush1.msra.mxu0 0.0
    %4490 = vmatprep.subr.mxu0 0.0
    %4491 = vmatpush1.msra.mxu0 0.0
    %4492 = vmatprep.subr.mxu0 0.0
    %4493 = vmatpush1.msra.mxu0 0.0
    %4494 = vmatprep.subr.mxu0 0.0
    %4495 = vmatpush1.msra.mxu0 %v4467
    %4496 = vmatprep.subr.mxu0 0.0
    %4497 = vmatpush1.msra.mxu0 %v4466
    %4498 = vmatprep.subr.mxu0 0.0
    %4499 = vmatpush1.msra.mxu0 %v4465
    %4500 = vmatprep.subr.mxu0 0.0
    %4501 = vmatpush1.msra.mxu0 %v4464
    %4502 = vmatprep.subr.mxu0 0.0
    %4503 = vmatpush1.msra.mxu0 %v4463
    %4504 = vmatprep.subr.mxu0 0.0
    %4505 = vmatpush1.msra.mxu0 %v4462
    %4506 = vmatprep.subr.mxu0 0.0
    %4507 = vmatpush1.msra.mxu0 %v4461
    %4508 = vmatprep.subr.mxu0 0.0
    %4509 = vmatpush1.msra.mxu0 %v4460
    %4510 = vmatprep.subr.mxu0 0.0
    %4511 = vmatpush2.msra.mxu0 0.0
    %4512 = vmatprep.subr.mxu0 0.0
    %4513 = vmatpush2.msra.mxu0 0.0
    %4514 = vmatprep.subr.mxu0 0.0
    %4515 = vmatpush2.msra.mxu0 0.0
    %4516 = vmatprep.subr.mxu0 0.0
    %4517 = vmatpush2.msra.mxu0 0.0
    %4518 = vmatprep.subr.mxu0 0.0
    %4519 = vmatpush2.msra.mxu0 0.0
    %4520 = vmatprep.subr.mxu0 0.0
    %4521 = vmatpush2.msra.mxu0 0.0
    %4522 = vmatprep.subr.mxu0 0.0
    %4523 = vmatpush2.msra.mxu0 0.0
    %4524 = vmatprep.subr.mxu0 0.0
    %4525 = vmatpush2.msra.mxu0 0.0
    %4526 = vmatprep.subr.mxu0 0.0
    %4527 = vmatpush2.msra.mxu0 0.0
    %4528 = vmatprep.subr.mxu0 0.0
    %4529 = vmatpush2.msra.mxu0 0.0
    %4530 = vmatprep.subr.mxu0 0.0
    %4531 = vmatpush2.msra.mxu0 0.0
    %4532 = vmatprep.subr.mxu0 0.0
    %4533 = vmatpush2.msra.mxu0 0.0
    %4534 = vmatprep.subr.mxu0 0.0
    %4535 = vmatpush2.msra.mxu0 0.0
    %4536 = vmatprep.subr.mxu0 0.0
    %4537 = vmatpush2.msra.mxu0 0.0
    %4538 = vmatprep.subr.mxu0 0.0
    %4539 = vmatpush2.msra.mxu0 0.0
    %4540 = vmatprep.subr.mxu0 0.0
    %4541 = vmatpush2.msra.mxu0 0.0
    %4542 = vmatprep.mubr.f32.mxu0 0.0
    %4543 = vmatmul.mubr.f32.gmra.mxu0 %v4473
    %v4544 = vpop.f32.mrf.mxu0
    %v4545 = vadd.f32 %v4471, %v4544
    %v4546 = vpop.f32.mrf.mxu0
    %4547 = vmatprep.mubr.f32.mxu0 0.0
    %4548 = vmatmul.mubr.f32.gmra.mxu0 %v4476
    %v4549 = vpop.f32.mrf.mxu0
    %v4550 = vadd.f32 %v4471, %v4549
    %v4551 = vpop.f32.mrf.mxu0
    %4552 = vdwg.mxu0
    %s4553 = scalar_lea.vmem %s2, 1280
    %v4554 = vld [vmem:[%s4553] sm:$0xff]
    %v4555 = vld [vmem:[%s4553 + $0x8] sm:$0xff]
    %v4556 = vld [vmem:[%s4553 + $0x10] sm:$0xff]
    %v4557 = vld [vmem:[%s4553 + $0x18] sm:$0xff]
    %v4558 = vld [vmem:[%s4553 + $0x20] sm:$0xff]
    %v4559 = vld [vmem:[%s4553 + $0x28] sm:$0xff]
    %v4560 = vld [vmem:[%s4553 + $0x30] sm:$0xff]
    %v4561 = vld [vmem:[%s4553 + $0x38] sm:$0xff]
    %v4562 = vlaneseq
    %v4563 = vshrl.u32 %v4562, 7
    %v4564 = vsub.s32 4, %v4563
    %v4565 = vrot.slane %v47, %v4564
    %4566 = vmatprep.subr.mxu0 0.0
    %4567 = vmatpush1.msra.mxu0 0.0
    %4568 = vmatprep.subr.mxu0 0.0
    %4569 = vmatpush1.msra.mxu0 0.0
    %4570 = vmatprep.subr.mxu0 0.0
    %4571 = vmatpush1.msra.mxu0 0.0
    %4572 = vmatprep.subr.mxu0 0.0
    %4573 = vmatpush1.msra.mxu0 0.0
    %4574 = vmatprep.subr.mxu0 0.0
    %4575 = vmatpush1.msra.mxu0 0.0
    %4576 = vmatprep.subr.mxu0 0.0
    %4577 = vmatpush1.msra.mxu0 0.0
    %4578 = vmatprep.subr.mxu0 0.0
    %4579 = vmatpush1.msra.mxu0 0.0
    %4580 = vmatprep.subr.mxu0 0.0
    %4581 = vmatpush1.msra.mxu0 0.0
    %4582 = vmatprep.subr.mxu0 0.0
    %4583 = vmatpush1.msra.mxu0 %v4561
    %4584 = vmatprep.subr.mxu0 0.0
    %4585 = vmatpush1.msra.mxu0 %v4560
    %4586 = vmatprep.subr.mxu0 0.0
    %4587 = vmatpush1.msra.mxu0 %v4559
    %4588 = vmatprep.subr.mxu0 0.0
    %4589 = vmatpush1.msra.mxu0 %v4558
    %4590 = vmatprep.subr.mxu0 0.0
    %4591 = vmatpush1.msra.mxu0 %v4557
    %4592 = vmatprep.subr.mxu0 0.0
    %4593 = vmatpush1.msra.mxu0 %v4556
    %4594 = vmatprep.subr.mxu0 0.0
    %4595 = vmatpush1.msra.mxu0 %v4555
    %4596 = vmatprep.subr.mxu0 0.0
    %4597 = vmatpush1.msra.mxu0 %v4554
    %4598 = vmatprep.subr.mxu0 0.0
    %4599 = vmatpush2.msra.mxu0 0.0
    %4600 = vmatprep.subr.mxu0 0.0
    %4601 = vmatpush2.msra.mxu0 0.0
    %4602 = vmatprep.subr.mxu0 0.0
    %4603 = vmatpush2.msra.mxu0 0.0
    %4604 = vmatprep.subr.mxu0 0.0
    %4605 = vmatpush2.msra.mxu0 0.0
    %4606 = vmatprep.subr.mxu0 0.0
    %4607 = vmatpush2.msra.mxu0 0.0
    %4608 = vmatprep.subr.mxu0 0.0
    %4609 = vmatpush2.msra.mxu0 0.0
    %4610 = vmatprep.subr.mxu0 0.0
    %4611 = vmatpush2.msra.mxu0 0.0
    %4612 = vmatprep.subr.mxu0 0.0
    %4613 = vmatpush2.msra.mxu0 0.0
    %4614 = vmatprep.subr.mxu0 0.0
    %4615 = vmatpush2.msra.mxu0 0.0
    %4616 = vmatprep.subr.mxu0 0.0
    %4617 = vmatpush2.msra.mxu0 0.0
    %4618 = vmatprep.subr.mxu0 0.0
    %4619 = vmatpush2.msra.mxu0 0.0
    %4620 = vmatprep.subr.mxu0 0.0
    %4621 = vmatpush2.msra.mxu0 0.0
    %4622 = vmatprep.subr.mxu0 0.0
    %4623 = vmatpush2.msra.mxu0 0.0
    %4624 = vmatprep.subr.mxu0 0.0
    %4625 = vmatpush2.msra.mxu0 0.0
    %4626 = vmatprep.subr.mxu0 0.0
    %4627 = vmatpush2.msra.mxu0 0.0
    %4628 = vmatprep.subr.mxu0 0.0
    %4629 = vmatpush2.msra.mxu0 0.0
    %4630 = vmatprep.mubr.f32.mxu0 0.0
    %4631 = vmatmul.mubr.f32.gmra.mxu0 %v4473
    %v4632 = vpop.f32.mrf.mxu0
    %v4633 = vadd.f32 %v4565, %v4632
    %v4634 = vpop.f32.mrf.mxu0
    %4635 = vmatprep.mubr.f32.mxu0 0.0
    %4636 = vmatmul.mubr.f32.gmra.mxu0 %v4476
    %v4637 = vpop.f32.mrf.mxu0
    %v4638 = vadd.f32 %v4565, %v4637
    %v4639 = vpop.f32.mrf.mxu0
    %4640 = vdwg.mxu0
    %v4642 = vsel %vm330, %v4456, 0
    %v4645 = vsel %vm330, %v4545, 0
    %v4648 = vsel %vm330, %v4550, 0
    %4650 = vmatprep.subr.mxu0 0.0
    %4651 = vmatpush1.xpose.msra.mxu0 0.0
    %4652 = vmatprep.subr.mxu0 0.0
    %4653 = vmatpush1.xpose.msra.mxu0 0.0
    %4654 = vmatprep.subr.mxu0 0.0
    %4655 = vmatpush1.xpose.msra.mxu0 0.0
    %4656 = vmatprep.subr.mxu0 0.0
    %4657 = vmatpush1.xpose.msra.mxu0 0.0
    %4658 = vmatprep.subr.mxu0 0.0
    %4659 = vmatpush1.xpose.msra.mxu0 0.0
    %4660 = vmatprep.subr.mxu0 0.0
    %4661 = vmatpush1.xpose.msra.mxu0 0.0
    %4662 = vmatprep.subr.mxu0 0.0
    %4663 = vmatpush1.xpose.msra.mxu0 0.0
    %4664 = vmatprep.subr.mxu0 0.0
    %4665 = vmatpush1.xpose.msra.mxu0 0.0
    %4666 = vmatprep.subr.mxu0 0.0
    %4667 = vmatpush1.xpose.msra.mxu0 0.0
    %4668 = vmatprep.subr.mxu0 0.0
    %4669 = vmatpush1.xpose.msra.mxu0 0.0
    %4670 = vmatprep.subr.mxu0 0.0
    %4671 = vmatpush1.xpose.msra.mxu0 0.0
    %4672 = vmatprep.subr.mxu0 0.0
    %4673 = vmatpush1.xpose.msra.mxu0 0.0
    %4674 = vmatprep.subr.mxu0 0.0
    %4675 = vmatpush1.xpose.msra.mxu0 0.0
    %4676 = vmatprep.subr.mxu0 0.0
    %4677 = vmatpush1.xpose.msra.mxu0 0.0
    %4678 = vmatprep.subr.mxu0 0.0
    %4679 = vmatpush1.xpose.msra.mxu0 %v4648
    %4680 = vmatprep.subr.mxu0 0.0
    %4681 = vmatpush1.xpose.msra.mxu0 %v4645
    %4682 = vmatprep.subr.mxu0 0.0
    %4683 = vmatpush2.xpose.msra.mxu0 0.0
    %4684 = vmatprep.subr.mxu0 0.0
    %4685 = vmatpush2.xpose.msra.mxu0 0.0
    %4686 = vmatprep.subr.mxu0 0.0
    %4687 = vmatpush2.xpose.msra.mxu0 0.0
    %4688 = vmatprep.subr.mxu0 0.0
    %4689 = vmatpush2.xpose.msra.mxu0 0.0
    %4690 = vmatprep.subr.mxu0 0.0
    %4691 = vmatpush2.xpose.msra.mxu0 0.0
    %4692 = vmatprep.subr.mxu0 0.0
    %4693 = vmatpush2.xpose.msra.mxu0 0.0
    %4694 = vmatprep.subr.mxu0 0.0
    %4695 = vmatpush2.xpose.msra.mxu0 0.0
    %4696 = vmatprep.subr.mxu0 0.0
    %4697 = vmatpush2.xpose.msra.mxu0 0.0
    %4698 = vmatprep.subr.mxu0 0.0
    %4699 = vmatpush2.xpose.msra.mxu0 0.0
    %4700 = vmatprep.subr.mxu0 0.0
    %4701 = vmatpush2.xpose.msra.mxu0 0.0
    %4702 = vmatprep.subr.mxu0 0.0
    %4703 = vmatpush2.xpose.msra.mxu0 0.0
    %4704 = vmatprep.subr.mxu0 0.0
    %4705 = vmatpush2.xpose.msra.mxu0 0.0
    %4706 = vmatprep.subr.mxu0 0.0
    %4707 = vmatpush2.xpose.msra.mxu0 0.0
    %4708 = vmatprep.subr.mxu0 0.0
    %4709 = vmatpush2.xpose.msra.mxu0 0.0
    %4710 = vmatprep.subr.mxu0 0.0
    %4711 = vmatpush2.xpose.msra.mxu0 0.0
    %4712 = vmatprep.subr.mxu0 0.0
    %4713 = vmatpush2.xpose.msra.mxu0 0.0
    %4714 = vmatprep.mubr.f32.mxu0 0.0
    %4715 = vmatmul.mubr.f32.gmra.mxu0 %v4642
    %v4716 = vpop.f32.mrf.mxu0
    %v4717 = vadd.f32 0.0, %v4716
    %v4718 = vpop.f32.mrf.mxu0
    %4719 = vdwg.mxu0
    %v4720 = vmul.f32 %v4717, 0.25
    %vm4721 = vcmask 122880
    %v4722 = vsel %vm4721, %v4720, -inf
    %4723 = vmax.xlane.f32.xlu0 %v4722
    %v4724 = vpop.xlane.xlu0 %4723
    %v4725 = vsub.f32 %v4720, %v4724
    %v4726 = vmul.f32 %v4725, 1.442695
    %v4727 = vpow.pop %v4726
    %v4728 = vsel %vm4721, %v4727, 0.0
    %4729 = vadd.xlane.f32.xlu0 %v4728
    %v4730 = vpop.xlane.xlu0 %4729
    %v4731 = vrcp.pop %v4730
    %v4732 = vmul.f32 %v4727, %v4731
    %v4733 = vadd.f32 %v4732, 0.0
    %v4735 = vsel %vm330, %v4732, 0
    %4737 = vmatprep.subr.mxu0 0.0
    %4738 = vmatpush1.msra.mxu0 0.0
    %4739 = vmatprep.subr.mxu0 0.0
    %4740 = vmatpush1.msra.mxu0 0.0
    %4741 = vmatprep.subr.mxu0 0.0
    %4742 = vmatpush1.msra.mxu0 0.0
    %4743 = vmatprep.subr.mxu0 0.0
    %4744 = vmatpush1.msra.mxu0 0.0
    %4745 = vmatprep.subr.mxu0 0.0
    %4746 = vmatpush1.msra.mxu0 0.0
    %4747 = vmatprep.subr.mxu0 0.0
    %4748 = vmatpush1.msra.mxu0 0.0
    %4749 = vmatprep.subr.mxu0 0.0
    %4750 = vmatpush1.msra.mxu0 0.0
    %4751 = vmatprep.subr.mxu0 0.0
    %4752 = vmatpush1.msra.mxu0 0.0
    %4753 = vmatprep.subr.mxu0 0.0
    %4754 = vmatpush1.msra.mxu0 0.0
    %4755 = vmatprep.subr.mxu0 0.0
    %4756 = vmatpush1.msra.mxu0 0.0
    %4757 = vmatprep.subr.mxu0 0.0
    %4758 = vmatpush1.msra.mxu0 0.0
    %4759 = vmatprep.subr.mxu0 0.0
    %4760 = vmatpush1.msra.mxu0 0.0
    %4761 = vmatprep.subr.mxu0 0.0
    %4762 = vmatpush1.msra.mxu0 0.0
    %4763 = vmatprep.subr.mxu0 0.0
    %4764 = vmatpush1.msra.mxu0 0.0
    %4765 = vmatprep.subr.mxu0 0.0
    %4766 = vmatpush1.msra.mxu0 %v4638
    %4767 = vmatprep.subr.mxu0 0.0
    %4768 = vmatpush1.msra.mxu0 %v4633
    %4769 = vmatprep.subr.mxu0 0.0
    %4770 = vmatpush2.msra.mxu0 0.0
    %4771 = vmatprep.subr.mxu0 0.0
    %4772 = vmatpush2.msra.mxu0 0.0
    %4773 = vmatprep.subr.mxu0 0.0
    %4774 = vmatpush2.msra.mxu0 0.0
    %4775 = vmatprep.subr.mxu0 0.0
    %4776 = vmatpush2.msra.mxu0 0.0
    %4777 = vmatprep.subr.mxu0 0.0
    %4778 = vmatpush2.msra.mxu0 0.0
    %4779 = vmatprep.subr.mxu0 0.0
    %4780 = vmatpush2.msra.mxu0 0.0
    %4781 = vmatprep.subr.mxu0 0.0
    %4782 = vmatpush2.msra.mxu0 0.0
    %4783 = vmatprep.subr.mxu0 0.0
    %4784 = vmatpush2.msra.mxu0 0.0
    %4785 = vmatprep.subr.mxu0 0.0
    %4786 = vmatpush2.msra.mxu0 0.0
    %4787 = vmatprep.subr.mxu0 0.0
    %4788 = vmatpush2.msra.mxu0 0.0
    %4789 = vmatprep.subr.mxu0 0.0
    %4790 = vmatpush2.msra.mxu0 0.0
    %4791 = vmatprep.subr.mxu0 0.0
    %4792 = vmatpush2.msra.mxu0 0.0
    %4793 = vmatprep.subr.mxu0 0.0
    %4794 = vmatpush2.msra.mxu0 0.0
    %4795 = vmatprep.subr.mxu0 0.0
    %4796 = vmatpush2.msra.mxu0 0.0
    %4797 = vmatprep.subr.mxu0 0.0
    %4798 = vmatpush2.msra.mxu0 0.0
    %4799 = vmatprep.subr.mxu0 0.0
    %4800 = vmatpush2.msra.mxu0 0.0
    %4801 = vmatprep.mubr.f32.mxu0 0.0
    %4802 = vmatmul.mubr.f32.gmra.mxu0 %v4735
    %v4803 = vpop.f32.mrf.mxu0
    %v4804 = vadd.f32 0.0, %v4803
    %v4805 = vpop.f32.mrf.mxu0
    %4806 = vdwg.mxu0
    %s4807 = scalar_lea.vmem %s3, 64
    %v4808 = vld [vmem:[%s4807] sm:$0xff]
    %v4809 = vld [vmem:[%s4807 + $0x8] sm:$0xff]
    %v4811 = vsel %vm330, %v4804, 0
    %4813 = vmatprep.subr.mxu0 0.0
    %4814 = vmatpush1.msra.mxu0 0.0
    %4815 = vmatprep.subr.mxu0 0.0
    %4816 = vmatpush1.msra.mxu0 0.0
    %4817 = vmatprep.subr.mxu0 0.0
    %4818 = vmatpush1.msra.mxu0 0.0
    %4819 = vmatprep.subr.mxu0 0.0
    %4820 = vmatpush1.msra.mxu0 0.0
    %4821 = vmatprep.subr.mxu0 0.0
    %4822 = vmatpush1.msra.mxu0 0.0
    %4823 = vmatprep.subr.mxu0 0.0
    %4824 = vmatpush1.msra.mxu0 0.0
    %4825 = vmatprep.subr.mxu0 0.0
    %4826 = vmatpush1.msra.mxu0 0.0
    %4827 = vmatprep.subr.mxu0 0.0
    %4828 = vmatpush1.msra.mxu0 0.0
    %4829 = vmatprep.subr.mxu0 0.0
    %4830 = vmatpush1.msra.mxu0 0.0
    %4831 = vmatprep.subr.mxu0 0.0
    %4832 = vmatpush1.msra.mxu0 0.0
    %4833 = vmatprep.subr.mxu0 0.0
    %4834 = vmatpush1.msra.mxu0 0.0
    %4835 = vmatprep.subr.mxu0 0.0
    %4836 = vmatpush1.msra.mxu0 0.0
    %4837 = vmatprep.subr.mxu0 0.0
    %4838 = vmatpush1.msra.mxu0 0.0
    %4839 = vmatprep.subr.mxu0 0.0
    %4840 = vmatpush1.msra.mxu0 0.0
    %4841 = vmatprep.subr.mxu0 0.0
    %4842 = vmatpush1.msra.mxu0 %v4809
    %4843 = vmatprep.subr.mxu0 0.0
    %4844 = vmatpush1.msra.mxu0 %v4808
    %4845 = vmatprep.subr.mxu0 0.0
    %4846 = vmatpush2.msra.mxu0 0.0
    %4847 = vmatprep.subr.mxu0 0.0
    %4848 = vmatpush2.msra.mxu0 0.0
    %4849 = vmatprep.subr.mxu0 0.0
    %4850 = vmatpush2.msra.mxu0 0.0
    %4851 = vmatprep.subr.mxu0 0.0
    %4852 = vmatpush2.msra.mxu0 0.0
    %4853 = vmatprep.subr.mxu0 0.0
    %4854 = vmatpush2.msra.mxu0 0.0
    %4855 = vmatprep.subr.mxu0 0.0
    %4856 = vmatpush2.msra.mxu0 0.0
    %4857 = vmatprep.subr.mxu0 0.0
    %4858 = vmatpush2.msra.mxu0 0.0
    %4859 = vmatprep.subr.mxu0 0.0
    %4860 = vmatpush2.msra.mxu0 0.0
    %4861 = vmatprep.subr.mxu0 0.0
    %4862 = vmatpush2.msra.mxu0 0.0
    %4863 = vmatprep.subr.mxu0 0.0
    %4864 = vmatpush2.msra.mxu0 0.0
    %4865 = vmatprep.subr.mxu0 0.0
    %4866 = vmatpush2.msra.mxu0 0.0
    %4867 = vmatprep.subr.mxu0 0.0
    %4868 = vmatpush2.msra.mxu0 0.0
    %4869 = vmatprep.subr.mxu0 0.0
    %4870 = vmatpush2.msra.mxu0 0.0
    %4871 = vmatprep.subr.mxu0 0.0
    %4872 = vmatpush2.msra.mxu0 0.0
    %4873 = vmatprep.subr.mxu0 0.0
    %4874 = vmatpush2.msra.mxu0 0.0
    %4875 = vmatprep.subr.mxu0 0.0
    %4876 = vmatpush2.msra.mxu0 0.0
    %4877 = vmatprep.mubr.f32.mxu0 0.0
    %4878 = vmatmul.mubr.f32.gmra.mxu0 %v4811
    %v4879 = vpop.f32.mrf.mxu0
    %v4880 = vadd.f32 0.0, %v4879
    %v4881 = vpop.f32.mrf.mxu0
    %4882 = vdwg.mxu0
    %v4884 = vrot.slane %v4880, 5
    %v4886 = vadd.f32 %v4373, %v4884
    %s4887 = scalar_lea.vmem %s2, 832
    %v4888 = vld [vmem:[%s4887] sm:$0xff]
    %v4889 = vld [vmem:[%s4887 + $0x8] sm:$0xff]
    %v4890 = vld [vmem:[%s4887 + $0x10] sm:$0xff]
    %v4891 = vld [vmem:[%s4887 + $0x18] sm:$0xff]
    %v4892 = vld [vmem:[%s4887 + $0x20] sm:$0xff]
    %v4893 = vld [vmem:[%s4887 + $0x28] sm:$0xff]
    %v4894 = vld [vmem:[%s4887 + $0x30] sm:$0xff]
    %v4895 = vld [vmem:[%s4887 + $0x38] sm:$0xff]
    %v4896 = vrot.slane %v46, 5
    %4898 = vmatprep.subr.mxu0 0.0
    %4899 = vmatpush1.msra.mxu0 0.0
    %4900 = vmatprep.subr.mxu0 0.0
    %4901 = vmatpush1.msra.mxu0 0.0
    %4902 = vmatprep.subr.mxu0 0.0
    %4903 = vmatpush1.msra.mxu0 0.0
    %4904 = vmatprep.subr.mxu0 0.0
    %4905 = vmatpush1.msra.mxu0 0.0
    %4906 = vmatprep.subr.mxu0 0.0
    %4907 = vmatpush1.msra.mxu0 0.0
    %4908 = vmatprep.subr.mxu0 0.0
    %4909 = vmatpush1.msra.mxu0 0.0
    %4910 = vmatprep.subr.mxu0 0.0
    %4911 = vmatpush1.msra.mxu0 0.0
    %4912 = vmatprep.subr.mxu0 0.0
    %4913 = vmatpush1.msra.mxu0 0.0
    %4914 = vmatprep.subr.mxu0 0.0
    %4915 = vmatpush1.msra.mxu0 %v4895
    %4916 = vmatprep.subr.mxu0 0.0
    %4917 = vmatpush1.msra.mxu0 %v4894
    %4918 = vmatprep.subr.mxu0 0.0
    %4919 = vmatpush1.msra.mxu0 %v4893
    %4920 = vmatprep.subr.mxu0 0.0
    %4921 = vmatpush1.msra.mxu0 %v4892
    %4922 = vmatprep.subr.mxu0 0.0
    %4923 = vmatpush1.msra.mxu0 %v4891
    %4924 = vmatprep.subr.mxu0 0.0
    %4925 = vmatpush1.msra.mxu0 %v4890
    %4926 = vmatprep.subr.mxu0 0.0
    %4927 = vmatpush1.msra.mxu0 %v4889
    %4928 = vmatprep.subr.mxu0 0.0
    %4929 = vmatpush1.msra.mxu0 %v4888
    %4930 = vmatprep.subr.mxu0 0.0
    %4931 = vmatpush2.msra.mxu0 0.0
    %4932 = vmatprep.subr.mxu0 0.0
    %4933 = vmatpush2.msra.mxu0 0.0
    %4934 = vmatprep.subr.mxu0 0.0
    %4935 = vmatpush2.msra.mxu0 0.0
    %4936 = vmatprep.subr.mxu0 0.0
    %4937 = vmatpush2.msra.mxu0 0.0
    %4938 = vmatprep.subr.mxu0 0.0
    %4939 = vmatpush2.msra.mxu0 0.0
    %4940 = vmatprep.subr.mxu0 0.0
    %4941 = vmatpush2.msra.mxu0 0.0
    %4942 = vmatprep.subr.mxu0 0.0
    %4943 = vmatpush2.msra.mxu0 0.0
    %4944 = vmatprep.subr.mxu0 0.0
    %4945 = vmatpush2.msra.mxu0 0.0
    %4946 = vmatprep.subr.mxu0 0.0
    %4947 = vmatpush2.msra.mxu0 0.0
    %4948 = vmatprep.subr.mxu0 0.0
    %4949 = vmatpush2.msra.mxu0 0.0
    %4950 = vmatprep.subr.mxu0 0.0
    %4951 = vmatpush2.msra.mxu0 0.0
    %4952 = vmatprep.subr.mxu0 0.0
    %4953 = vmatpush2.msra.mxu0 0.0
    %4954 = vmatprep.subr.mxu0 0.0
    %4955 = vmatpush2.msra.mxu0 0.0
    %4956 = vmatprep.subr.mxu0 0.0
    %4957 = vmatpush2.msra.mxu0 0.0
    %4958 = vmatprep.subr.mxu0 0.0
    %4959 = vmatpush2.msra.mxu0 0.0
    %4960 = vmatprep.subr.mxu0 0.0
    %4961 = vmatpush2.msra.mxu0 0.0
    %4962 = vmatprep.mubr.f32.mxu0 0.0
    %4963 = vmatmul.mubr.f32.gmra.mxu0 %v4387
    %v4964 = vpop.f32.mrf.mxu0
    %v4965 = vadd.f32 %v4896, %v4964
    %v4966 = vpop.f32.mrf.mxu0
    %4967 = vdwg.mxu0
    %s4968 = scalar_lea.vmem %s2, 1088
    %v4969 = vld [vmem:[%s4968] sm:$0xff]
    %v4970 = vld [vmem:[%s4968 + $0x8] sm:$0xff]
    %v4971 = vld [vmem:[%s4968 + $0x10] sm:$0xff]
    %v4972 = vld [vmem:[%s4968 + $0x18] sm:$0xff]
    %v4973 = vld [vmem:[%s4968 + $0x20] sm:$0xff]
    %v4974 = vld [vmem:[%s4968 + $0x28] sm:$0xff]
    %v4975 = vld [vmem:[%s4968 + $0x30] sm:$0xff]
    %v4976 = vld [vmem:[%s4968 + $0x38] sm:$0xff]
    %v4977 = vlaneseq
    %v4978 = vshrl.u32 %v4977, 7
    %v4979 = vsub.s32 1, %v4978
    %v4980 = vrot.slane %v47, %v4979
    %4981 = vmatprep.subr.mxu0 0.0
    %4982 = vmatpush1.msra.mxu0 0.0
    %4983 = vmatprep.subr.mxu0 0.0
    %4984 = vmatpush1.msra.mxu0 0.0
    %4985 = vmatprep.subr.mxu0 0.0
    %4986 = vmatpush1.msra.mxu0 0.0
    %4987 = vmatprep.subr.mxu0 0.0
    %4988 = vmatpush1.msra.mxu0 0.0
    %4989 = vmatprep.subr.mxu0 0.0
    %4990 = vmatpush1.msra.mxu0 0.0
    %4991 = vmatprep.subr.mxu0 0.0
    %4992 = vmatpush1.msra.mxu0 0.0
    %4993 = vmatprep.subr.mxu0 0.0
    %4994 = vmatpush1.msra.mxu0 0.0
    %4995 = vmatprep.subr.mxu0 0.0
    %4996 = vmatpush1.msra.mxu0 0.0
    %4997 = vmatprep.subr.mxu0 0.0
    %4998 = vmatpush1.msra.mxu0 %v4976
    %4999 = vmatprep.subr.mxu0 0.0
    %5000 = vmatpush1.msra.mxu0 %v4975
    %5001 = vmatprep.subr.mxu0 0.0
    %5002 = vmatpush1.msra.mxu0 %v4974
    %5003 = vmatprep.subr.mxu0 0.0
    %5004 = vmatpush1.msra.mxu0 %v4973
    %5005 = vmatprep.subr.mxu0 0.0
    %5006 = vmatpush1.msra.mxu0 %v4972
    %5007 = vmatprep.subr.mxu0 0.0
    %5008 = vmatpush1.msra.mxu0 %v4971
    %5009 = vmatprep.subr.mxu0 0.0
    %5010 = vmatpush1.msra.mxu0 %v4970
    %5011 = vmatprep.subr.mxu0 0.0
    %5012 = vmatpush1.msra.mxu0 %v4969
    %5013 = vmatprep.subr.mxu0 0.0
    %5014 = vmatpush2.msra.mxu0 0.0
    %5015 = vmatprep.subr.mxu0 0.0
    %5016 = vmatpush2.msra.mxu0 0.0
    %5017 = vmatprep.subr.mxu0 0.0
    %5018 = vmatpush2.msra.mxu0 0.0
    %5019 = vmatprep.subr.mxu0 0.0
    %5020 = vmatpush2.msra.mxu0 0.0
    %5021 = vmatprep.subr.mxu0 0.0
    %5022 = vmatpush2.msra.mxu0 0.0
    %5023 = vmatprep.subr.mxu0 0.0
    %5024 = vmatpush2.msra.mxu0 0.0
    %5025 = vmatprep.subr.mxu0 0.0
    %5026 = vmatpush2.msra.mxu0 0.0
    %5027 = vmatprep.subr.mxu0 0.0
    %5028 = vmatpush2.msra.mxu0 0.0
    %5029 = vmatprep.subr.mxu0 0.0
    %5030 = vmatpush2.msra.mxu0 0.0
    %5031 = vmatprep.subr.mxu0 0.0
    %5032 = vmatpush2.msra.mxu0 0.0
    %5033 = vmatprep.subr.mxu0 0.0
    %5034 = vmatpush2.msra.mxu0 0.0
    %5035 = vmatprep.subr.mxu0 0.0
    %5036 = vmatpush2.msra.mxu0 0.0
    %5037 = vmatprep.subr.mxu0 0.0
    %5038 = vmatpush2.msra.mxu0 0.0
    %5039 = vmatprep.subr.mxu0 0.0
    %5040 = vmatpush2.msra.mxu0 0.0
    %5041 = vmatprep.subr.mxu0 0.0
    %5042 = vmatpush2.msra.mxu0 0.0
    %5043 = vmatprep.subr.mxu0 0.0
    %5044 = vmatpush2.msra.mxu0 0.0
    %5045 = vmatprep.mubr.f32.mxu0 0.0
    %5046 = vmatmul.mubr.f32.gmra.mxu0 %v4473
    %v5047 = vpop.f32.mrf.mxu0
    %v5048 = vadd.f32 %v4980, %v5047
    %v5049 = vpop.f32.mrf.mxu0
    %5050 = vmatprep.mubr.f32.mxu0 0.0
    %5051 = vmatmul.mubr.f32.gmra.mxu0 %v4476
    %v5052 = vpop.f32.mrf.mxu0
    %v5053 = vadd.f32 %v4980, %v5052
    %v5054 = vpop.f32.mrf.mxu0
    %5055 = vdwg.mxu0
    %s5056 = scalar_lea.vmem %s2, 1344
    %v5057 = vld [vmem:[%s5056] sm:$0xff]
    %v5058 = vld [vmem:[%s5056 + $0x8] sm:$0xff]
    %v5059 = vld [vmem:[%s5056 + $0x10] sm:$0xff]
    %v5060 = vld [vmem:[%s5056 + $0x18] sm:$0xff]
    %v5061 = vld [vmem:[%s5056 + $0x20] sm:$0xff]
    %v5062 = vld [vmem:[%s5056 + $0x28] sm:$0xff]
    %v5063 = vld [vmem:[%s5056 + $0x30] sm:$0xff]
    %v5064 = vld [vmem:[%s5056 + $0x38] sm:$0xff]
    %v5065 = vlaneseq
    %v5066 = vshrl.u32 %v5065, 7
    %v5067 = vsub.s32 5, %v5066
    %v5068 = vrot.slane %v47, %v5067
    %5069 = vmatprep.subr.mxu0 0.0
    %5070 = vmatpush1.msra.mxu0 0.0
    %5071 = vmatprep.subr.mxu0 0.0
    %5072 = vmatpush1.msra.mxu0 0.0
    %5073 = vmatprep.subr.mxu0 0.0
    %5074 = vmatpush1.msra.mxu0 0.0
    %5075 = vmatprep.subr.mxu0 0.0
    %5076 = vmatpush1.msra.mxu0 0.0
    %5077 = vmatprep.subr.mxu0 0.0
    %5078 = vmatpush1.msra.mxu0 0.0
    %5079 = vmatprep.subr.mxu0 0.0
    %5080 = vmatpush1.msra.mxu0 0.0
    %5081 = vmatprep.subr.mxu0 0.0
    %5082 = vmatpush1.msra.mxu0 0.0
    %5083 = vmatprep.subr.mxu0 0.0
    %5084 = vmatpush1.msra.mxu0 0.0
    %5085 = vmatprep.subr.mxu0 0.0
    %5086 = vmatpush1.msra.mxu0 %v5064
    %5087 = vmatprep.subr.mxu0 0.0
    %5088 = vmatpush1.msra.mxu0 %v5063
    %5089 = vmatprep.subr.mxu0 0.0
    %5090 = vmatpush1.msra.mxu0 %v5062
    %5091 = vmatprep.subr.mxu0 0.0
    %5092 = vmatpush1.msra.mxu0 %v5061
    %5093 = vmatprep.subr.mxu0 0.0
    %5094 = vmatpush1.msra.mxu0 %v5060
    %5095 = vmatprep.subr.mxu0 0.0
    %5096 = vmatpush1.msra.mxu0 %v5059
    %5097 = vmatprep.subr.mxu0 0.0
    %5098 = vmatpush1.msra.mxu0 %v5058
    %5099 = vmatprep.subr.mxu0 0.0
    %5100 = vmatpush1.msra.mxu0 %v5057
    %5101 = vmatprep.subr.mxu0 0.0
    %5102 = vmatpush2.msra.mxu0 0.0
    %5103 = vmatprep.subr.mxu0 0.0
    %5104 = vmatpush2.msra.mxu0 0.0
    %5105 = vmatprep.subr.mxu0 0.0
    %5106 = vmatpush2.msra.mxu0 0.0
    %5107 = vmatprep.subr.mxu0 0.0
    %5108 = vmatpush2.msra.mxu0 0.0
    %5109 = vmatprep.subr.mxu0 0.0
    %5110 = vmatpush2.msra.mxu0 0.0
    %5111 = vmatprep.subr.mxu0 0.0
    %5112 = vmatpush2.msra.mxu0 0.0
    %5113 = vmatprep.subr.mxu0 0.0
    %5114 = vmatpush2.msra.mxu0 0.0
    %5115 = vmatprep.subr.mxu0 0.0
    %5116 = vmatpush2.msra.mxu0 0.0
    %5117 = vmatprep.subr.mxu0 0.0
    %5118 = vmatpush2.msra.mxu0 0.0
    %5119 = vmatprep.subr.mxu0 0.0
    %5120 = vmatpush2.msra.mxu0 0.0
    %5121 = vmatprep.subr.mxu0 0.0
    %5122 = vmatpush2.msra.mxu0 0.0
    %5123 = vmatprep.subr.mxu0 0.0
    %5124 = vmatpush2.msra.mxu0 0.0
    %5125 = vmatprep.subr.mxu0 0.0
    %5126 = vmatpush2.msra.mxu0 0.0
    %5127 = vmatprep.subr.mxu0 0.0
    %5128 = vmatpush2.msra.mxu0 0.0
    %5129 = vmatprep.subr.mxu0 0.0
    %5130 = vmatpush2.msra.mxu0 0.0
    %5131 = vmatprep.subr.mxu0 0.0
    %5132 = vmatpush2.msra.mxu0 0.0
    %5133 = vmatprep.mubr.f32.mxu0 0.0
    %5134 = vmatmul.mubr.f32.gmra.mxu0 %v4473
    %v5135 = vpop.f32.mrf.mxu0
    %v5136 = vadd.f32 %v5068, %v5135
    %v5137 = vpop.f32.mrf.mxu0
    %5138 = vmatprep.mubr.f32.mxu0 0.0
    %5139 = vmatmul.mubr.f32.gmra.mxu0 %v4476
    %v5140 = vpop.f32.mrf.mxu0
    %v5141 = vadd.f32 %v5068, %v5140
    %v5142 = vpop.f32.mrf.mxu0
    %5143 = vdwg.mxu0
    %v5145 = vsel %vm330, %v4965, 0
    %v5148 = vsel %vm330, %v5048, 0
    %v5151 = vsel %vm330, %v5053, 0
    %5153 = vmatprep.subr.mxu0 0.0
    %5154 = vmatpush1.xpose.msra.mxu0 0.0
    %5155 = vmatprep.subr.mxu0 0.0
    %5156 = vmatpush1.xpose.msra.mxu0 0.0
    %5157 = vmatprep.subr.mxu0 0.0
    %5158 = vmatpush1.xpose.msra.mxu0 0.0
    %5159 = vmatprep.subr.mxu0 0.0
    %5160 = vmatpush1.xpose.msra.mxu0 0.0
    %5161 = vmatprep.subr.mxu0 0.0
    %5162 = vmatpush1.xpose.msra.mxu0 0.0
    %5163 = vmatprep.subr.mxu0 0.0
    %5164 = vmatpush1.xpose.msra.mxu0 0.0
    %5165 = vmatprep.subr.mxu0 0.0
    %5166 = vmatpush1.xpose.msra.mxu0 0.0
    %5167 = vmatprep.subr.mxu0 0.0
    %5168 = vmatpush1.xpose.msra.mxu0 0.0
    %5169 = vmatprep.subr.mxu0 0.0
    %5170 = vmatpush1.xpose.msra.mxu0 0.0
    %5171 = vmatprep.subr.mxu0 0.0
    %5172 = vmatpush1.xpose.msra.mxu0 0.0
    %5173 = vmatprep.subr.mxu0 0.0
    %5174 = vmatpush1.xpose.msra.mxu0 0.0
    %5175 = vmatprep.subr.mxu0 0.0
    %5176 = vmatpush1.xpose.msra.mxu0 0.0
    %5177 = vmatprep.subr.mxu0 0.0
    %5178 = vmatpush1.xpose.msra.mxu0 0.0
    %5179 = vmatprep.subr.mxu0 0.0
    %5180 = vmatpush1.xpose.msra.mxu0 0.0
    %5181 = vmatprep.subr.mxu0 0.0
    %5182 = vmatpush1.xpose.msra.mxu0 %v5151
    %5183 = vmatprep.subr.mxu0 0.0
    %5184 = vmatpush1.xpose.msra.mxu0 %v5148
    %5185 = vmatprep.subr.mxu0 0.0
    %5186 = vmatpush2.xpose.msra.mxu0 0.0
    %5187 = vmatprep.subr.mxu0 0.0
    %5188 = vmatpush2.xpose.msra.mxu0 0.0
    %5189 = vmatprep.subr.mxu0 0.0
    %5190 = vmatpush2.xpose.msra.mxu0 0.0
    %5191 = vmatprep.subr.mxu0 0.0
    %5192 = vmatpush2.xpose.msra.mxu0 0.0
    %5193 = vmatprep.subr.mxu0 0.0
    %5194 = vmatpush2.xpose.msra.mxu0 0.0
    %5195 = vmatprep.subr.mxu0 0.0
    %5196 = vmatpush2.xpose.msra.mxu0 0.0
    %5197 = vmatprep.subr.mxu0 0.0
    %5198 = vmatpush2.xpose.msra.mxu0 0.0
    %5199 = vmatprep.subr.mxu0 0.0
    %5200 = vmatpush2.xpose.msra.mxu0 0.0
    %5201 = vmatprep.subr.mxu0 0.0
    %5202 = vmatpush2.xpose.msra.mxu0 0.0
    %5203 = vmatprep.subr.mxu0 0.0
    %5204 = vmatpush2.xpose.msra.mxu0 0.0
    %5205 = vmatprep.subr.mxu0 0.0
    %5206 = vmatpush2.xpose.msra.mxu0 0.0
    %5207 = vmatprep.subr.mxu0 0.0
    %5208 = vmatpush2.xpose.msra.mxu0 0.0
    %5209 = vmatprep.subr.mxu0 0.0
    %5210 = vmatpush2.xpose.msra.mxu0 0.0
    %5211 = vmatprep.subr.mxu0 0.0
    %5212 = vmatpush2.xpose.msra.mxu0 0.0
    %5213 = vmatprep.subr.mxu0 0.0
    %5214 = vmatpush2.xpose.msra.mxu0 0.0
    %5215 = vmatprep.subr.mxu0 0.0
    %5216 = vmatpush2.xpose.msra.mxu0 0.0
    %5217 = vmatprep.mubr.f32.mxu0 0.0
    %5218 = vmatmul.mubr.f32.gmra.mxu0 %v5145
    %v5219 = vpop.f32.mrf.mxu0
    %v5220 = vadd.f32 0.0, %v5219
    %v5221 = vpop.f32.mrf.mxu0
    %5222 = vdwg.mxu0
    %v5223 = vmul.f32 %v5220, 0.25
    %v5224 = vsel %vm4721, %v5223, -inf
    %5225 = vmax.xlane.f32.xlu0 %v5224
    %v5226 = vpop.xlane.xlu0 %5225
    %v5227 = vsub.f32 %v5223, %v5226
    %v5228 = vmul.f32 %v5227, 1.442695
    %v5229 = vpow.pop %v5228
    %v5230 = vsel %vm4721, %v5229, 0.0
    %5231 = vadd.xlane.f32.xlu0 %v5230
    %v5232 = vpop.xlane.xlu0 %5231
    %v5233 = vrcp.pop %v5232
    %v5234 = vmul.f32 %v5229, %v5233
    %v5235 = vadd.f32 %v4733, %v5234
    %v5237 = vsel %vm330, %v5234, 0
    %5239 = vmatprep.subr.mxu0 0.0
    %5240 = vmatpush1.msra.mxu0 0.0
    %5241 = vmatprep.subr.mxu0 0.0
    %5242 = vmatpush1.msra.mxu0 0.0
    %5243 = vmatprep.subr.mxu0 0.0
    %5244 = vmatpush1.msra.mxu0 0.0
    %5245 = vmatprep.subr.mxu0 0.0
    %5246 = vmatpush1.msra.mxu0 0.0
    %5247 = vmatprep.subr.mxu0 0.0
    %5248 = vmatpush1.msra.mxu0 0.0
    %5249 = vmatprep.subr.mxu0 0.0
    %5250 = vmatpush1.msra.mxu0 0.0
    %5251 = vmatprep.subr.mxu0 0.0
    %5252 = vmatpush1.msra.mxu0 0.0
    %5253 = vmatprep.subr.mxu0 0.0
    %5254 = vmatpush1.msra.mxu0 0.0
    %5255 = vmatprep.subr.mxu0 0.0
    %5256 = vmatpush1.msra.mxu0 0.0
    %5257 = vmatprep.subr.mxu0 0.0
    %5258 = vmatpush1.msra.mxu0 0.0
    %5259 = vmatprep.subr.mxu0 0.0
    %5260 = vmatpush1.msra.mxu0 0.0
    %5261 = vmatprep.subr.mxu0 0.0
    %5262 = vmatpush1.msra.mxu0 0.0
    %5263 = vmatprep.subr.mxu0 0.0
    %5264 = vmatpush1.msra.mxu0 0.0
    %5265 = vmatprep.subr.mxu0 0.0
    %5266 = vmatpush1.msra.mxu0 0.0
    %5267 = vmatprep.subr.mxu0 0.0
    %5268 = vmatpush1.msra.mxu0 %v5141
    %5269 = vmatprep.subr.mxu0 0.0
    %5270 = vmatpush1.msra.mxu0 %v5136
    %5271 = vmatprep.subr.mxu0 0.0
    %5272 = vmatpush2.msra.mxu0 0.0
    %5273 = vmatprep.subr.mxu0 0.0
    %5274 = vmatpush2.msra.mxu0 0.0
    %5275 = vmatprep.subr.mxu0 0.0
    %5276 = vmatpush2.msra.mxu0 0.0
    %5277 = vmatprep.subr.mxu0 0.0
    %5278 = vmatpush2.msra.mxu0 0.0
    %5279 = vmatprep.subr.mxu0 0.0
    %5280 = vmatpush2.msra.mxu0 0.0
    %5281 = vmatprep.subr.mxu0 0.0
    %5282 = vmatpush2.msra.mxu0 0.0
    %5283 = vmatprep.subr.mxu0 0.0
    %5284 = vmatpush2.msra.mxu0 0.0
    %5285 = vmatprep.subr.mxu0 0.0
    %5286 = vmatpush2.msra.mxu0 0.0
    %5287 = vmatprep.subr.mxu0 0.0
    %5288 = vmatpush2.msra.mxu0 0.0
    %5289 = vmatprep.subr.mxu0 0.0
    %5290 = vmatpush2.msra.mxu0 0.0
    %5291 = vmatprep.subr.mxu0 0.0
    %5292 = vmatpush2.msra.mxu0 0.0
    %5293 = vmatprep.subr.mxu0 0.0
    %5294 = vmatpush2.msra.mxu0 0.0
    %5295 = vmatprep.subr.mxu0 0.0
    %5296 = vmatpush2.msra.mxu0 0.0
    %5297 = vmatprep.subr.mxu0 0.0
    %5298 = vmatpush2.msra.mxu0 0.0
    %5299 = vmatprep.subr.mxu0 0.0
    %5300 = vmatpush2.msra.mxu0 0.0
    %5301 = vmatprep.subr.mxu0 0.0
    %5302 = vmatpush2.msra.mxu0 0.0
    %5303 = vmatprep.mubr.f32.mxu0 0.0
    %5304 = vmatmul.mubr.f32.gmra.mxu0 %v5237
    %v5305 = vpop.f32.mrf.mxu0
    %v5306 = vadd.f32 0.0, %v5305
    %v5307 = vpop.f32.mrf.mxu0
    %5308 = vdwg.mxu0
    %s5309 = scalar_lea.vmem %s3, 80
    %v5310 = vld [vmem:[%s5309] sm:$0xff]
    %v5311 = vld [vmem:[%s5309 + $0x8] sm:$0xff]
    %v5313 = vsel %vm330, %v5306, 0
    %5315 = vmatprep.subr.mxu0 0.0
    %5316 = vmatpush1.msra.mxu0 0.0
    %5317 = vmatprep.subr.mxu0 0.0
    %5318 = vmatpush1.msra.mxu0 0.0
    %5319 = vmatprep.subr.mxu0 0.0
    %5320 = vmatpush1.msra.mxu0 0.0
    %5321 = vmatprep.subr.mxu0 0.0
    %5322 = vmatpush1.msra.mxu0 0.0
    %5323 = vmatprep.subr.mxu0 0.0
    %5324 = vmatpush1.msra.mxu0 0.0
    %5325 = vmatprep.subr.mxu0 0.0
    %5326 = vmatpush1.msra.mxu0 0.0
    %5327 = vmatprep.subr.mxu0 0.0
    %5328 = vmatpush1.msra.mxu0 0.0
    %5329 = vmatprep.subr.mxu0 0.0
    %5330 = vmatpush1.msra.mxu0 0.0
    %5331 = vmatprep.subr.mxu0 0.0
    %5332 = vmatpush1.msra.mxu0 0.0
    %5333 = vmatprep.subr.mxu0 0.0
    %5334 = vmatpush1.msra.mxu0 0.0
    %5335 = vmatprep.subr.mxu0 0.0
    %5336 = vmatpush1.msra.mxu0 0.0
    %5337 = vmatprep.subr.mxu0 0.0
    %5338 = vmatpush1.msra.mxu0 0.0
    %5339 = vmatprep.subr.mxu0 0.0
    %5340 = vmatpush1.msra.mxu0 0.0
    %5341 = vmatprep.subr.mxu0 0.0
    %5342 = vmatpush1.msra.mxu0 0.0
    %5343 = vmatprep.subr.mxu0 0.0
    %5344 = vmatpush1.msra.mxu0 %v5311
    %5345 = vmatprep.subr.mxu0 0.0
    %5346 = vmatpush1.msra.mxu0 %v5310
    %5347 = vmatprep.subr.mxu0 0.0
    %5348 = vmatpush2.msra.mxu0 0.0
    %5349 = vmatprep.subr.mxu0 0.0
    %5350 = vmatpush2.msra.mxu0 0.0
    %5351 = vmatprep.subr.mxu0 0.0
    %5352 = vmatpush2.msra.mxu0 0.0
    %5353 = vmatprep.subr.mxu0 0.0
    %5354 = vmatpush2.msra.mxu0 0.0
    %5355 = vmatprep.subr.mxu0 0.0
    %5356 = vmatpush2.msra.mxu0 0.0
    %5357 = vmatprep.subr.mxu0 0.0
    %5358 = vmatpush2.msra.mxu0 0.0
    %5359 = vmatprep.subr.mxu0 0.0
    %5360 = vmatpush2.msra.mxu0 0.0
    %5361 = vmatprep.subr.mxu0 0.0
    %5362 = vmatpush2.msra.mxu0 0.0
    %5363 = vmatprep.subr.mxu0 0.0
    %5364 = vmatpush2.msra.mxu0 0.0
    %5365 = vmatprep.subr.mxu0 0.0
    %5366 = vmatpush2.msra.mxu0 0.0
    %5367 = vmatprep.subr.mxu0 0.0
    %5368 = vmatpush2.msra.mxu0 0.0
    %5369 = vmatprep.subr.mxu0 0.0
    %5370 = vmatpush2.msra.mxu0 0.0
    %5371 = vmatprep.subr.mxu0 0.0
    %5372 = vmatpush2.msra.mxu0 0.0
    %5373 = vmatprep.subr.mxu0 0.0
    %5374 = vmatpush2.msra.mxu0 0.0
    %5375 = vmatprep.subr.mxu0 0.0
    %5376 = vmatpush2.msra.mxu0 0.0
    %5377 = vmatprep.subr.mxu0 0.0
    %5378 = vmatpush2.msra.mxu0 0.0
    %5379 = vmatprep.mubr.f32.mxu0 0.0
    %5380 = vmatmul.mubr.f32.gmra.mxu0 %v5313
    %v5381 = vpop.f32.mrf.mxu0
    %v5382 = vadd.f32 0.0, %v5381
    %v5383 = vpop.f32.mrf.mxu0
    %5384 = vdwg.mxu0
    %v5386 = vrot.slane %v5382, 5
    %v5388 = vadd.f32 %v4886, %v5386
    %s5389 = scalar_lea.vmem %s2, 896
    %v5390 = vld [vmem:[%s5389] sm:$0xff]
    %v5391 = vld [vmem:[%s5389 + $0x8] sm:$0xff]
    %v5392 = vld [vmem:[%s5389 + $0x10] sm:$0xff]
    %v5393 = vld [vmem:[%s5389 + $0x18] sm:$0xff]
    %v5394 = vld [vmem:[%s5389 + $0x20] sm:$0xff]
    %v5395 = vld [vmem:[%s5389 + $0x28] sm:$0xff]
    %v5396 = vld [vmem:[%s5389 + $0x30] sm:$0xff]
    %v5397 = vld [vmem:[%s5389 + $0x38] sm:$0xff]
    %v5398 = vrot.slane %v46, 6
    %5400 = vmatprep.subr.mxu0 0.0
    %5401 = vmatpush1.msra.mxu0 0.0
    %5402 = vmatprep.subr.mxu0 0.0
    %5403 = vmatpush1.msra.mxu0 0.0
    %5404 = vmatprep.subr.mxu0 0.0
    %5405 = vmatpush1.msra.mxu0 0.0
    %5406 = vmatprep.subr.mxu0 0.0
    %5407 = vmatpush1.msra.mxu0 0.0
    %5408 = vmatprep.subr.mxu0 0.0
    %5409 = vmatpush1.msra.mxu0 0.0
    %5410 = vmatprep.subr.mxu0 0.0
    %5411 = vmatpush1.msra.mxu0 0.0
    %5412 = vmatprep.subr.mxu0 0.0
    %5413 = vmatpush1.msra.mxu0 0.0
    %5414 = vmatprep.subr.mxu0 0.0
    %5415 = vmatpush1.msra.mxu0 0.0
    %5416 = vmatprep.subr.mxu0 0.0
    %5417 = vmatpush1.msra.mxu0 %v5397
    %5418 = vmatprep.subr.mxu0 0.0
    %5419 = vmatpush1.msra.mxu0 %v5396
    %5420 = vmatprep.subr.mxu0 0.0
    %5421 = vmatpush1.msra.mxu0 %v5395
    %5422 = vmatprep.subr.mxu0 0.0
    %5423 = vmatpush1.msra.mxu0 %v5394
    %5424 = vmatprep.subr.mxu0 0.0
    %5425 = vmatpush1.msra.mxu0 %v5393
    %5426 = vmatprep.subr.mxu0 0.0
    %5427 = vmatpush1.msra.mxu0 %v5392
    %5428 = vmatprep.subr.mxu0 0.0
    %5429 = vmatpush1.msra.mxu0 %v5391
    %5430 = vmatprep.subr.mxu0 0.0
    %5431 = vmatpush1.msra.mxu0 %v5390
    %5432 = vmatprep.subr.mxu0 0.0
    %5433 = vmatpush2.msra.mxu0 0.0
    %5434 = vmatprep.subr.mxu0 0.0
    %5435 = vmatpush2.msra.mxu0 0.0
    %5436 = vmatprep.subr.mxu0 0.0
    %5437 = vmatpush2.msra.mxu0 0.0
    %5438 = vmatprep.subr.mxu0 0.0
    %5439 = vmatpush2.msra.mxu0 0.0
    %5440 = vmatprep.subr.mxu0 0.0
    %5441 = vmatpush2.msra.mxu0 0.0
    %5442 = vmatprep.subr.mxu0 0.0
    %5443 = vmatpush2.msra.mxu0 0.0
    %5444 = vmatprep.subr.mxu0 0.0
    %5445 = vmatpush2.msra.mxu0 0.0
    %5446 = vmatprep.subr.mxu0 0.0
    %5447 = vmatpush2.msra.mxu0 0.0
    %5448 = vmatprep.subr.mxu0 0.0
    %5449 = vmatpush2.msra.mxu0 0.0
    %5450 = vmatprep.subr.mxu0 0.0
    %5451 = vmatpush2.msra.mxu0 0.0
    %5452 = vmatprep.subr.mxu0 0.0
    %5453 = vmatpush2.msra.mxu0 0.0
    %5454 = vmatprep.subr.mxu0 0.0
    %5455 = vmatpush2.msra.mxu0 0.0
    %5456 = vmatprep.subr.mxu0 0.0
    %5457 = vmatpush2.msra.mxu0 0.0
    %5458 = vmatprep.subr.mxu0 0.0
    %5459 = vmatpush2.msra.mxu0 0.0
    %5460 = vmatprep.subr.mxu0 0.0
    %5461 = vmatpush2.msra.mxu0 0.0
    %5462 = vmatprep.subr.mxu0 0.0
    %5463 = vmatpush2.msra.mxu0 0.0
    %5464 = vmatprep.mubr.f32.mxu0 0.0
    %5465 = vmatmul.mubr.f32.gmra.mxu0 %v4387
    %v5466 = vpop.f32.mrf.mxu0
    %v5467 = vadd.f32 %v5398, %v5466
    %v5468 = vpop.f32.mrf.mxu0
    %5469 = vdwg.mxu0
    %s5470 = scalar_lea.vmem %s2, 1152
    %v5471 = vld [vmem:[%s5470] sm:$0xff]
    %v5472 = vld [vmem:[%s5470 + $0x8] sm:$0xff]
    %v5473 = vld [vmem:[%s5470 + $0x10] sm:$0xff]
    %v5474 = vld [vmem:[%s5470 + $0x18] sm:$0xff]
    %v5475 = vld [vmem:[%s5470 + $0x20] sm:$0xff]
    %v5476 = vld [vmem:[%s5470 + $0x28] sm:$0xff]
    %v5477 = vld [vmem:[%s5470 + $0x30] sm:$0xff]
    %v5478 = vld [vmem:[%s5470 + $0x38] sm:$0xff]
    %v5479 = vlaneseq
    %v5480 = vshrl.u32 %v5479, 7
    %v5481 = vsub.s32 2, %v5480
    %v5482 = vrot.slane %v47, %v5481
    %5483 = vmatprep.subr.mxu0 0.0
    %5484 = vmatpush1.msra.mxu0 0.0
    %5485 = vmatprep.subr.mxu0 0.0
    %5486 = vmatpush1.msra.mxu0 0.0
    %5487 = vmatprep.subr.mxu0 0.0
    %5488 = vmatpush1.msra.mxu0 0.0
    %5489 = vmatprep.subr.mxu0 0.0
    %5490 = vmatpush1.msra.mxu0 0.0
    %5491 = vmatprep.subr.mxu0 0.0
    %5492 = vmatpush1.msra.mxu0 0.0
    %5493 = vmatprep.subr.mxu0 0.0
    %5494 = vmatpush1.msra.mxu0 0.0
    %5495 = vmatprep.subr.mxu0 0.0
    %5496 = vmatpush1.msra.mxu0 0.0
    %5497 = vmatprep.subr.mxu0 0.0
    %5498 = vmatpush1.msra.mxu0 0.0
    %5499 = vmatprep.subr.mxu0 0.0
    %5500 = vmatpush1.msra.mxu0 %v5478
    %5501 = vmatprep.subr.mxu0 0.0
    %5502 = vmatpush1.msra.mxu0 %v5477
    %5503 = vmatprep.subr.mxu0 0.0
    %5504 = vmatpush1.msra.mxu0 %v5476
    %5505 = vmatprep.subr.mxu0 0.0
    %5506 = vmatpush1.msra.mxu0 %v5475
    %5507 = vmatprep.subr.mxu0 0.0
    %5508 = vmatpush1.msra.mxu0 %v5474
    %5509 = vmatprep.subr.mxu0 0.0
    %5510 = vmatpush1.msra.mxu0 %v5473
    %5511 = vmatprep.subr.mxu0 0.0
    %5512 = vmatpush1.msra.mxu0 %v5472
    %5513 = vmatprep.subr.mxu0 0.0
    %5514 = vmatpush1.msra.mxu0 %v5471
    %5515 = vmatprep.subr.mxu0 0.0
    %5516 = vmatpush2.msra.mxu0 0.0
    %5517 = vmatprep.subr.mxu0 0.0
    %5518 = vmatpush2.msra.mxu0 0.0
    %5519 = vmatprep.subr.mxu0 0.0
    %5520 = vmatpush2.msra.mxu0 0.0
    %5521 = vmatprep.subr.mxu0 0.0
    %5522 = vmatpush2.msra.mxu0 0.0
    %5523 = vmatprep.subr.mxu0 0.0
    %5524 = vmatpush2.msra.mxu0 0.0
    %5525 = vmatprep.subr.mxu0 0.0
    %5526 = vmatpush2.msra.mxu0 0.0
    %5527 = vmatprep.subr.mxu0 0.0
    %5528 = vmatpush2.msra.mxu0 0.0
    %5529 = vmatprep.subr.mxu0 0.0
    %5530 = vmatpush2.msra.mxu0 0.0
    %5531 = vmatprep.subr.mxu0 0.0
    %5532 = vmatpush2.msra.mxu0 0.0
    %5533 = vmatprep.subr.mxu0 0.0
    %5534 = vmatpush2.msra.mxu0 0.0
    %5535 = vmatprep.subr.mxu0 0.0
    %5536 = vmatpush2.msra.mxu0 0.0
    %5537 = vmatprep.subr.mxu0 0.0
    %5538 = vmatpush2.msra.mxu0 0.0
    %5539 = vmatprep.subr.mxu0 0.0
    %5540 = vmatpush2.msra.mxu0 0.0
    %5541 = vmatprep.subr.mxu0 0.0
    %5542 = vmatpush2.msra.mxu0 0.0
    %5543 = vmatprep.subr.mxu0 0.0
    %5544 = vmatpush2.msra.mxu0 0.0
    %5545 = vmatprep.subr.mxu0 0.0
    %5546 = vmatpush2.msra.mxu0 0.0
    %5547 = vmatprep.mubr.f32.mxu0 0.0
    %5548 = vmatmul.mubr.f32.gmra.mxu0 %v4473
    %v5549 = vpop.f32.mrf.mxu0
    %v5550 = vadd.f32 %v5482, %v5549
    %v5551 = vpop.f32.mrf.mxu0
    %5552 = vmatprep.mubr.f32.mxu0 0.0
    %5553 = vmatmul.mubr.f32.gmra.mxu0 %v4476
    %v5554 = vpop.f32.mrf.mxu0
    %v5555 = vadd.f32 %v5482, %v5554
    %v5556 = vpop.f32.mrf.mxu0
    %5557 = vdwg.mxu0
    %s5558 = scalar_lea.vmem %s2, 1408
    %v5559 = vld [vmem:[%s5558] sm:$0xff]
    %v5560 = vld [vmem:[%s5558 + $0x8] sm:$0xff]
    %v5561 = vld [vmem:[%s5558 + $0x10] sm:$0xff]
    %v5562 = vld [vmem:[%s5558 + $0x18] sm:$0xff]
    %v5563 = vld [vmem:[%s5558 + $0x20] sm:$0xff]
    %v5564 = vld [vmem:[%s5558 + $0x28] sm:$0xff]
    %v5565 = vld [vmem:[%s5558 + $0x30] sm:$0xff]
    %v5566 = vld [vmem:[%s5558 + $0x38] sm:$0xff]
    %v5567 = vlaneseq
    %v5568 = vshrl.u32 %v5567, 7
    %v5569 = vsub.s32 6, %v5568
    %v5570 = vrot.slane %v47, %v5569
    %5571 = vmatprep.subr.mxu0 0.0
    %5572 = vmatpush1.msra.mxu0 0.0
    %5573 = vmatprep.subr.mxu0 0.0
    %5574 = vmatpush1.msra.mxu0 0.0
    %5575 = vmatprep.subr.mxu0 0.0
    %5576 = vmatpush1.msra.mxu0 0.0
    %5577 = vmatprep.subr.mxu0 0.0
    %5578 = vmatpush1.msra.mxu0 0.0
    %5579 = vmatprep.subr.mxu0 0.0
    %5580 = vmatpush1.msra.mxu0 0.0
    %5581 = vmatprep.subr.mxu0 0.0
    %5582 = vmatpush1.msra.mxu0 0.0
    %5583 = vmatprep.subr.mxu0 0.0
    %5584 = vmatpush1.msra.mxu0 0.0
    %5585 = vmatprep.subr.mxu0 0.0
    %5586 = vmatpush1.msra.mxu0 0.0
    %5587 = vmatprep.subr.mxu0 0.0
    %5588 = vmatpush1.msra.mxu0 %v5566
    %5589 = vmatprep.subr.mxu0 0.0
    %5590 = vmatpush1.msra.mxu0 %v5565
    %5591 = vmatprep.subr.mxu0 0.0
    %5592 = vmatpush1.msra.mxu0 %v5564
    %5593 = vmatprep.subr.mxu0 0.0
    %5594 = vmatpush1.msra.mxu0 %v5563
    %5595 = vmatprep.subr.mxu0 0.0
    %5596 = vmatpush1.msra.mxu0 %v5562
    %5597 = vmatprep.subr.mxu0 0.0
    %5598 = vmatpush1.msra.mxu0 %v5561
    %5599 = vmatprep.subr.mxu0 0.0
    %5600 = vmatpush1.msra.mxu0 %v5560
    %5601 = vmatprep.subr.mxu0 0.0
    %5602 = vmatpush1.msra.mxu0 %v5559
    %5603 = vmatprep.subr.mxu0 0.0
    %5604 = vmatpush2.msra.mxu0 0.0
    %5605 = vmatprep.subr.mxu0 0.0
    %5606 = vmatpush2.msra.mxu0 0.0
    %5607 = vmatprep.subr.mxu0 0.0
    %5608 = vmatpush2.msra.mxu0 0.0
    %5609 = vmatprep.subr.mxu0 0.0
    %5610 = vmatpush2.msra.mxu0 0.0
    %5611 = vmatprep.subr.mxu0 0.0
    %5612 = vmatpush2.msra.mxu0 0.0
    %5613 = vmatprep.subr.mxu0 0.0
    %5614 = vmatpush2.msra.mxu0 0.0
    %5615 = vmatprep.subr.mxu0 0.0
    %5616 = vmatpush2.msra.mxu0 0.0
    %5617 = vmatprep.subr.mxu0 0.0
    %5618 = vmatpush2.msra.mxu0 0.0
    %5619 = vmatprep.subr.mxu0 0.0
    %5620 = vmatpush2.msra.mxu0 0.0
    %5621 = vmatprep.subr.mxu0 0.0
    %5622 = vmatpush2.msra.mxu0 0.0
    %5623 = vmatprep.subr.mxu0 0.0
    %5624 = vmatpush2.msra.mxu0 0.0
    %5625 = vmatprep.subr.mxu0 0.0
    %5626 = vmatpush2.msra.mxu0 0.0
    %5627 = vmatprep.subr.mxu0 0.0
    %5628 = vmatpush2.msra.mxu0 0.0
    %5629 = vmatprep.subr.mxu0 0.0
    %5630 = vmatpush2.msra.mxu0 0.0
    %5631 = vmatprep.subr.mxu0 0.0
    %5632 = vmatpush2.msra.mxu0 0.0
    %5633 = vmatprep.subr.mxu0 0.0
    %5634 = vmatpush2.msra.mxu0 0.0
    %5635 = vmatprep.mubr.f32.mxu0 0.0
    %5636 = vmatmul.mubr.f32.gmra.mxu0 %v4473
    %v5637 = vpop.f32.mrf.mxu0
    %v5638 = vadd.f32 %v5570, %v5637
    %v5639 = vpop.f32.mrf.mxu0
    %5640 = vmatprep.mubr.f32.mxu0 0.0
    %5641 = vmatmul.mubr.f32.gmra.mxu0 %v4476
    %v5642 = vpop.f32.mrf.mxu0
    %v5643 = vadd.f32 %v5570, %v5642
    %v5644 = vpop.f32.mrf.mxu0
    %5645 = vdwg.mxu0
    %v5647 = vsel %vm330, %v5467, 0
    %v5650 = vsel %vm330, %v5550, 0
    %v5653 = vsel %vm330, %v5555, 0
    %5655 = vmatprep.subr.mxu0 0.0
    %5656 = vmatpush1.xpose.msra.mxu0 0.0
    %5657 = vmatprep.subr.mxu0 0.0
    %5658 = vmatpush1.xpose.msra.mxu0 0.0
    %5659 = vmatprep.subr.mxu0 0.0
    %5660 = vmatpush1.xpose.msra.mxu0 0.0
    %5661 = vmatprep.subr.mxu0 0.0
    %5662 = vmatpush1.xpose.msra.mxu0 0.0
    %5663 = vmatprep.subr.mxu0 0.0
    %5664 = vmatpush1.xpose.msra.mxu0 0.0
    %5665 = vmatprep.subr.mxu0 0.0
    %5666 = vmatpush1.xpose.msra.mxu0 0.0
    %5667 = vmatprep.subr.mxu0 0.0
    %5668 = vmatpush1.xpose.msra.mxu0 0.0
    %5669 = vmatprep.subr.mxu0 0.0
    %5670 = vmatpush1.xpose.msra.mxu0 0.0
    %5671 = vmatprep.subr.mxu0 0.0
    %5672 = vmatpush1.xpose.msra.mxu0 0.0
    %5673 = vmatprep.subr.mxu0 0.0
    %5674 = vmatpush1.xpose.msra.mxu0 0.0
    %5675 = vmatprep.subr.mxu0 0.0
    %5676 = vmatpush1.xpose.msra.mxu0 0.0
    %5677 = vmatprep.subr.mxu0 0.0
    %5678 = vmatpush1.xpose.msra.mxu0 0.0
    %5679 = vmatprep.subr.mxu0 0.0
    %5680 = vmatpush1.xpose.msra.mxu0 0.0
    %5681 = vmatprep.subr.mxu0 0.0
    %5682 = vmatpush1.xpose.msra.mxu0 0.0
    %5683 = vmatprep.subr.mxu0 0.0
    %5684 = vmatpush1.xpose.msra.mxu0 %v5653
    %5685 = vmatprep.subr.mxu0 0.0
    %5686 = vmatpush1.xpose.msra.mxu0 %v5650
    %5687 = vmatprep.subr.mxu0 0.0
    %5688 = vmatpush2.xpose.msra.mxu0 0.0
    %5689 = vmatprep.subr.mxu0 0.0
    %5690 = vmatpush2.xpose.msra.mxu0 0.0
    %5691 = vmatprep.subr.mxu0 0.0
    %5692 = vmatpush2.xpose.msra.mxu0 0.0
    %5693 = vmatprep.subr.mxu0 0.0
    %5694 = vmatpush2.xpose.msra.mxu0 0.0
    %5695 = vmatprep.subr.mxu0 0.0
    %5696 = vmatpush2.xpose.msra.mxu0 0.0
    %5697 = vmatprep.subr.mxu0 0.0
    %5698 = vmatpush2.xpose.msra.mxu0 0.0
    %5699 = vmatprep.subr.mxu0 0.0
    %5700 = vmatpush2.xpose.msra.mxu0 0.0
    %5701 = vmatprep.subr.mxu0 0.0
    %5702 = vmatpush2.xpose.msra.mxu0 0.0
    %5703 = vmatprep.subr.mxu0 0.0
    %5704 = vmatpush2.xpose.msra.mxu0 0.0
    %5705 = vmatprep.subr.mxu0 0.0
    %5706 = vmatpush2.xpose.msra.mxu0 0.0
    %5707 = vmatprep.subr.mxu0 0.0
    %5708 = vmatpush2.xpose.msra.mxu0 0.0
    %5709 = vmatprep.subr.mxu0 0.0
    %5710 = vmatpush2.xpose.msra.mxu0 0.0
    %5711 = vmatprep.subr.mxu0 0.0
    %5712 = vmatpush2.xpose.msra.mxu0 0.0
    %5713 = vmatprep.subr.mxu0 0.0
    %5714 = vmatpush2.xpose.msra.mxu0 0.0
    %5715 = vmatprep.subr.mxu0 0.0
    %5716 = vmatpush2.xpose.msra.mxu0 0.0
    %5717 = vmatprep.subr.mxu0 0.0
    %5718 = vmatpush2.xpose.msra.mxu0 0.0
    %5719 = vmatprep.mubr.f32.mxu0 0.0
    %5720 = vmatmul.mubr.f32.gmra.mxu0 %v5647
    %v5721 = vpop.f32.mrf.mxu0
    %v5722 = vadd.f32 0.0, %v5721
    %v5723 = vpop.f32.mrf.mxu0
    %5724 = vdwg.mxu0
    %v5725 = vmul.f32 %v5722, 0.25
    %v5726 = vsel %vm4721, %v5725, -inf
    %5727 = vmax.xlane.f32.xlu0 %v5726
    %v5728 = vpop.xlane.xlu0 %5727
    %v5729 = vsub.f32 %v5725, %v5728
    %v5730 = vmul.f32 %v5729, 1.442695
    %v5731 = vpow.pop %v5730
    %v5732 = vsel %vm4721, %v5731, 0.0
    %5733 = vadd.xlane.f32.xlu0 %v5732
    %v5734 = vpop.xlane.xlu0 %5733
    %v5735 = vrcp.pop %v5734
    %v5736 = vmul.f32 %v5731, %v5735
    %v5737 = vadd.f32 %v5235, %v5736
    %v5739 = vsel %vm330, %v5736, 0
    %5741 = vmatprep.subr.mxu0 0.0
    %5742 = vmatpush1.msra.mxu0 0.0
    %5743 = vmatprep.subr.mxu0 0.0
    %5744 = vmatpush1.msra.mxu0 0.0
    %5745 = vmatprep.subr.mxu0 0.0
    %5746 = vmatpush1.msra.mxu0 0.0
    %5747 = vmatprep.subr.mxu0 0.0
    %5748 = vmatpush1.msra.mxu0 0.0
    %5749 = vmatprep.subr.mxu0 0.0
    %5750 = vmatpush1.msra.mxu0 0.0
    %5751 = vmatprep.subr.mxu0 0.0
    %5752 = vmatpush1.msra.mxu0 0.0
    %5753 = vmatprep.subr.mxu0 0.0
    %5754 = vmatpush1.msra.mxu0 0.0
    %5755 = vmatprep.subr.mxu0 0.0
    %5756 = vmatpush1.msra.mxu0 0.0
    %5757 = vmatprep.subr.mxu0 0.0
    %5758 = vmatpush1.msra.mxu0 0.0
    %5759 = vmatprep.subr.mxu0 0.0
    %5760 = vmatpush1.msra.mxu0 0.0
    %5761 = vmatprep.subr.mxu0 0.0
    %5762 = vmatpush1.msra.mxu0 0.0
    %5763 = vmatprep.subr.mxu0 0.0
    %5764 = vmatpush1.msra.mxu0 0.0
    %5765 = vmatprep.subr.mxu0 0.0
    %5766 = vmatpush1.msra.mxu0 0.0
    %5767 = vmatprep.subr.mxu0 0.0
    %5768 = vmatpush1.msra.mxu0 0.0
    %5769 = vmatprep.subr.mxu0 0.0
    %5770 = vmatpush1.msra.mxu0 %v5643
    %5771 = vmatprep.subr.mxu0 0.0
    %5772 = vmatpush1.msra.mxu0 %v5638
    %5773 = vmatprep.subr.mxu0 0.0
    %5774 = vmatpush2.msra.mxu0 0.0
    %5775 = vmatprep.subr.mxu0 0.0
    %5776 = vmatpush2.msra.mxu0 0.0
    %5777 = vmatprep.subr.mxu0 0.0
    %5778 = vmatpush2.msra.mxu0 0.0
    %5779 = vmatprep.subr.mxu0 0.0
    %5780 = vmatpush2.msra.mxu0 0.0
    %5781 = vmatprep.subr.mxu0 0.0
    %5782 = vmatpush2.msra.mxu0 0.0
    %5783 = vmatprep.subr.mxu0 0.0
    %5784 = vmatpush2.msra.mxu0 0.0
    %5785 = vmatprep.subr.mxu0 0.0
    %5786 = vmatpush2.msra.mxu0 0.0
    %5787 = vmatprep.subr.mxu0 0.0
    %5788 = vmatpush2.msra.mxu0 0.0
    %5789 = vmatprep.subr.mxu0 0.0
    %5790 = vmatpush2.msra.mxu0 0.0
    %5791 = vmatprep.subr.mxu0 0.0
    %5792 = vmatpush2.msra.mxu0 0.0
    %5793 = vmatprep.subr.mxu0 0.0
    %5794 = vmatpush2.msra.mxu0 0.0
    %5795 = vmatprep.subr.mxu0 0.0
    %5796 = vmatpush2.msra.mxu0 0.0
    %5797 = vmatprep.subr.mxu0 0.0
    %5798 = vmatpush2.msra.mxu0 0.0
    %5799 = vmatprep.subr.mxu0 0.0
    %5800 = vmatpush2.msra.mxu0 0.0
    %5801 = vmatprep.subr.mxu0 0.0
    %5802 = vmatpush2.msra.mxu0 0.0
    %5803 = vmatprep.subr.mxu0 0.0
    %5804 = vmatpush2.msra.mxu0 0.0
    %5805 = vmatprep.mubr.f32.mxu0 0.0
    %5806 = vmatmul.mubr.f32.gmra.mxu0 %v5739
    %v5807 = vpop.f32.mrf.mxu0
    %v5808 = vadd.f32 0.0, %v5807
    %v5809 = vpop.f32.mrf.mxu0
    %5810 = vdwg.mxu0
    %s5811 = scalar_lea.vmem %s3, 96
    %v5812 = vld [vmem:[%s5811] sm:$0xff]
    %v5813 = vld [vmem:[%s5811 + $0x8] sm:$0xff]
    %v5815 = vsel %vm330, %v5808, 0
    %5817 = vmatprep.subr.mxu0 0.0
    %5818 = vmatpush1.msra.mxu0 0.0
    %5819 = vmatprep.subr.mxu0 0.0
    %5820 = vmatpush1.msra.mxu0 0.0
    %5821 = vmatprep.subr.mxu0 0.0
    %5822 = vmatpush1.msra.mxu0 0.0
    %5823 = vmatprep.subr.mxu0 0.0
    %5824 = vmatpush1.msra.mxu0 0.0
    %5825 = vmatprep.subr.mxu0 0.0
    %5826 = vmatpush1.msra.mxu0 0.0
    %5827 = vmatprep.subr.mxu0 0.0
    %5828 = vmatpush1.msra.mxu0 0.0
    %5829 = vmatprep.subr.mxu0 0.0
    %5830 = vmatpush1.msra.mxu0 0.0
    %5831 = vmatprep.subr.mxu0 0.0
    %5832 = vmatpush1.msra.mxu0 0.0
    %5833 = vmatprep.subr.mxu0 0.0
    %5834 = vmatpush1.msra.mxu0 0.0
    %5835 = vmatprep.subr.mxu0 0.0
    %5836 = vmatpush1.msra.mxu0 0.0
    %5837 = vmatprep.subr.mxu0 0.0
    %5838 = vmatpush1.msra.mxu0 0.0
    %5839 = vmatprep.subr.mxu0 0.0
    %5840 = vmatpush1.msra.mxu0 0.0
    %5841 = vmatprep.subr.mxu0 0.0
    %5842 = vmatpush1.msra.mxu0 0.0
    %5843 = vmatprep.subr.mxu0 0.0
    %5844 = vmatpush1.msra.mxu0 0.0
    %5845 = vmatprep.subr.mxu0 0.0
    %5846 = vmatpush1.msra.mxu0 %v5813
    %5847 = vmatprep.subr.mxu0 0.0
    %5848 = vmatpush1.msra.mxu0 %v5812
    %5849 = vmatprep.subr.mxu0 0.0
    %5850 = vmatpush2.msra.mxu0 0.0
    %5851 = vmatprep.subr.mxu0 0.0
    %5852 = vmatpush2.msra.mxu0 0.0
    %5853 = vmatprep.subr.mxu0 0.0
    %5854 = vmatpush2.msra.mxu0 0.0
    %5855 = vmatprep.subr.mxu0 0.0
    %5856 = vmatpush2.msra.mxu0 0.0
    %5857 = vmatprep.subr.mxu0 0.0
    %5858 = vmatpush2.msra.mxu0 0.0
    %5859 = vmatprep.subr.mxu0 0.0
    %5860 = vmatpush2.msra.mxu0 0.0
    %5861 = vmatprep.subr.mxu0 0.0
    %5862 = vmatpush2.msra.mxu0 0.0
    %5863 = vmatprep.subr.mxu0 0.0
    %5864 = vmatpush2.msra.mxu0 0.0
    %5865 = vmatprep.subr.mxu0 0.0
    %5866 = vmatpush2.msra.mxu0 0.0
    %5867 = vmatprep.subr.mxu0 0.0
    %5868 = vmatpush2.msra.mxu0 0.0
    %5869 = vmatprep.subr.mxu0 0.0
    %5870 = vmatpush2.msra.mxu0 0.0
    %5871 = vmatprep.subr.mxu0 0.0
    %5872 = vmatpush2.msra.mxu0 0.0
    %5873 = vmatprep.subr.mxu0 0.0
    %5874 = vmatpush2.msra.mxu0 0.0
    %5875 = vmatprep.subr.mxu0 0.0
    %5876 = vmatpush2.msra.mxu0 0.0
    %5877 = vmatprep.subr.mxu0 0.0
    %5878 = vmatpush2.msra.mxu0 0.0
    %5879 = vmatprep.subr.mxu0 0.0
    %5880 = vmatpush2.msra.mxu0 0.0
    %5881 = vmatprep.mubr.f32.mxu0 0.0
    %5882 = vmatmul.mubr.f32.gmra.mxu0 %v5815
    %v5883 = vpop.f32.mrf.mxu0
    %v5884 = vadd.f32 0.0, %v5883
    %v5885 = vpop.f32.mrf.mxu0
    %5886 = vdwg.mxu0
    %v5888 = vrot.slane %v5884, 5
    %v5890 = vadd.f32 %v5388, %v5888
    %s5891 = scalar_lea.vmem %s2, 960
    %v5892 = vld [vmem:[%s5891] sm:$0xff]
    %v5893 = vld [vmem:[%s5891 + $0x8] sm:$0xff]
    %v5894 = vld [vmem:[%s5891 + $0x10] sm:$0xff]
    %v5895 = vld [vmem:[%s5891 + $0x18] sm:$0xff]
    %v5896 = vld [vmem:[%s5891 + $0x20] sm:$0xff]
    %v5897 = vld [vmem:[%s5891 + $0x28] sm:$0xff]
    %v5898 = vld [vmem:[%s5891 + $0x30] sm:$0xff]
    %v5899 = vld [vmem:[%s5891 + $0x38] sm:$0xff]
    %v5900 = vrot.slane %v46, 7
    %5902 = vmatprep.subr.mxu0 0.0
    %5903 = vmatpush1.msra.mxu0 0.0
    %5904 = vmatprep.subr.mxu0 0.0
    %5905 = vmatpush1.msra.mxu0 0.0
    %5906 = vmatprep.subr.mxu0 0.0
    %5907 = vmatpush1.msra.mxu0 0.0
    %5908 = vmatprep.subr.mxu0 0.0
    %5909 = vmatpush1.msra.mxu0 0.0
    %5910 = vmatprep.subr.mxu0 0.0
    %5911 = vmatpush1.msra.mxu0 0.0
    %5912 = vmatprep.subr.mxu0 0.0
    %5913 = vmatpush1.msra.mxu0 0.0
    %5914 = vmatprep.subr.mxu0 0.0
    %5915 = vmatpush1.msra.mxu0 0.0
    %5916 = vmatprep.subr.mxu0 0.0
    %5917 = vmatpush1.msra.mxu0 0.0
    %5918 = vmatprep.subr.mxu0 0.0
    %5919 = vmatpush1.msra.mxu0 %v5899
    %5920 = vmatprep.subr.mxu0 0.0
    %5921 = vmatpush1.msra.mxu0 %v5898
    %5922 = vmatprep.subr.mxu0 0.0
    %5923 = vmatpush1.msra.mxu0 %v5897
    %5924 = vmatprep.subr.mxu0 0.0
    %5925 = vmatpush1.msra.mxu0 %v5896
    %5926 = vmatprep.subr.mxu0 0.0
    %5927 = vmatpush1.msra.mxu0 %v5895
    %5928 = vmatprep.subr.mxu0 0.0
    %5929 = vmatpush1.msra.mxu0 %v5894
    %5930 = vmatprep.subr.mxu0 0.0
    %5931 = vmatpush1.msra.mxu0 %v5893
    %5932 = vmatprep.subr.mxu0 0.0
    %5933 = vmatpush1.msra.mxu0 %v5892
    %5934 = vmatprep.subr.mxu0 0.0
    %5935 = vmatpush2.msra.mxu0 0.0
    %5936 = vmatprep.subr.mxu0 0.0
    %5937 = vmatpush2.msra.mxu0 0.0
    %5938 = vmatprep.subr.mxu0 0.0
    %5939 = vmatpush2.msra.mxu0 0.0
    %5940 = vmatprep.subr.mxu0 0.0
    %5941 = vmatpush2.msra.mxu0 0.0
    %5942 = vmatprep.subr.mxu0 0.0
    %5943 = vmatpush2.msra.mxu0 0.0
    %5944 = vmatprep.subr.mxu0 0.0
    %5945 = vmatpush2.msra.mxu0 0.0
    %5946 = vmatprep.subr.mxu0 0.0
    %5947 = vmatpush2.msra.mxu0 0.0
    %5948 = vmatprep.subr.mxu0 0.0
    %5949 = vmatpush2.msra.mxu0 0.0
    %5950 = vmatprep.subr.mxu0 0.0
    %5951 = vmatpush2.msra.mxu0 0.0
    %5952 = vmatprep.subr.mxu0 0.0
    %5953 = vmatpush2.msra.mxu0 0.0
    %5954 = vmatprep.subr.mxu0 0.0
    %5955 = vmatpush2.msra.mxu0 0.0
    %5956 = vmatprep.subr.mxu0 0.0
    %5957 = vmatpush2.msra.mxu0 0.0
    %5958 = vmatprep.subr.mxu0 0.0
    %5959 = vmatpush2.msra.mxu0 0.0
    %5960 = vmatprep.subr.mxu0 0.0
    %5961 = vmatpush2.msra.mxu0 0.0
    %5962 = vmatprep.subr.mxu0 0.0
    %5963 = vmatpush2.msra.mxu0 0.0
    %5964 = vmatprep.subr.mxu0 0.0
    %5965 = vmatpush2.msra.mxu0 0.0
    %5966 = vmatprep.mubr.f32.mxu0 0.0
    %5967 = vmatmul.mubr.f32.gmra.mxu0 %v4387
    %v5968 = vpop.f32.mrf.mxu0
    %v5969 = vadd.f32 %v5900, %v5968
    %v5970 = vpop.f32.mrf.mxu0
    %5971 = vdwg.mxu0
    %s5972 = scalar_lea.vmem %s2, 1216
    %v5973 = vld [vmem:[%s5972] sm:$0xff]
    %v5974 = vld [vmem:[%s5972 + $0x8] sm:$0xff]
    %v5975 = vld [vmem:[%s5972 + $0x10] sm:$0xff]
    %v5976 = vld [vmem:[%s5972 + $0x18] sm:$0xff]
    %v5977 = vld [vmem:[%s5972 + $0x20] sm:$0xff]
    %v5978 = vld [vmem:[%s5972 + $0x28] sm:$0xff]
    %v5979 = vld [vmem:[%s5972 + $0x30] sm:$0xff]
    %v5980 = vld [vmem:[%s5972 + $0x38] sm:$0xff]
    %v5981 = vlaneseq
    %v5982 = vshrl.u32 %v5981, 7
    %v5983 = vsub.s32 3, %v5982
    %v5984 = vrot.slane %v47, %v5983
    %5985 = vmatprep.subr.mxu0 0.0
    %5986 = vmatpush1.msra.mxu0 0.0
    %5987 = vmatprep.subr.mxu0 0.0
    %5988 = vmatpush1.msra.mxu0 0.0
    %5989 = vmatprep.subr.mxu0 0.0
    %5990 = vmatpush1.msra.mxu0 0.0
    %5991 = vmatprep.subr.mxu0 0.0
    %5992 = vmatpush1.msra.mxu0 0.0
    %5993 = vmatprep.subr.mxu0 0.0
    %5994 = vmatpush1.msra.mxu0 0.0
    %5995 = vmatprep.subr.mxu0 0.0
    %5996 = vmatpush1.msra.mxu0 0.0
    %5997 = vmatprep.subr.mxu0 0.0
    %5998 = vmatpush1.msra.mxu0 0.0
    %5999 = vmatprep.subr.mxu0 0.0
    %6000 = vmatpush1.msra.mxu0 0.0
    %6001 = vmatprep.subr.mxu0 0.0
    %6002 = vmatpush1.msra.mxu0 %v5980
    %6003 = vmatprep.subr.mxu0 0.0
    %6004 = vmatpush1.msra.mxu0 %v5979
    %6005 = vmatprep.subr.mxu0 0.0
    %6006 = vmatpush1.msra.mxu0 %v5978
    %6007 = vmatprep.subr.mxu0 0.0
    %6008 = vmatpush1.msra.mxu0 %v5977
    %6009 = vmatprep.subr.mxu0 0.0
    %6010 = vmatpush1.msra.mxu0 %v5976
    %6011 = vmatprep.subr.mxu0 0.0
    %6012 = vmatpush1.msra.mxu0 %v5975
    %6013 = vmatprep.subr.mxu0 0.0
    %6014 = vmatpush1.msra.mxu0 %v5974
    %6015 = vmatprep.subr.mxu0 0.0
    %6016 = vmatpush1.msra.mxu0 %v5973
    %6017 = vmatprep.subr.mxu0 0.0
    %6018 = vmatpush2.msra.mxu0 0.0
    %6019 = vmatprep.subr.mxu0 0.0
    %6020 = vmatpush2.msra.mxu0 0.0
    %6021 = vmatprep.subr.mxu0 0.0
    %6022 = vmatpush2.msra.mxu0 0.0
    %6023 = vmatprep.subr.mxu0 0.0
    %6024 = vmatpush2.msra.mxu0 0.0
    %6025 = vmatprep.subr.mxu0 0.0
    %6026 = vmatpush2.msra.mxu0 0.0
    %6027 = vmatprep.subr.mxu0 0.0
    %6028 = vmatpush2.msra.mxu0 0.0
    %6029 = vmatprep.subr.mxu0 0.0
    %6030 = vmatpush2.msra.mxu0 0.0
    %6031 = vmatprep.subr.mxu0 0.0
    %6032 = vmatpush2.msra.mxu0 0.0
    %6033 = vmatprep.subr.mxu0 0.0
    %6034 = vmatpush2.msra.mxu0 0.0
    %6035 = vmatprep.subr.mxu0 0.0
    %6036 = vmatpush2.msra.mxu0 0.0
    %6037 = vmatprep.subr.mxu0 0.0
    %6038 = vmatpush2.msra.mxu0 0.0
    %6039 = vmatprep.subr.mxu0 0.0
    %6040 = vmatpush2.msra.mxu0 0.0
    %6041 = vmatprep.subr.mxu0 0.0
    %6042 = vmatpush2.msra.mxu0 0.0
    %6043 = vmatprep.subr.mxu0 0.0
    %6044 = vmatpush2.msra.mxu0 0.0
    %6045 = vmatprep.subr.mxu0 0.0
    %6046 = vmatpush2.msra.mxu0 0.0
    %6047 = vmatprep.subr.mxu0 0.0
    %6048 = vmatpush2.msra.mxu0 0.0
    %6049 = vmatprep.mubr.f32.mxu0 0.0
    %6050 = vmatmul.mubr.f32.gmra.mxu0 %v4473
    %v6051 = vpop.f32.mrf.mxu0
    %v6052 = vadd.f32 %v5984, %v6051
    %v6053 = vpop.f32.mrf.mxu0
    %6054 = vmatprep.mubr.f32.mxu0 0.0
    %6055 = vmatmul.mubr.f32.gmra.mxu0 %v4476
    %v6056 = vpop.f32.mrf.mxu0
    %v6057 = vadd.f32 %v5984, %v6056
    %v6058 = vpop.f32.mrf.mxu0
    %6059 = vdwg.mxu0
    %s6060 = scalar_lea.vmem %s2, 1472
    %v6061 = vld [vmem:[%s6060] sm:$0xff]
    %v6062 = vld [vmem:[%s6060 + $0x8] sm:$0xff]
    %v6063 = vld [vmem:[%s6060 + $0x10] sm:$0xff]
    %v6064 = vld [vmem:[%s6060 + $0x18] sm:$0xff]
    %v6065 = vld [vmem:[%s6060 + $0x20] sm:$0xff]
    %v6066 = vld [vmem:[%s6060 + $0x28] sm:$0xff]
    %v6067 = vld [vmem:[%s6060 + $0x30] sm:$0xff]
    %v6068 = vld [vmem:[%s6060 + $0x38] sm:$0xff]
    %v6069 = vlaneseq
    %v6070 = vshrl.u32 %v6069, 7
    %v6071 = vsub.s32 7, %v6070
    %v6072 = vrot.slane %v47, %v6071
    %6073 = vmatprep.subr.mxu0 0.0
    %6074 = vmatpush1.msra.mxu0 0.0
    %6075 = vmatprep.subr.mxu0 0.0
    %6076 = vmatpush1.msra.mxu0 0.0
    %6077 = vmatprep.subr.mxu0 0.0
    %6078 = vmatpush1.msra.mxu0 0.0
    %6079 = vmatprep.subr.mxu0 0.0
    %6080 = vmatpush1.msra.mxu0 0.0
    %6081 = vmatprep.subr.mxu0 0.0
    %6082 = vmatpush1.msra.mxu0 0.0
    %6083 = vmatprep.subr.mxu0 0.0
    %6084 = vmatpush1.msra.mxu0 0.0
    %6085 = vmatprep.subr.mxu0 0.0
    %6086 = vmatpush1.msra.mxu0 0.0
    %6087 = vmatprep.subr.mxu0 0.0
    %6088 = vmatpush1.msra.mxu0 0.0
    %6089 = vmatprep.subr.mxu0 0.0
    %6090 = vmatpush1.msra.mxu0 %v6068
    %6091 = vmatprep.subr.mxu0 0.0
    %6092 = vmatpush1.msra.mxu0 %v6067
    %6093 = vmatprep.subr.mxu0 0.0
    %6094 = vmatpush1.msra.mxu0 %v6066
    %6095 = vmatprep.subr.mxu0 0.0
    %6096 = vmatpush1.msra.mxu0 %v6065
    %6097 = vmatprep.subr.mxu0 0.0
    %6098 = vmatpush1.msra.mxu0 %v6064
    %6099 = vmatprep.subr.mxu0 0.0
    %6100 = vmatpush1.msra.mxu0 %v6063
    %6101 = vmatprep.subr.mxu0 0.0
    %6102 = vmatpush1.msra.mxu0 %v6062
    %6103 = vmatprep.subr.mxu0 0.0
    %6104 = vmatpush1.msra.mxu0 %v6061
    %6105 = vmatprep.subr.mxu0 0.0
    %6106 = vmatpush2.msra.mxu0 0.0
    %6107 = vmatprep.subr.mxu0 0.0
    %6108 = vmatpush2.msra.mxu0 0.0
    %6109 = vmatprep.subr.mxu0 0.0
    %6110 = vmatpush2.msra.mxu0 0.0
    %6111 = vmatprep.subr.mxu0 0.0
    %6112 = vmatpush2.msra.mxu0 0.0
    %6113 = vmatprep.subr.mxu0 0.0
    %6114 = vmatpush2.msra.mxu0 0.0
    %6115 = vmatprep.subr.mxu0 0.0
    %6116 = vmatpush2.msra.mxu0 0.0
    %6117 = vmatprep.subr.mxu0 0.0
    %6118 = vmatpush2.msra.mxu0 0.0
    %6119 = vmatprep.subr.mxu0 0.0
    %6120 = vmatpush2.msra.mxu0 0.0
    %6121 = vmatprep.subr.mxu0 0.0
    %6122 = vmatpush2.msra.mxu0 0.0
    %6123 = vmatprep.subr.mxu0 0.0
    %6124 = vmatpush2.msra.mxu0 0.0
    %6125 = vmatprep.subr.mxu0 0.0
    %6126 = vmatpush2.msra.mxu0 0.0
    %6127 = vmatprep.subr.mxu0 0.0
    %6128 = vmatpush2.msra.mxu0 0.0
    %6129 = vmatprep.subr.mxu0 0.0
    %6130 = vmatpush2.msra.mxu0 0.0
    %6131 = vmatprep.subr.mxu0 0.0
    %6132 = vmatpush2.msra.mxu0 0.0
    %6133 = vmatprep.subr.mxu0 0.0
    %6134 = vmatpush2.msra.mxu0 0.0
    %6135 = vmatprep.subr.mxu0 0.0
    %6136 = vmatpush2.msra.mxu0 0.0
    %6137 = vmatprep.mubr.f32.mxu0 0.0
    %6138 = vmatmul.mubr.f32.gmra.mxu0 %v4473
    %v6139 = vpop.f32.mrf.mxu0
    %v6140 = vadd.f32 %v6072, %v6139
    %v6141 = vpop.f32.mrf.mxu0
    %6142 = vmatprep.mubr.f32.mxu0 0.0
    %6143 = vmatmul.mubr.f32.gmra.mxu0 %v4476
    %v6144 = vpop.f32.mrf.mxu0
    %v6145 = vadd.f32 %v6072, %v6144
    %v6146 = vpop.f32.mrf.mxu0
    %6147 = vdwg.mxu0
    %v6149 = vsel %vm330, %v5969, 0
    %v6152 = vsel %vm330, %v6052, 0
    %v6155 = vsel %vm330, %v6057, 0
    %6157 = vmatprep.subr.mxu0 0.0
    %6158 = vmatpush1.xpose.msra.mxu0 0.0
    %6159 = vmatprep.subr.mxu0 0.0
    %6160 = vmatpush1.xpose.msra.mxu0 0.0
    %6161 = vmatprep.subr.mxu0 0.0
    %6162 = vmatpush1.xpose.msra.mxu0 0.0
    %6163 = vmatprep.subr.mxu0 0.0
    %6164 = vmatpush1.xpose.msra.mxu0 0.0
    %6165 = vmatprep.subr.mxu0 0.0
    %6166 = vmatpush1.xpose.msra.mxu0 0.0
    %6167 = vmatprep.subr.mxu0 0.0
    %6168 = vmatpush1.xpose.msra.mxu0 0.0
    %6169 = vmatprep.subr.mxu0 0.0
    %6170 = vmatpush1.xpose.msra.mxu0 0.0
    %6171 = vmatprep.subr.mxu0 0.0
    %6172 = vmatpush1.xpose.msra.mxu0 0.0
    %6173 = vmatprep.subr.mxu0 0.0
    %6174 = vmatpush1.xpose.msra.mxu0 0.0
    %6175 = vmatprep.subr.mxu0 0.0
    %6176 = vmatpush1.xpose.msra.mxu0 0.0
    %6177 = vmatprep.subr.mxu0 0.0
    %6178 = vmatpush1.xpose.msra.mxu0 0.0
    %6179 = vmatprep.subr.mxu0 0.0
    %6180 = vmatpush1.xpose.msra.mxu0 0.0
    %6181 = vmatprep.subr.mxu0 0.0
    %6182 = vmatpush1.xpose.msra.mxu0 0.0
    %6183 = vmatprep.subr.mxu0 0.0
    %6184 = vmatpush1.xpose.msra.mxu0 0.0
    %6185 = vmatprep.subr.mxu0 0.0
    %6186 = vmatpush1.xpose.msra.mxu0 %v6155
    %6187 = vmatprep.subr.mxu0 0.0
    %6188 = vmatpush1.xpose.msra.mxu0 %v6152
    %6189 = vmatprep.subr.mxu0 0.0
    %6190 = vmatpush2.xpose.msra.mxu0 0.0
    %6191 = vmatprep.subr.mxu0 0.0
    %6192 = vmatpush2.xpose.msra.mxu0 0.0
    %6193 = vmatprep.subr.mxu0 0.0
    %6194 = vmatpush2.xpose.msra.mxu0 0.0
    %6195 = vmatprep.subr.mxu0 0.0
    %6196 = vmatpush2.xpose.msra.mxu0 0.0
    %6197 = vmatprep.subr.mxu0 0.0
    %6198 = vmatpush2.xpose.msra.mxu0 0.0
    %6199 = vmatprep.subr.mxu0 0.0
    %6200 = vmatpush2.xpose.msra.mxu0 0.0
    %6201 = vmatprep.subr.mxu0 0.0
    %6202 = vmatpush2.xpose.msra.mxu0 0.0
    %6203 = vmatprep.subr.mxu0 0.0
    %6204 = vmatpush2.xpose.msra.mxu0 0.0
    %6205 = vmatprep.subr.mxu0 0.0
    %6206 = vmatpush2.xpose.msra.mxu0 0.0
    %6207 = vmatprep.subr.mxu0 0.0
    %6208 = vmatpush2.xpose.msra.mxu0 0.0
    %6209 = vmatprep.subr.mxu0 0.0
    %6210 = vmatpush2.xpose.msra.mxu0 0.0
    %6211 = vmatprep.subr.mxu0 0.0
    %6212 = vmatpush2.xpose.msra.mxu0 0.0
    %6213 = vmatprep.subr.mxu0 0.0
    %6214 = vmatpush2.xpose.msra.mxu0 0.0
    %6215 = vmatprep.subr.mxu0 0.0
    %6216 = vmatpush2.xpose.msra.mxu0 0.0
    %6217 = vmatprep.subr.mxu0 0.0
    %6218 = vmatpush2.xpose.msra.mxu0 0.0
    %6219 = vmatprep.subr.mxu0 0.0
    %6220 = vmatpush2.xpose.msra.mxu0 0.0
    %6221 = vmatprep.mubr.f32.mxu0 0.0
    %6222 = vmatmul.mubr.f32.gmra.mxu0 %v6149
    %v6223 = vpop.f32.mrf.mxu0
    %v6224 = vadd.f32 0.0, %v6223
    %v6225 = vpop.f32.mrf.mxu0
    %6226 = vdwg.mxu0
    %v6227 = vmul.f32 %v6224, 0.25
    %v6228 = vsel %vm4721, %v6227, -inf
    %6229 = vmax.xlane.f32.xlu0 %v6228
    %v6230 = vpop.xlane.xlu0 %6229
    %v6231 = vsub.f32 %v6227, %v6230
    %v6232 = vmul.f32 %v6231, 1.442695
    %v6233 = vpow.pop %v6232
    %v6234 = vsel %vm4721, %v6233, 0.0
    %6235 = vadd.xlane.f32.xlu0 %v6234
    %v6236 = vpop.xlane.xlu0 %6235
    %v6237 = vrcp.pop %v6236
    %v6238 = vmul.f32 %v6233, %v6237
    %v6239 = vadd.f32 %v5737, %v6238
    %v6241 = vsel %vm330, %v6238, 0
    %6243 = vmatprep.subr.mxu0 0.0
    %6244 = vmatpush1.msra.mxu0 0.0
    %6245 = vmatprep.subr.mxu0 0.0
    %6246 = vmatpush1.msra.mxu0 0.0
    %6247 = vmatprep.subr.mxu0 0.0
    %6248 = vmatpush1.msra.mxu0 0.0
    %6249 = vmatprep.subr.mxu0 0.0
    %6250 = vmatpush1.msra.mxu0 0.0
    %6251 = vmatprep.subr.mxu0 0.0
    %6252 = vmatpush1.msra.mxu0 0.0
    %6253 = vmatprep.subr.mxu0 0.0
    %6254 = vmatpush1.msra.mxu0 0.0
    %6255 = vmatprep.subr.mxu0 0.0
    %6256 = vmatpush1.msra.mxu0 0.0
    %6257 = vmatprep.subr.mxu0 0.0
    %6258 = vmatpush1.msra.mxu0 0.0
    %6259 = vmatprep.subr.mxu0 0.0
    %6260 = vmatpush1.msra.mxu0 0.0
    %6261 = vmatprep.subr.mxu0 0.0
    %6262 = vmatpush1.msra.mxu0 0.0
    %6263 = vmatprep.subr.mxu0 0.0
    %6264 = vmatpush1.msra.mxu0 0.0
    %6265 = vmatprep.subr.mxu0 0.0
    %6266 = vmatpush1.msra.mxu0 0.0
    %6267 = vmatprep.subr.mxu0 0.0
    %6268 = vmatpush1.msra.mxu0 0.0
    %6269 = vmatprep.subr.mxu0 0.0
    %6270 = vmatpush1.msra.mxu0 0.0
    %6271 = vmatprep.subr.mxu0 0.0
    %6272 = vmatpush1.msra.mxu0 %v6145
    %6273 = vmatprep.subr.mxu0 0.0
    %6274 = vmatpush1.msra.mxu0 %v6140
    %6275 = vmatprep.subr.mxu0 0.0
    %6276 = vmatpush2.msra.mxu0 0.0
    %6277 = vmatprep.subr.mxu0 0.0
    %6278 = vmatpush2.msra.mxu0 0.0
    %6279 = vmatprep.subr.mxu0 0.0
    %6280 = vmatpush2.msra.mxu0 0.0
    %6281 = vmatprep.subr.mxu0 0.0
    %6282 = vmatpush2.msra.mxu0 0.0
    %6283 = vmatprep.subr.mxu0 0.0
    %6284 = vmatpush2.msra.mxu0 0.0
    %6285 = vmatprep.subr.mxu0 0.0
    %6286 = vmatpush2.msra.mxu0 0.0
    %6287 = vmatprep.subr.mxu0 0.0
    %6288 = vmatpush2.msra.mxu0 0.0
    %6289 = vmatprep.subr.mxu0 0.0
    %6290 = vmatpush2.msra.mxu0 0.0
    %6291 = vmatprep.subr.mxu0 0.0
    %6292 = vmatpush2.msra.mxu0 0.0
    %6293 = vmatprep.subr.mxu0 0.0
    %6294 = vmatpush2.msra.mxu0 0.0
    %6295 = vmatprep.subr.mxu0 0.0
    %6296 = vmatpush2.msra.mxu0 0.0
    %6297 = vmatprep.subr.mxu0 0.0
    %6298 = vmatpush2.msra.mxu0 0.0
    %6299 = vmatprep.subr.mxu0 0.0
    %6300 = vmatpush2.msra.mxu0 0.0
    %6301 = vmatprep.subr.mxu0 0.0
    %6302 = vmatpush2.msra.mxu0 0.0
    %6303 = vmatprep.subr.mxu0 0.0
    %6304 = vmatpush2.msra.mxu0 0.0
    %6305 = vmatprep.subr.mxu0 0.0
    %6306 = vmatpush2.msra.mxu0 0.0
    %6307 = vmatprep.mubr.f32.mxu0 0.0
    %6308 = vmatmul.mubr.f32.gmra.mxu0 %v6241
    %v6309 = vpop.f32.mrf.mxu0
    %v6310 = vadd.f32 0.0, %v6309
    %v6311 = vpop.f32.mrf.mxu0
    %6312 = vdwg.mxu0
    %s6313 = scalar_lea.vmem %s3, 112
    %v6314 = vld [vmem:[%s6313] sm:$0xff]
    %v6315 = vld [vmem:[%s6313 + $0x8] sm:$0xff]
    %v6317 = vsel %vm330, %v6310, 0
    %6319 = vmatprep.subr.mxu0 0.0
    %6320 = vmatpush1.msra.mxu0 0.0
    %6321 = vmatprep.subr.mxu0 0.0
    %6322 = vmatpush1.msra.mxu0 0.0
    %6323 = vmatprep.subr.mxu0 0.0
    %6324 = vmatpush1.msra.mxu0 0.0
    %6325 = vmatprep.subr.mxu0 0.0
    %6326 = vmatpush1.msra.mxu0 0.0
    %6327 = vmatprep.subr.mxu0 0.0
    %6328 = vmatpush1.msra.mxu0 0.0
    %6329 = vmatprep.subr.mxu0 0.0
    %6330 = vmatpush1.msra.mxu0 0.0
    %6331 = vmatprep.subr.mxu0 0.0
    %6332 = vmatpush1.msra.mxu0 0.0
    %6333 = vmatprep.subr.mxu0 0.0
    %6334 = vmatpush1.msra.mxu0 0.0
    %6335 = vmatprep.subr.mxu0 0.0
    %6336 = vmatpush1.msra.mxu0 0.0
    %6337 = vmatprep.subr.mxu0 0.0
    %6338 = vmatpush1.msra.mxu0 0.0
    %6339 = vmatprep.subr.mxu0 0.0
    %6340 = vmatpush1.msra.mxu0 0.0
    %6341 = vmatprep.subr.mxu0 0.0
    %6342 = vmatpush1.msra.mxu0 0.0
    %6343 = vmatprep.subr.mxu0 0.0
    %6344 = vmatpush1.msra.mxu0 0.0
    %6345 = vmatprep.subr.mxu0 0.0
    %6346 = vmatpush1.msra.mxu0 0.0
    %6347 = vmatprep.subr.mxu0 0.0
    %6348 = vmatpush1.msra.mxu0 %v6315
    %6349 = vmatprep.subr.mxu0 0.0
    %6350 = vmatpush1.msra.mxu0 %v6314
    %6351 = vmatprep.subr.mxu0 0.0
    %6352 = vmatpush2.msra.mxu0 0.0
    %6353 = vmatprep.subr.mxu0 0.0
    %6354 = vmatpush2.msra.mxu0 0.0
    %6355 = vmatprep.subr.mxu0 0.0
    %6356 = vmatpush2.msra.mxu0 0.0
    %6357 = vmatprep.subr.mxu0 0.0
    %6358 = vmatpush2.msra.mxu0 0.0
    %6359 = vmatprep.subr.mxu0 0.0
    %6360 = vmatpush2.msra.mxu0 0.0
    %6361 = vmatprep.subr.mxu0 0.0
    %6362 = vmatpush2.msra.mxu0 0.0
    %6363 = vmatprep.subr.mxu0 0.0
    %6364 = vmatpush2.msra.mxu0 0.0
    %6365 = vmatprep.subr.mxu0 0.0
    %6366 = vmatpush2.msra.mxu0 0.0
    %6367 = vmatprep.subr.mxu0 0.0
    %6368 = vmatpush2.msra.mxu0 0.0
    %6369 = vmatprep.subr.mxu0 0.0
    %6370 = vmatpush2.msra.mxu0 0.0
    %6371 = vmatprep.subr.mxu0 0.0
    %6372 = vmatpush2.msra.mxu0 0.0
    %6373 = vmatprep.subr.mxu0 0.0
    %6374 = vmatpush2.msra.mxu0 0.0
    %6375 = vmatprep.subr.mxu0 0.0
    %6376 = vmatpush2.msra.mxu0 0.0
    %6377 = vmatprep.subr.mxu0 0.0
    %6378 = vmatpush2.msra.mxu0 0.0
    %6379 = vmatprep.subr.mxu0 0.0
    %6380 = vmatpush2.msra.mxu0 0.0
    %6381 = vmatprep.subr.mxu0 0.0
    %6382 = vmatpush2.msra.mxu0 0.0
    %6383 = vmatprep.mubr.f32.mxu0 0.0
    %6384 = vmatmul.mubr.f32.gmra.mxu0 %v6317
    %v6385 = vpop.f32.mrf.mxu0
    %v6386 = vadd.f32 0.0, %v6385
    %v6387 = vpop.f32.mrf.mxu0
    %6388 = vdwg.mxu0
    %v6390 = vrot.slane %v6386, 5
    %v6392 = vadd.f32 %v5890, %v6390
    %v6393 = vmul.f32 %v6239, 0.25
    %v6395 = vrot.slane %v6392, 3
    %v6397 = vadd.f32 %v4372, %v6395
    %v6398 = vsel %vm4352, %v6397, 0.0
    %6399 = vadd.xlane.f32.xlu0 %v6398
    %v6400 = vpop.xlane.xlu0 %6399
    %v6401 = vmul.f32 %v6400, %v2242
    %v6402 = vsub.f32 %v6397, %v6401
    %v6403 = vmul.f32 %v6402, %v6402
    %v6404 = vsel %vm4352, %v6403, 0.0
    %6405 = vadd.xlane.f32.xlu0 %v6404
    %v6406 = vpop.xlane.xlu0 %6405
    %v6407 = vmul.f32 %v6406, %v2242
    %v6408 = vadd.f32 %v6407, 1e-05
    %v6409 = vrsqrt.pop %v6408
    %v6410 = vmul.f32 %v6402, %v6409
    %v6411 = vrot.slane %v49, 4
    %v6413 = vmul.f32 %v6410, %v6411
    %v6414 = vrot.slane %v49, 5
    %v6416 = vadd.f32 %v6413, %v6414
    %s6417 = scalar_lea.vmem %s5, 1024
    %v6418 = vld [vmem:[%s6417] sm:$0xff]
    %v6419 = vld [vmem:[%s6417 + $0x8] sm:$0xff]
    %v6420 = vld [vmem:[%s6417 + $0x10] sm:$0xff]
    %v6421 = vld [vmem:[%s6417 + $0x18] sm:$0xff]
    %v6422 = vld [vmem:[%s6417 + $0x20] sm:$0xff]
    %v6423 = vld [vmem:[%s6417 + $0x28] sm:$0xff]
    %v6424 = vld [vmem:[%s6417 + $0x30] sm:$0xff]
    %v6425 = vld [vmem:[%s6417 + $0x38] sm:$0xff]
    %v6426 = vld [vmem:[%s6417 + $0x40] sm:$0xff]
    %v6427 = vld [vmem:[%s6417 + $0x48] sm:$0xff]
    %v6428 = vld [vmem:[%s6417 + $0x50] sm:$0xff]
    %v6429 = vld [vmem:[%s6417 + $0x58] sm:$0xff]
    %v6430 = vld [vmem:[%s6417 + $0x60] sm:$0xff]
    %v6431 = vld [vmem:[%s6417 + $0x68] sm:$0xff]
    %v6432 = vld [vmem:[%s6417 + $0x70] sm:$0xff]
    %v6433 = vld [vmem:[%s6417 + $0x78] sm:$0xff]
    %v6434 = vld [vmem:[%s6417 + $0x80] sm:$0xff]
    %v6435 = vld [vmem:[%s6417 + $0x88] sm:$0xff]
    %v6436 = vld [vmem:[%s6417 + $0x90] sm:$0xff]
    %v6437 = vld [vmem:[%s6417 + $0x98] sm:$0xff]
    %v6438 = vld [vmem:[%s6417 + $0xa0] sm:$0xff]
    %v6439 = vld [vmem:[%s6417 + $0xa8] sm:$0xff]
    %v6440 = vld [vmem:[%s6417 + $0xb0] sm:$0xff]
    %v6441 = vld [vmem:[%s6417 + $0xb8] sm:$0xff]
    %v6442 = vld [vmem:[%s6417 + $0xc0] sm:$0xff]
    %v6443 = vld [vmem:[%s6417 + $0xc8] sm:$0xff]
    %v6444 = vld [vmem:[%s6417 + $0xd0] sm:$0xff]
    %v6445 = vld [vmem:[%s6417 + $0xd8] sm:$0xff]
    %v6446 = vld [vmem:[%s6417 + $0xe0] sm:$0xff]
    %v6447 = vld [vmem:[%s6417 + $0xe8] sm:$0xff]
    %v6448 = vld [vmem:[%s6417 + $0xf0] sm:$0xff]
    %v6449 = vld [vmem:[%s6417 + $0xf8] sm:$0xff]
    %v6450 = vld [vmem:[%s6417 + $0x100] sm:$0xff]
    %v6451 = vld [vmem:[%s6417 + $0x108] sm:$0xff]
    %v6452 = vld [vmem:[%s6417 + $0x110] sm:$0xff]
    %v6453 = vld [vmem:[%s6417 + $0x118] sm:$0xff]
    %v6454 = vld [vmem:[%s6417 + $0x120] sm:$0xff]
    %v6455 = vld [vmem:[%s6417 + $0x128] sm:$0xff]
    %v6456 = vld [vmem:[%s6417 + $0x130] sm:$0xff]
    %v6457 = vld [vmem:[%s6417 + $0x138] sm:$0xff]
    %v6458 = vld [vmem:[%s6417 + $0x140] sm:$0xff]
    %v6459 = vld [vmem:[%s6417 + $0x148] sm:$0xff]
    %v6460 = vld [vmem:[%s6417 + $0x150] sm:$0xff]
    %v6461 = vld [vmem:[%s6417 + $0x158] sm:$0xff]
    %v6462 = vld [vmem:[%s6417 + $0x160] sm:$0xff]
    %v6463 = vld [vmem:[%s6417 + $0x168] sm:$0xff]
    %v6464 = vld [vmem:[%s6417 + $0x170] sm:$0xff]
    %v6465 = vld [vmem:[%s6417 + $0x178] sm:$0xff]
    %v6466 = vld [vmem:[%s6417 + $0x180] sm:$0xff]
    %v6467 = vld [vmem:[%s6417 + $0x188] sm:$0xff]
    %v6468 = vld [vmem:[%s6417 + $0x190] sm:$0xff]
    %v6469 = vld [vmem:[%s6417 + $0x198] sm:$0xff]
    %v6470 = vld [vmem:[%s6417 + $0x1a0] sm:$0xff]
    %v6471 = vld [vmem:[%s6417 + $0x1a8] sm:$0xff]
    %v6472 = vld [vmem:[%s6417 + $0x1b0] sm:$0xff]
    %v6473 = vld [vmem:[%s6417 + $0x1b8] sm:$0xff]
    %v6474 = vld [vmem:[%s6417 + $0x1c0] sm:$0xff]
    %v6475 = vld [vmem:[%s6417 + $0x1c8] sm:$0xff]
    %v6476 = vld [vmem:[%s6417 + $0x1d0] sm:$0xff]
    %v6477 = vld [vmem:[%s6417 + $0x1d8] sm:$0xff]
    %v6478 = vld [vmem:[%s6417 + $0x1e0] sm:$0xff]
    %v6479 = vld [vmem:[%s6417 + $0x1e8] sm:$0xff]
    %v6480 = vld [vmem:[%s6417 + $0x1f0] sm:$0xff]
    %v6481 = vld [vmem:[%s6417 + $0x1f8] sm:$0xff]
    %v6482 = vld [vmem:[%s6417 + $0x200] sm:$0xff]
    %v6483 = vld [vmem:[%s6417 + $0x208] sm:$0xff]
    %v6484 = vld [vmem:[%s6417 + $0x210] sm:$0xff]
    %v6485 = vld [vmem:[%s6417 + $0x218] sm:$0xff]
    %v6486 = vld [vmem:[%s6417 + $0x220] sm:$0xff]
    %v6487 = vld [vmem:[%s6417 + $0x228] sm:$0xff]
    %v6488 = vld [vmem:[%s6417 + $0x230] sm:$0xff]
    %v6489 = vld [vmem:[%s6417 + $0x238] sm:$0xff]
    %v6490 = vld [vmem:[%s6417 + $0x240] sm:$0xff]
    %v6491 = vld [vmem:[%s6417 + $0x248] sm:$0xff]
    %v6492 = vld [vmem:[%s6417 + $0x250] sm:$0xff]
    %v6493 = vld [vmem:[%s6417 + $0x258] sm:$0xff]
    %v6494 = vld [vmem:[%s6417 + $0x260] sm:$0xff]
    %v6495 = vld [vmem:[%s6417 + $0x268] sm:$0xff]
    %v6496 = vld [vmem:[%s6417 + $0x270] sm:$0xff]
    %v6497 = vld [vmem:[%s6417 + $0x278] sm:$0xff]
    %v6498 = vld [vmem:[%s6417 + $0x280] sm:$0xff]
    %v6499 = vld [vmem:[%s6417 + $0x288] sm:$0xff]
    %v6500 = vld [vmem:[%s6417 + $0x290] sm:$0xff]
    %v6501 = vld [vmem:[%s6417 + $0x298] sm:$0xff]
    %v6502 = vld [vmem:[%s6417 + $0x2a0] sm:$0xff]
    %v6503 = vld [vmem:[%s6417 + $0x2a8] sm:$0xff]
    %v6504 = vld [vmem:[%s6417 + $0x2b0] sm:$0xff]
    %v6505 = vld [vmem:[%s6417 + $0x2b8] sm:$0xff]
    %v6506 = vld [vmem:[%s6417 + $0x2c0] sm:$0xff]
    %v6507 = vld [vmem:[%s6417 + $0x2c8] sm:$0xff]
    %v6508 = vld [vmem:[%s6417 + $0x2d0] sm:$0xff]
    %v6509 = vld [vmem:[%s6417 + $0x2d8] sm:$0xff]
    %v6510 = vld [vmem:[%s6417 + $0x2e0] sm:$0xff]
    %v6511 = vld [vmem:[%s6417 + $0x2e8] sm:$0xff]
    %v6512 = vld [vmem:[%s6417 + $0x2f0] sm:$0xff]
    %v6513 = vld [vmem:[%s6417 + $0x2f8] sm:$0xff]
    %v6514 = vld [vmem:[%s6417 + $0x300] sm:$0xff]
    %v6515 = vld [vmem:[%s6417 + $0x308] sm:$0xff]
    %v6516 = vld [vmem:[%s6417 + $0x310] sm:$0xff]
    %v6517 = vld [vmem:[%s6417 + $0x318] sm:$0xff]
    %v6518 = vld [vmem:[%s6417 + $0x320] sm:$0xff]
    %v6519 = vld [vmem:[%s6417 + $0x328] sm:$0xff]
    %v6520 = vld [vmem:[%s6417 + $0x330] sm:$0xff]
    %v6521 = vld [vmem:[%s6417 + $0x338] sm:$0xff]
    %v6522 = vld [vmem:[%s6417 + $0x340] sm:$0xff]
    %v6523 = vld [vmem:[%s6417 + $0x348] sm:$0xff]
    %v6524 = vld [vmem:[%s6417 + $0x350] sm:$0xff]
    %v6525 = vld [vmem:[%s6417 + $0x358] sm:$0xff]
    %v6526 = vld [vmem:[%s6417 + $0x360] sm:$0xff]
    %v6527 = vld [vmem:[%s6417 + $0x368] sm:$0xff]
    %v6528 = vld [vmem:[%s6417 + $0x370] sm:$0xff]
    %v6529 = vld [vmem:[%s6417 + $0x378] sm:$0xff]
    %v6530 = vld [vmem:[%s6417 + $0x380] sm:$0xff]
    %v6531 = vld [vmem:[%s6417 + $0x388] sm:$0xff]
    %v6532 = vld [vmem:[%s6417 + $0x390] sm:$0xff]
    %v6533 = vld [vmem:[%s6417 + $0x398] sm:$0xff]
    %v6534 = vld [vmem:[%s6417 + $0x3a0] sm:$0xff]
    %v6535 = vld [vmem:[%s6417 + $0x3a8] sm:$0xff]
    %v6536 = vld [vmem:[%s6417 + $0x3b0] sm:$0xff]
    %v6537 = vld [vmem:[%s6417 + $0x3b8] sm:$0xff]
    %v6538 = vld [vmem:[%s6417 + $0x3c0] sm:$0xff]
    %v6539 = vld [vmem:[%s6417 + $0x3c8] sm:$0xff]
    %v6540 = vld [vmem:[%s6417 + $0x3d0] sm:$0xff]
    %v6541 = vld [vmem:[%s6417 + $0x3d8] sm:$0xff]
    %v6542 = vld [vmem:[%s6417 + $0x3e0] sm:$0xff]
    %v6543 = vld [vmem:[%s6417 + $0x3e8] sm:$0xff]
    %v6544 = vld [vmem:[%s6417 + $0x3f0] sm:$0xff]
    %v6545 = vld [vmem:[%s6417 + $0x3f8] sm:$0xff]
    %v6546 = vlaneseq
    %v6547 = vshrl.u32 %v6546, 7
    %v6548 = vsub.s32 1, %v6547
    %v6549 = vrot.slane %v51, %v6548
    %v6550 = vlaneseq
    %v6551 = vshrl.u32 %v6550, 7
    %v6552 = vsub.s32 3, %v6551
    %v6553 = vrot.slane %v51, %v6552
    %v6554 = vlaneseq
    %v6555 = vshrl.u32 %v6554, 7
    %v6556 = vsub.s32 5, %v6555
    %v6557 = vrot.slane %v51, %v6556
    %v6558 = vlaneseq
    %v6559 = vshrl.u32 %v6558, 7
    %v6560 = vsub.s32 7, %v6559
    %v6561 = vrot.slane %v51, %v6560
    %v6562 = vlaneseq
    %v6563 = vshrl.u32 %v6562, 7
    %v6564 = vsub.s32 1, %v6563
    %v6565 = vrot.slane %v52, %v6564
    %v6566 = vlaneseq
    %v6567 = vshrl.u32 %v6566, 7
    %v6568 = vsub.s32 3, %v6567
    %v6569 = vrot.slane %v52, %v6568
    %v6570 = vlaneseq
    %v6571 = vshrl.u32 %v6570, 7
    %v6572 = vsub.s32 5, %v6571
    %v6573 = vrot.slane %v52, %v6572
    %v6574 = vlaneseq
    %v6575 = vshrl.u32 %v6574, 7
    %v6576 = vsub.s32 7, %v6575
    %v6577 = vrot.slane %v52, %v6576
    %v6578 = vlaneseq
    %v6579 = vshrl.u32 %v6578, 7
    %v6580 = vsub.s32 1, %v6579
    %v6581 = vrot.slane %v53, %v6580
    %v6582 = vlaneseq
    %v6583 = vshrl.u32 %v6582, 7
    %v6584 = vsub.s32 3, %v6583
    %v6585 = vrot.slane %v53, %v6584
    %v6586 = vlaneseq
    %v6587 = vshrl.u32 %v6586, 7
    %v6588 = vsub.s32 5, %v6587
    %v6589 = vrot.slane %v53, %v6588
    %v6590 = vlaneseq
    %v6591 = vshrl.u32 %v6590, 7
    %v6592 = vsub.s32 7, %v6591
    %v6593 = vrot.slane %v53, %v6592
    %v6594 = vlaneseq
    %v6595 = vshrl.u32 %v6594, 7
    %v6596 = vsub.s32 1, %v6595
    %v6597 = vrot.slane %v54, %v6596
    %v6598 = vlaneseq
    %v6599 = vshrl.u32 %v6598, 7
    %v6600 = vsub.s32 3, %v6599
    %v6601 = vrot.slane %v54, %v6600
    %v6602 = vlaneseq
    %v6603 = vshrl.u32 %v6602, 7
    %v6604 = vsub.s32 5, %v6603
    %v6605 = vrot.slane %v54, %v6604
    %v6606 = vlaneseq
    %v6607 = vshrl.u32 %v6606, 7
    %v6608 = vsub.s32 7, %v6607
    %v6609 = vrot.slane %v54, %v6608
    %v6627 = vsel %vm72, %v6416, 0
    %6629 = vmatprep.subr.mxu0 0.0
    %6630 = vmatpush1.msra.mxu0 0.0
    %6631 = vmatprep.subr.mxu0 0.0
    %6632 = vmatpush1.msra.mxu0 0.0
    %6633 = vmatprep.subr.mxu0 0.0
    %6634 = vmatpush1.msra.mxu0 0.0
    %6635 = vmatprep.subr.mxu0 0.0
    %6636 = vmatpush1.msra.mxu0 0.0
    %6637 = vmatprep.subr.mxu0 0.0
    %6638 = vmatpush1.msra.mxu0 0.0
    %6639 = vmatprep.subr.mxu0 0.0
    %6640 = vmatpush1.msra.mxu0 0.0
    %6641 = vmatprep.subr.mxu0 0.0
    %6642 = vmatpush1.msra.mxu0 0.0
    %6643 = vmatprep.subr.mxu0 0.0
    %6644 = vmatpush1.msra.mxu0 0.0
    %6645 = vmatprep.subr.mxu0 %v6531
    %6646 = vmatpush1.msra.mxu0 %v6530
    %6647 = vmatprep.subr.mxu0 %v6515
    %6648 = vmatpush1.msra.mxu0 %v6514
    %6649 = vmatprep.subr.mxu0 %v6499
    %6650 = vmatpush1.msra.mxu0 %v6498
    %6651 = vmatprep.subr.mxu0 %v6483
    %6652 = vmatpush1.msra.mxu0 %v6482
    %6653 = vmatprep.subr.mxu0 %v6467
    %6654 = vmatpush1.msra.mxu0 %v6466
    %6655 = vmatprep.subr.mxu0 %v6451
    %6656 = vmatpush1.msra.mxu0 %v6450
    %6657 = vmatprep.subr.mxu0 %v6435
    %6658 = vmatpush1.msra.mxu0 %v6434
    %6659 = vmatprep.subr.mxu0 %v6419
    %6660 = vmatpush1.msra.mxu0 %v6418
    %6661 = vmatprep.subr.mxu0 0.0
    %6662 = vmatpush2.msra.mxu0 0.0
    %6663 = vmatprep.subr.mxu0 0.0
    %6664 = vmatpush2.msra.mxu0 0.0
    %6665 = vmatprep.subr.mxu0 0.0
    %6666 = vmatpush2.msra.mxu0 0.0
    %6667 = vmatprep.subr.mxu0 0.0
    %6668 = vmatpush2.msra.mxu0 0.0
    %6669 = vmatprep.subr.mxu0 0.0
    %6670 = vmatpush2.msra.mxu0 0.0
    %6671 = vmatprep.subr.mxu0 0.0
    %6672 = vmatpush2.msra.mxu0 0.0
    %6673 = vmatprep.subr.mxu0 0.0
    %6674 = vmatpush2.msra.mxu0 0.0
    %6675 = vmatprep.subr.mxu0 0.0
    %6676 = vmatpush2.msra.mxu0 0.0
    %6677 = vmatprep.subr.mxu0 0.0
    %6678 = vmatpush2.msra.mxu0 0.0
    %6679 = vmatprep.subr.mxu0 0.0
    %6680 = vmatpush2.msra.mxu0 0.0
    %6681 = vmatprep.subr.mxu0 0.0
    %6682 = vmatpush2.msra.mxu0 0.0
    %6683 = vmatprep.subr.mxu0 0.0
    %6684 = vmatpush2.msra.mxu0 0.0
    %6685 = vmatprep.subr.mxu0 0.0
    %6686 = vmatpush2.msra.mxu0 0.0
    %6687 = vmatprep.subr.mxu0 0.0
    %6688 = vmatpush2.msra.mxu0 0.0
    %6689 = vmatprep.subr.mxu0 0.0
    %6690 = vmatpush2.msra.mxu0 0.0
    %6691 = vmatprep.subr.mxu0 0.0
    %6692 = vmatpush2.msra.mxu0 0.0
    %6693 = vmatprep.mubr.f32.mxu0 0.0
    %6694 = vmatmul.mubr.f32.gmra.mxu0 %v6627
    %v6695 = vpop.f32.mrf.mxu0
    %v6696 = vadd.f32 %v6549, %v6695
    %v6697 = vpop.f32.mrf.mxu0
    %v6698 = vadd.f32 %v6553, %v6697
    %6699 = vdwg.mxu0
    %6700 = vmatprep.subr.mxu0 0.0
    %6701 = vmatpush1.msra.mxu0 0.0
    %6702 = vmatprep.subr.mxu0 0.0
    %6703 = vmatpush1.msra.mxu0 0.0
    %6704 = vmatprep.subr.mxu0 0.0
    %6705 = vmatpush1.msra.mxu0 0.0
    %6706 = vmatprep.subr.mxu0 0.0
    %6707 = vmatpush1.msra.mxu0 0.0
    %6708 = vmatprep.subr.mxu0 0.0
    %6709 = vmatpush1.msra.mxu0 0.0
    %6710 = vmatprep.subr.mxu0 0.0
    %6711 = vmatpush1.msra.mxu0 0.0
    %6712 = vmatprep.subr.mxu0 0.0
    %6713 = vmatpush1.msra.mxu0 0.0
    %6714 = vmatprep.subr.mxu0 0.0
    %6715 = vmatpush1.msra.mxu0 0.0
    %6716 = vmatprep.subr.mxu0 %v6533
    %6717 = vmatpush1.msra.mxu0 %v6532
    %6718 = vmatprep.subr.mxu0 %v6517
    %6719 = vmatpush1.msra.mxu0 %v6516
    %6720 = vmatprep.subr.mxu0 %v6501
    %6721 = vmatpush1.msra.mxu0 %v6500
    %6722 = vmatprep.subr.mxu0 %v6485
    %6723 = vmatpush1.msra.mxu0 %v6484
    %6724 = vmatprep.subr.mxu0 %v6469
    %6725 = vmatpush1.msra.mxu0 %v6468
    %6726 = vmatprep.subr.mxu0 %v6453
    %6727 = vmatpush1.msra.mxu0 %v6452
    %6728 = vmatprep.subr.mxu0 %v6437
    %6729 = vmatpush1.msra.mxu0 %v6436
    %6730 = vmatprep.subr.mxu0 %v6421
    %6731 = vmatpush1.msra.mxu0 %v6420
    %6732 = vmatprep.subr.mxu0 0.0
    %6733 = vmatpush2.msra.mxu0 0.0
    %6734 = vmatprep.subr.mxu0 0.0
    %6735 = vmatpush2.msra.mxu0 0.0
    %6736 = vmatprep.subr.mxu0 0.0
    %6737 = vmatpush2.msra.mxu0 0.0
    %6738 = vmatprep.subr.mxu0 0.0
    %6739 = vmatpush2.msra.mxu0 0.0
    %6740 = vmatprep.subr.mxu0 0.0
    %6741 = vmatpush2.msra.mxu0 0.0
    %6742 = vmatprep.subr.mxu0 0.0
    %6743 = vmatpush2.msra.mxu0 0.0
    %6744 = vmatprep.subr.mxu0 0.0
    %6745 = vmatpush2.msra.mxu0 0.0
    %6746 = vmatprep.subr.mxu0 0.0
    %6747 = vmatpush2.msra.mxu0 0.0
    %6748 = vmatprep.subr.mxu0 0.0
    %6749 = vmatpush2.msra.mxu0 0.0
    %6750 = vmatprep.subr.mxu0 0.0
    %6751 = vmatpush2.msra.mxu0 0.0
    %6752 = vmatprep.subr.mxu0 0.0
    %6753 = vmatpush2.msra.mxu0 0.0
    %6754 = vmatprep.subr.mxu0 0.0
    %6755 = vmatpush2.msra.mxu0 0.0
    %6756 = vmatprep.subr.mxu0 0.0
    %6757 = vmatpush2.msra.mxu0 0.0
    %6758 = vmatprep.subr.mxu0 0.0
    %6759 = vmatpush2.msra.mxu0 0.0
    %6760 = vmatprep.subr.mxu0 0.0
    %6761 = vmatpush2.msra.mxu0 0.0
    %6762 = vmatprep.subr.mxu0 0.0
    %6763 = vmatpush2.msra.mxu0 0.0
    %6764 = vmatprep.mubr.f32.mxu0 0.0
    %6765 = vmatmul.mubr.f32.gmra.mxu0 %v6627
    %v6766 = vpop.f32.mrf.mxu0
    %v6767 = vadd.f32 %v6557, %v6766
    %v6768 = vpop.f32.mrf.mxu0
    %v6769 = vadd.f32 %v6561, %v6768
    %6770 = vdwg.mxu0
    %6771 = vmatprep.subr.mxu0 0.0
    %6772 = vmatpush1.msra.mxu0 0.0
    %6773 = vmatprep.subr.mxu0 0.0
    %6774 = vmatpush1.msra.mxu0 0.0
    %6775 = vmatprep.subr.mxu0 0.0
    %6776 = vmatpush1.msra.mxu0 0.0
    %6777 = vmatprep.subr.mxu0 0.0
    %6778 = vmatpush1.msra.mxu0 0.0
    %6779 = vmatprep.subr.mxu0 0.0
    %6780 = vmatpush1.msra.mxu0 0.0
    %6781 = vmatprep.subr.mxu0 0.0
    %6782 = vmatpush1.msra.mxu0 0.0
    %6783 = vmatprep.subr.mxu0 0.0
    %6784 = vmatpush1.msra.mxu0 0.0
    %6785 = vmatprep.subr.mxu0 0.0
    %6786 = vmatpush1.msra.mxu0 0.0
    %6787 = vmatprep.subr.mxu0 %v6535
    %6788 = vmatpush1.msra.mxu0 %v6534
    %6789 = vmatprep.subr.mxu0 %v6519
    %6790 = vmatpush1.msra.mxu0 %v6518
    %6791 = vmatprep.subr.mxu0 %v6503
    %6792 = vmatpush1.msra.mxu0 %v6502
    %6793 = vmatprep.subr.mxu0 %v6487
    %6794 = vmatpush1.msra.mxu0 %v6486
    %6795 = vmatprep.subr.mxu0 %v6471
    %6796 = vmatpush1.msra.mxu0 %v6470
    %6797 = vmatprep.subr.mxu0 %v6455
    %6798 = vmatpush1.msra.mxu0 %v6454
    %6799 = vmatprep.subr.mxu0 %v6439
    %6800 = vmatpush1.msra.mxu0 %v6438
    %6801 = vmatprep.subr.mxu0 %v6423
    %6802 = vmatpush1.msra.mxu0 %v6422
    %6803 = vmatprep.subr.mxu0 0.0
    %6804 = vmatpush2.msra.mxu0 0.0
    %6805 = vmatprep.subr.mxu0 0.0
    %6806 = vmatpush2.msra.mxu0 0.0
    %6807 = vmatprep.subr.mxu0 0.0
    %6808 = vmatpush2.msra.mxu0 0.0
    %6809 = vmatprep.subr.mxu0 0.0
    %6810 = vmatpush2.msra.mxu0 0.0
    %6811 = vmatprep.subr.mxu0 0.0
    %6812 = vmatpush2.msra.mxu0 0.0
    %6813 = vmatprep.subr.mxu0 0.0
    %6814 = vmatpush2.msra.mxu0 0.0
    %6815 = vmatprep.subr.mxu0 0.0
    %6816 = vmatpush2.msra.mxu0 0.0
    %6817 = vmatprep.subr.mxu0 0.0
    %6818 = vmatpush2.msra.mxu0 0.0
    %6819 = vmatprep.subr.mxu0 0.0
    %6820 = vmatpush2.msra.mxu0 0.0
    %6821 = vmatprep.subr.mxu0 0.0
    %6822 = vmatpush2.msra.mxu0 0.0
    %6823 = vmatprep.subr.mxu0 0.0
    %6824 = vmatpush2.msra.mxu0 0.0
    %6825 = vmatprep.subr.mxu0 0.0
    %6826 = vmatpush2.msra.mxu0 0.0
    %6827 = vmatprep.subr.mxu0 0.0
    %6828 = vmatpush2.msra.mxu0 0.0
    %6829 = vmatprep.subr.mxu0 0.0
    %6830 = vmatpush2.msra.mxu0 0.0
    %6831 = vmatprep.subr.mxu0 0.0
    %6832 = vmatpush2.msra.mxu0 0.0
    %6833 = vmatprep.subr.mxu0 0.0
    %6834 = vmatpush2.msra.mxu0 0.0
    %6835 = vmatprep.mubr.f32.mxu0 0.0
    %6836 = vmatmul.mubr.f32.gmra.mxu0 %v6627
    %v6837 = vpop.f32.mrf.mxu0
    %v6838 = vadd.f32 %v6565, %v6837
    %v6839 = vpop.f32.mrf.mxu0
    %v6840 = vadd.f32 %v6569, %v6839
    %6841 = vdwg.mxu0
    %6842 = vmatprep.subr.mxu0 0.0
    %6843 = vmatpush1.msra.mxu0 0.0
    %6844 = vmatprep.subr.mxu0 0.0
    %6845 = vmatpush1.msra.mxu0 0.0
    %6846 = vmatprep.subr.mxu0 0.0
    %6847 = vmatpush1.msra.mxu0 0.0
    %6848 = vmatprep.subr.mxu0 0.0
    %6849 = vmatpush1.msra.mxu0 0.0
    %6850 = vmatprep.subr.mxu0 0.0
    %6851 = vmatpush1.msra.mxu0 0.0
    %6852 = vmatprep.subr.mxu0 0.0
    %6853 = vmatpush1.msra.mxu0 0.0
    %6854 = vmatprep.subr.mxu0 0.0
    %6855 = vmatpush1.msra.mxu0 0.0
    %6856 = vmatprep.subr.mxu0 0.0
    %6857 = vmatpush1.msra.mxu0 0.0
    %6858 = vmatprep.subr.mxu0 %v6537
    %6859 = vmatpush1.msra.mxu0 %v6536
    %6860 = vmatprep.subr.mxu0 %v6521
    %6861 = vmatpush1.msra.mxu0 %v6520
    %6862 = vmatprep.subr.mxu0 %v6505
    %6863 = vmatpush1.msra.mxu0 %v6504
    %6864 = vmatprep.subr.mxu0 %v6489
    %6865 = vmatpush1.msra.mxu0 %v6488
    %6866 = vmatprep.subr.mxu0 %v6473
    %6867 = vmatpush1.msra.mxu0 %v6472
    %6868 = vmatprep.subr.mxu0 %v6457
    %6869 = vmatpush1.msra.mxu0 %v6456
    %6870 = vmatprep.subr.mxu0 %v6441
    %6871 = vmatpush1.msra.mxu0 %v6440
    %6872 = vmatprep.subr.mxu0 %v6425
    %6873 = vmatpush1.msra.mxu0 %v6424
    %6874 = vmatprep.subr.mxu0 0.0
    %6875 = vmatpush2.msra.mxu0 0.0
    %6876 = vmatprep.subr.mxu0 0.0
    %6877 = vmatpush2.msra.mxu0 0.0
    %6878 = vmatprep.subr.mxu0 0.0
    %6879 = vmatpush2.msra.mxu0 0.0
    %6880 = vmatprep.subr.mxu0 0.0
    %6881 = vmatpush2.msra.mxu0 0.0
    %6882 = vmatprep.subr.mxu0 0.0
    %6883 = vmatpush2.msra.mxu0 0.0
    %6884 = vmatprep.subr.mxu0 0.0
    %6885 = vmatpush2.msra.mxu0 0.0
    %6886 = vmatprep.subr.mxu0 0.0
    %6887 = vmatpush2.msra.mxu0 0.0
    %6888 = vmatprep.subr.mxu0 0.0
    %6889 = vmatpush2.msra.mxu0 0.0
    %6890 = vmatprep.subr.mxu0 0.0
    %6891 = vmatpush2.msra.mxu0 0.0
    %6892 = vmatprep.subr.mxu0 0.0
    %6893 = vmatpush2.msra.mxu0 0.0
    %6894 = vmatprep.subr.mxu0 0.0
    %6895 = vmatpush2.msra.mxu0 0.0
    %6896 = vmatprep.subr.mxu0 0.0
    %6897 = vmatpush2.msra.mxu0 0.0
    %6898 = vmatprep.subr.mxu0 0.0
    %6899 = vmatpush2.msra.mxu0 0.0
    %6900 = vmatprep.subr.mxu0 0.0
    %6901 = vmatpush2.msra.mxu0 0.0
    %6902 = vmatprep.subr.mxu0 0.0
    %6903 = vmatpush2.msra.mxu0 0.0
    %6904 = vmatprep.subr.mxu0 0.0
    %6905 = vmatpush2.msra.mxu0 0.0
    %6906 = vmatprep.mubr.f32.mxu0 0.0
    %6907 = vmatmul.mubr.f32.gmra.mxu0 %v6627
    %v6908 = vpop.f32.mrf.mxu0
    %v6909 = vadd.f32 %v6573, %v6908
    %v6910 = vpop.f32.mrf.mxu0
    %v6911 = vadd.f32 %v6577, %v6910
    %6912 = vdwg.mxu0
    %6913 = vmatprep.subr.mxu0 0.0
    %6914 = vmatpush1.msra.mxu0 0.0
    %6915 = vmatprep.subr.mxu0 0.0
    %6916 = vmatpush1.msra.mxu0 0.0
    %6917 = vmatprep.subr.mxu0 0.0
    %6918 = vmatpush1.msra.mxu0 0.0
    %6919 = vmatprep.subr.mxu0 0.0
    %6920 = vmatpush1.msra.mxu0 0.0
    %6921 = vmatprep.subr.mxu0 0.0
    %6922 = vmatpush1.msra.mxu0 0.0
    %6923 = vmatprep.subr.mxu0 0.0
    %6924 = vmatpush1.msra.mxu0 0.0
    %6925 = vmatprep.subr.mxu0 0.0
    %6926 = vmatpush1.msra.mxu0 0.0
    %6927 = vmatprep.subr.mxu0 0.0
    %6928 = vmatpush1.msra.mxu0 0.0
    %6929 = vmatprep.subr.mxu0 %v6539
    %6930 = vmatpush1.msra.mxu0 %v6538
    %6931 = vmatprep.subr.mxu0 %v6523
    %6932 = vmatpush1.msra.mxu0 %v6522
    %6933 = vmatprep.subr.mxu0 %v6507
    %6934 = vmatpush1.msra.mxu0 %v6506
    %6935 = vmatprep.subr.mxu0 %v6491
    %6936 = vmatpush1.msra.mxu0 %v6490
    %6937 = vmatprep.subr.mxu0 %v6475
    %6938 = vmatpush1.msra.mxu0 %v6474
    %6939 = vmatprep.subr.mxu0 %v6459
    %6940 = vmatpush1.msra.mxu0 %v6458
    %6941 = vmatprep.subr.mxu0 %v6443
    %6942 = vmatpush1.msra.mxu0 %v6442
    %6943 = vmatprep.subr.mxu0 %v6427
    %6944 = vmatpush1.msra.mxu0 %v6426
    %6945 = vmatprep.subr.mxu0 0.0
    %6946 = vmatpush2.msra.mxu0 0.0
    %6947 = vmatprep.subr.mxu0 0.0
    %6948 = vmatpush2.msra.mxu0 0.0
    %6949 = vmatprep.subr.mxu0 0.0
    %6950 = vmatpush2.msra.mxu0 0.0
    %6951 = vmatprep.subr.mxu0 0.0
    %6952 = vmatpush2.msra.mxu0 0.0
    %6953 = vmatprep.subr.mxu0 0.0
    %6954 = vmatpush2.msra.mxu0 0.0
    %6955 = vmatprep.subr.mxu0 0.0
    %6956 = vmatpush2.msra.mxu0 0.0
    %6957 = vmatprep.subr.mxu0 0.0
    %6958 = vmatpush2.msra.mxu0 0.0
    %6959 = vmatprep.subr.mxu0 0.0
    %6960 = vmatpush2.msra.mxu0 0.0
    %6961 = vmatprep.subr.mxu0 0.0
    %6962 = vmatpush2.msra.mxu0 0.0
    %6963 = vmatprep.subr.mxu0 0.0
    %6964 = vmatpush2.msra.mxu0 0.0
    %6965 = vmatprep.subr.mxu0 0.0
    %6966 = vmatpush2.msra.mxu0 0.0
    %6967 = vmatprep.subr.mxu0 0.0
    %6968 = vmatpush2.msra.mxu0 0.0
    %6969 = vmatprep.subr.mxu0 0.0
    %6970 = vmatpush2.msra.mxu0 0.0
    %6971 = vmatprep.subr.mxu0 0.0
    %6972 = vmatpush2.msra.mxu0 0.0
    %6973 = vmatprep.subr.mxu0 0.0
    %6974 = vmatpush2.msra.mxu0 0.0
    %6975 = vmatprep.subr.mxu0 0.0
    %6976 = vmatpush2.msra.mxu0 0.0
    %6977 = vmatprep.mubr.f32.mxu0 0.0
    %6978 = vmatmul.mubr.f32.gmra.mxu0 %v6627
    %v6979 = vpop.f32.mrf.mxu0
    %v6980 = vadd.f32 %v6581, %v6979
    %v6981 = vpop.f32.mrf.mxu0
    %v6982 = vadd.f32 %v6585, %v6981
    %6983 = vdwg.mxu0
    %6984 = vmatprep.subr.mxu0 0.0
    %6985 = vmatpush1.msra.mxu0 0.0
    %6986 = vmatprep.subr.mxu0 0.0
    %6987 = vmatpush1.msra.mxu0 0.0
    %6988 = vmatprep.subr.mxu0 0.0
    %6989 = vmatpush1.msra.mxu0 0.0
    %6990 = vmatprep.subr.mxu0 0.0
    %6991 = vmatpush1.msra.mxu0 0.0
    %6992 = vmatprep.subr.mxu0 0.0
    %6993 = vmatpush1.msra.mxu0 0.0
    %6994 = vmatprep.subr.mxu0 0.0
    %6995 = vmatpush1.msra.mxu0 0.0
    %6996 = vmatprep.subr.mxu0 0.0
    %6997 = vmatpush1.msra.mxu0 0.0
    %6998 = vmatprep.subr.mxu0 0.0
    %6999 = vmatpush1.msra.mxu0 0.0
    %7000 = vmatprep.subr.mxu0 %v6541
    %7001 = vmatpush1.msra.mxu0 %v6540
    %7002 = vmatprep.subr.mxu0 %v6525
    %7003 = vmatpush1.msra.mxu0 %v6524
    %7004 = vmatprep.subr.mxu0 %v6509
    %7005 = vmatpush1.msra.mxu0 %v6508
    %7006 = vmatprep.subr.mxu0 %v6493
    %7007 = vmatpush1.msra.mxu0 %v6492
    %7008 = vmatprep.subr.mxu0 %v6477
    %7009 = vmatpush1.msra.mxu0 %v6476
    %7010 = vmatprep.subr.mxu0 %v6461
    %7011 = vmatpush1.msra.mxu0 %v6460
    %7012 = vmatprep.subr.mxu0 %v6445
    %7013 = vmatpush1.msra.mxu0 %v6444
    %7014 = vmatprep.subr.mxu0 %v6429
    %7015 = vmatpush1.msra.mxu0 %v6428
    %7016 = vmatprep.subr.mxu0 0.0
    %7017 = vmatpush2.msra.mxu0 0.0
    %7018 = vmatprep.subr.mxu0 0.0
    %7019 = vmatpush2.msra.mxu0 0.0
    %7020 = vmatprep.subr.mxu0 0.0
    %7021 = vmatpush2.msra.mxu0 0.0
    %7022 = vmatprep.subr.mxu0 0.0
    %7023 = vmatpush2.msra.mxu0 0.0
    %7024 = vmatprep.subr.mxu0 0.0
    %7025 = vmatpush2.msra.mxu0 0.0
    %7026 = vmatprep.subr.mxu0 0.0
    %7027 = vmatpush2.msra.mxu0 0.0
    %7028 = vmatprep.subr.mxu0 0.0
    %7029 = vmatpush2.msra.mxu0 0.0
    %7030 = vmatprep.subr.mxu0 0.0
    %7031 = vmatpush2.msra.mxu0 0.0
    %7032 = vmatprep.subr.mxu0 0.0
    %7033 = vmatpush2.msra.mxu0 0.0
    %7034 = vmatprep.subr.mxu0 0.0
    %7035 = vmatpush2.msra.mxu0 0.0
    %7036 = vmatprep.subr.mxu0 0.0
    %7037 = vmatpush2.msra.mxu0 0.0
    %7038 = vmatprep.subr.mxu0 0.0
    %7039 = vmatpush2.msra.mxu0 0.0
    %7040 = vmatprep.subr.mxu0 0.0
    %7041 = vmatpush2.msra.mxu0 0.0
    %7042 = vmatprep.subr.mxu0 0.0
    %7043 = vmatpush2.msra.mxu0 0.0
    %7044 = vmatprep.subr.mxu0 0.0
    %7045 = vmatpush2.msra.mxu0 0.0
    %7046 = vmatprep.subr.mxu0 0.0
    %7047 = vmatpush2.msra.mxu0 0.0
    %7048 = vmatprep.mubr.f32.mxu0 0.0
    %7049 = vmatmul.mubr.f32.gmra.mxu0 %v6627
    %v7050 = vpop.f32.mrf.mxu0
    %v7051 = vadd.f32 %v6589, %v7050
    %v7052 = vpop.f32.mrf.mxu0
    %v7053 = vadd.f32 %v6593, %v7052
    %7054 = vdwg.mxu0
    %7055 = vmatprep.subr.mxu0 0.0
    %7056 = vmatpush1.msra.mxu0 0.0
    %7057 = vmatprep.subr.mxu0 0.0
    %7058 = vmatpush1.msra.mxu0 0.0
    %7059 = vmatprep.subr.mxu0 0.0
    %7060 = vmatpush1.msra.mxu0 0.0
    %7061 = vmatprep.subr.mxu0 0.0
    %7062 = vmatpush1.msra.mxu0 0.0
    %7063 = vmatprep.subr.mxu0 0.0
    %7064 = vmatpush1.msra.mxu0 0.0
    %7065 = vmatprep.subr.mxu0 0.0
    %7066 = vmatpush1.msra.mxu0 0.0
    %7067 = vmatprep.subr.mxu0 0.0
    %7068 = vmatpush1.msra.mxu0 0.0
    %7069 = vmatprep.subr.mxu0 0.0
    %7070 = vmatpush1.msra.mxu0 0.0
    %7071 = vmatprep.subr.mxu0 %v6543
    %7072 = vmatpush1.msra.mxu0 %v6542
    %7073 = vmatprep.subr.mxu0 %v6527
    %7074 = vmatpush1.msra.mxu0 %v6526
    %7075 = vmatprep.subr.mxu0 %v6511
    %7076 = vmatpush1.msra.mxu0 %v6510
    %7077 = vmatprep.subr.mxu0 %v6495
    %7078 = vmatpush1.msra.mxu0 %v6494
    %7079 = vmatprep.subr.mxu0 %v6479
    %7080 = vmatpush1.msra.mxu0 %v6478
    %7081 = vmatprep.subr.mxu0 %v6463
    %7082 = vmatpush1.msra.mxu0 %v6462
    %7083 = vmatprep.subr.mxu0 %v6447
    %7084 = vmatpush1.msra.mxu0 %v6446
    %7085 = vmatprep.subr.mxu0 %v6431
    %7086 = vmatpush1.msra.mxu0 %v6430
    %7087 = vmatprep.subr.mxu0 0.0
    %7088 = vmatpush2.msra.mxu0 0.0
    %7089 = vmatprep.subr.mxu0 0.0
    %7090 = vmatpush2.msra.mxu0 0.0
    %7091 = vmatprep.subr.mxu0 0.0
    %7092 = vmatpush2.msra.mxu0 0.0
    %7093 = vmatprep.subr.mxu0 0.0
    %7094 = vmatpush2.msra.mxu0 0.0
    %7095 = vmatprep.subr.mxu0 0.0
    %7096 = vmatpush2.msra.mxu0 0.0
    %7097 = vmatprep.subr.mxu0 0.0
    %7098 = vmatpush2.msra.mxu0 0.0
    %7099 = vmatprep.subr.mxu0 0.0
    %7100 = vmatpush2.msra.mxu0 0.0
    %7101 = vmatprep.subr.mxu0 0.0
    %7102 = vmatpush2.msra.mxu0 0.0
    %7103 = vmatprep.subr.mxu0 0.0
    %7104 = vmatpush2.msra.mxu0 0.0
    %7105 = vmatprep.subr.mxu0 0.0
    %7106 = vmatpush2.msra.mxu0 0.0
    %7107 = vmatprep.subr.mxu0 0.0
    %7108 = vmatpush2.msra.mxu0 0.0
    %7109 = vmatprep.subr.mxu0 0.0
    %7110 = vmatpush2.msra.mxu0 0.0
    %7111 = vmatprep.subr.mxu0 0.0
    %7112 = vmatpush2.msra.mxu0 0.0
    %7113 = vmatprep.subr.mxu0 0.0
    %7114 = vmatpush2.msra.mxu0 0.0
    %7115 = vmatprep.subr.mxu0 0.0
    %7116 = vmatpush2.msra.mxu0 0.0
    %7117 = vmatprep.subr.mxu0 0.0
    %7118 = vmatpush2.msra.mxu0 0.0
    %7119 = vmatprep.mubr.f32.mxu0 0.0
    %7120 = vmatmul.mubr.f32.gmra.mxu0 %v6627
    %v7121 = vpop.f32.mrf.mxu0
    %v7122 = vadd.f32 %v6597, %v7121
    %v7123 = vpop.f32.mrf.mxu0
    %v7124 = vadd.f32 %v6601, %v7123
    %7125 = vdwg.mxu0
    %7126 = vmatprep.subr.mxu0 0.0
    %7127 = vmatpush1.msra.mxu0 0.0
    %7128 = vmatprep.subr.mxu0 0.0
    %7129 = vmatpush1.msra.mxu0 0.0
    %7130 = vmatprep.subr.mxu0 0.0
    %7131 = vmatpush1.msra.mxu0 0.0
    %7132 = vmatprep.subr.mxu0 0.0
    %7133 = vmatpush1.msra.mxu0 0.0
    %7134 = vmatprep.subr.mxu0 0.0
    %7135 = vmatpush1.msra.mxu0 0.0
    %7136 = vmatprep.subr.mxu0 0.0
    %7137 = vmatpush1.msra.mxu0 0.0
    %7138 = vmatprep.subr.mxu0 0.0
    %7139 = vmatpush1.msra.mxu0 0.0
    %7140 = vmatprep.subr.mxu0 0.0
    %7141 = vmatpush1.msra.mxu0 0.0
    %7142 = vmatprep.subr.mxu0 %v6545
    %7143 = vmatpush1.msra.mxu0 %v6544
    %7144 = vmatprep.subr.mxu0 %v6529
    %7145 = vmatpush1.msra.mxu0 %v6528
    %7146 = vmatprep.subr.mxu0 %v6513
    %7147 = vmatpush1.msra.mxu0 %v6512
    %7148 = vmatprep.subr.mxu0 %v6497
    %7149 = vmatpush1.msra.mxu0 %v6496
    %7150 = vmatprep.subr.mxu0 %v6481
    %7151 = vmatpush1.msra.mxu0 %v6480
    %7152 = vmatprep.subr.mxu0 %v6465
    %7153 = vmatpush1.msra.mxu0 %v6464
    %7154 = vmatprep.subr.mxu0 %v6449
    %7155 = vmatpush1.msra.mxu0 %v6448
    %7156 = vmatprep.subr.mxu0 %v6433
    %7157 = vmatpush1.msra.mxu0 %v6432
    %7158 = vmatprep.subr.mxu0 0.0
    %7159 = vmatpush2.msra.mxu0 0.0
    %7160 = vmatprep.subr.mxu0 0.0
    %7161 = vmatpush2.msra.mxu0 0.0
    %7162 = vmatprep.subr.mxu0 0.0
    %7163 = vmatpush2.msra.mxu0 0.0
    %7164 = vmatprep.subr.mxu0 0.0
    %7165 = vmatpush2.msra.mxu0 0.0
    %7166 = vmatprep.subr.mxu0 0.0
    %7167 = vmatpush2.msra.mxu0 0.0
    %7168 = vmatprep.subr.mxu0 0.0
    %7169 = vmatpush2.msra.mxu0 0.0
    %7170 = vmatprep.subr.mxu0 0.0
    %7171 = vmatpush2.msra.mxu0 0.0
    %7172 = vmatprep.subr.mxu0 0.0
    %7173 = vmatpush2.msra.mxu0 0.0
    %7174 = vmatprep.subr.mxu0 0.0
    %7175 = vmatpush2.msra.mxu0 0.0
    %7176 = vmatprep.subr.mxu0 0.0
    %7177 = vmatpush2.msra.mxu0 0.0
    %7178 = vmatprep.subr.mxu0 0.0
    %7179 = vmatpush2.msra.mxu0 0.0
    %7180 = vmatprep.subr.mxu0 0.0
    %7181 = vmatpush2.msra.mxu0 0.0
    %7182 = vmatprep.subr.mxu0 0.0
    %7183 = vmatpush2.msra.mxu0 0.0
    %7184 = vmatprep.subr.mxu0 0.0
    %7185 = vmatpush2.msra.mxu0 0.0
    %7186 = vmatprep.subr.mxu0 0.0
    %7187 = vmatpush2.msra.mxu0 0.0
    %7188 = vmatprep.subr.mxu0 0.0
    %7189 = vmatpush2.msra.mxu0 0.0
    %7190 = vmatprep.mubr.f32.mxu0 0.0
    %7191 = vmatmul.mubr.f32.gmra.mxu0 %v6627
    %v7192 = vpop.f32.mrf.mxu0
    %v7193 = vadd.f32 %v6605, %v7192
    %v7194 = vpop.f32.mrf.mxu0
    %v7195 = vadd.f32 %v6609, %v7194
    %7196 = vdwg.mxu0
    %v7197 = vmax.f32 %v6696, 0.0
    %v7198 = vmax.f32 %v6698, 0.0
    %v7199 = vmax.f32 %v6767, 0.0
    %v7200 = vmax.f32 %v6769, 0.0
    %v7201 = vmax.f32 %v6838, 0.0
    %v7202 = vmax.f32 %v6840, 0.0
    %v7203 = vmax.f32 %v6909, 0.0
    %v7204 = vmax.f32 %v6911, 0.0
    %v7205 = vmax.f32 %v6980, 0.0
    %v7206 = vmax.f32 %v6982, 0.0
    %v7207 = vmax.f32 %v7051, 0.0
    %v7208 = vmax.f32 %v7053, 0.0
    %v7209 = vmax.f32 %v7122, 0.0
    %v7210 = vmax.f32 %v7124, 0.0
    %v7211 = vmax.f32 %v7193, 0.0
    %v7212 = vmax.f32 %v7195, 0.0
    %s7213 = scalar_lea.vmem %s6, 2048
    %v7214 = vld [vmem:[%s7213] sm:$0xff]
    %v7215 = vld [vmem:[%s7213 + $0x8] sm:$0xff]
    %v7216 = vld [vmem:[%s7213 + $0x10] sm:$0xff]
    %v7217 = vld [vmem:[%s7213 + $0x18] sm:$0xff]
    %v7218 = vld [vmem:[%s7213 + $0x20] sm:$0xff]
    %v7219 = vld [vmem:[%s7213 + $0x28] sm:$0xff]
    %v7220 = vld [vmem:[%s7213 + $0x30] sm:$0xff]
    %v7221 = vld [vmem:[%s7213 + $0x38] sm:$0xff]
    %v7222 = vld [vmem:[%s7213 + $0x40] sm:$0xff]
    %v7223 = vld [vmem:[%s7213 + $0x48] sm:$0xff]
    %v7224 = vld [vmem:[%s7213 + $0x50] sm:$0xff]
    %v7225 = vld [vmem:[%s7213 + $0x58] sm:$0xff]
    %v7226 = vld [vmem:[%s7213 + $0x60] sm:$0xff]
    %v7227 = vld [vmem:[%s7213 + $0x68] sm:$0xff]
    %v7228 = vld [vmem:[%s7213 + $0x70] sm:$0xff]
    %v7229 = vld [vmem:[%s7213 + $0x78] sm:$0xff]
    %v7230 = vld [vmem:[%s7213 + $0x80] sm:$0xff]
    %v7231 = vld [vmem:[%s7213 + $0x88] sm:$0xff]
    %v7232 = vld [vmem:[%s7213 + $0x90] sm:$0xff]
    %v7233 = vld [vmem:[%s7213 + $0x98] sm:$0xff]
    %v7234 = vld [vmem:[%s7213 + $0xa0] sm:$0xff]
    %v7235 = vld [vmem:[%s7213 + $0xa8] sm:$0xff]
    %v7236 = vld [vmem:[%s7213 + $0xb0] sm:$0xff]
    %v7237 = vld [vmem:[%s7213 + $0xb8] sm:$0xff]
    %v7238 = vld [vmem:[%s7213 + $0xc0] sm:$0xff]
    %v7239 = vld [vmem:[%s7213 + $0xc8] sm:$0xff]
    %v7240 = vld [vmem:[%s7213 + $0xd0] sm:$0xff]
    %v7241 = vld [vmem:[%s7213 + $0xd8] sm:$0xff]
    %v7242 = vld [vmem:[%s7213 + $0xe0] sm:$0xff]
    %v7243 = vld [vmem:[%s7213 + $0xe8] sm:$0xff]
    %v7244 = vld [vmem:[%s7213 + $0xf0] sm:$0xff]
    %v7245 = vld [vmem:[%s7213 + $0xf8] sm:$0xff]
    %v7246 = vld [vmem:[%s7213 + $0x100] sm:$0xff]
    %v7247 = vld [vmem:[%s7213 + $0x108] sm:$0xff]
    %v7248 = vld [vmem:[%s7213 + $0x110] sm:$0xff]
    %v7249 = vld [vmem:[%s7213 + $0x118] sm:$0xff]
    %v7250 = vld [vmem:[%s7213 + $0x120] sm:$0xff]
    %v7251 = vld [vmem:[%s7213 + $0x128] sm:$0xff]
    %v7252 = vld [vmem:[%s7213 + $0x130] sm:$0xff]
    %v7253 = vld [vmem:[%s7213 + $0x138] sm:$0xff]
    %v7254 = vld [vmem:[%s7213 + $0x140] sm:$0xff]
    %v7255 = vld [vmem:[%s7213 + $0x148] sm:$0xff]
    %v7256 = vld [vmem:[%s7213 + $0x150] sm:$0xff]
    %v7257 = vld [vmem:[%s7213 + $0x158] sm:$0xff]
    %v7258 = vld [vmem:[%s7213 + $0x160] sm:$0xff]
    %v7259 = vld [vmem:[%s7213 + $0x168] sm:$0xff]
    %v7260 = vld [vmem:[%s7213 + $0x170] sm:$0xff]
    %v7261 = vld [vmem:[%s7213 + $0x178] sm:$0xff]
    %v7262 = vld [vmem:[%s7213 + $0x180] sm:$0xff]
    %v7263 = vld [vmem:[%s7213 + $0x188] sm:$0xff]
    %v7264 = vld [vmem:[%s7213 + $0x190] sm:$0xff]
    %v7265 = vld [vmem:[%s7213 + $0x198] sm:$0xff]
    %v7266 = vld [vmem:[%s7213 + $0x1a0] sm:$0xff]
    %v7267 = vld [vmem:[%s7213 + $0x1a8] sm:$0xff]
    %v7268 = vld [vmem:[%s7213 + $0x1b0] sm:$0xff]
    %v7269 = vld [vmem:[%s7213 + $0x1b8] sm:$0xff]
    %v7270 = vld [vmem:[%s7213 + $0x1c0] sm:$0xff]
    %v7271 = vld [vmem:[%s7213 + $0x1c8] sm:$0xff]
    %v7272 = vld [vmem:[%s7213 + $0x1d0] sm:$0xff]
    %v7273 = vld [vmem:[%s7213 + $0x1d8] sm:$0xff]
    %v7274 = vld [vmem:[%s7213 + $0x1e0] sm:$0xff]
    %v7275 = vld [vmem:[%s7213 + $0x1e8] sm:$0xff]
    %v7276 = vld [vmem:[%s7213 + $0x1f0] sm:$0xff]
    %v7277 = vld [vmem:[%s7213 + $0x1f8] sm:$0xff]
    %v7278 = vld [vmem:[%s7213 + $0x200] sm:$0xff]
    %v7279 = vld [vmem:[%s7213 + $0x208] sm:$0xff]
    %v7280 = vld [vmem:[%s7213 + $0x210] sm:$0xff]
    %v7281 = vld [vmem:[%s7213 + $0x218] sm:$0xff]
    %v7282 = vld [vmem:[%s7213 + $0x220] sm:$0xff]
    %v7283 = vld [vmem:[%s7213 + $0x228] sm:$0xff]
    %v7284 = vld [vmem:[%s7213 + $0x230] sm:$0xff]
    %v7285 = vld [vmem:[%s7213 + $0x238] sm:$0xff]
    %v7286 = vld [vmem:[%s7213 + $0x240] sm:$0xff]
    %v7287 = vld [vmem:[%s7213 + $0x248] sm:$0xff]
    %v7288 = vld [vmem:[%s7213 + $0x250] sm:$0xff]
    %v7289 = vld [vmem:[%s7213 + $0x258] sm:$0xff]
    %v7290 = vld [vmem:[%s7213 + $0x260] sm:$0xff]
    %v7291 = vld [vmem:[%s7213 + $0x268] sm:$0xff]
    %v7292 = vld [vmem:[%s7213 + $0x270] sm:$0xff]
    %v7293 = vld [vmem:[%s7213 + $0x278] sm:$0xff]
    %v7294 = vld [vmem:[%s7213 + $0x280] sm:$0xff]
    %v7295 = vld [vmem:[%s7213 + $0x288] sm:$0xff]
    %v7296 = vld [vmem:[%s7213 + $0x290] sm:$0xff]
    %v7297 = vld [vmem:[%s7213 + $0x298] sm:$0xff]
    %v7298 = vld [vmem:[%s7213 + $0x2a0] sm:$0xff]
    %v7299 = vld [vmem:[%s7213 + $0x2a8] sm:$0xff]
    %v7300 = vld [vmem:[%s7213 + $0x2b0] sm:$0xff]
    %v7301 = vld [vmem:[%s7213 + $0x2b8] sm:$0xff]
    %v7302 = vld [vmem:[%s7213 + $0x2c0] sm:$0xff]
    %v7303 = vld [vmem:[%s7213 + $0x2c8] sm:$0xff]
    %v7304 = vld [vmem:[%s7213 + $0x2d0] sm:$0xff]
    %v7305 = vld [vmem:[%s7213 + $0x2d8] sm:$0xff]
    %v7306 = vld [vmem:[%s7213 + $0x2e0] sm:$0xff]
    %v7307 = vld [vmem:[%s7213 + $0x2e8] sm:$0xff]
    %v7308 = vld [vmem:[%s7213 + $0x2f0] sm:$0xff]
    %v7309 = vld [vmem:[%s7213 + $0x2f8] sm:$0xff]
    %v7310 = vld [vmem:[%s7213 + $0x300] sm:$0xff]
    %v7311 = vld [vmem:[%s7213 + $0x308] sm:$0xff]
    %v7312 = vld [vmem:[%s7213 + $0x310] sm:$0xff]
    %v7313 = vld [vmem:[%s7213 + $0x318] sm:$0xff]
    %v7314 = vld [vmem:[%s7213 + $0x320] sm:$0xff]
    %v7315 = vld [vmem:[%s7213 + $0x328] sm:$0xff]
    %v7316 = vld [vmem:[%s7213 + $0x330] sm:$0xff]
    %v7317 = vld [vmem:[%s7213 + $0x338] sm:$0xff]
    %v7318 = vld [vmem:[%s7213 + $0x340] sm:$0xff]
    %v7319 = vld [vmem:[%s7213 + $0x348] sm:$0xff]
    %v7320 = vld [vmem:[%s7213 + $0x350] sm:$0xff]
    %v7321 = vld [vmem:[%s7213 + $0x358] sm:$0xff]
    %v7322 = vld [vmem:[%s7213 + $0x360] sm:$0xff]
    %v7323 = vld [vmem:[%s7213 + $0x368] sm:$0xff]
    %v7324 = vld [vmem:[%s7213 + $0x370] sm:$0xff]
    %v7325 = vld [vmem:[%s7213 + $0x378] sm:$0xff]
    %v7326 = vld [vmem:[%s7213 + $0x380] sm:$0xff]
    %v7327 = vld [vmem:[%s7213 + $0x388] sm:$0xff]
    %v7328 = vld [vmem:[%s7213 + $0x390] sm:$0xff]
    %v7329 = vld [vmem:[%s7213 + $0x398] sm:$0xff]
    %v7330 = vld [vmem:[%s7213 + $0x3a0] sm:$0xff]
    %v7331 = vld [vmem:[%s7213 + $0x3a8] sm:$0xff]
    %v7332 = vld [vmem:[%s7213 + $0x3b0] sm:$0xff]
    %v7333 = vld [vmem:[%s7213 + $0x3b8] sm:$0xff]
    %v7334 = vld [vmem:[%s7213 + $0x3c0] sm:$0xff]
    %v7335 = vld [vmem:[%s7213 + $0x3c8] sm:$0xff]
    %v7336 = vld [vmem:[%s7213 + $0x3d0] sm:$0xff]
    %v7337 = vld [vmem:[%s7213 + $0x3d8] sm:$0xff]
    %v7338 = vld [vmem:[%s7213 + $0x3e0] sm:$0xff]
    %v7339 = vld [vmem:[%s7213 + $0x3e8] sm:$0xff]
    %v7340 = vld [vmem:[%s7213 + $0x3f0] sm:$0xff]
    %v7341 = vld [vmem:[%s7213 + $0x3f8] sm:$0xff]
    %v7342 = vld [vmem:[%s7213 + $0x400] sm:$0xff]
    %v7343 = vld [vmem:[%s7213 + $0x408] sm:$0xff]
    %v7344 = vld [vmem:[%s7213 + $0x410] sm:$0xff]
    %v7345 = vld [vmem:[%s7213 + $0x418] sm:$0xff]
    %v7346 = vld [vmem:[%s7213 + $0x420] sm:$0xff]
    %v7347 = vld [vmem:[%s7213 + $0x428] sm:$0xff]
    %v7348 = vld [vmem:[%s7213 + $0x430] sm:$0xff]
    %v7349 = vld [vmem:[%s7213 + $0x438] sm:$0xff]
    %v7350 = vld [vmem:[%s7213 + $0x440] sm:$0xff]
    %v7351 = vld [vmem:[%s7213 + $0x448] sm:$0xff]
    %v7352 = vld [vmem:[%s7213 + $0x450] sm:$0xff]
    %v7353 = vld [vmem:[%s7213 + $0x458] sm:$0xff]
    %v7354 = vld [vmem:[%s7213 + $0x460] sm:$0xff]
    %v7355 = vld [vmem:[%s7213 + $0x468] sm:$0xff]
    %v7356 = vld [vmem:[%s7213 + $0x470] sm:$0xff]
    %v7357 = vld [vmem:[%s7213 + $0x478] sm:$0xff]
    %v7358 = vld [vmem:[%s7213 + $0x480] sm:$0xff]
    %v7359 = vld [vmem:[%s7213 + $0x488] sm:$0xff]
    %v7360 = vld [vmem:[%s7213 + $0x490] sm:$0xff]
    %v7361 = vld [vmem:[%s7213 + $0x498] sm:$0xff]
    %v7362 = vld [vmem:[%s7213 + $0x4a0] sm:$0xff]
    %v7363 = vld [vmem:[%s7213 + $0x4a8] sm:$0xff]
    %v7364 = vld [vmem:[%s7213 + $0x4b0] sm:$0xff]
    %v7365 = vld [vmem:[%s7213 + $0x4b8] sm:$0xff]
    %v7366 = vld [vmem:[%s7213 + $0x4c0] sm:$0xff]
    %v7367 = vld [vmem:[%s7213 + $0x4c8] sm:$0xff]
    %v7368 = vld [vmem:[%s7213 + $0x4d0] sm:$0xff]
    %v7369 = vld [vmem:[%s7213 + $0x4d8] sm:$0xff]
    %v7370 = vld [vmem:[%s7213 + $0x4e0] sm:$0xff]
    %v7371 = vld [vmem:[%s7213 + $0x4e8] sm:$0xff]
    %v7372 = vld [vmem:[%s7213 + $0x4f0] sm:$0xff]
    %v7373 = vld [vmem:[%s7213 + $0x4f8] sm:$0xff]
    %v7374 = vld [vmem:[%s7213 + $0x500] sm:$0xff]
    %v7375 = vld [vmem:[%s7213 + $0x508] sm:$0xff]
    %v7376 = vld [vmem:[%s7213 + $0x510] sm:$0xff]
    %v7377 = vld [vmem:[%s7213 + $0x518] sm:$0xff]
    %v7378 = vld [vmem:[%s7213 + $0x520] sm:$0xff]
    %v7379 = vld [vmem:[%s7213 + $0x528] sm:$0xff]
    %v7380 = vld [vmem:[%s7213 + $0x530] sm:$0xff]
    %v7381 = vld [vmem:[%s7213 + $0x538] sm:$0xff]
    %v7382 = vld [vmem:[%s7213 + $0x540] sm:$0xff]
    %v7383 = vld [vmem:[%s7213 + $0x548] sm:$0xff]
    %v7384 = vld [vmem:[%s7213 + $0x550] sm:$0xff]
    %v7385 = vld [vmem:[%s7213 + $0x558] sm:$0xff]
    %v7386 = vld [vmem:[%s7213 + $0x560] sm:$0xff]
    %v7387 = vld [vmem:[%s7213 + $0x568] sm:$0xff]
    %v7388 = vld [vmem:[%s7213 + $0x570] sm:$0xff]
    %v7389 = vld [vmem:[%s7213 + $0x578] sm:$0xff]
    %v7390 = vld [vmem:[%s7213 + $0x580] sm:$0xff]
    %v7391 = vld [vmem:[%s7213 + $0x588] sm:$0xff]
    %v7392 = vld [vmem:[%s7213 + $0x590] sm:$0xff]
    %v7393 = vld [vmem:[%s7213 + $0x598] sm:$0xff]
    %v7394 = vld [vmem:[%s7213 + $0x5a0] sm:$0xff]
    %v7395 = vld [vmem:[%s7213 + $0x5a8] sm:$0xff]
    %v7396 = vld [vmem:[%s7213 + $0x5b0] sm:$0xff]
    %v7397 = vld [vmem:[%s7213 + $0x5b8] sm:$0xff]
    %v7398 = vld [vmem:[%s7213 + $0x5c0] sm:$0xff]
    %v7399 = vld [vmem:[%s7213 + $0x5c8] sm:$0xff]
    %v7400 = vld [vmem:[%s7213 + $0x5d0] sm:$0xff]
    %v7401 = vld [vmem:[%s7213 + $0x5d8] sm:$0xff]
    %v7402 = vld [vmem:[%s7213 + $0x5e0] sm:$0xff]
    %v7403 = vld [vmem:[%s7213 + $0x5e8] sm:$0xff]
    %v7404 = vld [vmem:[%s7213 + $0x5f0] sm:$0xff]
    %v7405 = vld [vmem:[%s7213 + $0x5f8] sm:$0xff]
    %v7406 = vld [vmem:[%s7213 + $0x600] sm:$0xff]
    %v7407 = vld [vmem:[%s7213 + $0x608] sm:$0xff]
    %v7408 = vld [vmem:[%s7213 + $0x610] sm:$0xff]
    %v7409 = vld [vmem:[%s7213 + $0x618] sm:$0xff]
    %v7410 = vld [vmem:[%s7213 + $0x620] sm:$0xff]
    %v7411 = vld [vmem:[%s7213 + $0x628] sm:$0xff]
    %v7412 = vld [vmem:[%s7213 + $0x630] sm:$0xff]
    %v7413 = vld [vmem:[%s7213 + $0x638] sm:$0xff]
    %v7414 = vld [vmem:[%s7213 + $0x640] sm:$0xff]
    %v7415 = vld [vmem:[%s7213 + $0x648] sm:$0xff]
    %v7416 = vld [vmem:[%s7213 + $0x650] sm:$0xff]
    %v7417 = vld [vmem:[%s7213 + $0x658] sm:$0xff]
    %v7418 = vld [vmem:[%s7213 + $0x660] sm:$0xff]
    %v7419 = vld [vmem:[%s7213 + $0x668] sm:$0xff]
    %v7420 = vld [vmem:[%s7213 + $0x670] sm:$0xff]
    %v7421 = vld [vmem:[%s7213 + $0x678] sm:$0xff]
    %v7422 = vld [vmem:[%s7213 + $0x680] sm:$0xff]
    %v7423 = vld [vmem:[%s7213 + $0x688] sm:$0xff]
    %v7424 = vld [vmem:[%s7213 + $0x690] sm:$0xff]
    %v7425 = vld [vmem:[%s7213 + $0x698] sm:$0xff]
    %v7426 = vld [vmem:[%s7213 + $0x6a0] sm:$0xff]
    %v7427 = vld [vmem:[%s7213 + $0x6a8] sm:$0xff]
    %v7428 = vld [vmem:[%s7213 + $0x6b0] sm:$0xff]
    %v7429 = vld [vmem:[%s7213 + $0x6b8] sm:$0xff]
    %v7430 = vld [vmem:[%s7213 + $0x6c0] sm:$0xff]
    %v7431 = vld [vmem:[%s7213 + $0x6c8] sm:$0xff]
    %v7432 = vld [vmem:[%s7213 + $0x6d0] sm:$0xff]
    %v7433 = vld [vmem:[%s7213 + $0x6d8] sm:$0xff]
    %v7434 = vld [vmem:[%s7213 + $0x6e0] sm:$0xff]
    %v7435 = vld [vmem:[%s7213 + $0x6e8] sm:$0xff]
    %v7436 = vld [vmem:[%s7213 + $0x6f0] sm:$0xff]
    %v7437 = vld [vmem:[%s7213 + $0x6f8] sm:$0xff]
    %v7438 = vld [vmem:[%s7213 + $0x700] sm:$0xff]
    %v7439 = vld [vmem:[%s7213 + $0x708] sm:$0xff]
    %v7440 = vld [vmem:[%s7213 + $0x710] sm:$0xff]
    %v7441 = vld [vmem:[%s7213 + $0x718] sm:$0xff]
    %v7442 = vld [vmem:[%s7213 + $0x720] sm:$0xff]
    %v7443 = vld [vmem:[%s7213 + $0x728] sm:$0xff]
    %v7444 = vld [vmem:[%s7213 + $0x730] sm:$0xff]
    %v7445 = vld [vmem:[%s7213 + $0x738] sm:$0xff]
    %v7446 = vld [vmem:[%s7213 + $0x740] sm:$0xff]
    %v7447 = vld [vmem:[%s7213 + $0x748] sm:$0xff]
    %v7448 = vld [vmem:[%s7213 + $0x750] sm:$0xff]
    %v7449 = vld [vmem:[%s7213 + $0x758] sm:$0xff]
    %v7450 = vld [vmem:[%s7213 + $0x760] sm:$0xff]
    %v7451 = vld [vmem:[%s7213 + $0x768] sm:$0xff]
    %v7452 = vld [vmem:[%s7213 + $0x770] sm:$0xff]
    %v7453 = vld [vmem:[%s7213 + $0x778] sm:$0xff]
    %v7454 = vld [vmem:[%s7213 + $0x780] sm:$0xff]
    %v7455 = vld [vmem:[%s7213 + $0x788] sm:$0xff]
    %v7456 = vld [vmem:[%s7213 + $0x790] sm:$0xff]
    %v7457 = vld [vmem:[%s7213 + $0x798] sm:$0xff]
    %v7458 = vld [vmem:[%s7213 + $0x7a0] sm:$0xff]
    %v7459 = vld [vmem:[%s7213 + $0x7a8] sm:$0xff]
    %v7460 = vld [vmem:[%s7213 + $0x7b0] sm:$0xff]
    %v7461 = vld [vmem:[%s7213 + $0x7b8] sm:$0xff]
    %v7462 = vld [vmem:[%s7213 + $0x7c0] sm:$0xff]
    %v7463 = vld [vmem:[%s7213 + $0x7c8] sm:$0xff]
    %v7464 = vld [vmem:[%s7213 + $0x7d0] sm:$0xff]
    %v7465 = vld [vmem:[%s7213 + $0x7d8] sm:$0xff]
    %v7466 = vld [vmem:[%s7213 + $0x7e0] sm:$0xff]
    %v7467 = vld [vmem:[%s7213 + $0x7e8] sm:$0xff]
    %v7468 = vld [vmem:[%s7213 + $0x7f0] sm:$0xff]
    %v7469 = vld [vmem:[%s7213 + $0x7f8] sm:$0xff]
    %v7470 = vrot.slane %v49, 6
    %7472 = vmatprep.subr.mxu0 0.0
    %7473 = vmatpush1.msra.mxu0 %v7229
    %7474 = vmatprep.subr.mxu0 0.0
    %7475 = vmatpush1.msra.mxu0 %v7228
    %7476 = vmatprep.subr.mxu0 0.0
    %7477 = vmatpush1.msra.mxu0 %v7227
    %7478 = vmatprep.subr.mxu0 0.0
    %7479 = vmatpush1.msra.mxu0 %v7226
    %7480 = vmatprep.subr.mxu0 0.0
    %7481 = vmatpush1.msra.mxu0 %v7225
    %7482 = vmatprep.subr.mxu0 0.0
    %7483 = vmatpush1.msra.mxu0 %v7224
    %7484 = vmatprep.subr.mxu0 0.0
    %7485 = vmatpush1.msra.mxu0 %v7223
    %7486 = vmatprep.subr.mxu0 0.0
    %7487 = vmatpush1.msra.mxu0 %v7222
    %7488 = vmatprep.subr.mxu0 0.0
    %7489 = vmatpush1.msra.mxu0 %v7221
    %7490 = vmatprep.subr.mxu0 0.0
    %7491 = vmatpush1.msra.mxu0 %v7220
    %7492 = vmatprep.subr.mxu0 0.0
    %7493 = vmatpush1.msra.mxu0 %v7219
    %7494 = vmatprep.subr.mxu0 0.0
    %7495 = vmatpush1.msra.mxu0 %v7218
    %7496 = vmatprep.subr.mxu0 0.0
    %7497 = vmatpush1.msra.mxu0 %v7217
    %7498 = vmatprep.subr.mxu0 0.0
    %7499 = vmatpush1.msra.mxu0 %v7216
    %7500 = vmatprep.subr.mxu0 0.0
    %7501 = vmatpush1.msra.mxu0 %v7215
    %7502 = vmatprep.subr.mxu0 0.0
    %7503 = vmatpush1.msra.mxu0 %v7214
    %7504 = vmatprep.subr.mxu0 0.0
    %7505 = vmatpush2.msra.mxu0 %v7245
    %7506 = vmatprep.subr.mxu0 0.0
    %7507 = vmatpush2.msra.mxu0 %v7244
    %7508 = vmatprep.subr.mxu0 0.0
    %7509 = vmatpush2.msra.mxu0 %v7243
    %7510 = vmatprep.subr.mxu0 0.0
    %7511 = vmatpush2.msra.mxu0 %v7242
    %7512 = vmatprep.subr.mxu0 0.0
    %7513 = vmatpush2.msra.mxu0 %v7241
    %7514 = vmatprep.subr.mxu0 0.0
    %7515 = vmatpush2.msra.mxu0 %v7240
    %7516 = vmatprep.subr.mxu0 0.0
    %7517 = vmatpush2.msra.mxu0 %v7239
    %7518 = vmatprep.subr.mxu0 0.0
    %7519 = vmatpush2.msra.mxu0 %v7238
    %7520 = vmatprep.subr.mxu0 0.0
    %7521 = vmatpush2.msra.mxu0 %v7237
    %7522 = vmatprep.subr.mxu0 0.0
    %7523 = vmatpush2.msra.mxu0 %v7236
    %7524 = vmatprep.subr.mxu0 0.0
    %7525 = vmatpush2.msra.mxu0 %v7235
    %7526 = vmatprep.subr.mxu0 0.0
    %7527 = vmatpush2.msra.mxu0 %v7234
    %7528 = vmatprep.subr.mxu0 0.0
    %7529 = vmatpush2.msra.mxu0 %v7233
    %7530 = vmatprep.subr.mxu0 0.0
    %7531 = vmatpush2.msra.mxu0 %v7232
    %7532 = vmatprep.subr.mxu0 0.0
    %7533 = vmatpush2.msra.mxu0 %v7231
    %7534 = vmatprep.subr.mxu0 0.0
    %7535 = vmatpush2.msra.mxu0 %v7230
    %7536 = vmatprep.mubr.f32.mxu0 %v7198
    %7537 = vmatmul.mubr.f32.gmra.mxu0 %v7197
    %v7538 = vpop.f32.mrf.mxu0
    %v7539 = vadd.f32 %v7470, %v7538
    %v7540 = vpop.f32.mrf.mxu0
    %7541 = vdwg.mxu0
    %7542 = vmatprep.subr.mxu0 0.0
    %7543 = vmatpush1.msra.mxu0 %v7261
    %7544 = vmatprep.subr.mxu0 0.0
    %7545 = vmatpush1.msra.mxu0 %v7260
    %7546 = vmatprep.subr.mxu0 0.0
    %7547 = vmatpush1.msra.mxu0 %v7259
    %7548 = vmatprep.subr.mxu0 0.0
    %7549 = vmatpush1.msra.mxu0 %v7258
    %7550 = vmatprep.subr.mxu0 0.0
    %7551 = vmatpush1.msra.mxu0 %v7257
    %7552 = vmatprep.subr.mxu0 0.0
    %7553 = vmatpush1.msra.mxu0 %v7256
    %7554 = vmatprep.subr.mxu0 0.0
    %7555 = vmatpush1.msra.mxu0 %v7255
    %7556 = vmatprep.subr.mxu0 0.0
    %7557 = vmatpush1.msra.mxu0 %v7254
    %7558 = vmatprep.subr.mxu0 0.0
    %7559 = vmatpush1.msra.mxu0 %v7253
    %7560 = vmatprep.subr.mxu0 0.0
    %7561 = vmatpush1.msra.mxu0 %v7252
    %7562 = vmatprep.subr.mxu0 0.0
    %7563 = vmatpush1.msra.mxu0 %v7251
    %7564 = vmatprep.subr.mxu0 0.0
    %7565 = vmatpush1.msra.mxu0 %v7250
    %7566 = vmatprep.subr.mxu0 0.0
    %7567 = vmatpush1.msra.mxu0 %v7249
    %7568 = vmatprep.subr.mxu0 0.0
    %7569 = vmatpush1.msra.mxu0 %v7248
    %7570 = vmatprep.subr.mxu0 0.0
    %7571 = vmatpush1.msra.mxu0 %v7247
    %7572 = vmatprep.subr.mxu0 0.0
    %7573 = vmatpush1.msra.mxu0 %v7246
    %7574 = vmatprep.subr.mxu0 0.0
    %7575 = vmatpush2.msra.mxu0 %v7277
    %7576 = vmatprep.subr.mxu0 0.0
    %7577 = vmatpush2.msra.mxu0 %v7276
    %7578 = vmatprep.subr.mxu0 0.0
    %7579 = vmatpush2.msra.mxu0 %v7275
    %7580 = vmatprep.subr.mxu0 0.0
    %7581 = vmatpush2.msra.mxu0 %v7274
    %7582 = vmatprep.subr.mxu0 0.0
    %7583 = vmatpush2.msra.mxu0 %v7273
    %7584 = vmatprep.subr.mxu0 0.0
    %7585 = vmatpush2.msra.mxu0 %v7272
    %7586 = vmatprep.subr.mxu0 0.0
    %7587 = vmatpush2.msra.mxu0 %v7271
    %7588 = vmatprep.subr.mxu0 0.0
    %7589 = vmatpush2.msra.mxu0 %v7270
    %7590 = vmatprep.subr.mxu0 0.0
    %7591 = vmatpush2.msra.mxu0 %v7269
    %7592 = vmatprep.subr.mxu0 0.0
    %7593 = vmatpush2.msra.mxu0 %v7268
    %7594 = vmatprep.subr.mxu0 0.0
    %7595 = vmatpush2.msra.mxu0 %v7267
    %7596 = vmatprep.subr.mxu0 0.0
    %7597 = vmatpush2.msra.mxu0 %v7266
    %7598 = vmatprep.subr.mxu0 0.0
    %7599 = vmatpush2.msra.mxu0 %v7265
    %7600 = vmatprep.subr.mxu0 0.0
    %7601 = vmatpush2.msra.mxu0 %v7264
    %7602 = vmatprep.subr.mxu0 0.0
    %7603 = vmatpush2.msra.mxu0 %v7263
    %7604 = vmatprep.subr.mxu0 0.0
    %7605 = vmatpush2.msra.mxu0 %v7262
    %7606 = vmatprep.mubr.f32.mxu0 %v7200
    %7607 = vmatmul.mubr.f32.gmra.mxu0 %v7199
    %v7608 = vpop.f32.mrf.mxu0
    %v7609 = vadd.f32 %v7539, %v7608
    %v7610 = vpop.f32.mrf.mxu0
    %7611 = vdwg.mxu0
    %7612 = vmatprep.subr.mxu0 0.0
    %7613 = vmatpush1.msra.mxu0 %v7293
    %7614 = vmatprep.subr.mxu0 0.0
    %7615 = vmatpush1.msra.mxu0 %v7292
    %7616 = vmatprep.subr.mxu0 0.0
    %7617 = vmatpush1.msra.mxu0 %v7291
    %7618 = vmatprep.subr.mxu0 0.0
    %7619 = vmatpush1.msra.mxu0 %v7290
    %7620 = vmatprep.subr.mxu0 0.0
    %7621 = vmatpush1.msra.mxu0 %v7289
    %7622 = vmatprep.subr.mxu0 0.0
    %7623 = vmatpush1.msra.mxu0 %v7288
    %7624 = vmatprep.subr.mxu0 0.0
    %7625 = vmatpush1.msra.mxu0 %v7287
    %7626 = vmatprep.subr.mxu0 0.0
    %7627 = vmatpush1.msra.mxu0 %v7286
    %7628 = vmatprep.subr.mxu0 0.0
    %7629 = vmatpush1.msra.mxu0 %v7285
    %7630 = vmatprep.subr.mxu0 0.0
    %7631 = vmatpush1.msra.mxu0 %v7284
    %7632 = vmatprep.subr.mxu0 0.0
    %7633 = vmatpush1.msra.mxu0 %v7283
    %7634 = vmatprep.subr.mxu0 0.0
    %7635 = vmatpush1.msra.mxu0 %v7282
    %7636 = vmatprep.subr.mxu0 0.0
    %7637 = vmatpush1.msra.mxu0 %v7281
    %7638 = vmatprep.subr.mxu0 0.0
    %7639 = vmatpush1.msra.mxu0 %v7280
    %7640 = vmatprep.subr.mxu0 0.0
    %7641 = vmatpush1.msra.mxu0 %v7279
    %7642 = vmatprep.subr.mxu0 0.0
    %7643 = vmatpush1.msra.mxu0 %v7278
    %7644 = vmatprep.subr.mxu0 0.0
    %7645 = vmatpush2.msra.mxu0 %v7309
    %7646 = vmatprep.subr.mxu0 0.0
    %7647 = vmatpush2.msra.mxu0 %v7308
    %7648 = vmatprep.subr.mxu0 0.0
    %7649 = vmatpush2.msra.mxu0 %v7307
    %7650 = vmatprep.subr.mxu0 0.0
    %7651 = vmatpush2.msra.mxu0 %v7306
    %7652 = vmatprep.subr.mxu0 0.0
    %7653 = vmatpush2.msra.mxu0 %v7305
    %7654 = vmatprep.subr.mxu0 0.0
    %7655 = vmatpush2.msra.mxu0 %v7304
    %7656 = vmatprep.subr.mxu0 0.0
    %7657 = vmatpush2.msra.mxu0 %v7303
    %7658 = vmatprep.subr.mxu0 0.0
    %7659 = vmatpush2.msra.mxu0 %v7302
    %7660 = vmatprep.subr.mxu0 0.0
    %7661 = vmatpush2.msra.mxu0 %v7301
    %7662 = vmatprep.subr.mxu0 0.0
    %7663 = vmatpush2.msra.mxu0 %v7300
    %7664 = vmatprep.subr.mxu0 0.0
    %7665 = vmatpush2.msra.mxu0 %v7299
    %7666 = vmatprep.subr.mxu0 0.0
    %7667 = vmatpush2.msra.mxu0 %v7298
    %7668 = vmatprep.subr.mxu0 0.0
    %7669 = vmatpush2.msra.mxu0 %v7297
    %7670 = vmatprep.subr.mxu0 0.0
    %7671 = vmatpush2.msra.mxu0 %v7296
    %7672 = vmatprep.subr.mxu0 0.0
    %7673 = vmatpush2.msra.mxu0 %v7295
    %7674 = vmatprep.subr.mxu0 0.0
    %7675 = vmatpush2.msra.mxu0 %v7294
    %7676 = vmatprep.mubr.f32.mxu0 %v7202
    %7677 = vmatmul.mubr.f32.gmra.mxu0 %v7201
    %v7678 = vpop.f32.mrf.mxu0
    %v7679 = vadd.f32 %v7609, %v7678
    %v7680 = vpop.f32.mrf.mxu0
    %7681 = vdwg.mxu0
    %7682 = vmatprep.subr.mxu0 0.0
    %7683 = vmatpush1.msra.mxu0 %v7325
    %7684 = vmatprep.subr.mxu0 0.0
    %7685 = vmatpush1.msra.mxu0 %v7324
    %7686 = vmatprep.subr.mxu0 0.0
    %7687 = vmatpush1.msra.mxu0 %v7323
    %7688 = vmatprep.subr.mxu0 0.0
    %7689 = vmatpush1.msra.mxu0 %v7322
    %7690 = vmatprep.subr.mxu0 0.0
    %7691 = vmatpush1.msra.mxu0 %v7321
    %7692 = vmatprep.subr.mxu0 0.0
    %7693 = vmatpush1.msra.mxu0 %v7320
    %7694 = vmatprep.subr.mxu0 0.0
    %7695 = vmatpush1.msra.mxu0 %v7319
    %7696 = vmatprep.subr.mxu0 0.0
    %7697 = vmatpush1.msra.mxu0 %v7318
    %7698 = vmatprep.subr.mxu0 0.0
    %7699 = vmatpush1.msra.mxu0 %v7317
    %7700 = vmatprep.subr.mxu0 0.0
    %7701 = vmatpush1.msra.mxu0 %v7316
    %7702 = vmatprep.subr.mxu0 0.0
    %7703 = vmatpush1.msra.mxu0 %v7315
    %7704 = vmatprep.subr.mxu0 0.0
    %7705 = vmatpush1.msra.mxu0 %v7314
    %7706 = vmatprep.subr.mxu0 0.0
    %7707 = vmatpush1.msra.mxu0 %v7313
    %7708 = vmatprep.subr.mxu0 0.0
    %7709 = vmatpush1.msra.mxu0 %v7312
    %7710 = vmatprep.subr.mxu0 0.0
    %7711 = vmatpush1.msra.mxu0 %v7311
    %7712 = vmatprep.subr.mxu0 0.0
    %7713 = vmatpush1.msra.mxu0 %v7310
    %7714 = vmatprep.subr.mxu0 0.0
    %7715 = vmatpush2.msra.mxu0 %v7341
    %7716 = vmatprep.subr.mxu0 0.0
    %7717 = vmatpush2.msra.mxu0 %v7340
    %7718 = vmatprep.subr.mxu0 0.0
    %7719 = vmatpush2.msra.mxu0 %v7339
    %7720 = vmatprep.subr.mxu0 0.0
    %7721 = vmatpush2.msra.mxu0 %v7338
    %7722 = vmatprep.subr.mxu0 0.0
    %7723 = vmatpush2.msra.mxu0 %v7337
    %7724 = vmatprep.subr.mxu0 0.0
    %7725 = vmatpush2.msra.mxu0 %v7336
    %7726 = vmatprep.subr.mxu0 0.0
    %7727 = vmatpush2.msra.mxu0 %v7335
    %7728 = vmatprep.subr.mxu0 0.0
    %7729 = vmatpush2.msra.mxu0 %v7334
    %7730 = vmatprep.subr.mxu0 0.0
    %7731 = vmatpush2.msra.mxu0 %v7333
    %7732 = vmatprep.subr.mxu0 0.0
    %7733 = vmatpush2.msra.mxu0 %v7332
    %7734 = vmatprep.subr.mxu0 0.0
    %7735 = vmatpush2.msra.mxu0 %v7331
    %7736 = vmatprep.subr.mxu0 0.0
    %7737 = vmatpush2.msra.mxu0 %v7330
    %7738 = vmatprep.subr.mxu0 0.0
    %7739 = vmatpush2.msra.mxu0 %v7329
    %7740 = vmatprep.subr.mxu0 0.0
    %7741 = vmatpush2.msra.mxu0 %v7328
    %7742 = vmatprep.subr.mxu0 0.0
    %7743 = vmatpush2.msra.mxu0 %v7327
    %7744 = vmatprep.subr.mxu0 0.0
    %7745 = vmatpush2.msra.mxu0 %v7326
    %7746 = vmatprep.mubr.f32.mxu0 %v7204
    %7747 = vmatmul.mubr.f32.gmra.mxu0 %v7203
    %v7748 = vpop.f32.mrf.mxu0
    %v7749 = vadd.f32 %v7679, %v7748
    %v7750 = vpop.f32.mrf.mxu0
    %7751 = vdwg.mxu0
    %7752 = vmatprep.subr.mxu0 0.0
    %7753 = vmatpush1.msra.mxu0 %v7357
    %7754 = vmatprep.subr.mxu0 0.0
    %7755 = vmatpush1.msra.mxu0 %v7356
    %7756 = vmatprep.subr.mxu0 0.0
    %7757 = vmatpush1.msra.mxu0 %v7355
    %7758 = vmatprep.subr.mxu0 0.0
    %7759 = vmatpush1.msra.mxu0 %v7354
    %7760 = vmatprep.subr.mxu0 0.0
    %7761 = vmatpush1.msra.mxu0 %v7353
    %7762 = vmatprep.subr.mxu0 0.0
    %7763 = vmatpush1.msra.mxu0 %v7352
    %7764 = vmatprep.subr.mxu0 0.0
    %7765 = vmatpush1.msra.mxu0 %v7351
    %7766 = vmatprep.subr.mxu0 0.0
    %7767 = vmatpush1.msra.mxu0 %v7350
    %7768 = vmatprep.subr.mxu0 0.0
    %7769 = vmatpush1.msra.mxu0 %v7349
    %7770 = vmatprep.subr.mxu0 0.0
    %7771 = vmatpush1.msra.mxu0 %v7348
    %7772 = vmatprep.subr.mxu0 0.0
    %7773 = vmatpush1.msra.mxu0 %v7347
    %7774 = vmatprep.subr.mxu0 0.0
    %7775 = vmatpush1.msra.mxu0 %v7346
    %7776 = vmatprep.subr.mxu0 0.0
    %7777 = vmatpush1.msra.mxu0 %v7345
    %7778 = vmatprep.subr.mxu0 0.0
    %7779 = vmatpush1.msra.mxu0 %v7344
    %7780 = vmatprep.subr.mxu0 0.0
    %7781 = vmatpush1.msra.mxu0 %v7343
    %7782 = vmatprep.subr.mxu0 0.0
    %7783 = vmatpush1.msra.mxu0 %v7342
    %7784 = vmatprep.subr.mxu0 0.0
    %7785 = vmatpush2.msra.mxu0 %v7373
    %7786 = vmatprep.subr.mxu0 0.0
    %7787 = vmatpush2.msra.mxu0 %v7372
    %7788 = vmatprep.subr.mxu0 0.0
    %7789 = vmatpush2.msra.mxu0 %v7371
    %7790 = vmatprep.subr.mxu0 0.0
    %7791 = vmatpush2.msra.mxu0 %v7370
    %7792 = vmatprep.subr.mxu0 0.0
    %7793 = vmatpush2.msra.mxu0 %v7369
    %7794 = vmatprep.subr.mxu0 0.0
    %7795 = vmatpush2.msra.mxu0 %v7368
    %7796 = vmatprep.subr.mxu0 0.0
    %7797 = vmatpush2.msra.mxu0 %v7367
    %7798 = vmatprep.subr.mxu0 0.0
    %7799 = vmatpush2.msra.mxu0 %v7366
    %7800 = vmatprep.subr.mxu0 0.0
    %7801 = vmatpush2.msra.mxu0 %v7365
    %7802 = vmatprep.subr.mxu0 0.0
    %7803 = vmatpush2.msra.mxu0 %v7364
    %7804 = vmatprep.subr.mxu0 0.0
    %7805 = vmatpush2.msra.mxu0 %v7363
    %7806 = vmatprep.subr.mxu0 0.0
    %7807 = vmatpush2.msra.mxu0 %v7362
    %7808 = vmatprep.subr.mxu0 0.0
    %7809 = vmatpush2.msra.mxu0 %v7361
    %7810 = vmatprep.subr.mxu0 0.0
    %7811 = vmatpush2.msra.mxu0 %v7360
    %7812 = vmatprep.subr.mxu0 0.0
    %7813 = vmatpush2.msra.mxu0 %v7359
    %7814 = vmatprep.subr.mxu0 0.0
    %7815 = vmatpush2.msra.mxu0 %v7358
    %7816 = vmatprep.mubr.f32.mxu0 %v7206
    %7817 = vmatmul.mubr.f32.gmra.mxu0 %v7205
    %v7818 = vpop.f32.mrf.mxu0
    %v7819 = vadd.f32 %v7749, %v7818
    %v7820 = vpop.f32.mrf.mxu0
    %7821 = vdwg.mxu0
    %7822 = vmatprep.subr.mxu0 0.0
    %7823 = vmatpush1.msra.mxu0 %v7389
    %7824 = vmatprep.subr.mxu0 0.0
    %7825 = vmatpush1.msra.mxu0 %v7388
    %7826 = vmatprep.subr.mxu0 0.0
    %7827 = vmatpush1.msra.mxu0 %v7387
    %7828 = vmatprep.subr.mxu0 0.0
    %7829 = vmatpush1.msra.mxu0 %v7386
    %7830 = vmatprep.subr.mxu0 0.0
    %7831 = vmatpush1.msra.mxu0 %v7385
    %7832 = vmatprep.subr.mxu0 0.0
    %7833 = vmatpush1.msra.mxu0 %v7384
    %7834 = vmatprep.subr.mxu0 0.0
    %7835 = vmatpush1.msra.mxu0 %v7383
    %7836 = vmatprep.subr.mxu0 0.0
    %7837 = vmatpush1.msra.mxu0 %v7382
    %7838 = vmatprep.subr.mxu0 0.0
    %7839 = vmatpush1.msra.mxu0 %v7381
    %7840 = vmatprep.subr.mxu0 0.0
    %7841 = vmatpush1.msra.mxu0 %v7380
    %7842 = vmatprep.subr.mxu0 0.0
    %7843 = vmatpush1.msra.mxu0 %v7379
    %7844 = vmatprep.subr.mxu0 0.0
    %7845 = vmatpush1.msra.mxu0 %v7378
    %7846 = vmatprep.subr.mxu0 0.0
    %7847 = vmatpush1.msra.mxu0 %v7377
    %7848 = vmatprep.subr.mxu0 0.0
    %7849 = vmatpush1.msra.mxu0 %v7376
    %7850 = vmatprep.subr.mxu0 0.0
    %7851 = vmatpush1.msra.mxu0 %v7375
    %7852 = vmatprep.subr.mxu0 0.0
    %7853 = vmatpush1.msra.mxu0 %v7374
    %7854 = vmatprep.subr.mxu0 0.0
    %7855 = vmatpush2.msra.mxu0 %v7405
    %7856 = vmatprep.subr.mxu0 0.0
    %7857 = vmatpush2.msra.mxu0 %v7404
    %7858 = vmatprep.subr.mxu0 0.0
    %7859 = vmatpush2.msra.mxu0 %v7403
    %7860 = vmatprep.subr.mxu0 0.0
    %7861 = vmatpush2.msra.mxu0 %v7402
    %7862 = vmatprep.subr.mxu0 0.0
    %7863 = vmatpush2.msra.mxu0 %v7401
    %7864 = vmatprep.subr.mxu0 0.0
    %7865 = vmatpush2.msra.mxu0 %v7400
    %7866 = vmatprep.subr.mxu0 0.0
    %7867 = vmatpush2.msra.mxu0 %v7399
    %7868 = vmatprep.subr.mxu0 0.0
    %7869 = vmatpush2.msra.mxu0 %v7398
    %7870 = vmatprep.subr.mxu0 0.0
    %7871 = vmatpush2.msra.mxu0 %v7397
    %7872 = vmatprep.subr.mxu0 0.0
    %7873 = vmatpush2.msra.mxu0 %v7396
    %7874 = vmatprep.subr.mxu0 0.0
    %7875 = vmatpush2.msra.mxu0 %v7395
    %7876 = vmatprep.subr.mxu0 0.0
    %7877 = vmatpush2.msra.mxu0 %v7394
    %7878 = vmatprep.subr.mxu0 0.0
    %7879 = vmatpush2.msra.mxu0 %v7393
    %7880 = vmatprep.subr.mxu0 0.0
    %7881 = vmatpush2.msra.mxu0 %v7392
    %7882 = vmatprep.subr.mxu0 0.0
    %7883 = vmatpush2.msra.mxu0 %v7391
    %7884 = vmatprep.subr.mxu0 0.0
    %7885 = vmatpush2.msra.mxu0 %v7390
    %7886 = vmatprep.mubr.f32.mxu0 %v7208
    %7887 = vmatmul.mubr.f32.gmra.mxu0 %v7207
    %v7888 = vpop.f32.mrf.mxu0
    %v7889 = vadd.f32 %v7819, %v7888
    %v7890 = vpop.f32.mrf.mxu0
    %7891 = vdwg.mxu0
    %7892 = vmatprep.subr.mxu0 0.0
    %7893 = vmatpush1.msra.mxu0 %v7421
    %7894 = vmatprep.subr.mxu0 0.0
    %7895 = vmatpush1.msra.mxu0 %v7420
    %7896 = vmatprep.subr.mxu0 0.0
    %7897 = vmatpush1.msra.mxu0 %v7419
    %7898 = vmatprep.subr.mxu0 0.0
    %7899 = vmatpush1.msra.mxu0 %v7418
    %7900 = vmatprep.subr.mxu0 0.0
    %7901 = vmatpush1.msra.mxu0 %v7417
    %7902 = vmatprep.subr.mxu0 0.0
    %7903 = vmatpush1.msra.mxu0 %v7416
    %7904 = vmatprep.subr.mxu0 0.0
    %7905 = vmatpush1.msra.mxu0 %v7415
    %7906 = vmatprep.subr.mxu0 0.0
    %7907 = vmatpush1.msra.mxu0 %v7414
    %7908 = vmatprep.subr.mxu0 0.0
    %7909 = vmatpush1.msra.mxu0 %v7413
    %7910 = vmatprep.subr.mxu0 0.0
    %7911 = vmatpush1.msra.mxu0 %v7412
    %7912 = vmatprep.subr.mxu0 0.0
    %7913 = vmatpush1.msra.mxu0 %v7411
    %7914 = vmatprep.subr.mxu0 0.0
    %7915 = vmatpush1.msra.mxu0 %v7410
    %7916 = vmatprep.subr.mxu0 0.0
    %7917 = vmatpush1.msra.mxu0 %v7409
    %7918 = vmatprep.subr.mxu0 0.0
    %7919 = vmatpush1.msra.mxu0 %v7408
    %7920 = vmatprep.subr.mxu0 0.0
    %7921 = vmatpush1.msra.mxu0 %v7407
    %7922 = vmatprep.subr.mxu0 0.0
    %7923 = vmatpush1.msra.mxu0 %v7406
    %7924 = vmatprep.subr.mxu0 0.0
    %7925 = vmatpush2.msra.mxu0 %v7437
    %7926 = vmatprep.subr.mxu0 0.0
    %7927 = vmatpush2.msra.mxu0 %v7436
    %7928 = vmatprep.subr.mxu0 0.0
    %7929 = vmatpush2.msra.mxu0 %v7435
    %7930 = vmatprep.subr.mxu0 0.0
    %7931 = vmatpush2.msra.mxu0 %v7434
    %7932 = vmatprep.subr.mxu0 0.0
    %7933 = vmatpush2.msra.mxu0 %v7433
    %7934 = vmatprep.subr.mxu0 0.0
    %7935 = vmatpush2.msra.mxu0 %v7432
    %7936 = vmatprep.subr.mxu0 0.0
    %7937 = vmatpush2.msra.mxu0 %v7431
    %7938 = vmatprep.subr.mxu0 0.0
    %7939 = vmatpush2.msra.mxu0 %v7430
    %7940 = vmatprep.subr.mxu0 0.0
    %7941 = vmatpush2.msra.mxu0 %v7429
    %7942 = vmatprep.subr.mxu0 0.0
    %7943 = vmatpush2.msra.mxu0 %v7428
    %7944 = vmatprep.subr.mxu0 0.0
    %7945 = vmatpush2.msra.mxu0 %v7427
    %7946 = vmatprep.subr.mxu0 0.0
    %7947 = vmatpush2.msra.mxu0 %v7426
    %7948 = vmatprep.subr.mxu0 0.0
    %7949 = vmatpush2.msra.mxu0 %v7425
    %7950 = vmatprep.subr.mxu0 0.0
    %7951 = vmatpush2.msra.mxu0 %v7424
    %7952 = vmatprep.subr.mxu0 0.0
    %7953 = vmatpush2.msra.mxu0 %v7423
    %7954 = vmatprep.subr.mxu0 0.0
    %7955 = vmatpush2.msra.mxu0 %v7422
    %7956 = vmatprep.mubr.f32.mxu0 %v7210
    %7957 = vmatmul.mubr.f32.gmra.mxu0 %v7209
    %v7958 = vpop.f32.mrf.mxu0
    %v7959 = vadd.f32 %v7889, %v7958
    %v7960 = vpop.f32.mrf.mxu0
    %7961 = vdwg.mxu0
    %7962 = vmatprep.subr.mxu0 0.0
    %7963 = vmatpush1.msra.mxu0 %v7453
    %7964 = vmatprep.subr.mxu0 0.0
    %7965 = vmatpush1.msra.mxu0 %v7452
    %7966 = vmatprep.subr.mxu0 0.0
    %7967 = vmatpush1.msra.mxu0 %v7451
    %7968 = vmatprep.subr.mxu0 0.0
    %7969 = vmatpush1.msra.mxu0 %v7450
    %7970 = vmatprep.subr.mxu0 0.0
    %7971 = vmatpush1.msra.mxu0 %v7449
    %7972 = vmatprep.subr.mxu0 0.0
    %7973 = vmatpush1.msra.mxu0 %v7448
    %7974 = vmatprep.subr.mxu0 0.0
    %7975 = vmatpush1.msra.mxu0 %v7447
    %7976 = vmatprep.subr.mxu0 0.0
    %7977 = vmatpush1.msra.mxu0 %v7446
    %7978 = vmatprep.subr.mxu0 0.0
    %7979 = vmatpush1.msra.mxu0 %v7445
    %7980 = vmatprep.subr.mxu0 0.0
    %7981 = vmatpush1.msra.mxu0 %v7444
    %7982 = vmatprep.subr.mxu0 0.0
    %7983 = vmatpush1.msra.mxu0 %v7443
    %7984 = vmatprep.subr.mxu0 0.0
    %7985 = vmatpush1.msra.mxu0 %v7442
    %7986 = vmatprep.subr.mxu0 0.0
    %7987 = vmatpush1.msra.mxu0 %v7441
    %7988 = vmatprep.subr.mxu0 0.0
    %7989 = vmatpush1.msra.mxu0 %v7440
    %7990 = vmatprep.subr.mxu0 0.0
    %7991 = vmatpush1.msra.mxu0 %v7439
    %7992 = vmatprep.subr.mxu0 0.0
    %7993 = vmatpush1.msra.mxu0 %v7438
    %7994 = vmatprep.subr.mxu0 0.0
    %7995 = vmatpush2.msra.mxu0 %v7469
    %7996 = vmatprep.subr.mxu0 0.0
    %7997 = vmatpush2.msra.mxu0 %v7468
    %7998 = vmatprep.subr.mxu0 0.0
    %7999 = vmatpush2.msra.mxu0 %v7467
    %8000 = vmatprep.subr.mxu0 0.0
    %8001 = vmatpush2.msra.mxu0 %v7466
    %8002 = vmatprep.subr.mxu0 0.0
    %8003 = vmatpush2.msra.mxu0 %v7465
    %8004 = vmatprep.subr.mxu0 0.0
    %8005 = vmatpush2.msra.mxu0 %v7464
    %8006 = vmatprep.subr.mxu0 0.0
    %8007 = vmatpush2.msra.mxu0 %v7463
    %8008 = vmatprep.subr.mxu0 0.0
    %8009 = vmatpush2.msra.mxu0 %v7462
    %8010 = vmatprep.subr.mxu0 0.0
    %8011 = vmatpush2.msra.mxu0 %v7461
    %8012 = vmatprep.subr.mxu0 0.0
    %8013 = vmatpush2.msra.mxu0 %v7460
    %8014 = vmatprep.subr.mxu0 0.0
    %8015 = vmatpush2.msra.mxu0 %v7459
    %8016 = vmatprep.subr.mxu0 0.0
    %8017 = vmatpush2.msra.mxu0 %v7458
    %8018 = vmatprep.subr.mxu0 0.0
    %8019 = vmatpush2.msra.mxu0 %v7457
    %8020 = vmatprep.subr.mxu0 0.0
    %8021 = vmatpush2.msra.mxu0 %v7456
    %8022 = vmatprep.subr.mxu0 0.0
    %8023 = vmatpush2.msra.mxu0 %v7455
    %8024 = vmatprep.subr.mxu0 0.0
    %8025 = vmatpush2.msra.mxu0 %v7454
    %8026 = vmatprep.mubr.f32.mxu0 %v7212
    %8027 = vmatmul.mubr.f32.gmra.mxu0 %v7211
    %v8028 = vpop.f32.mrf.mxu0
    %v8029 = vadd.f32 %v7959, %v8028
    %v8030 = vpop.f32.mrf.mxu0
    %8031 = vdwg.mxu0
    %v8032 = vadd.f32 %v6416, %v8029
    %v8033 = vsel %vm4352, %v8032, 0.0
    %8034 = vadd.xlane.f32.xlu0 %v8033
    %v8035 = vpop.xlane.xlu0 %8034
    %v8036 = vmul.f32 %v8035, %v2242
    %v8037 = vsub.f32 %v8032, %v8036
    %v8038 = vmul.f32 %v8037, %v8037
    %v8039 = vsel %vm4352, %v8038, 0.0
    %8040 = vadd.xlane.f32.xlu0 %v8039
    %v8041 = vpop.xlane.xlu0 %8040
    %v8042 = vmul.f32 %v8041, %v2242
    %v8043 = vadd.f32 %v8042, 1e-05
    %v8044 = vrsqrt.pop %v8043
    %v8045 = vmul.f32 %v8037, %v8044
    %v8046 = vrot.slane %v49, 7
    %v8048 = vmul.f32 %v8045, %v8046
    %v8049 = vadd.f32 %v8048, %v50
    %8050 = vst.msk [vmem:[#allocation2] sm:$0x1] %vm4352, %v8049
    %8051 = vst.msk [vmem:[#allocation4] sm:$0x1] %vm4721, %v6393
    // Predicated region
    $region46: #{tpu_custom_call.1} parent=1 // pred_check
      _
    $region47: #{tpu_custom_call.1} parent=1 // pred_check_branch
      %8053 = sbr.rel (0) target = $region49
    $region48: #{tpu_custom_call.1} parent=1 // pred_region
      %s8055 = ssub.s32 16, 16
      %8056 = vsyncadd [#allocation3], %s8055
      %s8058 = sshll.u32 [#allocation2], 4
      %s8059 = int_to_ptr.vmem [resolvable:$true] %s8058
      %8061 = dma.vmem_to_hbm [thread:$0]  %s8059, 16, %s11, [#allocation3]
    $region49: #{tpu_custom_call.1} parent=1 // pred_fallthru
      _
    // Predicated region
    $region50: #{tpu_custom_call.1} parent=1 // pred_check
      _
    $region51: #{tpu_custom_call.1} parent=1 // pred_check_branch
      %8063 = sbr.rel (0) target = $region53
    $region52: #{tpu_custom_call.1} parent=1 // pred_region
      %s8065 = ssub.s32 16, 16
      %8066 = vsyncadd [#allocation5], %s8065
      %s8068 = sshll.u32 [#allocation4], 4
      %s8069 = int_to_ptr.vmem [resolvable:$true] %s8068
      %8071 = dma.vmem_to_hbm [thread:$0]  %s8069, 16, %s12, [#allocation5]
    $region53: #{tpu_custom_call.1} parent=1 // pred_fallthru
      _
    // Predicated region
    $region54: #{tpu_custom_call.1} parent=1 // pred_check
      _
    $region55: #{tpu_custom_call.1} parent=1 // pred_check_branch
      %8073 = sbr.rel (0) target = $region57
    $region56: #{tpu_custom_call.1} parent=1 // pred_region
      %8074 = dma.done [#allocation3], 16
    $region57: #{tpu_custom_call.1} parent=1 // pred_fallthru
      _
    // Predicated region
    $region58: #{tpu_custom_call.1} parent=1 // pred_check
      _
    $region59: #{tpu_custom_call.1} parent=1 // pred_check_branch
      %8076 = sbr.rel (0) target = $region61
    $region60: #{tpu_custom_call.1} parent=1 // pred_region
      %8077 = dma.done [#allocation5], 16
    $region61: #{tpu_custom_call.1} parent=1 // pred_fallthru
      _
    %8078 = vsyncpa [#allocation3], 1
    %8079 = vsyncpa [#allocation5], 1

</llo_original>
